<compile_context>
chip_gen: v7x
topology: tpu7x:2x2x1
jax: 0.10.0
libtpu: 0.0.40
codegen_flags: <defaults>
</compile_context>

<pallas_src>
import functools

import jax
import jax.numpy as jnp
from jax.experimental import pallas as pl
from jax.experimental.pallas import tpu as pltpu

_LANE = 128
_NEG = -1e30  # bias for padded class lanes -> exp() == 0 inside the softmax


def _round_up(x, m):
    return (x + m - 1) // m * m


# ----------------------------------------------------------------------------
# Static plan: shapes / paddings / flat-row bookkeeping for the fused kernel
# ----------------------------------------------------------------------------
def _build_plan(config, in_shape, classes):
    N, C, H, W = in_shape
    plan = {
        "N": N, "C": C, "H": H, "W": W,
        "classes": classes, "cls_pad": _round_up(classes, _LANE),
        "layers": [],
    }
    cur_h, cur_w, cur_c = H, W, C
    for li, (cin, cout, k, stride) in enumerate(config):
        assert cin == cur_c, "config in_channels mismatch"
        is_last = li == len(config) - 1
        if not is_last:
            # TODO(synk): only the final conv may be strided in this fused
            # kernel; earlier strided convs would need strided VMEM reads.
            assert stride == 1, "only the last conv layer may have stride > 1"
        m = (cur_h - k + 1) * W                      # dense rows, pitch = W
        out_h = (cur_h - k) // stride + 1
        out_w = (cur_w - k) // stride + 1
        plan["layers"].append(dict(
            k=k, stride=stride, cin=cur_c, cout=cout, m=m,
            cin_pad=(C if li == 0 else plan["layers"][-1]["ocpad"]),
            ocpad=(cout if is_last else _round_up(cout, _LANE)),
            out_h=out_h, out_w=out_w, is_last=is_last,
            rows=_round_up(m, 8),
        ))
        cur_h, cur_w, cur_c = out_h, out_w, cout
    # Halo rows each stored activation must provide for its consumer.
    plan["in_rows"] = _round_up(H * W + config[0][2] - 1, 8)
    for li in range(len(config) - 1):
        k_next = config[li + 1][2]
        plan["layers"][li]["rows"] = _round_up(
            plan["layers"][li]["m"] + k_next - 1, 8)
    # FC gather sites: flat row (in the last conv's dense output) per (oh, ow).
    last = plan["layers"][-1]
    plan["fc_pos"] = [last["stride"] * (oh * W + ow)
                      for oh in range(last["out_h"])
                      for ow in range(last["out_w"])]
    return plan


# ----------------------------------------------------------------------------
# The single fused kernel: convs -> ReLU -> flatten -> linear -> softmax
# ----------------------------------------------------------------------------
def _fused_kernel(*refs, plan):
    nl = len(plan["layers"])
    x_ref = refs[0]
    w_refs = [refs[1 + 2 * i] for i in range(nl)]
    b_refs = [refs[2 + 2 * i] for i in range(nl)]
    wf_ref = refs[1 + 2 * nl]
    bf_ref = refs[2 + 2 * nl]
    o_ref = refs[3 + 2 * nl]
    act_refs = list(refs[4 + 2 * nl:])

    W = plan["W"]
    src = x_ref                                   # (in_rows, C) bf16
    for li, L in enumerate(plan["layers"]):
        k, m = L["k"], L["m"]
        acc = jnp.zeros((m, L["ocpad"]), jnp.float32)
        for i in range(k):                        # in-VMEM im2col: k*k shifted
            for j in range(k):                    # contiguous-slice matmuls
                lhs = src[pl.ds(i * W + j, m), :]
                acc = acc + jnp.dot(lhs, w_refs[li][i * k + j],
                                    preferred_element_type=jnp.float32)
        acc = acc + b_refs[li][...]
        if L["is_last"]:
            acc = jnp.maximum(acc, 0.0)           # the module's single ReLU
        dst = act_refs[li]
        dst[pl.ds(0, m), :] = acc.astype(dst.dtype)
        if L["rows"] > m:                         # zero halo rows for consumer
            dst[pl.ds(m, L["rows"] - m), :] = jnp.zeros(
                (L["rows"] - m, L["ocpad"]), dst.dtype)
        src = dst

    # Flatten (+ last-conv stride + NCHW order folded into wf layout) + Linear.
    logits = bf_ref[...]                          # (1, cls_pad) f32
    act_last = act_refs[-1]
    for idx, pos in enumerate(plan["fc_pos"]):
        logits = logits + jnp.dot(act_last[pl.ds(pos, 1), :], wf_ref[idx],
                                  preferred_element_type=jnp.float32)

    # Softmax over the (padded) class lanes; padded lanes carry -1e30 bias.
    mx = jnp.max(logits, axis=1, keepdims=True)
    e = jnp.exp(logits - mx)
    denom = jnp.sum(e, axis=1, keepdims=True)
    o_ref[...] = (e * pl.reciprocal(denom, approx=True)).astype(o_ref.dtype)


def _make_forward_fn(plan):
    kernel = functools.partial(_fused_kernel, plan=plan)
    in_specs = [pl.BlockSpec((None, plan["in_rows"], plan["C"]),
                             lambda n: (n, 0, 0))]
    for L in plan["layers"]:
        in_specs.append(pl.BlockSpec((L["k"] * L["k"], L["cin_pad"], L["ocpad"]),
                                     lambda n: (0, 0, 0)))
        in_specs.append(pl.BlockSpec((1, L["ocpad"]), lambda n: (0, 0)))
    last = plan["layers"][-1]
    in_specs.append(pl.BlockSpec(
        (len(plan["fc_pos"]), last["cout"], plan["cls_pad"]),
        lambda n: (0, 0, 0)))
    in_specs.append(pl.BlockSpec((1, plan["cls_pad"]), lambda n: (0, 0)))
    out_spec = pl.BlockSpec((None, 1, plan["cls_pad"]), lambda n: (n, 0, 0))
    scratch_shapes = [pltpu.VMEM((L["rows"], L["ocpad"]), jnp.bfloat16)
                      for L in plan["layers"]]
    grid_spec = pltpu.PrefetchScalarGridSpec(
        num_scalar_prefetch=0,
        grid=(plan["N"],),
        in_specs=in_specs,
        out_specs=out_spec,
        scratch_shapes=scratch_shapes,
    )
    return pl.pallas_call(
        kernel,
        out_shape=jax.ShapeDtypeStruct((plan["N"], 1, plan["cls_pad"]),
                                       jnp.float32),
        grid_spec=grid_spec,
        compiler_params=pltpu.CompilerParams(
            dimension_semantics=("parallel",)),
    )


# ----------------------------------------------------------------------------
# One-time data/weight layout prep (outside the per-call hot path)
# ----------------------------------------------------------------------------
def prepare_inputs(x, plan):
    # NCHW f32 -> flattened channel-last rows (N, H*W + halo, C), bf16.
    N, C, H, W = x.shape
    xf = jnp.transpose(x, (0, 2, 3, 1)).reshape(N, H * W, C)
    xf = jnp.pad(xf, ((0, 0), (0, plan["in_rows"] - H * W), (0, 0)))
    return xf.astype(jnp.bfloat16)


def prepare_params(params, plan):
    prepped = []
    for L, (w, b) in zip(plan["layers"], params["convs"]):
        k = L["k"]
        wp = jnp.transpose(w, (2, 3, 1, 0)).reshape(k * k, L["cin"], L["cout"])
        wp = jnp.pad(wp, ((0, 0),
                          (0, L["cin_pad"] - L["cin"]),
                          (0, L["ocpad"] - L["cout"])))
        prepped.append(wp.astype(jnp.bfloat16))
        bp = jnp.pad(b.astype(jnp.float32),
                     (0, L["ocpad"] - L["cout"])).reshape(1, L["ocpad"])
        prepped.append(bp)
    last = plan["layers"][-1]
    oh, ow, oc = last["out_h"], last["out_w"], last["cout"]
    cls, clsp = plan["classes"], plan["cls_pad"]
    # torch Flatten is NCHW order: feature = c*(oh*ow) + h*ow + w
    wf = params["fc_w"].reshape(cls, oc, oh, ow)
    wf = jnp.transpose(wf, (2, 3, 1, 0)).reshape(oh * ow, oc, cls)
    wf = jnp.pad(wf, ((0, 0), (0, 0), (0, clsp - cls))).astype(jnp.bfloat16)
    prepped.append(wf)
    bf = jnp.full((1, clsp), _NEG, jnp.float32)
    bf = bf.at[0, :cls].set(params["fc_b"].astype(jnp.float32))
    prepped.append(bf)
    return prepped


def forward(fwd_fn, plan, prepped, x):
    xp = prepare_inputs(x, plan)
    out = fwd_fn(xp, *prepped)                    # (N, 1, cls_pad)
    return out.reshape(out.shape[0], -1)[:, :plan["classes"]]


# ----------------------------------------------------------------------------
# Parameter init + pure-JAX f32 reference (mirrors the PyTorch module)
# ----------------------------------------------------------------------------
def init_params(config, in_shape, classes=10, seed=0):
    key = jax.random.PRNGKey(seed)
    params = {"convs": []}
    N, C, H, W = in_shape
    for (cin, cout, k, stride) in config:
        key, kw_, kb_ = jax.random.split(key, 3)
        w = jax.random.normal(kw_, (cout, cin, k, k), jnp.float32) * 0.1
        b = jax.random.normal(kb_, (cout,), jnp.float32) * 0.1
        params["convs"].append((w, b))
        H = (H - k) // stride + 1
        W = (W - k) // stride + 1
        C = cout
    size = C * H * W
    key, kw_, kb_ = jax.random.split(key, 3)
    params["fc_w"] = jax.random.normal(kw_, (classes, size), jnp.float32) * 0.05
    params["fc_b"] = jax.random.normal(kb_, (classes,), jnp.float32) * 0.05
    return params


def reference_forward(params, config, x):
    n_convs = len(config)
    for idx, (cin, cout, k, stride) in enumerate(config):
        w, b = params["convs"][idx]
        x = jax.lax.conv_general_dilated(
            x, w, window_strides=(stride, stride), padding="VALID",
            dimension_numbers=("NCHW", "OIHW", "NCHW"))
        x = x + b.reshape(1, cout, 1, 1)
        if idx == n_convs - 1:
            x = jnp.maximum(x, 0.0)
    flat = x.reshape(x.shape[0], -1)
    logits = flat @ params["fc_w"].T + params["fc_b"]
    return jax.nn.softmax(logits, axis=1)


if __name__ == "__main__":
    # config entries: (in_channels, out_channels, kernel_size, stride)
    config = [(4, 8, 3, 1), (8, 16, 3, 2)]
    in_shape = (2, 4, 16, 16)

    params = init_params(config, in_shape, classes=10, seed=0)
    plan = _build_plan(config, in_shape, classes=10)
    prepped = prepare_params(params, plan)
    fwd_fn = _make_forward_fn(plan)

    run = jax.jit(lambda xx: forward(fwd_fn, plan, prepped, xx))

    x = jax.random.normal(jax.random.PRNGKey(0), in_shape, jnp.float32)
    out = jax.block_until_ready(run(x))
    ref = jax.block_until_ready(reference_forward(params, config, x))

    assert out.shape == (2, 10), out.shape
    # bf16 operands + approx reciprocal -> slightly looser tolerances than f32.
    assert bool(jnp.allclose(jnp.sum(out, axis=1), 1.0, atol=1e-2))
    assert bool(jnp.allclose(out, ref, atol=2e-2, rtol=2e-2)), (
        jnp.max(jnp.abs(out - ref)))

    print("KERNEL_OK")
</pallas_src>

<mosaic_0001>
module attributes {stable_mosaic.version = 11 : i64} {
  func.func @_fused_kernel(%arg0: i32, %arg1: memref<1x264x4xbf16, #tpu.memory_space<vmem>>, %arg2: memref<9x4x128xbf16, #tpu.memory_space<vmem>>, %arg3: memref<1x128xf32, #tpu.memory_space<vmem>>, %arg4: memref<9x128x16xbf16, #tpu.memory_space<vmem>>, %arg5: memref<1x16xf32, #tpu.memory_space<vmem>>, %arg6: memref<36x16x128xbf16, #tpu.memory_space<vmem>>, %arg7: memref<1x128xf32, #tpu.memory_space<vmem>>, %arg8: memref<1x1x128xf32, #tpu.memory_space<vmem>>, %arg9: memref<232x128xbf16, #tpu.memory_space<vmem>>, %arg10: memref<192x16xbf16, #tpu.memory_space<vmem>>) attributes {dimension_semantics = [#tpu.dimension_semantics<parallel>], iteration_bounds = array<i64: 2>, scalar_prefetch = 0 : i64, scratch_operands = 2 : i64, tpu.core_type = #tpu.core_type<tc>, window_params = [{transform_indices = @transform_0, window_bounds = array<i64: 1, 264, 4>}, {pipeline_mode = #tpu.pipeline_mode<synchronous>, transform_indices = @transform_1, window_bounds = array<i64: 9, 4, 128>}, {pipeline_mode = #tpu.pipeline_mode<synchronous>, transform_indices = @transform_2, window_bounds = array<i64: 1, 128>}, {pipeline_mode = #tpu.pipeline_mode<synchronous>, transform_indices = @transform_3, window_bounds = array<i64: 9, 128, 16>}, {pipeline_mode = #tpu.pipeline_mode<synchronous>, transform_indices = @transform_4, window_bounds = array<i64: 1, 16>}, {pipeline_mode = #tpu.pipeline_mode<synchronous>, transform_indices = @transform_5, window_bounds = array<i64: 36, 16, 128>}, {pipeline_mode = #tpu.pipeline_mode<synchronous>, transform_indices = @transform_6, window_bounds = array<i64: 1, 128>}, {transform_indices = @transform_7, window_bounds = array<i64: 1, 1, 128>}]} {
    %cst = arith.constant 0.000000e+00 : f32
    %0 = vector.broadcast %cst : f32 to vector<224x128xf32>
    %c0 = arith.constant 0 : index
    %c0_0 = arith.constant 0 : index
    %c0_1 = arith.constant 0 : index
    %1 = vector.load %arg1[%c0, %c0_0, %c0_1] : memref<1x264x4xbf16, #tpu.memory_space<vmem>>, vector<1x224x4xbf16>
    %2 = vector.shape_cast %1 : vector<1x224x4xbf16> to vector<224x4xbf16>
    %c0_2 = arith.constant 0 : index
    %c0_3 = arith.constant 0 : index
    %c0_4 = arith.constant 0 : index
    %3 = vector.load %arg2[%c0_2, %c0_3, %c0_4] : memref<9x4x128xbf16, #tpu.memory_space<vmem>>, vector<1x4x128xbf16>
    %4 = vector.shape_cast %3 : vector<1x4x128xbf16> to vector<4x128xbf16>
    %cst_5 = arith.constant dense<0.000000e+00> : vector<224x128xf32>
    %5 = tpu.matmul %2, %4, %cst_5 {dimension_numbers = #tpu.dot_dimension_numbers<[1], [0], [0], [1], [0, 0, 1, 1], [], []>} : vector<224x4xbf16>, vector<4x128xbf16>, vector<224x128xf32> -> vector<224x128xf32>
    %6 = arith.addf %0, %5 : vector<224x128xf32>
    %c0_6 = arith.constant 0 : index
    %c1 = arith.constant 1 : index
    %c0_7 = arith.constant 0 : index
    %7 = vector.load %arg1[%c0_6, %c1, %c0_7] : memref<1x264x4xbf16, #tpu.memory_space<vmem>>, vector<1x224x4xbf16>
    %8 = vector.shape_cast %7 : vector<1x224x4xbf16> to vector<224x4xbf16>
    %c1_8 = arith.constant 1 : index
    %c0_9 = arith.constant 0 : index
    %c0_10 = arith.constant 0 : index
    %9 = vector.load %arg2[%c1_8, %c0_9, %c0_10] : memref<9x4x128xbf16, #tpu.memory_space<vmem>>, vector<1x4x128xbf16>
    %10 = vector.shape_cast %9 : vector<1x4x128xbf16> to vector<4x128xbf16>
    %cst_11 = arith.constant dense<0.000000e+00> : vector<224x128xf32>
    %11 = tpu.matmul %8, %10, %cst_11 {dimension_numbers = #tpu.dot_dimension_numbers<[1], [0], [0], [1], [0, 0, 1, 1], [], []>} : vector<224x4xbf16>, vector<4x128xbf16>, vector<224x128xf32> -> vector<224x128xf32>
    %12 = arith.addf %6, %11 : vector<224x128xf32>
    %c0_12 = arith.constant 0 : index
    %c2 = arith.constant 2 : index
    %c0_13 = arith.constant 0 : index
    %13 = vector.load %arg1[%c0_12, %c2, %c0_13] : memref<1x264x4xbf16, #tpu.memory_space<vmem>>, vector<1x224x4xbf16>
    %14 = vector.shape_cast %13 : vector<1x224x4xbf16> to vector<224x4xbf16>
    %c2_14 = arith.constant 2 : index
    %c0_15 = arith.constant 0 : index
    %c0_16 = arith.constant 0 : index
    %15 = vector.load %arg2[%c2_14, %c0_15, %c0_16] : memref<9x4x128xbf16, #tpu.memory_space<vmem>>, vector<1x4x128xbf16>
    %16 = vector.shape_cast %15 : vector<1x4x128xbf16> to vector<4x128xbf16>
    %cst_17 = arith.constant dense<0.000000e+00> : vector<224x128xf32>
    %17 = tpu.matmul %14, %16, %cst_17 {dimension_numbers = #tpu.dot_dimension_numbers<[1], [0], [0], [1], [0, 0, 1, 1], [], []>} : vector<224x4xbf16>, vector<4x128xbf16>, vector<224x128xf32> -> vector<224x128xf32>
    %18 = arith.addf %12, %17 : vector<224x128xf32>
    %c0_18 = arith.constant 0 : index
    %c16 = arith.constant 16 : index
    %c0_19 = arith.constant 0 : index
    %19 = vector.load %arg1[%c0_18, %c16, %c0_19] : memref<1x264x4xbf16, #tpu.memory_space<vmem>>, vector<1x224x4xbf16>
    %20 = vector.shape_cast %19 : vector<1x224x4xbf16> to vector<224x4xbf16>
    %c3 = arith.constant 3 : index
    %c0_20 = arith.constant 0 : index
    %c0_21 = arith.constant 0 : index
    %21 = vector.load %arg2[%c3, %c0_20, %c0_21] : memref<9x4x128xbf16, #tpu.memory_space<vmem>>, vector<1x4x128xbf16>
    %22 = vector.shape_cast %21 : vector<1x4x128xbf16> to vector<4x128xbf16>
    %cst_22 = arith.constant dense<0.000000e+00> : vector<224x128xf32>
    %23 = tpu.matmul %20, %22, %cst_22 {dimension_numbers = #tpu.dot_dimension_numbers<[1], [0], [0], [1], [0, 0, 1, 1], [], []>} : vector<224x4xbf16>, vector<4x128xbf16>, vector<224x128xf32> -> vector<224x128xf32>
    %24 = arith.addf %18, %23 : vector<224x128xf32>
    %c0_23 = arith.constant 0 : index
    %c17 = arith.constant 17 : index
    %c0_24 = arith.constant 0 : index
    %25 = vector.load %arg1[%c0_23, %c17, %c0_24] : memref<1x264x4xbf16, #tpu.memory_space<vmem>>, vector<1x224x4xbf16>
    %26 = vector.shape_cast %25 : vector<1x224x4xbf16> to vector<224x4xbf16>
    %c4 = arith.constant 4 : index
    %c0_25 = arith.constant 0 : index
    %c0_26 = arith.constant 0 : index
    %27 = vector.load %arg2[%c4, %c0_25, %c0_26] : memref<9x4x128xbf16, #tpu.memory_space<vmem>>, vector<1x4x128xbf16>
    %28 = vector.shape_cast %27 : vector<1x4x128xbf16> to vector<4x128xbf16>
    %cst_27 = arith.constant dense<0.000000e+00> : vector<224x128xf32>
    %29 = tpu.matmul %26, %28, %cst_27 {dimension_numbers = #tpu.dot_dimension_numbers<[1], [0], [0], [1], [0, 0, 1, 1], [], []>} : vector<224x4xbf16>, vector<4x128xbf16>, vector<224x128xf32> -> vector<224x128xf32>
    %30 = arith.addf %24, %29 : vector<224x128xf32>
    %c0_28 = arith.constant 0 : index
    %c18 = arith.constant 18 : index
    %c0_29 = arith.constant 0 : index
    %31 = vector.load %arg1[%c0_28, %c18, %c0_29] : memref<1x264x4xbf16, #tpu.memory_space<vmem>>, vector<1x224x4xbf16>
    %32 = vector.shape_cast %31 : vector<1x224x4xbf16> to vector<224x4xbf16>
    %c5 = arith.constant 5 : index
    %c0_30 = arith.constant 0 : index
    %c0_31 = arith.constant 0 : index
    %33 = vector.load %arg2[%c5, %c0_30, %c0_31] : memref<9x4x128xbf16, #tpu.memory_space<vmem>>, vector<1x4x128xbf16>
    %34 = vector.shape_cast %33 : vector<1x4x128xbf16> to vector<4x128xbf16>
    %cst_32 = arith.constant dense<0.000000e+00> : vector<224x128xf32>
    %35 = tpu.matmul %32, %34, %cst_32 {dimension_numbers = #tpu.dot_dimension_numbers<[1], [0], [0], [1], [0, 0, 1, 1], [], []>} : vector<224x4xbf16>, vector<4x128xbf16>, vector<224x128xf32> -> vector<224x128xf32>
    %36 = arith.addf %30, %35 : vector<224x128xf32>
    %c0_33 = arith.constant 0 : index
    %c32 = arith.constant 32 : index
    %c0_34 = arith.constant 0 : index
    %37 = vector.load %arg1[%c0_33, %c32, %c0_34] : memref<1x264x4xbf16, #tpu.memory_space<vmem>>, vector<1x224x4xbf16>
    %38 = vector.shape_cast %37 : vector<1x224x4xbf16> to vector<224x4xbf16>
    %c6 = arith.constant 6 : index
    %c0_35 = arith.constant 0 : index
    %c0_36 = arith.constant 0 : index
    %39 = vector.load %arg2[%c6, %c0_35, %c0_36] : memref<9x4x128xbf16, #tpu.memory_space<vmem>>, vector<1x4x128xbf16>
    %40 = vector.shape_cast %39 : vector<1x4x128xbf16> to vector<4x128xbf16>
    %cst_37 = arith.constant dense<0.000000e+00> : vector<224x128xf32>
    %41 = tpu.matmul %38, %40, %cst_37 {dimension_numbers = #tpu.dot_dimension_numbers<[1], [0], [0], [1], [0, 0, 1, 1], [], []>} : vector<224x4xbf16>, vector<4x128xbf16>, vector<224x128xf32> -> vector<224x128xf32>
    %42 = arith.addf %36, %41 : vector<224x128xf32>
    %c0_38 = arith.constant 0 : index
    %c33 = arith.constant 33 : index
    %c0_39 = arith.constant 0 : index
    %43 = vector.load %arg1[%c0_38, %c33, %c0_39] : memref<1x264x4xbf16, #tpu.memory_space<vmem>>, vector<1x224x4xbf16>
    %44 = vector.shape_cast %43 : vector<1x224x4xbf16> to vector<224x4xbf16>
    %c7 = arith.constant 7 : index
    %c0_40 = arith.constant 0 : index
    %c0_41 = arith.constant 0 : index
    %45 = vector.load %arg2[%c7, %c0_40, %c0_41] : memref<9x4x128xbf16, #tpu.memory_space<vmem>>, vector<1x4x128xbf16>
    %46 = vector.shape_cast %45 : vector<1x4x128xbf16> to vector<4x128xbf16>
    %cst_42 = arith.constant dense<0.000000e+00> : vector<224x128xf32>
    %47 = tpu.matmul %44, %46, %cst_42 {dimension_numbers = #tpu.dot_dimension_numbers<[1], [0], [0], [1], [0, 0, 1, 1], [], []>} : vector<224x4xbf16>, vector<4x128xbf16>, vector<224x128xf32> -> vector<224x128xf32>
    %48 = arith.addf %42, %47 : vector<224x128xf32>
    %c0_43 = arith.constant 0 : index
    %c34 = arith.constant 34 : index
    %c0_44 = arith.constant 0 : index
    %49 = vector.load %arg1[%c0_43, %c34, %c0_44] : memref<1x264x4xbf16, #tpu.memory_space<vmem>>, vector<1x224x4xbf16>
    %50 = vector.shape_cast %49 : vector<1x224x4xbf16> to vector<224x4xbf16>
    %c8 = arith.constant 8 : index
    %c0_45 = arith.constant 0 : index
    %c0_46 = arith.constant 0 : index
    %51 = vector.load %arg2[%c8, %c0_45, %c0_46] : memref<9x4x128xbf16, #tpu.memory_space<vmem>>, vector<1x4x128xbf16>
    %52 = vector.shape_cast %51 : vector<1x4x128xbf16> to vector<4x128xbf16>
    %cst_47 = arith.constant dense<0.000000e+00> : vector<224x128xf32>
    %53 = tpu.matmul %50, %52, %cst_47 {dimension_numbers = #tpu.dot_dimension_numbers<[1], [0], [0], [1], [0, 0, 1, 1], [], []>} : vector<224x4xbf16>, vector<4x128xbf16>, vector<224x128xf32> -> vector<224x128xf32>
    %54 = arith.addf %48, %53 : vector<224x128xf32>
    %c0_48 = arith.constant 0 : index
    %c0_49 = arith.constant 0 : index
    %55 = vector.load %arg3[%c0_48, %c0_49] : memref<1x128xf32, #tpu.memory_space<vmem>>, vector<1x128xf32>
    %56 = vector.broadcast %55 : vector<1x128xf32> to vector<224x128xf32>
    %57 = arith.addf %54, %56 : vector<224x128xf32>
    %58 = arith.truncf %57 : vector<224x128xf32> to vector<224x128xbf16>
    %c0_50 = arith.constant 0 : index
    %c0_51 = arith.constant 0 : index
    %59 = vector.load %arg9[%c0_50, %c0_51] : memref<232x128xbf16, #tpu.memory_space<vmem>>, vector<224x128xbf16>
    tpu.vector_store %arg9[%c0_50, %c0_51], %58 {strides = array<i32>} : memref<232x128xbf16, #tpu.memory_space<vmem>>, vector<224x128xbf16>,
    %cst_52 = arith.constant 0.000000e+00 : bf16
    %60 = vector.broadcast %cst_52 : bf16 to vector<8x128xbf16>
    %c224 = arith.constant 224 : index
    %c0_53 = arith.constant 0 : index
    %61 = vector.load %arg9[%c224, %c0_53] : memref<232x128xbf16, #tpu.memory_space<vmem>>, vector<8x128xbf16>
    tpu.vector_store %arg9[%c224, %c0_53], %60 {strides = array<i32>} : memref<232x128xbf16, #tpu.memory_space<vmem>>, vector<8x128xbf16>,
    %cst_54 = arith.constant 0.000000e+00 : f32
    %62 = vector.broadcast %cst_54 : f32 to vector<192x16xf32>
    %c0_55 = arith.constant 0 : index
    %c0_56 = arith.constant 0 : index
    %63 = vector.load %arg9[%c0_55, %c0_56] : memref<232x128xbf16, #tpu.memory_space<vmem>>, vector<192x128xbf16>
    %c0_57 = arith.constant 0 : index
    %c0_58 = arith.constant 0 : index
    %c0_59 = arith.constant 0 : index
    %64 = vector.load %arg4[%c0_57, %c0_58, %c0_59] : memref<9x128x16xbf16, #tpu.memory_space<vmem>>, vector<1x128x16xbf16>
    %65 = vector.shape_cast %64 : vector<1x128x16xbf16> to vector<128x16xbf16>
    %cst_60 = arith.constant dense<0.000000e+00> : vector<192x16xf32>
    %66 = tpu.matmul %63, %65, %cst_60 {dimension_numbers = #tpu.dot_dimension_numbers<[1], [0], [0], [1], [0, 0, 1, 1], [], []>} : vector<192x128xbf16>, vector<128x16xbf16>, vector<192x16xf32> -> vector<192x16xf32>
    %67 = arith.addf %62, %66 : vector<192x16xf32>
    %c1_61 = arith.constant 1 : index
    %c0_62 = arith.constant 0 : index
    %68 = vector.load %arg9[%c1_61, %c0_62] : memref<232x128xbf16, #tpu.memory_space<vmem>>, vector<192x128xbf16>
    %c1_63 = arith.constant 1 : index
    %c0_64 = arith.constant 0 : index
    %c0_65 = arith.constant 0 : index
    %69 = vector.load %arg4[%c1_63, %c0_64, %c0_65] : memref<9x128x16xbf16, #tpu.memory_space<vmem>>, vector<1x128x16xbf16>
    %70 = vector.shape_cast %69 : vector<1x128x16xbf16> to vector<128x16xbf16>
    %cst_66 = arith.constant dense<0.000000e+00> : vector<192x16xf32>
    %71 = tpu.matmul %68, %70, %cst_66 {dimension_numbers = #tpu.dot_dimension_numbers<[1], [0], [0], [1], [0, 0, 1, 1], [], []>} : vector<192x128xbf16>, vector<128x16xbf16>, vector<192x16xf32> -> vector<192x16xf32>
    %72 = arith.addf %67, %71 : vector<192x16xf32>
    %c2_67 = arith.constant 2 : index
    %c0_68 = arith.constant 0 : index
    %73 = vector.load %arg9[%c2_67, %c0_68] : memref<232x128xbf16, #tpu.memory_space<vmem>>, vector<192x128xbf16>
    %c2_69 = arith.constant 2 : index
    %c0_70 = arith.constant 0 : index
    %c0_71 = arith.constant 0 : index
    %74 = vector.load %arg4[%c2_69, %c0_70, %c0_71] : memref<9x128x16xbf16, #tpu.memory_space<vmem>>, vector<1x128x16xbf16>
    %75 = vector.shape_cast %74 : vector<1x128x16xbf16> to vector<128x16xbf16>
    %cst_72 = arith.constant dense<0.000000e+00> : vector<192x16xf32>
    %76 = tpu.matmul %73, %75, %cst_72 {dimension_numbers = #tpu.dot_dimension_numbers<[1], [0], [0], [1], [0, 0, 1, 1], [], []>} : vector<192x128xbf16>, vector<128x16xbf16>, vector<192x16xf32> -> vector<192x16xf32>
    %77 = arith.addf %72, %76 : vector<192x16xf32>
    %c16_73 = arith.constant 16 : index
    %c0_74 = arith.constant 0 : index
    %78 = vector.load %arg9[%c16_73, %c0_74] : memref<232x128xbf16, #tpu.memory_space<vmem>>, vector<192x128xbf16>
    %c3_75 = arith.constant 3 : index
    %c0_76 = arith.constant 0 : index
    %c0_77 = arith.constant 0 : index
    %79 = vector.load %arg4[%c3_75, %c0_76, %c0_77] : memref<9x128x16xbf16, #tpu.memory_space<vmem>>, vector<1x128x16xbf16>
    %80 = vector.shape_cast %79 : vector<1x128x16xbf16> to vector<128x16xbf16>
    %cst_78 = arith.constant dense<0.000000e+00> : vector<192x16xf32>
    %81 = tpu.matmul %78, %80, %cst_78 {dimension_numbers = #tpu.dot_dimension_numbers<[1], [0], [0], [1], [0, 0, 1, 1], [], []>} : vector<192x128xbf16>, vector<128x16xbf16>, vector<192x16xf32> -> vector<192x16xf32>
    %82 = arith.addf %77, %81 : vector<192x16xf32>
    %c17_79 = arith.constant 17 : index
    %c0_80 = arith.constant 0 : index
    %83 = vector.load %arg9[%c17_79, %c0_80] : memref<232x128xbf16, #tpu.memory_space<vmem>>, vector<192x128xbf16>
    %c4_81 = arith.constant 4 : index
    %c0_82 = arith.constant 0 : index
    %c0_83 = arith.constant 0 : index
    %84 = vector.load %arg4[%c4_81, %c0_82, %c0_83] : memref<9x128x16xbf16, #tpu.memory_space<vmem>>, vector<1x128x16xbf16>
    %85 = vector.shape_cast %84 : vector<1x128x16xbf16> to vector<128x16xbf16>
    %cst_84 = arith.constant dense<0.000000e+00> : vector<192x16xf32>
    %86 = tpu.matmul %83, %85, %cst_84 {dimension_numbers = #tpu.dot_dimension_numbers<[1], [0], [0], [1], [0, 0, 1, 1], [], []>} : vector<192x128xbf16>, vector<128x16xbf16>, vector<192x16xf32> -> vector<192x16xf32>
    %87 = arith.addf %82, %86 : vector<192x16xf32>
    %c18_85 = arith.constant 18 : index
    %c0_86 = arith.constant 0 : index
    %88 = vector.load %arg9[%c18_85, %c0_86] : memref<232x128xbf16, #tpu.memory_space<vmem>>, vector<192x128xbf16>
    %c5_87 = arith.constant 5 : index
    %c0_88 = arith.constant 0 : index
    %c0_89 = arith.constant 0 : index
    %89 = vector.load %arg4[%c5_87, %c0_88, %c0_89] : memref<9x128x16xbf16, #tpu.memory_space<vmem>>, vector<1x128x16xbf16>
    %90 = vector.shape_cast %89 : vector<1x128x16xbf16> to vector<128x16xbf16>
    %cst_90 = arith.constant dense<0.000000e+00> : vector<192x16xf32>
    %91 = tpu.matmul %88, %90, %cst_90 {dimension_numbers = #tpu.dot_dimension_numbers<[1], [0], [0], [1], [0, 0, 1, 1], [], []>} : vector<192x128xbf16>, vector<128x16xbf16>, vector<192x16xf32> -> vector<192x16xf32>
    %92 = arith.addf %87, %91 : vector<192x16xf32>
    %c32_91 = arith.constant 32 : index
    %c0_92 = arith.constant 0 : index
    %93 = vector.load %arg9[%c32_91, %c0_92] : memref<232x128xbf16, #tpu.memory_space<vmem>>, vector<192x128xbf16>
    %c6_93 = arith.constant 6 : index
    %c0_94 = arith.constant 0 : index
    %c0_95 = arith.constant 0 : index
    %94 = vector.load %arg4[%c6_93, %c0_94, %c0_95] : memref<9x128x16xbf16, #tpu.memory_space<vmem>>, vector<1x128x16xbf16>
    %95 = vector.shape_cast %94 : vector<1x128x16xbf16> to vector<128x16xbf16>
    %cst_96 = arith.constant dense<0.000000e+00> : vector<192x16xf32>
    %96 = tpu.matmul %93, %95, %cst_96 {dimension_numbers = #tpu.dot_dimension_numbers<[1], [0], [0], [1], [0, 0, 1, 1], [], []>} : vector<192x128xbf16>, vector<128x16xbf16>, vector<192x16xf32> -> vector<192x16xf32>
    %97 = arith.addf %92, %96 : vector<192x16xf32>
    %c33_97 = arith.constant 33 : index
    %c0_98 = arith.constant 0 : index
    %98 = vector.load %arg9[%c33_97, %c0_98] : memref<232x128xbf16, #tpu.memory_space<vmem>>, vector<192x128xbf16>
    %c7_99 = arith.constant 7 : index
    %c0_100 = arith.constant 0 : index
    %c0_101 = arith.constant 0 : index
    %99 = vector.load %arg4[%c7_99, %c0_100, %c0_101] : memref<9x128x16xbf16, #tpu.memory_space<vmem>>, vector<1x128x16xbf16>
    %100 = vector.shape_cast %99 : vector<1x128x16xbf16> to vector<128x16xbf16>
    %cst_102 = arith.constant dense<0.000000e+00> : vector<192x16xf32>
    %101 = tpu.matmul %98, %100, %cst_102 {dimension_numbers = #tpu.dot_dimension_numbers<[1], [0], [0], [1], [0, 0, 1, 1], [], []>} : vector<192x128xbf16>, vector<128x16xbf16>, vector<192x16xf32> -> vector<192x16xf32>
    %102 = arith.addf %97, %101 : vector<192x16xf32>
    %c34_103 = arith.constant 34 : index
    %c0_104 = arith.constant 0 : index
    %103 = vector.load %arg9[%c34_103, %c0_104] : memref<232x128xbf16, #tpu.memory_space<vmem>>, vector<192x128xbf16>
    %c8_105 = arith.constant 8 : index
    %c0_106 = arith.constant 0 : index
    %c0_107 = arith.constant 0 : index
    %104 = vector.load %arg4[%c8_105, %c0_106, %c0_107] : memref<9x128x16xbf16, #tpu.memory_space<vmem>>, vector<1x128x16xbf16>
    %105 = vector.shape_cast %104 : vector<1x128x16xbf16> to vector<128x16xbf16>
    %cst_108 = arith.constant dense<0.000000e+00> : vector<192x16xf32>
    %106 = tpu.matmul %103, %105, %cst_108 {dimension_numbers = #tpu.dot_dimension_numbers<[1], [0], [0], [1], [0, 0, 1, 1], [], []>} : vector<192x128xbf16>, vector<128x16xbf16>, vector<192x16xf32> -> vector<192x16xf32>
    %107 = arith.addf %102, %106 : vector<192x16xf32>
    %c0_109 = arith.constant 0 : index
    %c0_110 = arith.constant 0 : index
    %108 = vector.load %arg5[%c0_109, %c0_110] : memref<1x16xf32, #tpu.memory_space<vmem>>, vector<1x16xf32>
    %109 = vector.broadcast %108 : vector<1x16xf32> to vector<192x16xf32>
    %110 = arith.addf %107, %109 : vector<192x16xf32>
    %cst_111 = arith.constant 0.000000e+00 : f32
    %111 = vector.broadcast %cst_111 : f32 to vector<192x16xf32>
    %112 = arith.maximumf %110, %111 : vector<192x16xf32>
    %113 = arith.truncf %112 : vector<192x16xf32> to vector<192x16xbf16>
    %c0_112 = arith.constant 0 : index
    %c0_113 = arith.constant 0 : index
    %114 = vector.load %arg10[%c0_112, %c0_113] : memref<192x16xbf16, #tpu.memory_space<vmem>>, vector<192x16xbf16>
    tpu.vector_store %arg10[%c0_112, %c0_113], %113 {strides = array<i32>} : memref<192x16xbf16, #tpu.memory_space<vmem>>, vector<192x16xbf16>,
    %c0_114 = arith.constant 0 : index
    %c0_115 = arith.constant 0 : index
    %115 = vector.load %arg7[%c0_114, %c0_115] : memref<1x128xf32, #tpu.memory_space<vmem>>, vector<1x128xf32>
    %c0_116 = arith.constant 0 : index
    %c0_117 = arith.constant 0 : index
    %116 = vector.load %arg10[%c0_116, %c0_117] : memref<192x16xbf16, #tpu.memory_space<vmem>>, vector<1x16xbf16>
    %c0_118 = arith.constant 0 : index
    %c0_119 = arith.constant 0 : index
    %c0_120 = arith.constant 0 : index
    %117 = vector.load %arg6[%c0_118, %c0_119, %c0_120] : memref<36x16x128xbf16, #tpu.memory_space<vmem>>, vector<1x16x128xbf16>
    %118 = vector.shape_cast %117 : vector<1x16x128xbf16> to vector<16x128xbf16>
    %cst_121 = arith.constant dense<0.000000e+00> : vector<1x128xf32>
    %119 = tpu.matmul %116, %118, %cst_121 {dimension_numbers = #tpu.dot_dimension_numbers<[1], [0], [0], [1], [0, 0, 1, 1], [], []>} : vector<1x16xbf16>, vector<16x128xbf16>, vector<1x128xf32> -> vector<1x128xf32>
    %120 = arith.addf %115, %119 : vector<1x128xf32>
    %c2_122 = arith.constant 2 : index
    %c0_123 = arith.constant 0 : index
    %121 = vector.load %arg10[%c2_122, %c0_123] : memref<192x16xbf16, #tpu.memory_space<vmem>>, vector<1x16xbf16>
    %c1_124 = arith.constant 1 : index
    %c0_125 = arith.constant 0 : index
    %c0_126 = arith.constant 0 : index
    %122 = vector.load %arg6[%c1_124, %c0_125, %c0_126] : memref<36x16x128xbf16, #tpu.memory_space<vmem>>, vector<1x16x128xbf16>
    %123 = vector.shape_cast %122 : vector<1x16x128xbf16> to vector<16x128xbf16>
    %cst_127 = arith.constant dense<0.000000e+00> : vector<1x128xf32>
    %124 = tpu.matmul %121, %123, %cst_127 {dimension_numbers = #tpu.dot_dimension_numbers<[1], [0], [0], [1], [0, 0, 1, 1], [], []>} : vector<1x16xbf16>, vector<16x128xbf16>, vector<1x128xf32> -> vector<1x128xf32>
    %125 = arith.addf %120, %124 : vector<1x128xf32>
    %c4_128 = arith.constant 4 : index
    %c0_129 = arith.constant 0 : index
    %126 = vector.load %arg10[%c4_128, %c0_129] : memref<192x16xbf16, #tpu.memory_space<vmem>>, vector<1x16xbf16>
    %c2_130 = arith.constant 2 : index
    %c0_131 = arith.constant 0 : index
    %c0_132 = arith.constant 0 : index
    %127 = vector.load %arg6[%c2_130, %c0_131, %c0_132] : memref<36x16x128xbf16, #tpu.memory_space<vmem>>, vector<1x16x128xbf16>
    %128 = vector.shape_cast %127 : vector<1x16x128xbf16> to vector<16x128xbf16>
    %cst_133 = arith.constant dense<0.000000e+00> : vector<1x128xf32>
    %129 = tpu.matmul %126, %128, %cst_133 {dimension_numbers = #tpu.dot_dimension_numbers<[1], [0], [0], [1], [0, 0, 1, 1], [], []>} : vector<1x16xbf16>, vector<16x128xbf16>, vector<1x128xf32> -> vector<1x128xf32>
    %130 = arith.addf %125, %129 : vector<1x128xf32>
    %c6_134 = arith.constant 6 : index
    %c0_135 = arith.constant 0 : index
    %131 = vector.load %arg10[%c6_134, %c0_135] : memref<192x16xbf16, #tpu.memory_space<vmem>>, vector<1x16xbf16>
    %c3_136 = arith.constant 3 : index
    %c0_137 = arith.constant 0 : index
    %c0_138 = arith.constant 0 : index
    %132 = vector.load %arg6[%c3_136, %c0_137, %c0_138] : memref<36x16x128xbf16, #tpu.memory_space<vmem>>, vector<1x16x128xbf16>
    %133 = vector.shape_cast %132 : vector<1x16x128xbf16> to vector<16x128xbf16>
    %cst_139 = arith.constant dense<0.000000e+00> : vector<1x128xf32>
    %134 = tpu.matmul %131, %133, %cst_139 {dimension_numbers = #tpu.dot_dimension_numbers<[1], [0], [0], [1], [0, 0, 1, 1], [], []>} : vector<1x16xbf16>, vector<16x128xbf16>, vector<1x128xf32> -> vector<1x128xf32>
    %135 = arith.addf %130, %134 : vector<1x128xf32>
    %c8_140 = arith.constant 8 : index
    %c0_141 = arith.constant 0 : index
    %136 = vector.load %arg10[%c8_140, %c0_141] : memref<192x16xbf16, #tpu.memory_space<vmem>>, vector<1x16xbf16>
    %c4_142 = arith.constant 4 : index
    %c0_143 = arith.constant 0 : index
    %c0_144 = arith.constant 0 : index
    %137 = vector.load %arg6[%c4_142, %c0_143, %c0_144] : memref<36x16x128xbf16, #tpu.memory_space<vmem>>, vector<1x16x128xbf16>
    %138 = vector.shape_cast %137 : vector<1x16x128xbf16> to vector<16x128xbf16>
    %cst_145 = arith.constant dense<0.000000e+00> : vector<1x128xf32>
    %139 = tpu.matmul %136, %138, %cst_145 {dimension_numbers = #tpu.dot_dimension_numbers<[1], [0], [0], [1], [0, 0, 1, 1], [], []>} : vector<1x16xbf16>, vector<16x128xbf16>, vector<1x128xf32> -> vector<1x128xf32>
    %140 = arith.addf %135, %139 : vector<1x128xf32>
    %c10 = arith.constant 10 : index
    %c0_146 = arith.constant 0 : index
    %141 = vector.load %arg10[%c10, %c0_146] : memref<192x16xbf16, #tpu.memory_space<vmem>>, vector<1x16xbf16>
    %c5_147 = arith.constant 5 : index
    %c0_148 = arith.constant 0 : index
    %c0_149 = arith.constant 0 : index
    %142 = vector.load %arg6[%c5_147, %c0_148, %c0_149] : memref<36x16x128xbf16, #tpu.memory_space<vmem>>, vector<1x16x128xbf16>
    %143 = vector.shape_cast %142 : vector<1x16x128xbf16> to vector<16x128xbf16>
    %cst_150 = arith.constant dense<0.000000e+00> : vector<1x128xf32>
    %144 = tpu.matmul %141, %143, %cst_150 {dimension_numbers = #tpu.dot_dimension_numbers<[1], [0], [0], [1], [0, 0, 1, 1], [], []>} : vector<1x16xbf16>, vector<16x128xbf16>, vector<1x128xf32> -> vector<1x128xf32>
    %145 = arith.addf %140, %144 : vector<1x128xf32>
    %c32_151 = arith.constant 32 : index
    %c0_152 = arith.constant 0 : index
    %146 = vector.load %arg10[%c32_151, %c0_152] : memref<192x16xbf16, #tpu.memory_space<vmem>>, vector<1x16xbf16>
    %c6_153 = arith.constant 6 : index
    %c0_154 = arith.constant 0 : index
    %c0_155 = arith.constant 0 : index
    %147 = vector.load %arg6[%c6_153, %c0_154, %c0_155] : memref<36x16x128xbf16, #tpu.memory_space<vmem>>, vector<1x16x128xbf16>
    %148 = vector.shape_cast %147 : vector<1x16x128xbf16> to vector<16x128xbf16>
    %cst_156 = arith.constant dense<0.000000e+00> : vector<1x128xf32>
    %149 = tpu.matmul %146, %148, %cst_156 {dimension_numbers = #tpu.dot_dimension_numbers<[1], [0], [0], [1], [0, 0, 1, 1], [], []>} : vector<1x16xbf16>, vector<16x128xbf16>, vector<1x128xf32> -> vector<1x128xf32>
    %150 = arith.addf %145, %149 : vector<1x128xf32>
    %c34_157 = arith.constant 34 : index
    %c0_158 = arith.constant 0 : index
    %151 = vector.load %arg10[%c34_157, %c0_158] : memref<192x16xbf16, #tpu.memory_space<vmem>>, vector<1x16xbf16>
    %c7_159 = arith.constant 7 : index
    %c0_160 = arith.constant 0 : index
    %c0_161 = arith.constant 0 : index
    %152 = vector.load %arg6[%c7_159, %c0_160, %c0_161] : memref<36x16x128xbf16, #tpu.memory_space<vmem>>, vector<1x16x128xbf16>
    %153 = vector.shape_cast %152 : vector<1x16x128xbf16> to vector<16x128xbf16>
    %cst_162 = arith.constant dense<0.000000e+00> : vector<1x128xf32>
    %154 = tpu.matmul %151, %153, %cst_162 {dimension_numbers = #tpu.dot_dimension_numbers<[1], [0], [0], [1], [0, 0, 1, 1], [], []>} : vector<1x16xbf16>, vector<16x128xbf16>, vector<1x128xf32> -> vector<1x128xf32>
    %155 = arith.addf %150, %154 : vector<1x128xf32>
    %c36 = arith.constant 36 : index
    %c0_163 = arith.constant 0 : index
    %156 = vector.load %arg10[%c36, %c0_163] : memref<192x16xbf16, #tpu.memory_space<vmem>>, vector<1x16xbf16>
    %c8_164 = arith.constant 8 : index
    %c0_165 = arith.constant 0 : index
    %c0_166 = arith.constant 0 : index
    %157 = vector.load %arg6[%c8_164, %c0_165, %c0_166] : memref<36x16x128xbf16, #tpu.memory_space<vmem>>, vector<1x16x128xbf16>
    %158 = vector.shape_cast %157 : vector<1x16x128xbf16> to vector<16x128xbf16>
    %cst_167 = arith.constant dense<0.000000e+00> : vector<1x128xf32>
    %159 = tpu.matmul %156, %158, %cst_167 {dimension_numbers = #tpu.dot_dimension_numbers<[1], [0], [0], [1], [0, 0, 1, 1], [], []>} : vector<1x16xbf16>, vector<16x128xbf16>, vector<1x128xf32> -> vector<1x128xf32>
    %160 = arith.addf %155, %159 : vector<1x128xf32>
    %c38 = arith.constant 38 : index
    %c0_168 = arith.constant 0 : index
    %161 = vector.load %arg10[%c38, %c0_168] : memref<192x16xbf16, #tpu.memory_space<vmem>>, vector<1x16xbf16>
    %c9 = arith.constant 9 : index
    %c0_169 = arith.constant 0 : index
    %c0_170 = arith.constant 0 : index
    %162 = vector.load %arg6[%c9, %c0_169, %c0_170] : memref<36x16x128xbf16, #tpu.memory_space<vmem>>, vector<1x16x128xbf16>
    %163 = vector.shape_cast %162 : vector<1x16x128xbf16> to vector<16x128xbf16>
    %cst_171 = arith.constant dense<0.000000e+00> : vector<1x128xf32>
    %164 = tpu.matmul %161, %163, %cst_171 {dimension_numbers = #tpu.dot_dimension_numbers<[1], [0], [0], [1], [0, 0, 1, 1], [], []>} : vector<1x16xbf16>, vector<16x128xbf16>, vector<1x128xf32> -> vector<1x128xf32>
    %165 = arith.addf %160, %164 : vector<1x128xf32>
    %c40 = arith.constant 40 : index
    %c0_172 = arith.constant 0 : index
    %166 = vector.load %arg10[%c40, %c0_172] : memref<192x16xbf16, #tpu.memory_space<vmem>>, vector<1x16xbf16>
    %c10_173 = arith.constant 10 : index
    %c0_174 = arith.constant 0 : index
    %c0_175 = arith.constant 0 : index
    %167 = vector.load %arg6[%c10_173, %c0_174, %c0_175] : memref<36x16x128xbf16, #tpu.memory_space<vmem>>, vector<1x16x128xbf16>
    %168 = vector.shape_cast %167 : vector<1x16x128xbf16> to vector<16x128xbf16>
    %cst_176 = arith.constant dense<0.000000e+00> : vector<1x128xf32>
    %169 = tpu.matmul %166, %168, %cst_176 {dimension_numbers = #tpu.dot_dimension_numbers<[1], [0], [0], [1], [0, 0, 1, 1], [], []>} : vector<1x16xbf16>, vector<16x128xbf16>, vector<1x128xf32> -> vector<1x128xf32>
    %170 = arith.addf %165, %169 : vector<1x128xf32>
    %c42 = arith.constant 42 : index
    %c0_177 = arith.constant 0 : index
    %171 = vector.load %arg10[%c42, %c0_177] : memref<192x16xbf16, #tpu.memory_space<vmem>>, vector<1x16xbf16>
    %c11 = arith.constant 11 : index
    %c0_178 = arith.constant 0 : index
    %c0_179 = arith.constant 0 : index
    %172 = vector.load %arg6[%c11, %c0_178, %c0_179] : memref<36x16x128xbf16, #tpu.memory_space<vmem>>, vector<1x16x128xbf16>
    %173 = vector.shape_cast %172 : vector<1x16x128xbf16> to vector<16x128xbf16>
    %cst_180 = arith.constant dense<0.000000e+00> : vector<1x128xf32>
    %174 = tpu.matmul %171, %173, %cst_180 {dimension_numbers = #tpu.dot_dimension_numbers<[1], [0], [0], [1], [0, 0, 1, 1], [], []>} : vector<1x16xbf16>, vector<16x128xbf16>, vector<1x128xf32> -> vector<1x128xf32>
    %175 = arith.addf %170, %174 : vector<1x128xf32>
    %c64 = arith.constant 64 : index
    %c0_181 = arith.constant 0 : index
    %176 = vector.load %arg10[%c64, %c0_181] : memref<192x16xbf16, #tpu.memory_space<vmem>>, vector<1x16xbf16>
    %c12 = arith.constant 12 : index
    %c0_182 = arith.constant 0 : index
    %c0_183 = arith.constant 0 : index
    %177 = vector.load %arg6[%c12, %c0_182, %c0_183] : memref<36x16x128xbf16, #tpu.memory_space<vmem>>, vector<1x16x128xbf16>
    %178 = vector.shape_cast %177 : vector<1x16x128xbf16> to vector<16x128xbf16>
    %cst_184 = arith.constant dense<0.000000e+00> : vector<1x128xf32>
    %179 = tpu.matmul %176, %178, %cst_184 {dimension_numbers = #tpu.dot_dimension_numbers<[1], [0], [0], [1], [0, 0, 1, 1], [], []>} : vector<1x16xbf16>, vector<16x128xbf16>, vector<1x128xf32> -> vector<1x128xf32>
    %180 = arith.addf %175, %179 : vector<1x128xf32>
    %c66 = arith.constant 66 : index
    %c0_185 = arith.constant 0 : index
    %181 = vector.load %arg10[%c66, %c0_185] : memref<192x16xbf16, #tpu.memory_space<vmem>>, vector<1x16xbf16>
    %c13 = arith.constant 13 : index
    %c0_186 = arith.constant 0 : index
    %c0_187 = arith.constant 0 : index
    %182 = vector.load %arg6[%c13, %c0_186, %c0_187] : memref<36x16x128xbf16, #tpu.memory_space<vmem>>, vector<1x16x128xbf16>
    %183 = vector.shape_cast %182 : vector<1x16x128xbf16> to vector<16x128xbf16>
    %cst_188 = arith.constant dense<0.000000e+00> : vector<1x128xf32>
    %184 = tpu.matmul %181, %183, %cst_188 {dimension_numbers = #tpu.dot_dimension_numbers<[1], [0], [0], [1], [0, 0, 1, 1], [], []>} : vector<1x16xbf16>, vector<16x128xbf16>, vector<1x128xf32> -> vector<1x128xf32>
    %185 = arith.addf %180, %184 : vector<1x128xf32>
    %c68 = arith.constant 68 : index
    %c0_189 = arith.constant 0 : index
    %186 = vector.load %arg10[%c68, %c0_189] : memref<192x16xbf16, #tpu.memory_space<vmem>>, vector<1x16xbf16>
    %c14 = arith.constant 14 : index
    %c0_190 = arith.constant 0 : index
    %c0_191 = arith.constant 0 : index
    %187 = vector.load %arg6[%c14, %c0_190, %c0_191] : memref<36x16x128xbf16, #tpu.memory_space<vmem>>, vector<1x16x128xbf16>
    %188 = vector.shape_cast %187 : vector<1x16x128xbf16> to vector<16x128xbf16>
    %cst_192 = arith.constant dense<0.000000e+00> : vector<1x128xf32>
    %189 = tpu.matmul %186, %188, %cst_192 {dimension_numbers = #tpu.dot_dimension_numbers<[1], [0], [0], [1], [0, 0, 1, 1], [], []>} : vector<1x16xbf16>, vector<16x128xbf16>, vector<1x128xf32> -> vector<1x128xf32>
    %190 = arith.addf %185, %189 : vector<1x128xf32>
    %c70 = arith.constant 70 : index
    %c0_193 = arith.constant 0 : index
    %191 = vector.load %arg10[%c70, %c0_193] : memref<192x16xbf16, #tpu.memory_space<vmem>>, vector<1x16xbf16>
    %c15 = arith.constant 15 : index
    %c0_194 = arith.constant 0 : index
    %c0_195 = arith.constant 0 : index
    %192 = vector.load %arg6[%c15, %c0_194, %c0_195] : memref<36x16x128xbf16, #tpu.memory_space<vmem>>, vector<1x16x128xbf16>
    %193 = vector.shape_cast %192 : vector<1x16x128xbf16> to vector<16x128xbf16>
    %cst_196 = arith.constant dense<0.000000e+00> : vector<1x128xf32>
    %194 = tpu.matmul %191, %193, %cst_196 {dimension_numbers = #tpu.dot_dimension_numbers<[1], [0], [0], [1], [0, 0, 1, 1], [], []>} : vector<1x16xbf16>, vector<16x128xbf16>, vector<1x128xf32> -> vector<1x128xf32>
    %195 = arith.addf %190, %194 : vector<1x128xf32>
    %c72 = arith.constant 72 : index
    %c0_197 = arith.constant 0 : index
    %196 = vector.load %arg10[%c72, %c0_197] : memref<192x16xbf16, #tpu.memory_space<vmem>>, vector<1x16xbf16>
    %c16_198 = arith.constant 16 : index
    %c0_199 = arith.constant 0 : index
    %c0_200 = arith.constant 0 : index
    %197 = vector.load %arg6[%c16_198, %c0_199, %c0_200] : memref<36x16x128xbf16, #tpu.memory_space<vmem>>, vector<1x16x128xbf16>
    %198 = vector.shape_cast %197 : vector<1x16x128xbf16> to vector<16x128xbf16>
    %cst_201 = arith.constant dense<0.000000e+00> : vector<1x128xf32>
    %199 = tpu.matmul %196, %198, %cst_201 {dimension_numbers = #tpu.dot_dimension_numbers<[1], [0], [0], [1], [0, 0, 1, 1], [], []>} : vector<1x16xbf16>, vector<16x128xbf16>, vector<1x128xf32> -> vector<1x128xf32>
    %200 = arith.addf %195, %199 : vector<1x128xf32>
    %c74 = arith.constant 74 : index
    %c0_202 = arith.constant 0 : index
    %201 = vector.load %arg10[%c74, %c0_202] : memref<192x16xbf16, #tpu.memory_space<vmem>>, vector<1x16xbf16>
    %c17_203 = arith.constant 17 : index
    %c0_204 = arith.constant 0 : index
    %c0_205 = arith.constant 0 : index
    %202 = vector.load %arg6[%c17_203, %c0_204, %c0_205] : memref<36x16x128xbf16, #tpu.memory_space<vmem>>, vector<1x16x128xbf16>
    %203 = vector.shape_cast %202 : vector<1x16x128xbf16> to vector<16x128xbf16>
    %cst_206 = arith.constant dense<0.000000e+00> : vector<1x128xf32>
    %204 = tpu.matmul %201, %203, %cst_206 {dimension_numbers = #tpu.dot_dimension_numbers<[1], [0], [0], [1], [0, 0, 1, 1], [], []>} : vector<1x16xbf16>, vector<16x128xbf16>, vector<1x128xf32> -> vector<1x128xf32>
    %205 = arith.addf %200, %204 : vector<1x128xf32>
    %c96 = arith.constant 96 : index
    %c0_207 = arith.constant 0 : index
    %206 = vector.load %arg10[%c96, %c0_207] : memref<192x16xbf16, #tpu.memory_space<vmem>>, vector<1x16xbf16>
    %c18_208 = arith.constant 18 : index
    %c0_209 = arith.constant 0 : index
    %c0_210 = arith.constant 0 : index
    %207 = vector.load %arg6[%c18_208, %c0_209, %c0_210] : memref<36x16x128xbf16, #tpu.memory_space<vmem>>, vector<1x16x128xbf16>
    %208 = vector.shape_cast %207 : vector<1x16x128xbf16> to vector<16x128xbf16>
    %cst_211 = arith.constant dense<0.000000e+00> : vector<1x128xf32>
    %209 = tpu.matmul %206, %208, %cst_211 {dimension_numbers = #tpu.dot_dimension_numbers<[1], [0], [0], [1], [0, 0, 1, 1], [], []>} : vector<1x16xbf16>, vector<16x128xbf16>, vector<1x128xf32> -> vector<1x128xf32>
    %210 = arith.addf %205, %209 : vector<1x128xf32>
    %c98 = arith.constant 98 : index
    %c0_212 = arith.constant 0 : index
    %211 = vector.load %arg10[%c98, %c0_212] : memref<192x16xbf16, #tpu.memory_space<vmem>>, vector<1x16xbf16>
    %c19 = arith.constant 19 : index
    %c0_213 = arith.constant 0 : index
    %c0_214 = arith.constant 0 : index
    %212 = vector.load %arg6[%c19, %c0_213, %c0_214] : memref<36x16x128xbf16, #tpu.memory_space<vmem>>, vector<1x16x128xbf16>
    %213 = vector.shape_cast %212 : vector<1x16x128xbf16> to vector<16x128xbf16>
    %cst_215 = arith.constant dense<0.000000e+00> : vector<1x128xf32>
    %214 = tpu.matmul %211, %213, %cst_215 {dimension_numbers = #tpu.dot_dimension_numbers<[1], [0], [0], [1], [0, 0, 1, 1], [], []>} : vector<1x16xbf16>, vector<16x128xbf16>, vector<1x128xf32> -> vector<1x128xf32>
    %215 = arith.addf %210, %214 : vector<1x128xf32>
    %c100 = arith.constant 100 : index
    %c0_216 = arith.constant 0 : index
    %216 = vector.load %arg10[%c100, %c0_216] : memref<192x16xbf16, #tpu.memory_space<vmem>>, vector<1x16xbf16>
    %c20 = arith.constant 20 : index
    %c0_217 = arith.constant 0 : index
    %c0_218 = arith.constant 0 : index
    %217 = vector.load %arg6[%c20, %c0_217, %c0_218] : memref<36x16x128xbf16, #tpu.memory_space<vmem>>, vector<1x16x128xbf16>
    %218 = vector.shape_cast %217 : vector<1x16x128xbf16> to vector<16x128xbf16>
    %cst_219 = arith.constant dense<0.000000e+00> : vector<1x128xf32>
    %219 = tpu.matmul %216, %218, %cst_219 {dimension_numbers = #tpu.dot_dimension_numbers<[1], [0], [0], [1], [0, 0, 1, 1], [], []>} : vector<1x16xbf16>, vector<16x128xbf16>, vector<1x128xf32> -> vector<1x128xf32>
    %220 = arith.addf %215, %219 : vector<1x128xf32>
    %c102 = arith.constant 102 : index
    %c0_220 = arith.constant 0 : index
    %221 = vector.load %arg10[%c102, %c0_220] : memref<192x16xbf16, #tpu.memory_space<vmem>>, vector<1x16xbf16>
    %c21 = arith.constant 21 : index
    %c0_221 = arith.constant 0 : index
    %c0_222 = arith.constant 0 : index
    %222 = vector.load %arg6[%c21, %c0_221, %c0_222] : memref<36x16x128xbf16, #tpu.memory_space<vmem>>, vector<1x16x128xbf16>
    %223 = vector.shape_cast %222 : vector<1x16x128xbf16> to vector<16x128xbf16>
    %cst_223 = arith.constant dense<0.000000e+00> : vector<1x128xf32>
    %224 = tpu.matmul %221, %223, %cst_223 {dimension_numbers = #tpu.dot_dimension_numbers<[1], [0], [0], [1], [0, 0, 1, 1], [], []>} : vector<1x16xbf16>, vector<16x128xbf16>, vector<1x128xf32> -> vector<1x128xf32>
    %225 = arith.addf %220, %224 : vector<1x128xf32>
    %c104 = arith.constant 104 : index
    %c0_224 = arith.constant 0 : index
    %226 = vector.load %arg10[%c104, %c0_224] : memref<192x16xbf16, #tpu.memory_space<vmem>>, vector<1x16xbf16>
    %c22 = arith.constant 22 : index
    %c0_225 = arith.constant 0 : index
    %c0_226 = arith.constant 0 : index
    %227 = vector.load %arg6[%c22, %c0_225, %c0_226] : memref<36x16x128xbf16, #tpu.memory_space<vmem>>, vector<1x16x128xbf16>
    %228 = vector.shape_cast %227 : vector<1x16x128xbf16> to vector<16x128xbf16>
    %cst_227 = arith.constant dense<0.000000e+00> : vector<1x128xf32>
    %229 = tpu.matmul %226, %228, %cst_227 {dimension_numbers = #tpu.dot_dimension_numbers<[1], [0], [0], [1], [0, 0, 1, 1], [], []>} : vector<1x16xbf16>, vector<16x128xbf16>, vector<1x128xf32> -> vector<1x128xf32>
    %230 = arith.addf %225, %229 : vector<1x128xf32>
    %c106 = arith.constant 106 : index
    %c0_228 = arith.constant 0 : index
    %231 = vector.load %arg10[%c106, %c0_228] : memref<192x16xbf16, #tpu.memory_space<vmem>>, vector<1x16xbf16>
    %c23 = arith.constant 23 : index
    %c0_229 = arith.constant 0 : index
    %c0_230 = arith.constant 0 : index
    %232 = vector.load %arg6[%c23, %c0_229, %c0_230] : memref<36x16x128xbf16, #tpu.memory_space<vmem>>, vector<1x16x128xbf16>
    %233 = vector.shape_cast %232 : vector<1x16x128xbf16> to vector<16x128xbf16>
    %cst_231 = arith.constant dense<0.000000e+00> : vector<1x128xf32>
    %234 = tpu.matmul %231, %233, %cst_231 {dimension_numbers = #tpu.dot_dimension_numbers<[1], [0], [0], [1], [0, 0, 1, 1], [], []>} : vector<1x16xbf16>, vector<16x128xbf16>, vector<1x128xf32> -> vector<1x128xf32>
    %235 = arith.addf %230, %234 : vector<1x128xf32>
    %c128 = arith.constant 128 : index
    %c0_232 = arith.constant 0 : index
    %236 = vector.load %arg10[%c128, %c0_232] : memref<192x16xbf16, #tpu.memory_space<vmem>>, vector<1x16xbf16>
    %c24 = arith.constant 24 : index
    %c0_233 = arith.constant 0 : index
    %c0_234 = arith.constant 0 : index
    %237 = vector.load %arg6[%c24, %c0_233, %c0_234] : memref<36x16x128xbf16, #tpu.memory_space<vmem>>, vector<1x16x128xbf16>
    %238 = vector.shape_cast %237 : vector<1x16x128xbf16> to vector<16x128xbf16>
    %cst_235 = arith.constant dense<0.000000e+00> : vector<1x128xf32>
    %239 = tpu.matmul %236, %238, %cst_235 {dimension_numbers = #tpu.dot_dimension_numbers<[1], [0], [0], [1], [0, 0, 1, 1], [], []>} : vector<1x16xbf16>, vector<16x128xbf16>, vector<1x128xf32> -> vector<1x128xf32>
    %240 = arith.addf %235, %239 : vector<1x128xf32>
    %c130 = arith.constant 130 : index
    %c0_236 = arith.constant 0 : index
    %241 = vector.load %arg10[%c130, %c0_236] : memref<192x16xbf16, #tpu.memory_space<vmem>>, vector<1x16xbf16>
    %c25 = arith.constant 25 : index
    %c0_237 = arith.constant 0 : index
    %c0_238 = arith.constant 0 : index
    %242 = vector.load %arg6[%c25, %c0_237, %c0_238] : memref<36x16x128xbf16, #tpu.memory_space<vmem>>, vector<1x16x128xbf16>
    %243 = vector.shape_cast %242 : vector<1x16x128xbf16> to vector<16x128xbf16>
    %cst_239 = arith.constant dense<0.000000e+00> : vector<1x128xf32>
    %244 = tpu.matmul %241, %243, %cst_239 {dimension_numbers = #tpu.dot_dimension_numbers<[1], [0], [0], [1], [0, 0, 1, 1], [], []>} : vector<1x16xbf16>, vector<16x128xbf16>, vector<1x128xf32> -> vector<1x128xf32>
    %245 = arith.addf %240, %244 : vector<1x128xf32>
    %c132 = arith.constant 132 : index
    %c0_240 = arith.constant 0 : index
    %246 = vector.load %arg10[%c132, %c0_240] : memref<192x16xbf16, #tpu.memory_space<vmem>>, vector<1x16xbf16>
    %c26 = arith.constant 26 : index
    %c0_241 = arith.constant 0 : index
    %c0_242 = arith.constant 0 : index
    %247 = vector.load %arg6[%c26, %c0_241, %c0_242] : memref<36x16x128xbf16, #tpu.memory_space<vmem>>, vector<1x16x128xbf16>
    %248 = vector.shape_cast %247 : vector<1x16x128xbf16> to vector<16x128xbf16>
    %cst_243 = arith.constant dense<0.000000e+00> : vector<1x128xf32>
    %249 = tpu.matmul %246, %248, %cst_243 {dimension_numbers = #tpu.dot_dimension_numbers<[1], [0], [0], [1], [0, 0, 1, 1], [], []>} : vector<1x16xbf16>, vector<16x128xbf16>, vector<1x128xf32> -> vector<1x128xf32>
    %250 = arith.addf %245, %249 : vector<1x128xf32>
    %c134 = arith.constant 134 : index
    %c0_244 = arith.constant 0 : index
    %251 = vector.load %arg10[%c134, %c0_244] : memref<192x16xbf16, #tpu.memory_space<vmem>>, vector<1x16xbf16>
    %c27 = arith.constant 27 : index
    %c0_245 = arith.constant 0 : index
    %c0_246 = arith.constant 0 : index
    %252 = vector.load %arg6[%c27, %c0_245, %c0_246] : memref<36x16x128xbf16, #tpu.memory_space<vmem>>, vector<1x16x128xbf16>
    %253 = vector.shape_cast %252 : vector<1x16x128xbf16> to vector<16x128xbf16>
    %cst_247 = arith.constant dense<0.000000e+00> : vector<1x128xf32>
    %254 = tpu.matmul %251, %253, %cst_247 {dimension_numbers = #tpu.dot_dimension_numbers<[1], [0], [0], [1], [0, 0, 1, 1], [], []>} : vector<1x16xbf16>, vector<16x128xbf16>, vector<1x128xf32> -> vector<1x128xf32>
    %255 = arith.addf %250, %254 : vector<1x128xf32>
    %c136 = arith.constant 136 : index
    %c0_248 = arith.constant 0 : index
    %256 = vector.load %arg10[%c136, %c0_248] : memref<192x16xbf16, #tpu.memory_space<vmem>>, vector<1x16xbf16>
    %c28 = arith.constant 28 : index
    %c0_249 = arith.constant 0 : index
    %c0_250 = arith.constant 0 : index
    %257 = vector.load %arg6[%c28, %c0_249, %c0_250] : memref<36x16x128xbf16, #tpu.memory_space<vmem>>, vector<1x16x128xbf16>
    %258 = vector.shape_cast %257 : vector<1x16x128xbf16> to vector<16x128xbf16>
    %cst_251 = arith.constant dense<0.000000e+00> : vector<1x128xf32>
    %259 = tpu.matmul %256, %258, %cst_251 {dimension_numbers = #tpu.dot_dimension_numbers<[1], [0], [0], [1], [0, 0, 1, 1], [], []>} : vector<1x16xbf16>, vector<16x128xbf16>, vector<1x128xf32> -> vector<1x128xf32>
    %260 = arith.addf %255, %259 : vector<1x128xf32>
    %c138 = arith.constant 138 : index
    %c0_252 = arith.constant 0 : index
    %261 = vector.load %arg10[%c138, %c0_252] : memref<192x16xbf16, #tpu.memory_space<vmem>>, vector<1x16xbf16>
    %c29 = arith.constant 29 : index
    %c0_253 = arith.constant 0 : index
    %c0_254 = arith.constant 0 : index
    %262 = vector.load %arg6[%c29, %c0_253, %c0_254] : memref<36x16x128xbf16, #tpu.memory_space<vmem>>, vector<1x16x128xbf16>
    %263 = vector.shape_cast %262 : vector<1x16x128xbf16> to vector<16x128xbf16>
    %cst_255 = arith.constant dense<0.000000e+00> : vector<1x128xf32>
    %264 = tpu.matmul %261, %263, %cst_255 {dimension_numbers = #tpu.dot_dimension_numbers<[1], [0], [0], [1], [0, 0, 1, 1], [], []>} : vector<1x16xbf16>, vector<16x128xbf16>, vector<1x128xf32> -> vector<1x128xf32>
    %265 = arith.addf %260, %264 : vector<1x128xf32>
    %c160 = arith.constant 160 : index
    %c0_256 = arith.constant 0 : index
    %266 = vector.load %arg10[%c160, %c0_256] : memref<192x16xbf16, #tpu.memory_space<vmem>>, vector<1x16xbf16>
    %c30 = arith.constant 30 : index
    %c0_257 = arith.constant 0 : index
    %c0_258 = arith.constant 0 : index
    %267 = vector.load %arg6[%c30, %c0_257, %c0_258] : memref<36x16x128xbf16, #tpu.memory_space<vmem>>, vector<1x16x128xbf16>
    %268 = vector.shape_cast %267 : vector<1x16x128xbf16> to vector<16x128xbf16>
    %cst_259 = arith.constant dense<0.000000e+00> : vector<1x128xf32>
    %269 = tpu.matmul %266, %268, %cst_259 {dimension_numbers = #tpu.dot_dimension_numbers<[1], [0], [0], [1], [0, 0, 1, 1], [], []>} : vector<1x16xbf16>, vector<16x128xbf16>, vector<1x128xf32> -> vector<1x128xf32>
    %270 = arith.addf %265, %269 : vector<1x128xf32>
    %c162 = arith.constant 162 : index
    %c0_260 = arith.constant 0 : index
    %271 = vector.load %arg10[%c162, %c0_260] : memref<192x16xbf16, #tpu.memory_space<vmem>>, vector<1x16xbf16>
    %c31 = arith.constant 31 : index
    %c0_261 = arith.constant 0 : index
    %c0_262 = arith.constant 0 : index
    %272 = vector.load %arg6[%c31, %c0_261, %c0_262] : memref<36x16x128xbf16, #tpu.memory_space<vmem>>, vector<1x16x128xbf16>
    %273 = vector.shape_cast %272 : vector<1x16x128xbf16> to vector<16x128xbf16>
    %cst_263 = arith.constant dense<0.000000e+00> : vector<1x128xf32>
    %274 = tpu.matmul %271, %273, %cst_263 {dimension_numbers = #tpu.dot_dimension_numbers<[1], [0], [0], [1], [0, 0, 1, 1], [], []>} : vector<1x16xbf16>, vector<16x128xbf16>, vector<1x128xf32> -> vector<1x128xf32>
    %275 = arith.addf %270, %274 : vector<1x128xf32>
    %c164 = arith.constant 164 : index
    %c0_264 = arith.constant 0 : index
    %276 = vector.load %arg10[%c164, %c0_264] : memref<192x16xbf16, #tpu.memory_space<vmem>>, vector<1x16xbf16>
    %c32_265 = arith.constant 32 : index
    %c0_266 = arith.constant 0 : index
    %c0_267 = arith.constant 0 : index
    %277 = vector.load %arg6[%c32_265, %c0_266, %c0_267] : memref<36x16x128xbf16, #tpu.memory_space<vmem>>, vector<1x16x128xbf16>
    %278 = vector.shape_cast %277 : vector<1x16x128xbf16> to vector<16x128xbf16>
    %cst_268 = arith.constant dense<0.000000e+00> : vector<1x128xf32>
    %279 = tpu.matmul %276, %278, %cst_268 {dimension_numbers = #tpu.dot_dimension_numbers<[1], [0], [0], [1], [0, 0, 1, 1], [], []>} : vector<1x16xbf16>, vector<16x128xbf16>, vector<1x128xf32> -> vector<1x128xf32>
    %280 = arith.addf %275, %279 : vector<1x128xf32>
    %c166 = arith.constant 166 : index
    %c0_269 = arith.constant 0 : index
    %281 = vector.load %arg10[%c166, %c0_269] : memref<192x16xbf16, #tpu.memory_space<vmem>>, vector<1x16xbf16>
    %c33_270 = arith.constant 33 : index
    %c0_271 = arith.constant 0 : index
    %c0_272 = arith.constant 0 : index
    %282 = vector.load %arg6[%c33_270, %c0_271, %c0_272] : memref<36x16x128xbf16, #tpu.memory_space<vmem>>, vector<1x16x128xbf16>
    %283 = vector.shape_cast %282 : vector<1x16x128xbf16> to vector<16x128xbf16>
    %cst_273 = arith.constant dense<0.000000e+00> : vector<1x128xf32>
    %284 = tpu.matmul %281, %283, %cst_273 {dimension_numbers = #tpu.dot_dimension_numbers<[1], [0], [0], [1], [0, 0, 1, 1], [], []>} : vector<1x16xbf16>, vector<16x128xbf16>, vector<1x128xf32> -> vector<1x128xf32>
    %285 = arith.addf %280, %284 : vector<1x128xf32>
    %c168 = arith.constant 168 : index
    %c0_274 = arith.constant 0 : index
    %286 = vector.load %arg10[%c168, %c0_274] : memref<192x16xbf16, #tpu.memory_space<vmem>>, vector<1x16xbf16>
    %c34_275 = arith.constant 34 : index
    %c0_276 = arith.constant 0 : index
    %c0_277 = arith.constant 0 : index
    %287 = vector.load %arg6[%c34_275, %c0_276, %c0_277] : memref<36x16x128xbf16, #tpu.memory_space<vmem>>, vector<1x16x128xbf16>
    %288 = vector.shape_cast %287 : vector<1x16x128xbf16> to vector<16x128xbf16>
    %cst_278 = arith.constant dense<0.000000e+00> : vector<1x128xf32>
    %289 = tpu.matmul %286, %288, %cst_278 {dimension_numbers = #tpu.dot_dimension_numbers<[1], [0], [0], [1], [0, 0, 1, 1], [], []>} : vector<1x16xbf16>, vector<16x128xbf16>, vector<1x128xf32> -> vector<1x128xf32>
    %290 = arith.addf %285, %289 : vector<1x128xf32>
    %c170 = arith.constant 170 : index
    %c0_279 = arith.constant 0 : index
    %291 = vector.load %arg10[%c170, %c0_279] : memref<192x16xbf16, #tpu.memory_space<vmem>>, vector<1x16xbf16>
    %c35 = arith.constant 35 : index
    %c0_280 = arith.constant 0 : index
    %c0_281 = arith.constant 0 : index
    %292 = vector.load %arg6[%c35, %c0_280, %c0_281] : memref<36x16x128xbf16, #tpu.memory_space<vmem>>, vector<1x16x128xbf16>
    %293 = vector.shape_cast %292 : vector<1x16x128xbf16> to vector<16x128xbf16>
    %cst_282 = arith.constant dense<0.000000e+00> : vector<1x128xf32>
    %294 = tpu.matmul %291, %293, %cst_282 {dimension_numbers = #tpu.dot_dimension_numbers<[1], [0], [0], [1], [0, 0, 1, 1], [], []>} : vector<1x16xbf16>, vector<16x128xbf16>, vector<1x128xf32> -> vector<1x128xf32>
    %295 = arith.addf %290, %294 : vector<1x128xf32>
    %cst_283 = arith.constant dense<0xFF800000> : vector<1xf32>
    %296 = vector.multi_reduction <maximumf>, %295, %cst_283 [1] : vector<1x128xf32> to vector<1xf32>
    %297 = vector.shape_cast %296 : vector<1xf32> to vector<1x1xf32>
    %298 = vector.broadcast %297 : vector<1x1xf32> to vector<1x128xf32>
    %299 = arith.subf %295, %298 : vector<1x128xf32>
    %300 = math.exp %299 : vector<1x128xf32>
    %cst_284 = arith.constant dense<0.000000e+00> : vector<1xf32>
    %301 = vector.multi_reduction <add>, %300, %cst_284 [1] : vector<1x128xf32> to vector<1xf32>
    %302 = vector.shape_cast %301 : vector<1xf32> to vector<1x1xf32>
    %303 = tpu.reciprocal %302 {approx = true} : vector<1x1xf32> -> vector<1x1xf32>
    %304 = vector.broadcast %303 : vector<1x1xf32> to vector<1x128xf32>
    %305 = arith.mulf %300, %304 : vector<1x128xf32>
    %c0_285 = arith.constant 0 : index
    %c0_286 = arith.constant 0 : index
    %c0_287 = arith.constant 0 : index
    %306 = vector.load %arg8[%c0_285, %c0_286, %c0_287] : memref<1x1x128xf32, #tpu.memory_space<vmem>>, vector<1x1x128xf32>
    %307 = vector.shape_cast %306 : vector<1x1x128xf32> to vector<1x128xf32>
    %308 = vector.shape_cast %305 : vector<1x128xf32> to vector<1x1x128xf32>
    tpu.vector_store %arg8[%c0_285, %c0_286, %c0_287], %308 {strides = array<i32>} : memref<1x1x128xf32, #tpu.memory_space<vmem>>, vector<1x1x128xf32>,
    return
  }
  func.func @transform_0(%arg0: i32) -> (i32, i32, i32) {
    %c0_i32 = arith.constant 0 : i32
    %c0_i32_0 = arith.constant 0 : i32
    %c0_i32_1 = arith.constant 0 : i32
    return %arg0, %c0_i32, %c0_i32_0 : i32, i32, i32
  }
  func.func @transform_1(%arg0: i32) -> (i32, i32, i32) {
    %c0_i32 = arith.constant 0 : i32
    %c0_i32_0 = arith.constant 0 : i32
    %c0_i32_1 = arith.constant 0 : i32
    %c0_i32_2 = arith.constant 0 : i32
    return %c0_i32, %c0_i32_0, %c0_i32_1 : i32, i32, i32
  }
  func.func @transform_2(%arg0: i32) -> (i32, i32) {
    %c0_i32 = arith.constant 0 : i32
    %c0_i32_0 = arith.constant 0 : i32
    %c0_i32_1 = arith.constant 0 : i32
    return %c0_i32, %c0_i32_0 : i32, i32
  }
  func.func @transform_3(%arg0: i32) -> (i32, i32, i32) {
    %c0_i32 = arith.constant 0 : i32
    %c0_i32_0 = arith.constant 0 : i32
    %c0_i32_1 = arith.constant 0 : i32
    %c0_i32_2 = arith.constant 0 : i32
    return %c0_i32, %c0_i32_0, %c0_i32_1 : i32, i32, i32
  }
  func.func @transform_4(%arg0: i32) -> (i32, i32) {
    %c0_i32 = arith.constant 0 : i32
    %c0_i32_0 = arith.constant 0 : i32
    %c0_i32_1 = arith.constant 0 : i32
    return %c0_i32, %c0_i32_0 : i32, i32
  }
  func.func @transform_5(%arg0: i32) -> (i32, i32, i32) {
    %c0_i32 = arith.constant 0 : i32
    %c0_i32_0 = arith.constant 0 : i32
    %c0_i32_1 = arith.constant 0 : i32
    %c0_i32_2 = arith.constant 0 : i32
    return %c0_i32, %c0_i32_0, %c0_i32_1 : i32, i32, i32
  }
  func.func @transform_6(%arg0: i32) -> (i32, i32) {
    %c0_i32 = arith.constant 0 : i32
    %c0_i32_0 = arith.constant 0 : i32
    %c0_i32_1 = arith.constant 0 : i32
    return %c0_i32, %c0_i32_0 : i32, i32
  }
  func.func @transform_7(%arg0: i32) -> (i32, i32, i32) {
    %c0_i32 = arith.constant 0 : i32
    %c0_i32_0 = arith.constant 0 : i32
    %c0_i32_1 = arith.constant 0 : i32
    return %arg0, %c0_i32, %c0_i32_0 : i32, i32, i32
  }
}

</mosaic_0001>

<llo_original>
// kernel: _lambda_.1
$region0: #{_lambda_.1}
  #allocation0 [shape = 'u32[]', space=smem, size = 0x4, offset = 0x4, fixed_abs, tag = 'smem constant byte address 0x4 - core index']
  #allocation1 [shape = 'u32[144,128]{1,0:T(1,128)}', space=vmem, size = 0x12000, scoped, tag = 'internal scratch']
  #allocation2 [shape = 'bf16[232,128]{1,0:T(8,128)(2,1)}', space=vmem, size = 0xe800, scoped, tag = 'scratch operand']
  #allocation3 [shape = 'bf16[192,16]{1,0:T(16,128)(2,1)}', space=vmem, size = 0xc000, scoped, tag = 'scratch operand']
  %s0 = inlined_call_operand.vmem [shape: bf16[2,264,4], index: 0, kind: input, shape index: {}]
  %s1 = inlined_call_operand.vmem [shape: bf16[9,4,128], index: 1, kind: input, shape index: {}]
  %s2 = inlined_call_operand.vmem [shape: f32[1,128], index: 2, kind: input, shape index: {}]
  %s3 = inlined_call_operand.vmem [shape: bf16[9,128,16], index: 3, kind: input, shape index: {}]
  %s4 = inlined_call_operand.vmem [shape: f32[1,16], index: 4, kind: input, shape index: {}]
  %s5 = inlined_call_operand.vmem [shape: bf16[36,16,128], index: 5, kind: input, shape index: {}]
  %s6 = inlined_call_operand.vmem [shape: f32[1,128], index: 6, kind: input, shape index: {}]
  %s7 = inlined_call_operand.hbm [shape: f32[2,1,128], index: 7, kind: output, shape index: {}]
  %s8 = sld [smem:[#allocation0]]
  $region61: #{_lambda_.1} parent=0
    _
  %s10 = ssub.s32 1, %s8
  %s11 = scalar_select 0, %s10, %s8
  $region1: #{_lambda_.1} parent=0
    #allocation4 [shape = 'u8[1024]{0}', space=vmem, size = 0x400, scoped, tag = 'output window, operand 0']
    #allocation5 [shape = 's32[2]{0}', space=sflag, size = 0x8, scoped, tag = 'scoped memory for _lambda_.1']
    %12 = vsyncpa [#allocation5], 0
    %s13 = scalar_lea.sflag [#allocation5], 1
    %14 = vsyncpa %s13, 0
    loop: start=0, step=1, limit=4
    $region2: #{_lambda_.1} parent=1 // loop_pre_header
      _
    $region3: #{_lambda_.1} parent=1 // loop_header
      %s16 = sphi 0, %s20
      %p17 = scmp.ge.s32.totalorder %s16, 4
      %s26 = sphi 0, %s28
      %s29 = sphi 0, %s26
      %s30 = sphi 0, %s29
      %s46 = sphi 0, %s30
      %s50 = sphi 0, %s50
      %s52 = sphi 0, %s50
      %s53 = sphi 0, %s52
      %s67 = sphi 0, %s53
      %s71 = sphi 0, %s71
      %s73 = sphi 0, %s71
      %s74 = sphi 0, %s73
      %s88 = sphi 0, %s74
      %s92 = sphi 0, %s92
      %s94 = sphi 0, %s92
      %s95 = sphi 0, %s94
      %s109 = sphi 0, %s95
      %s113 = sphi 0, %s113
      %s115 = sphi 0, %s113
      %s116 = sphi 0, %s115
      %s130 = sphi 0, %s116
      %s134 = sphi 0, %s134
      %s136 = sphi 0, %s134
      %s137 = sphi 0, %s136
      %s151 = sphi 0, %s137
      %s155 = sphi 0, %s155
      %s157 = sphi 0, %s155
      %s158 = sphi 0, %s157
      %s172 = sphi 0, %s158
      %s178 = sphi 0, %s180
      %s181 = sphi 0, %s178
      %s182 = sphi 0, %s181
      %s198 = sphi 0, %s182
    $region4: #{_lambda_.1} parent=1 // loop_header_branch
      %19 = sbr.rel (%p17) target = $region8
    $region5: #{_lambda_.1} parent=1 // loop_body
      %s21 = ssub.s32 %s16, 1
      %s22 = ssub.s32 %s16, 2
      %s23 = sadd.s32 %s16, 1
      %s24 = ssub.s32 %s16, %s23
      %p25 = scmp.eq.s32.totalorder %s24, 0
      %s27 = sadd.s32 %s26, 1
      %s28 = scalar_select %p25, %s26, %s27
      %p31 = pneg %p25
      %p32 = scmp.eq.s32.totalorder %s16, 1
      %p33 = por %p31, %p32
      %p34 = scmp.ne.s32.totalorder %s26, %s29
      %p35 = scmp.eq.s32.totalorder %s16, 0
      %p36 = por %p34, %p35
      %p37 = scmp.ne.s32.totalorder %s26, %s29
      %p38 = scmp.eq.s32.totalorder %s21, 1
      %p39 = por %p37, %p38
      %p40 = scmp.ne.s32.totalorder %s29, %s30
      %p41 = scmp.eq.s32.totalorder %s21, 0
      %p42 = por %p40, %p41
      %p43 = scmp.ne.s32.totalorder %s29, %s30
      %p44 = scmp.eq.s32.totalorder %s22, 1
      %p45 = por %p43, %p44
      %p47 = scmp.ne.s32.totalorder %s30, %s46
      %p48 = scmp.eq.s32.totalorder %s22, 0
      %p49 = por %p47, %p48
      %s51 = sadd.s32 %s50, 1
      %p54 = scmp.eq.s32.totalorder %s16, 1
      %p55 = scmp.ne.s32.totalorder %s50, %s52
      %p56 = scmp.eq.s32.totalorder %s16, 0
      %p57 = por %p55, %p56
      %p58 = scmp.ne.s32.totalorder %s50, %s52
      %p59 = scmp.eq.s32.totalorder %s21, 1
      %p60 = por %p58, %p59
      %p61 = scmp.ne.s32.totalorder %s52, %s53
      %p62 = scmp.eq.s32.totalorder %s21, 0
      %p63 = por %p61, %p62
      %p64 = scmp.ne.s32.totalorder %s52, %s53
      %p65 = scmp.eq.s32.totalorder %s22, 1
      %p66 = por %p64, %p65
      %p68 = scmp.ne.s32.totalorder %s53, %s67
      %p69 = scmp.eq.s32.totalorder %s22, 0
      %p70 = por %p68, %p69
      %s72 = sadd.s32 %s71, 1
      %p75 = scmp.eq.s32.totalorder %s16, 1
      %p76 = scmp.ne.s32.totalorder %s71, %s73
      %p77 = scmp.eq.s32.totalorder %s16, 0
      %p78 = por %p76, %p77
      %p79 = scmp.ne.s32.totalorder %s71, %s73
      %p80 = scmp.eq.s32.totalorder %s21, 1
      %p81 = por %p79, %p80
      %p82 = scmp.ne.s32.totalorder %s73, %s74
      %p83 = scmp.eq.s32.totalorder %s21, 0
      %p84 = por %p82, %p83
      %p85 = scmp.ne.s32.totalorder %s73, %s74
      %p86 = scmp.eq.s32.totalorder %s22, 1
      %p87 = por %p85, %p86
      %p89 = scmp.ne.s32.totalorder %s74, %s88
      %p90 = scmp.eq.s32.totalorder %s22, 0
      %p91 = por %p89, %p90
      %s93 = sadd.s32 %s92, 1
      %p96 = scmp.eq.s32.totalorder %s16, 1
      %p97 = scmp.ne.s32.totalorder %s92, %s94
      %p98 = scmp.eq.s32.totalorder %s16, 0
      %p99 = por %p97, %p98
      %p100 = scmp.ne.s32.totalorder %s92, %s94
      %p101 = scmp.eq.s32.totalorder %s21, 1
      %p102 = por %p100, %p101
      %p103 = scmp.ne.s32.totalorder %s94, %s95
      %p104 = scmp.eq.s32.totalorder %s21, 0
      %p105 = por %p103, %p104
      %p106 = scmp.ne.s32.totalorder %s94, %s95
      %p107 = scmp.eq.s32.totalorder %s22, 1
      %p108 = por %p106, %p107
      %p110 = scmp.ne.s32.totalorder %s95, %s109
      %p111 = scmp.eq.s32.totalorder %s22, 0
      %p112 = por %p110, %p111
      %s114 = sadd.s32 %s113, 1
      %p117 = scmp.eq.s32.totalorder %s16, 1
      %p118 = scmp.ne.s32.totalorder %s113, %s115
      %p119 = scmp.eq.s32.totalorder %s16, 0
      %p120 = por %p118, %p119
      %p121 = scmp.ne.s32.totalorder %s113, %s115
      %p122 = scmp.eq.s32.totalorder %s21, 1
      %p123 = por %p121, %p122
      %p124 = scmp.ne.s32.totalorder %s115, %s116
      %p125 = scmp.eq.s32.totalorder %s21, 0
      %p126 = por %p124, %p125
      %p127 = scmp.ne.s32.totalorder %s115, %s116
      %p128 = scmp.eq.s32.totalorder %s22, 1
      %p129 = por %p127, %p128
      %p131 = scmp.ne.s32.totalorder %s116, %s130
      %p132 = scmp.eq.s32.totalorder %s22, 0
      %p133 = por %p131, %p132
      %s135 = sadd.s32 %s134, 1
      %p138 = scmp.eq.s32.totalorder %s16, 1
      %p139 = scmp.ne.s32.totalorder %s134, %s136
      %p140 = scmp.eq.s32.totalorder %s16, 0
      %p141 = por %p139, %p140
      %p142 = scmp.ne.s32.totalorder %s134, %s136
      %p143 = scmp.eq.s32.totalorder %s21, 1
      %p144 = por %p142, %p143
      %p145 = scmp.ne.s32.totalorder %s136, %s137
      %p146 = scmp.eq.s32.totalorder %s21, 0
      %p147 = por %p145, %p146
      %p148 = scmp.ne.s32.totalorder %s136, %s137
      %p149 = scmp.eq.s32.totalorder %s22, 1
      %p150 = por %p148, %p149
      %p152 = scmp.ne.s32.totalorder %s137, %s151
      %p153 = scmp.eq.s32.totalorder %s22, 0
      %p154 = por %p152, %p153
      %s156 = sadd.s32 %s155, 1
      %p159 = scmp.eq.s32.totalorder %s16, 1
      %p160 = scmp.ne.s32.totalorder %s155, %s157
      %p161 = scmp.eq.s32.totalorder %s16, 0
      %p162 = por %p160, %p161
      %p163 = scmp.ne.s32.totalorder %s155, %s157
      %p164 = scmp.eq.s32.totalorder %s21, 1
      %p165 = por %p163, %p164
      %p166 = scmp.ne.s32.totalorder %s157, %s158
      %p167 = scmp.eq.s32.totalorder %s21, 0
      %p168 = por %p166, %p167
      %p169 = scmp.ne.s32.totalorder %s157, %s158
      %p170 = scmp.eq.s32.totalorder %s22, 1
      %p171 = por %p169, %p170
      %p173 = scmp.ne.s32.totalorder %s158, %s172
      %p174 = scmp.eq.s32.totalorder %s22, 0
      %p175 = por %p173, %p174
      %s176 = ssub.s32 %s16, %s23
      %p177 = scmp.eq.s32.totalorder %s176, 0
      %s179 = sadd.s32 %s178, 1
      %s180 = scalar_select %p177, %s178, %s179
      %p183 = pneg %p177
      %p184 = scmp.eq.s32.totalorder %s16, 1
      %p185 = por %p183, %p184
      %p186 = scmp.ne.s32.totalorder %s178, %s181
      %p187 = scmp.eq.s32.totalorder %s16, 0
      %p188 = por %p186, %p187
      %p189 = scmp.ne.s32.totalorder %s178, %s181
      %p190 = scmp.eq.s32.totalorder %s21, 1
      %p191 = por %p189, %p190
      %p192 = scmp.ne.s32.totalorder %s181, %s182
      %p193 = scmp.eq.s32.totalorder %s21, 0
      %p194 = por %p192, %p193
      %p195 = scmp.ne.s32.totalorder %s181, %s182
      %p196 = scmp.eq.s32.totalorder %s22, 1
      %p197 = por %p195, %p196
      %p199 = scmp.ne.s32.totalorder %s182, %s198
      %p200 = scmp.eq.s32.totalorder %s22, 0
      %p201 = por %p199, %p200
      %p202 = scmp.le.s32.totalorder 1, %s16
      %p203 = scmp.lt.s32.totalorder %s16, 3
      %p204 = pnand %p202, %p203
      %p205 = pneg %p204
      // Predicated region
      $region9: #{_lambda_.1} parent=5 // pred_check
        _
      $region10: #{_lambda_.1} parent=5 // pred_check_branch
        %207 = sbr.rel (%p204) target = $region12
      $region11: #{_lambda_.1} parent=5 // pred_region
        %s208 = ssub.s32 %s16, 1
        // Predicated region
        $region13: #{_lambda_.1} parent=11 // pred_check
          %p209 = pneg %p63
        $region14: #{_lambda_.1} parent=11 // pred_check_branch
          %211 = sbr.rel (%p209) target = $region16
        $region15: #{_lambda_.1} parent=11 // pred_region
          _
        $region16: #{_lambda_.1} parent=11 // pred_fallthru
          _
        // Predicated region
        $region17: #{_lambda_.1} parent=11 // pred_check
          %p212 = pneg %p84
        $region18: #{_lambda_.1} parent=11 // pred_check_branch
          %214 = sbr.rel (%p212) target = $region20
        $region19: #{_lambda_.1} parent=11 // pred_region
          _
        $region20: #{_lambda_.1} parent=11 // pred_fallthru
          _
        // Predicated region
        $region21: #{_lambda_.1} parent=11 // pred_check
          %p215 = pneg %p105
        $region22: #{_lambda_.1} parent=11 // pred_check_branch
          %217 = sbr.rel (%p215) target = $region24
        $region23: #{_lambda_.1} parent=11 // pred_region
          _
        $region24: #{_lambda_.1} parent=11 // pred_fallthru
          _
        // Predicated region
        $region25: #{_lambda_.1} parent=11 // pred_check
          %p218 = pneg %p126
        $region26: #{_lambda_.1} parent=11 // pred_check_branch
          %220 = sbr.rel (%p218) target = $region28
        $region27: #{_lambda_.1} parent=11 // pred_region
          _
        $region28: #{_lambda_.1} parent=11 // pred_fallthru
          _
        // Predicated region
        $region29: #{_lambda_.1} parent=11 // pred_check
          %p221 = pneg %p147
        $region30: #{_lambda_.1} parent=11 // pred_check_branch
          %223 = sbr.rel (%p221) target = $region32
        $region31: #{_lambda_.1} parent=11 // pred_region
          _
        $region32: #{_lambda_.1} parent=11 // pred_fallthru
          _
        // Predicated region
        $region33: #{_lambda_.1} parent=11 // pred_check
          %p224 = pneg %p168
        $region34: #{_lambda_.1} parent=11 // pred_check_branch
          %226 = sbr.rel (%p224) target = $region36
        $region35: #{_lambda_.1} parent=11 // pred_region
          _
        $region36: #{_lambda_.1} parent=11 // pred_fallthru
          _
      $region12: #{_lambda_.1} parent=5 // pred_fallthru
        _
      %p227 = scmp.lt.s32.totalorder %s16, 2
      // Predicated region
      $region37: #{_lambda_.1} parent=5 // pred_check
        %p228 = pneg %p227
      $region38: #{_lambda_.1} parent=5 // pred_check_branch
        %230 = sbr.rel (%p228) target = $region40
      $region39: #{_lambda_.1} parent=5 // pred_region
        // Predicated region
        $region41: #{_lambda_.1} parent=39 // pred_check
          %p231 = pneg %p36
        $region42: #{_lambda_.1} parent=39 // pred_check_branch
          %233 = sbr.rel (%p231) target = $region44
        $region43: #{_lambda_.1} parent=39 // pred_region
          %p234 = scmp.lt.s32.totalorder %s16, 1
          %s235 = scalar_select %p234, %s16, 1
          %s236 = smul.addr %s235, 33
          %s237 = smul.addr %s236, 4
          %s238 = scalar_lea.vmem %s0, %s237
        $region44: #{_lambda_.1} parent=39 // pred_fallthru
          _
      $region40: #{_lambda_.1} parent=5 // pred_fallthru
        _
      %p239 = scmp.le.s32.totalorder 1, %s16
      %p240 = scmp.lt.s32.totalorder %s16, 3
      %p241 = pnand %p239, %p240
      %p242 = pneg %p241
      // Predicated region
      $region45: #{_lambda_.1} parent=5 // pred_check
        _
      $region46: #{_lambda_.1} parent=5 // pred_check_branch
        %244 = sbr.rel (%p241) target = $region48
      $region47: #{_lambda_.1} parent=5 // pred_region
        %s245 = ssub.s32 %s16, 1
        %p246 = scmp.lt.s32.totalorder %s21, 1
        %s247 = scalar_select %p246, %s21, 1
        %s248 = smul.addr %s247, 33
        %s249 = smul.addr %s248, 4
        %s250 = scalar_lea.vmem %s0, %s249
        %p251 = pneg %p42
        %p252 = pneg %p39
        %p253 = pneg %p63
        %p254 = pneg %p60
        %p255 = pneg %p84
        %p256 = pneg %p81
        %p257 = pneg %p105
        %p258 = pneg %p102
        %p259 = pneg %p126
        %p260 = pneg %p123
        %p261 = pneg %p147
        %p262 = pneg %p144
        %p263 = pneg %p168
        %p264 = pneg %p165
        %p265 = pneg %p194
        %p266 = pneg %p191
        %s267 = sand.u32 %s181, 1
        %s268 = scalar_lea.sflag [#allocation5], %s267
        %s269 = sand.u32 %s181, 1
        %s270 = scalar_lea.vmem [#allocation4], %s269
        %p271 = scmp.lt.s32.totalorder %s21, 1
        %s272 = scalar_select %p271, %s21, 1
        %s273 = smul.addr %s272, 33
        %s274 = smul.addr %s273, 4
        %s275 = scalar_lea.vmem %s0, %s274
        %v277 = vld [vmem:[%s275] sm:$0xf]
        %v278 = vld [vmem:[%s275 + $0x4] sm:$0xf]
        %v279 = vld [vmem:[%s275 + $0x8] sm:$0xf]
        %v280 = vld [vmem:[%s275 + $0xc] sm:$0xf]
        %v281 = vld [vmem:[%s275 + $0x10] sm:$0xf]
        %v282 = vld [vmem:[%s275 + $0x14] sm:$0xf]
        %v283 = vld [vmem:[%s275 + $0x18] sm:$0xf]
        %v284 = vld [vmem:[%s275 + $0x1c] sm:$0xf]
        %v285 = vld [vmem:[%s275 + $0x20] sm:$0xf]
        %v286 = vld [vmem:[%s275 + $0x24] sm:$0xf]
        %v287 = vld [vmem:[%s275 + $0x28] sm:$0xf]
        %v288 = vld [vmem:[%s275 + $0x2c] sm:$0xf]
        %v289 = vld [vmem:[%s275 + $0x30] sm:$0xf]
        %v290 = vld [vmem:[%s275 + $0x34] sm:$0xf]
        %v291 = vld [vmem:[%s275 + $0x38] sm:$0xf]
        %v292 = vld [vmem:[%s275 + $0x3c] sm:$0xf]
        %v293 = vld [vmem:[%s275 + $0x40] sm:$0xf]
        %v294 = vld [vmem:[%s275 + $0x44] sm:$0xf]
        %v295 = vld [vmem:[%s275 + $0x48] sm:$0xf]
        %v296 = vld [vmem:[%s275 + $0x4c] sm:$0xf]
        %v297 = vld [vmem:[%s275 + $0x50] sm:$0xf]
        %v298 = vld [vmem:[%s275 + $0x54] sm:$0xf]
        %v299 = vld [vmem:[%s275 + $0x58] sm:$0xf]
        %v300 = vld [vmem:[%s275 + $0x5c] sm:$0xf]
        %v301 = vld [vmem:[%s275 + $0x60] sm:$0xf]
        %v302 = vld [vmem:[%s275 + $0x64] sm:$0xf]
        %v303 = vld [vmem:[%s275 + $0x68] sm:$0xf]
        %v304 = vld [vmem:[%s275 + $0x6c] sm:$0xf]
        %v305 = vld [vmem:[%s1] sm:$0x3]
        %v306 = vld [vmem:[%s275 + $0x70] sm:$0x1]
        %s307 = scalar_lea.vmem %s1, 2
        %v308 = vld [vmem:[%s307] sm:$0x3]
        %v338 = vunpack.c.l.b16 %v277
        %v339 = vunpack.c.l.b16 %v278
        %v340 = vunpack.c.l.b16 %v279
        %v341 = vunpack.c.l.b16 %v280
        %v342 = vunpack.c.l.b16 %v281
        %v343 = vunpack.c.l.b16 %v282
        %v344 = vunpack.c.l.b16 %v283
        %v345 = vunpack.c.l.b16 %v284
        %v346 = vunpack.c.l.b16 %v285
        %v347 = vunpack.c.l.b16 %v286
        %v348 = vunpack.c.l.b16 %v287
        %v349 = vunpack.c.l.b16 %v288
        %v350 = vunpack.c.l.b16 %v289
        %v351 = vunpack.c.l.b16 %v290
        %v352 = vunpack.c.l.b16 %v291
        %v353 = vunpack.c.l.b16 %v292
        %v354 = vunpack.c.l.b16 %v293
        %v355 = vunpack.c.l.b16 %v294
        %v356 = vunpack.c.l.b16 %v295
        %v357 = vunpack.c.l.b16 %v296
        %v358 = vunpack.c.l.b16 %v297
        %v359 = vunpack.c.l.b16 %v298
        %v360 = vunpack.c.l.b16 %v299
        %v361 = vunpack.c.l.b16 %v300
        %v362 = vunpack.c.l.b16 %v301
        %v363 = vunpack.c.l.b16 %v302
        %v364 = vunpack.c.l.b16 %v303
        %v365 = vunpack.c.l.b16 %v304
        %v366 = vunpack.c.l.b16 %v306
        %v367 = vpack.c.b16 %v339, %v338
        %v368 = vpack.c.b16 %v341, %v340
        %v369 = vpack.c.b16 %v343, %v342
        %v370 = vpack.c.b16 %v345, %v344
        %v371 = vpack.c.b16 %v347, %v346
        %v372 = vpack.c.b16 %v349, %v348
        %v373 = vpack.c.b16 %v351, %v350
        %v374 = vpack.c.b16 %v353, %v352
        %v375 = vpack.c.b16 %v355, %v354
        %v376 = vpack.c.b16 %v357, %v356
        %v377 = vpack.c.b16 %v359, %v358
        %v378 = vpack.c.b16 %v361, %v360
        %v379 = vpack.c.b16 %v363, %v362
        %v380 = vpack.c.b16 %v365, %v364
        %v381 = vpack.c.b16 %v366, %v366
        %vm382 = vsmask.f32 7424
        %v384 = vshrl.u32 %v367, 16
        %v386 = vshll.u32 %v367, 16
        %v388 = vrot.slane %v386, 1
        %v389 = vor.u32 %v384, %v388
        %v391 = vshll.u32 %v368, 16
        %v393 = vrot.slane %v391, 1
        %v394 = vsel %vm382, %v389, %v393
        %v395 = vshrl.u32 %v368, 16
        %v397 = vor.u32 %v395, %v393
        %v399 = vshll.u32 %v369, 16
        %v401 = vrot.slane %v399, 1
        %v402 = vsel %vm382, %v397, %v401
        %v403 = vshrl.u32 %v369, 16
        %v405 = vor.u32 %v403, %v401
        %v407 = vshll.u32 %v370, 16
        %v409 = vrot.slane %v407, 1
        %v410 = vsel %vm382, %v405, %v409
        %v411 = vshrl.u32 %v370, 16
        %v413 = vor.u32 %v411, %v409
        %v415 = vshll.u32 %v371, 16
        %v417 = vrot.slane %v415, 1
        %v418 = vsel %vm382, %v413, %v417
        %v419 = vshrl.u32 %v371, 16
        %v421 = vor.u32 %v419, %v417
        %v423 = vshll.u32 %v372, 16
        %v425 = vrot.slane %v423, 1
        %v426 = vsel %vm382, %v421, %v425
        %v427 = vshrl.u32 %v372, 16
        %v429 = vor.u32 %v427, %v425
        %v431 = vshll.u32 %v373, 16
        %v433 = vrot.slane %v431, 1
        %v434 = vsel %vm382, %v429, %v433
        %v435 = vshrl.u32 %v373, 16
        %v437 = vor.u32 %v435, %v433
        %v439 = vshll.u32 %v374, 16
        %v441 = vrot.slane %v439, 1
        %v442 = vsel %vm382, %v437, %v441
        %v443 = vshrl.u32 %v374, 16
        %v445 = vor.u32 %v443, %v441
        %v447 = vshll.u32 %v375, 16
        %v449 = vrot.slane %v447, 1
        %v450 = vsel %vm382, %v445, %v449
        %v451 = vshrl.u32 %v375, 16
        %v453 = vor.u32 %v451, %v449
        %v455 = vshll.u32 %v376, 16
        %v457 = vrot.slane %v455, 1
        %v458 = vsel %vm382, %v453, %v457
        %v459 = vshrl.u32 %v376, 16
        %v461 = vor.u32 %v459, %v457
        %v463 = vshll.u32 %v377, 16
        %v465 = vrot.slane %v463, 1
        %v466 = vsel %vm382, %v461, %v465
        %v467 = vshrl.u32 %v377, 16
        %v469 = vor.u32 %v467, %v465
        %v471 = vshll.u32 %v378, 16
        %v473 = vrot.slane %v471, 1
        %v474 = vsel %vm382, %v469, %v473
        %v475 = vshrl.u32 %v378, 16
        %v477 = vor.u32 %v475, %v473
        %v479 = vshll.u32 %v379, 16
        %v481 = vrot.slane %v479, 1
        %v482 = vsel %vm382, %v477, %v481
        %v483 = vshrl.u32 %v379, 16
        %v485 = vor.u32 %v483, %v481
        %v487 = vshll.u32 %v380, 16
        %v489 = vrot.slane %v487, 1
        %v490 = vsel %vm382, %v485, %v489
        %v491 = vshrl.u32 %v380, 16
        %v493 = vor.u32 %v491, %v489
        %v495 = vshll.u32 %v381, 16
        %v497 = vrot.slane %v495, 1
        %v498 = vsel %vm382, %v493, %v497
        %vm499 = vcmask 31744
        %v501 = vsel %vm499, %v394, 0
        %v504 = vsel %vm499, %v402, 0
        %v507 = vsel %vm499, %v410, 0
        %v510 = vsel %vm499, %v418, 0
        %v513 = vsel %vm499, %v426, 0
        %v516 = vsel %vm499, %v434, 0
        %v519 = vsel %vm499, %v442, 0
        %v522 = vsel %vm499, %v450, 0
        %v525 = vsel %vm499, %v458, 0
        %v528 = vsel %vm499, %v466, 0
        %v531 = vsel %vm499, %v474, 0
        %v534 = vsel %vm499, %v482, 0
        %v537 = vsel %vm499, %v490, 0
        %v540 = vsel %vm499, %v498, 0
        %vm542 = vcmask 1041408
        %v544 = vsel %vm542, %v308, 0
        %546 = vmatprep.subr.bf16.mxu0 0
        %547 = vmatpush1.bf16.msra.mxu0 %v544
        %548 = vmatprep.subr.bf16.mxu0 0
        %549 = vmatpush1.bf16.msra.mxu0 0
        %550 = vmatprep.subr.bf16.mxu0 0
        %551 = vmatpush1.bf16.msra.mxu0 0
        %552 = vmatprep.subr.bf16.mxu0 0
        %553 = vmatpush1.bf16.msra.mxu0 0
        %554 = vmatprep.subr.bf16.mxu0 0
        %555 = vmatpush1.bf16.msra.mxu0 0
        %556 = vmatprep.subr.bf16.mxu0 0
        %557 = vmatpush1.bf16.msra.mxu0 0
        %558 = vmatprep.subr.bf16.mxu0 0
        %559 = vmatpush1.bf16.msra.mxu0 0
        %560 = vmatprep.subr.bf16.mxu0 0
        %561 = vmatpush1.bf16.msra.mxu0 0
        %562 = vmatprep.subr.bf16.mxu0 0
        %563 = vmatpush1.bf16.msra.mxu0 0
        %564 = vmatprep.subr.bf16.mxu0 0
        %565 = vmatpush1.bf16.msra.mxu0 0
        %566 = vmatprep.subr.bf16.mxu0 0
        %567 = vmatpush1.bf16.msra.mxu0 0
        %568 = vmatprep.subr.bf16.mxu0 0
        %569 = vmatpush1.bf16.msra.mxu0 0
        %570 = vmatprep.subr.bf16.mxu0 0
        %571 = vmatpush1.bf16.msra.mxu0 0
        %572 = vmatprep.subr.bf16.mxu0 0
        %573 = vmatpush1.bf16.msra.mxu0 0
        %574 = vmatprep.subr.bf16.mxu0 0
        %575 = vmatpush1.bf16.msra.mxu0 0
        %576 = vmatprep.subr.bf16.mxu0 0
        %577 = vmatpush1.bf16.msra.mxu0 0
        %578 = vmatprep.mubr.bf16.mxu0 0
        %579 = vmatmul.mubr.bf16.gmra.mrb[0].mxu0 %v501
        %v580 = vpop.f32.mrb[0].mxu0
        %v581 = vadd.f32 0.0, %v580
        %v582 = vpop.f32.mrb[0].mxu0
        %v583 = vpop.f32.mrb[0].mxu0
        %v584 = vadd.f32 0.0, %v583
        %v585 = vpop.f32.mrb[0].mxu0
        %586 = vmatprep.mubr.bf16.mxu0 0
        %587 = vmatmul.mubr.bf16.gmra.mrb[0].mxu0 %v504
        %v588 = vpop.f32.mrb[0].mxu0
        %v589 = vadd.f32 0.0, %v588
        %v590 = vpop.f32.mrb[0].mxu0
        %v591 = vpop.f32.mrb[0].mxu0
        %v592 = vadd.f32 0.0, %v591
        %v593 = vpop.f32.mrb[0].mxu0
        %594 = vmatprep.mubr.bf16.mxu0 0
        %595 = vmatmul.mubr.bf16.gmra.mrb[0].mxu0 %v507
        %v596 = vpop.f32.mrb[0].mxu0
        %v597 = vadd.f32 0.0, %v596
        %v598 = vpop.f32.mrb[0].mxu0
        %v599 = vpop.f32.mrb[0].mxu0
        %v600 = vadd.f32 0.0, %v599
        %v601 = vpop.f32.mrb[0].mxu0
        %602 = vmatprep.mubr.bf16.mxu0 0
        %603 = vmatmul.mubr.bf16.gmra.mrb[0].mxu0 %v510
        %v604 = vpop.f32.mrb[0].mxu0
        %v605 = vadd.f32 0.0, %v604
        %v606 = vpop.f32.mrb[0].mxu0
        %v607 = vpop.f32.mrb[0].mxu0
        %v608 = vadd.f32 0.0, %v607
        %v609 = vpop.f32.mrb[0].mxu0
        %610 = vmatprep.mubr.bf16.mxu0 0
        %611 = vmatmul.mubr.bf16.gmra.mrb[0].mxu0 %v513
        %v612 = vpop.f32.mrb[0].mxu0
        %v613 = vadd.f32 0.0, %v612
        %v614 = vpop.f32.mrb[0].mxu0
        %v615 = vpop.f32.mrb[0].mxu0
        %v616 = vadd.f32 0.0, %v615
        %v617 = vpop.f32.mrb[0].mxu0
        %618 = vmatprep.mubr.bf16.mxu0 0
        %619 = vmatmul.mubr.bf16.gmra.mrb[0].mxu0 %v516
        %v620 = vpop.f32.mrb[0].mxu0
        %v621 = vadd.f32 0.0, %v620
        %v622 = vpop.f32.mrb[0].mxu0
        %v623 = vpop.f32.mrb[0].mxu0
        %v624 = vadd.f32 0.0, %v623
        %v625 = vpop.f32.mrb[0].mxu0
        %626 = vmatprep.mubr.bf16.mxu0 0
        %627 = vmatmul.mubr.bf16.gmra.mrb[0].mxu0 %v519
        %v628 = vpop.f32.mrb[0].mxu0
        %v629 = vadd.f32 0.0, %v628
        %v630 = vpop.f32.mrb[0].mxu0
        %v631 = vpop.f32.mrb[0].mxu0
        %v632 = vadd.f32 0.0, %v631
        %v633 = vpop.f32.mrb[0].mxu0
        %634 = vmatprep.mubr.bf16.mxu0 0
        %635 = vmatmul.mubr.bf16.gmra.mrb[0].mxu0 %v522
        %v636 = vpop.f32.mrb[0].mxu0
        %v637 = vadd.f32 0.0, %v636
        %v638 = vpop.f32.mrb[0].mxu0
        %v639 = vpop.f32.mrb[0].mxu0
        %v640 = vadd.f32 0.0, %v639
        %v641 = vpop.f32.mrb[0].mxu0
        %642 = vmatprep.mubr.bf16.mxu0 0
        %643 = vmatmul.mubr.bf16.gmra.mrb[0].mxu0 %v525
        %v644 = vpop.f32.mrb[0].mxu0
        %v645 = vadd.f32 0.0, %v644
        %v646 = vpop.f32.mrb[0].mxu0
        %v647 = vpop.f32.mrb[0].mxu0
        %v648 = vadd.f32 0.0, %v647
        %v649 = vpop.f32.mrb[0].mxu0
        %650 = vmatprep.mubr.bf16.mxu0 0
        %651 = vmatmul.mubr.bf16.gmra.mrb[0].mxu0 %v528
        %v652 = vpop.f32.mrb[0].mxu0
        %v653 = vadd.f32 0.0, %v652
        %v654 = vpop.f32.mrb[0].mxu0
        %v655 = vpop.f32.mrb[0].mxu0
        %v656 = vadd.f32 0.0, %v655
        %v657 = vpop.f32.mrb[0].mxu0
        %658 = vmatprep.mubr.bf16.mxu0 0
        %659 = vmatmul.mubr.bf16.gmra.mrb[0].mxu0 %v531
        %v660 = vpop.f32.mrb[0].mxu0
        %v661 = vadd.f32 0.0, %v660
        %v662 = vpop.f32.mrb[0].mxu0
        %v663 = vpop.f32.mrb[0].mxu0
        %v664 = vadd.f32 0.0, %v663
        %v665 = vpop.f32.mrb[0].mxu0
        %666 = vmatprep.mubr.bf16.mxu0 0
        %667 = vmatmul.mubr.bf16.gmra.mrb[0].mxu0 %v534
        %v668 = vpop.f32.mrb[0].mxu0
        %v669 = vadd.f32 0.0, %v668
        %v670 = vpop.f32.mrb[0].mxu0
        %v671 = vpop.f32.mrb[0].mxu0
        %v672 = vadd.f32 0.0, %v671
        %v673 = vpop.f32.mrb[0].mxu0
        %674 = vmatprep.mubr.bf16.mxu0 0
        %675 = vmatmul.mubr.bf16.gmra.mrb[0].mxu0 %v537
        %v676 = vpop.f32.mrb[0].mxu0
        %v677 = vadd.f32 0.0, %v676
        %v678 = vpop.f32.mrb[0].mxu0
        %v679 = vpop.f32.mrb[0].mxu0
        %v680 = vadd.f32 0.0, %v679
        %v681 = vpop.f32.mrb[0].mxu0
        %682 = vmatprep.mubr.bf16.mxu0 0
        %683 = vmatmul.mubr.bf16.gmra.mrb[0].mxu0 %v540
        %v684 = vpop.f32.mrb[0].mxu0
        %v685 = vadd.f32 0.0, %v684
        %v686 = vpop.f32.mrb[0].mxu0
        %v687 = vpop.f32.mrb[0].mxu0
        %v688 = vadd.f32 0.0, %v687
        %v689 = vpop.f32.mrb[0].mxu0
        %690 = vdwg.mxu0
        %v691 = vsel %vm499, %v367, 0
        %v693 = vsel %vm499, %v368, 0
        %v695 = vsel %vm499, %v369, 0
        %v697 = vsel %vm499, %v370, 0
        %v699 = vsel %vm499, %v371, 0
        %v701 = vsel %vm499, %v372, 0
        %v703 = vsel %vm499, %v373, 0
        %v705 = vsel %vm499, %v374, 0
        %v707 = vsel %vm499, %v375, 0
        %v709 = vsel %vm499, %v376, 0
        %v711 = vsel %vm499, %v377, 0
        %v713 = vsel %vm499, %v378, 0
        %v715 = vsel %vm499, %v379, 0
        %v717 = vsel %vm499, %v380, 0
        %v720 = vsel %vm542, %v305, 0
        %722 = vmatprep.subr.bf16.mxu0 0
        %723 = vmatpush1.bf16.msra.mxu0 %v720
        %724 = vmatprep.subr.bf16.mxu0 0
        %725 = vmatpush1.bf16.msra.mxu0 0
        %726 = vmatprep.subr.bf16.mxu0 0
        %727 = vmatpush1.bf16.msra.mxu0 0
        %728 = vmatprep.subr.bf16.mxu0 0
        %729 = vmatpush1.bf16.msra.mxu0 0
        %730 = vmatprep.subr.bf16.mxu0 0
        %731 = vmatpush1.bf16.msra.mxu0 0
        %732 = vmatprep.subr.bf16.mxu0 0
        %733 = vmatpush1.bf16.msra.mxu0 0
        %734 = vmatprep.subr.bf16.mxu0 0
        %735 = vmatpush1.bf16.msra.mxu0 0
        %736 = vmatprep.subr.bf16.mxu0 0
        %737 = vmatpush1.bf16.msra.mxu0 0
        %738 = vmatprep.subr.bf16.mxu0 0
        %739 = vmatpush1.bf16.msra.mxu0 0
        %740 = vmatprep.subr.bf16.mxu0 0
        %741 = vmatpush1.bf16.msra.mxu0 0
        %742 = vmatprep.subr.bf16.mxu0 0
        %743 = vmatpush1.bf16.msra.mxu0 0
        %744 = vmatprep.subr.bf16.mxu0 0
        %745 = vmatpush1.bf16.msra.mxu0 0
        %746 = vmatprep.subr.bf16.mxu0 0
        %747 = vmatpush1.bf16.msra.mxu0 0
        %748 = vmatprep.subr.bf16.mxu0 0
        %749 = vmatpush1.bf16.msra.mxu0 0
        %750 = vmatprep.subr.bf16.mxu0 0
        %751 = vmatpush1.bf16.msra.mxu0 0
        %752 = vmatprep.subr.bf16.mxu0 0
        %753 = vmatpush1.bf16.msra.mxu0 0
        %754 = vmatprep.mubr.bf16.mxu0 0
        %755 = vmatmul.mubr.bf16.gmra.mrb[0].mxu0 %v691
        %v756 = vpop.f32.mrb[0].mxu0
        %v757 = vadd.f32 %v581, %v756
        %v758 = vpop.f32.mrb[0].mxu0
        %v759 = vpop.f32.mrb[0].mxu0
        %v760 = vadd.f32 %v584, %v759
        %v761 = vpop.f32.mrb[0].mxu0
        %762 = vmatprep.mubr.bf16.mxu0 0
        %763 = vmatmul.mubr.bf16.gmra.mrb[0].mxu0 %v693
        %v764 = vpop.f32.mrb[0].mxu0
        %v765 = vadd.f32 %v589, %v764
        %v766 = vpop.f32.mrb[0].mxu0
        %v767 = vpop.f32.mrb[0].mxu0
        %v768 = vadd.f32 %v592, %v767
        %v769 = vpop.f32.mrb[0].mxu0
        %770 = vmatprep.mubr.bf16.mxu0 0
        %771 = vmatmul.mubr.bf16.gmra.mrb[0].mxu0 %v695
        %v772 = vpop.f32.mrb[0].mxu0
        %v773 = vadd.f32 %v597, %v772
        %v774 = vpop.f32.mrb[0].mxu0
        %v775 = vpop.f32.mrb[0].mxu0
        %v776 = vadd.f32 %v600, %v775
        %v777 = vpop.f32.mrb[0].mxu0
        %778 = vmatprep.mubr.bf16.mxu0 0
        %779 = vmatmul.mubr.bf16.gmra.mrb[0].mxu0 %v697
        %v780 = vpop.f32.mrb[0].mxu0
        %v781 = vadd.f32 %v605, %v780
        %v782 = vpop.f32.mrb[0].mxu0
        %v783 = vpop.f32.mrb[0].mxu0
        %v784 = vadd.f32 %v608, %v783
        %v785 = vpop.f32.mrb[0].mxu0
        %786 = vmatprep.mubr.bf16.mxu0 0
        %787 = vmatmul.mubr.bf16.gmra.mrb[0].mxu0 %v699
        %v788 = vpop.f32.mrb[0].mxu0
        %v789 = vadd.f32 %v613, %v788
        %v790 = vpop.f32.mrb[0].mxu0
        %v791 = vpop.f32.mrb[0].mxu0
        %v792 = vadd.f32 %v616, %v791
        %v793 = vpop.f32.mrb[0].mxu0
        %794 = vmatprep.mubr.bf16.mxu0 0
        %795 = vmatmul.mubr.bf16.gmra.mrb[0].mxu0 %v701
        %v796 = vpop.f32.mrb[0].mxu0
        %v797 = vadd.f32 %v621, %v796
        %v798 = vpop.f32.mrb[0].mxu0
        %v799 = vpop.f32.mrb[0].mxu0
        %v800 = vadd.f32 %v624, %v799
        %v801 = vpop.f32.mrb[0].mxu0
        %802 = vmatprep.mubr.bf16.mxu0 0
        %803 = vmatmul.mubr.bf16.gmra.mrb[0].mxu0 %v703
        %v804 = vpop.f32.mrb[0].mxu0
        %v805 = vadd.f32 %v629, %v804
        %v806 = vpop.f32.mrb[0].mxu0
        %v807 = vpop.f32.mrb[0].mxu0
        %v808 = vadd.f32 %v632, %v807
        %v809 = vpop.f32.mrb[0].mxu0
        %810 = vmatprep.mubr.bf16.mxu0 0
        %811 = vmatmul.mubr.bf16.gmra.mrb[0].mxu0 %v705
        %v812 = vpop.f32.mrb[0].mxu0
        %v813 = vadd.f32 %v637, %v812
        %v814 = vpop.f32.mrb[0].mxu0
        %v815 = vpop.f32.mrb[0].mxu0
        %v816 = vadd.f32 %v640, %v815
        %v817 = vpop.f32.mrb[0].mxu0
        %818 = vmatprep.mubr.bf16.mxu0 0
        %819 = vmatmul.mubr.bf16.gmra.mrb[0].mxu0 %v707
        %v820 = vpop.f32.mrb[0].mxu0
        %v821 = vadd.f32 %v645, %v820
        %v822 = vpop.f32.mrb[0].mxu0
        %v823 = vpop.f32.mrb[0].mxu0
        %v824 = vadd.f32 %v648, %v823
        %v825 = vpop.f32.mrb[0].mxu0
        %826 = vmatprep.mubr.bf16.mxu0 0
        %827 = vmatmul.mubr.bf16.gmra.mrb[0].mxu0 %v709
        %v828 = vpop.f32.mrb[0].mxu0
        %v829 = vadd.f32 %v653, %v828
        %v830 = vpop.f32.mrb[0].mxu0
        %v831 = vpop.f32.mrb[0].mxu0
        %v832 = vadd.f32 %v656, %v831
        %v833 = vpop.f32.mrb[0].mxu0
        %834 = vmatprep.mubr.bf16.mxu0 0
        %835 = vmatmul.mubr.bf16.gmra.mrb[0].mxu0 %v711
        %v836 = vpop.f32.mrb[0].mxu0
        %v837 = vadd.f32 %v661, %v836
        %v838 = vpop.f32.mrb[0].mxu0
        %v839 = vpop.f32.mrb[0].mxu0
        %v840 = vadd.f32 %v664, %v839
        %v841 = vpop.f32.mrb[0].mxu0
        %842 = vmatprep.mubr.bf16.mxu0 0
        %843 = vmatmul.mubr.bf16.gmra.mrb[0].mxu0 %v713
        %v844 = vpop.f32.mrb[0].mxu0
        %v845 = vadd.f32 %v669, %v844
        %v846 = vpop.f32.mrb[0].mxu0
        %v847 = vpop.f32.mrb[0].mxu0
        %v848 = vadd.f32 %v672, %v847
        %v849 = vpop.f32.mrb[0].mxu0
        %850 = vmatprep.mubr.bf16.mxu0 0
        %851 = vmatmul.mubr.bf16.gmra.mrb[0].mxu0 %v715
        %v852 = vpop.f32.mrb[0].mxu0
        %v853 = vadd.f32 %v677, %v852
        %v854 = vpop.f32.mrb[0].mxu0
        %v855 = vpop.f32.mrb[0].mxu0
        %v856 = vadd.f32 %v680, %v855
        %v857 = vpop.f32.mrb[0].mxu0
        %858 = vmatprep.mubr.bf16.mxu0 0
        %859 = vmatmul.mubr.bf16.gmra.mrb[0].mxu0 %v717
        %v860 = vpop.f32.mrb[0].mxu0
        %v861 = vadd.f32 %v685, %v860
        %v862 = vpop.f32.mrb[0].mxu0
        %v863 = vpop.f32.mrb[0].mxu0
        %v864 = vadd.f32 %v688, %v863
        %v865 = vpop.f32.mrb[0].mxu0
        %866 = vdwg.mxu0
        %v867 = vld [vmem:[%s275] sm:$0xe]
        %s868 = scalar_lea.vmem %s1, 4
        %v869 = vld [vmem:[%s868] sm:$0x3]
        %v871 = vunpack.c.l.b16 %v867
        %v872 = vpack.c.b16 %v339, %v871
        %vm873 = vcmask 1046528
        %v874 = vrot.slane %v872, 1
        %v875 = vrot.slane %v368, 1
        %v876 = vsel %vm873, %v874, %v875
        %v877 = vrot.slane %v369, 1
        %v878 = vsel %vm873, %v875, %v877
        %v879 = vrot.slane %v370, 1
        %v880 = vsel %vm873, %v877, %v879
        %v881 = vrot.slane %v371, 1
        %v882 = vsel %vm873, %v879, %v881
        %v883 = vrot.slane %v372, 1
        %v884 = vsel %vm873, %v881, %v883
        %v885 = vrot.slane %v373, 1
        %v886 = vsel %vm873, %v883, %v885
        %v887 = vrot.slane %v374, 1
        %v888 = vsel %vm873, %v885, %v887
        %v889 = vrot.slane %v375, 1
        %v890 = vsel %vm873, %v887, %v889
        %v891 = vrot.slane %v376, 1
        %v892 = vsel %vm873, %v889, %v891
        %v893 = vrot.slane %v377, 1
        %v894 = vsel %vm873, %v891, %v893
        %v895 = vrot.slane %v378, 1
        %v896 = vsel %vm873, %v893, %v895
        %v897 = vrot.slane %v379, 1
        %v898 = vsel %vm873, %v895, %v897
        %v899 = vrot.slane %v380, 1
        %v900 = vsel %vm873, %v897, %v899
        %v901 = vrot.slane %v381, 1
        %v902 = vsel %vm873, %v899, %v901
        %v904 = vsel %vm499, %v876, 0
        %v907 = vsel %vm499, %v878, 0
        %v910 = vsel %vm499, %v880, 0
        %v913 = vsel %vm499, %v882, 0
        %v916 = vsel %vm499, %v884, 0
        %v919 = vsel %vm499, %v886, 0
        %v922 = vsel %vm499, %v888, 0
        %v925 = vsel %vm499, %v890, 0
        %v928 = vsel %vm499, %v892, 0
        %v931 = vsel %vm499, %v894, 0
        %v934 = vsel %vm499, %v896, 0
        %v937 = vsel %vm499, %v898, 0
        %v940 = vsel %vm499, %v900, 0
        %v943 = vsel %vm499, %v902, 0
        %v946 = vsel %vm542, %v869, 0
        %948 = vmatprep.subr.bf16.mxu0 0
        %949 = vmatpush1.bf16.msra.mxu0 %v946
        %950 = vmatprep.subr.bf16.mxu0 0
        %951 = vmatpush1.bf16.msra.mxu0 0
        %952 = vmatprep.subr.bf16.mxu0 0
        %953 = vmatpush1.bf16.msra.mxu0 0
        %954 = vmatprep.subr.bf16.mxu0 0
        %955 = vmatpush1.bf16.msra.mxu0 0
        %956 = vmatprep.subr.bf16.mxu0 0
        %957 = vmatpush1.bf16.msra.mxu0 0
        %958 = vmatprep.subr.bf16.mxu0 0
        %959 = vmatpush1.bf16.msra.mxu0 0
        %960 = vmatprep.subr.bf16.mxu0 0
        %961 = vmatpush1.bf16.msra.mxu0 0
        %962 = vmatprep.subr.bf16.mxu0 0
        %963 = vmatpush1.bf16.msra.mxu0 0
        %964 = vmatprep.subr.bf16.mxu0 0
        %965 = vmatpush1.bf16.msra.mxu0 0
        %966 = vmatprep.subr.bf16.mxu0 0
        %967 = vmatpush1.bf16.msra.mxu0 0
        %968 = vmatprep.subr.bf16.mxu0 0
        %969 = vmatpush1.bf16.msra.mxu0 0
        %970 = vmatprep.subr.bf16.mxu0 0
        %971 = vmatpush1.bf16.msra.mxu0 0
        %972 = vmatprep.subr.bf16.mxu0 0
        %973 = vmatpush1.bf16.msra.mxu0 0
        %974 = vmatprep.subr.bf16.mxu0 0
        %975 = vmatpush1.bf16.msra.mxu0 0
        %976 = vmatprep.subr.bf16.mxu0 0
        %977 = vmatpush1.bf16.msra.mxu0 0
        %978 = vmatprep.subr.bf16.mxu0 0
        %979 = vmatpush1.bf16.msra.mxu0 0
        %980 = vmatprep.mubr.bf16.mxu0 0
        %981 = vmatmul.mubr.bf16.gmra.mrb[0].mxu0 %v904
        %v982 = vpop.f32.mrb[0].mxu0
        %v983 = vadd.f32 0.0, %v982
        %v984 = vpop.f32.mrb[0].mxu0
        %v985 = vpop.f32.mrb[0].mxu0
        %v986 = vadd.f32 0.0, %v985
        %v987 = vpop.f32.mrb[0].mxu0
        %988 = vmatprep.mubr.bf16.mxu0 0
        %989 = vmatmul.mubr.bf16.gmra.mrb[0].mxu0 %v907
        %v990 = vpop.f32.mrb[0].mxu0
        %v991 = vadd.f32 0.0, %v990
        %v992 = vpop.f32.mrb[0].mxu0
        %v993 = vpop.f32.mrb[0].mxu0
        %v994 = vadd.f32 0.0, %v993
        %v995 = vpop.f32.mrb[0].mxu0
        %996 = vmatprep.mubr.bf16.mxu0 0
        %997 = vmatmul.mubr.bf16.gmra.mrb[0].mxu0 %v910
        %v998 = vpop.f32.mrb[0].mxu0
        %v999 = vadd.f32 0.0, %v998
        %v1000 = vpop.f32.mrb[0].mxu0
        %v1001 = vpop.f32.mrb[0].mxu0
        %v1002 = vadd.f32 0.0, %v1001
        %v1003 = vpop.f32.mrb[0].mxu0
        %1004 = vmatprep.mubr.bf16.mxu0 0
        %1005 = vmatmul.mubr.bf16.gmra.mrb[0].mxu0 %v913
        %v1006 = vpop.f32.mrb[0].mxu0
        %v1007 = vadd.f32 0.0, %v1006
        %v1008 = vpop.f32.mrb[0].mxu0
        %v1009 = vpop.f32.mrb[0].mxu0
        %v1010 = vadd.f32 0.0, %v1009
        %v1011 = vpop.f32.mrb[0].mxu0
        %1012 = vmatprep.mubr.bf16.mxu0 0
        %1013 = vmatmul.mubr.bf16.gmra.mrb[0].mxu0 %v916
        %v1014 = vpop.f32.mrb[0].mxu0
        %v1015 = vadd.f32 0.0, %v1014
        %v1016 = vpop.f32.mrb[0].mxu0
        %v1017 = vpop.f32.mrb[0].mxu0
        %v1018 = vadd.f32 0.0, %v1017
        %v1019 = vpop.f32.mrb[0].mxu0
        %1020 = vmatprep.mubr.bf16.mxu0 0
        %1021 = vmatmul.mubr.bf16.gmra.mrb[0].mxu0 %v919
        %v1022 = vpop.f32.mrb[0].mxu0
        %v1023 = vadd.f32 0.0, %v1022
        %v1024 = vpop.f32.mrb[0].mxu0
        %v1025 = vpop.f32.mrb[0].mxu0
        %v1026 = vadd.f32 0.0, %v1025
        %v1027 = vpop.f32.mrb[0].mxu0
        %1028 = vmatprep.mubr.bf16.mxu0 0
        %1029 = vmatmul.mubr.bf16.gmra.mrb[0].mxu0 %v922
        %v1030 = vpop.f32.mrb[0].mxu0
        %v1031 = vadd.f32 0.0, %v1030
        %v1032 = vpop.f32.mrb[0].mxu0
        %v1033 = vpop.f32.mrb[0].mxu0
        %v1034 = vadd.f32 0.0, %v1033
        %v1035 = vpop.f32.mrb[0].mxu0
        %1036 = vmatprep.mubr.bf16.mxu0 0
        %1037 = vmatmul.mubr.bf16.gmra.mrb[0].mxu0 %v925
        %v1038 = vpop.f32.mrb[0].mxu0
        %v1039 = vadd.f32 0.0, %v1038
        %v1040 = vpop.f32.mrb[0].mxu0
        %v1041 = vpop.f32.mrb[0].mxu0
        %v1042 = vadd.f32 0.0, %v1041
        %v1043 = vpop.f32.mrb[0].mxu0
        %1044 = vmatprep.mubr.bf16.mxu0 0
        %1045 = vmatmul.mubr.bf16.gmra.mrb[0].mxu0 %v928
        %v1046 = vpop.f32.mrb[0].mxu0
        %v1047 = vadd.f32 0.0, %v1046
        %v1048 = vpop.f32.mrb[0].mxu0
        %v1049 = vpop.f32.mrb[0].mxu0
        %v1050 = vadd.f32 0.0, %v1049
        %v1051 = vpop.f32.mrb[0].mxu0
        %1052 = vmatprep.mubr.bf16.mxu0 0
        %1053 = vmatmul.mubr.bf16.gmra.mrb[0].mxu0 %v931
        %v1054 = vpop.f32.mrb[0].mxu0
        %v1055 = vadd.f32 0.0, %v1054
        %v1056 = vpop.f32.mrb[0].mxu0
        %v1057 = vpop.f32.mrb[0].mxu0
        %v1058 = vadd.f32 0.0, %v1057
        %v1059 = vpop.f32.mrb[0].mxu0
        %1060 = vmatprep.mubr.bf16.mxu0 0
        %1061 = vmatmul.mubr.bf16.gmra.mrb[0].mxu0 %v934
        %v1062 = vpop.f32.mrb[0].mxu0
        %v1063 = vadd.f32 0.0, %v1062
        %v1064 = vpop.f32.mrb[0].mxu0
        %v1065 = vpop.f32.mrb[0].mxu0
        %v1066 = vadd.f32 0.0, %v1065
        %v1067 = vpop.f32.mrb[0].mxu0
        %1068 = vmatprep.mubr.bf16.mxu0 0
        %1069 = vmatmul.mubr.bf16.gmra.mrb[0].mxu0 %v937
        %v1070 = vpop.f32.mrb[0].mxu0
        %v1071 = vadd.f32 0.0, %v1070
        %v1072 = vpop.f32.mrb[0].mxu0
        %v1073 = vpop.f32.mrb[0].mxu0
        %v1074 = vadd.f32 0.0, %v1073
        %v1075 = vpop.f32.mrb[0].mxu0
        %1076 = vmatprep.mubr.bf16.mxu0 0
        %1077 = vmatmul.mubr.bf16.gmra.mrb[0].mxu0 %v940
        %v1078 = vpop.f32.mrb[0].mxu0
        %v1079 = vadd.f32 0.0, %v1078
        %v1080 = vpop.f32.mrb[0].mxu0
        %v1081 = vpop.f32.mrb[0].mxu0
        %v1082 = vadd.f32 0.0, %v1081
        %v1083 = vpop.f32.mrb[0].mxu0
        %1084 = vmatprep.mubr.bf16.mxu0 0
        %1085 = vmatmul.mubr.bf16.gmra.mrb[0].mxu0 %v943
        %v1086 = vpop.f32.mrb[0].mxu0
        %v1087 = vadd.f32 0.0, %v1086
        %v1088 = vpop.f32.mrb[0].mxu0
        %v1089 = vpop.f32.mrb[0].mxu0
        %v1090 = vadd.f32 0.0, %v1089
        %v1091 = vpop.f32.mrb[0].mxu0
        %1092 = vdwg.mxu0
        %v1093 = vadd.f32 %v757, %v983
        %v1094 = vadd.f32 %v760, %v986
        %v1095 = vadd.f32 %v765, %v991
        %v1096 = vadd.f32 %v768, %v994
        %v1097 = vadd.f32 %v773, %v999
        %v1098 = vadd.f32 %v776, %v1002
        %v1099 = vadd.f32 %v781, %v1007
        %v1100 = vadd.f32 %v784, %v1010
        %v1101 = vadd.f32 %v789, %v1015
        %v1102 = vadd.f32 %v792, %v1018
        %v1103 = vadd.f32 %v797, %v1023
        %v1104 = vadd.f32 %v800, %v1026
        %v1105 = vadd.f32 %v805, %v1031
        %v1106 = vadd.f32 %v808, %v1034
        %v1107 = vadd.f32 %v813, %v1039
        %v1108 = vadd.f32 %v816, %v1042
        %v1109 = vadd.f32 %v821, %v1047
        %v1110 = vadd.f32 %v824, %v1050
        %v1111 = vadd.f32 %v829, %v1055
        %v1112 = vadd.f32 %v832, %v1058
        %v1113 = vadd.f32 %v837, %v1063
        %v1114 = vadd.f32 %v840, %v1066
        %v1115 = vadd.f32 %v845, %v1071
        %v1116 = vadd.f32 %v848, %v1074
        %v1117 = vadd.f32 %v853, %v1079
        %v1118 = vadd.f32 %v856, %v1082
        %v1119 = vadd.f32 %v861, %v1087
        %v1120 = vadd.f32 %v864, %v1090
        %v1121 = vld [vmem:[%s275 + $0x8] sm:$0xf]
        %v1122 = vld [vmem:[%s275 + $0xc] sm:$0xf]
        %v1123 = vld [vmem:[%s275 + $0x10] sm:$0xf]
        %v1124 = vld [vmem:[%s275 + $0x14] sm:$0xf]
        %v1125 = vld [vmem:[%s275 + $0x18] sm:$0xf]
        %v1126 = vld [vmem:[%s275 + $0x1c] sm:$0xf]
        %v1127 = vld [vmem:[%s275 + $0x20] sm:$0xf]
        %v1128 = vld [vmem:[%s275 + $0x24] sm:$0xf]
        %v1129 = vld [vmem:[%s275 + $0x28] sm:$0xf]
        %v1130 = vld [vmem:[%s275 + $0x2c] sm:$0xf]
        %v1131 = vld [vmem:[%s275 + $0x30] sm:$0xf]
        %v1132 = vld [vmem:[%s275 + $0x34] sm:$0xf]
        %v1133 = vld [vmem:[%s275 + $0x38] sm:$0xf]
        %v1134 = vld [vmem:[%s275 + $0x3c] sm:$0xf]
        %v1135 = vld [vmem:[%s275 + $0x40] sm:$0xf]
        %v1136 = vld [vmem:[%s275 + $0x44] sm:$0xf]
        %v1137 = vld [vmem:[%s275 + $0x48] sm:$0xf]
        %v1138 = vld [vmem:[%s275 + $0x4c] sm:$0xf]
        %v1139 = vld [vmem:[%s275 + $0x50] sm:$0xf]
        %v1140 = vld [vmem:[%s275 + $0x54] sm:$0xf]
        %v1141 = vld [vmem:[%s275 + $0x58] sm:$0xf]
        %v1142 = vld [vmem:[%s275 + $0x5c] sm:$0xf]
        %v1143 = vld [vmem:[%s275 + $0x60] sm:$0xf]
        %v1144 = vld [vmem:[%s275 + $0x64] sm:$0xf]
        %v1145 = vld [vmem:[%s275 + $0x68] sm:$0xf]
        %v1146 = vld [vmem:[%s275 + $0x6c] sm:$0xf]
        %v1147 = vld [vmem:[%s275 + $0x70] sm:$0xf]
        %v1148 = vld [vmem:[%s275 + $0x74] sm:$0xf]
        %s1149 = scalar_lea.vmem %s1, 6
        %v1150 = vld [vmem:[%s1149] sm:$0x3]
        %v1179 = vunpack.c.l.b16 %v1121
        %v1180 = vunpack.c.l.b16 %v1122
        %v1181 = vunpack.c.l.b16 %v1123
        %v1182 = vunpack.c.l.b16 %v1124
        %v1183 = vunpack.c.l.b16 %v1125
        %v1184 = vunpack.c.l.b16 %v1126
        %v1185 = vunpack.c.l.b16 %v1127
        %v1186 = vunpack.c.l.b16 %v1128
        %v1187 = vunpack.c.l.b16 %v1129
        %v1188 = vunpack.c.l.b16 %v1130
        %v1189 = vunpack.c.l.b16 %v1131
        %v1190 = vunpack.c.l.b16 %v1132
        %v1191 = vunpack.c.l.b16 %v1133
        %v1192 = vunpack.c.l.b16 %v1134
        %v1193 = vunpack.c.l.b16 %v1135
        %v1194 = vunpack.c.l.b16 %v1136
        %v1195 = vunpack.c.l.b16 %v1137
        %v1196 = vunpack.c.l.b16 %v1138
        %v1197 = vunpack.c.l.b16 %v1139
        %v1198 = vunpack.c.l.b16 %v1140
        %v1199 = vunpack.c.l.b16 %v1141
        %v1200 = vunpack.c.l.b16 %v1142
        %v1201 = vunpack.c.l.b16 %v1143
        %v1202 = vunpack.c.l.b16 %v1144
        %v1203 = vunpack.c.l.b16 %v1145
        %v1204 = vunpack.c.l.b16 %v1146
        %v1205 = vunpack.c.l.b16 %v1147
        %v1206 = vunpack.c.l.b16 %v1148
        %v1207 = vpack.c.b16 %v1180, %v1179
        %v1208 = vpack.c.b16 %v1182, %v1181
        %v1209 = vpack.c.b16 %v1184, %v1183
        %v1210 = vpack.c.b16 %v1186, %v1185
        %v1211 = vpack.c.b16 %v1188, %v1187
        %v1212 = vpack.c.b16 %v1190, %v1189
        %v1213 = vpack.c.b16 %v1192, %v1191
        %v1214 = vpack.c.b16 %v1194, %v1193
        %v1215 = vpack.c.b16 %v1196, %v1195
        %v1216 = vpack.c.b16 %v1198, %v1197
        %v1217 = vpack.c.b16 %v1200, %v1199
        %v1218 = vpack.c.b16 %v1202, %v1201
        %v1219 = vpack.c.b16 %v1204, %v1203
        %v1220 = vpack.c.b16 %v1206, %v1205
        %v1222 = vsel %vm499, %v1207, 0
        %v1225 = vsel %vm499, %v1208, 0
        %v1228 = vsel %vm499, %v1209, 0
        %v1231 = vsel %vm499, %v1210, 0
        %v1234 = vsel %vm499, %v1211, 0
        %v1237 = vsel %vm499, %v1212, 0
        %v1240 = vsel %vm499, %v1213, 0
        %v1243 = vsel %vm499, %v1214, 0
        %v1246 = vsel %vm499, %v1215, 0
        %v1249 = vsel %vm499, %v1216, 0
        %v1252 = vsel %vm499, %v1217, 0
        %v1255 = vsel %vm499, %v1218, 0
        %v1258 = vsel %vm499, %v1219, 0
        %v1261 = vsel %vm499, %v1220, 0
        %v1264 = vsel %vm542, %v1150, 0
        %1266 = vmatprep.subr.bf16.mxu0 0
        %1267 = vmatpush1.bf16.msra.mxu0 %v1264
        %1268 = vmatprep.subr.bf16.mxu0 0
        %1269 = vmatpush1.bf16.msra.mxu0 0
        %1270 = vmatprep.subr.bf16.mxu0 0
        %1271 = vmatpush1.bf16.msra.mxu0 0
        %1272 = vmatprep.subr.bf16.mxu0 0
        %1273 = vmatpush1.bf16.msra.mxu0 0
        %1274 = vmatprep.subr.bf16.mxu0 0
        %1275 = vmatpush1.bf16.msra.mxu0 0
        %1276 = vmatprep.subr.bf16.mxu0 0
        %1277 = vmatpush1.bf16.msra.mxu0 0
        %1278 = vmatprep.subr.bf16.mxu0 0
        %1279 = vmatpush1.bf16.msra.mxu0 0
        %1280 = vmatprep.subr.bf16.mxu0 0
        %1281 = vmatpush1.bf16.msra.mxu0 0
        %1282 = vmatprep.subr.bf16.mxu0 0
        %1283 = vmatpush1.bf16.msra.mxu0 0
        %1284 = vmatprep.subr.bf16.mxu0 0
        %1285 = vmatpush1.bf16.msra.mxu0 0
        %1286 = vmatprep.subr.bf16.mxu0 0
        %1287 = vmatpush1.bf16.msra.mxu0 0
        %1288 = vmatprep.subr.bf16.mxu0 0
        %1289 = vmatpush1.bf16.msra.mxu0 0
        %1290 = vmatprep.subr.bf16.mxu0 0
        %1291 = vmatpush1.bf16.msra.mxu0 0
        %1292 = vmatprep.subr.bf16.mxu0 0
        %1293 = vmatpush1.bf16.msra.mxu0 0
        %1294 = vmatprep.subr.bf16.mxu0 0
        %1295 = vmatpush1.bf16.msra.mxu0 0
        %1296 = vmatprep.subr.bf16.mxu0 0
        %1297 = vmatpush1.bf16.msra.mxu0 0
        %1298 = vmatprep.mubr.bf16.mxu0 0
        %1299 = vmatmul.mubr.bf16.gmra.mrb[0].mxu0 %v1222
        %v1300 = vpop.f32.mrb[0].mxu0
        %v1301 = vadd.f32 0.0, %v1300
        %v1302 = vpop.f32.mrb[0].mxu0
        %v1303 = vpop.f32.mrb[0].mxu0
        %v1304 = vadd.f32 0.0, %v1303
        %v1305 = vpop.f32.mrb[0].mxu0
        %1306 = vmatprep.mubr.bf16.mxu0 0
        %1307 = vmatmul.mubr.bf16.gmra.mrb[0].mxu0 %v1225
        %v1308 = vpop.f32.mrb[0].mxu0
        %v1309 = vadd.f32 0.0, %v1308
        %v1310 = vpop.f32.mrb[0].mxu0
        %v1311 = vpop.f32.mrb[0].mxu0
        %v1312 = vadd.f32 0.0, %v1311
        %v1313 = vpop.f32.mrb[0].mxu0
        %1314 = vmatprep.mubr.bf16.mxu0 0
        %1315 = vmatmul.mubr.bf16.gmra.mrb[0].mxu0 %v1228
        %v1316 = vpop.f32.mrb[0].mxu0
        %v1317 = vadd.f32 0.0, %v1316
        %v1318 = vpop.f32.mrb[0].mxu0
        %v1319 = vpop.f32.mrb[0].mxu0
        %v1320 = vadd.f32 0.0, %v1319
        %v1321 = vpop.f32.mrb[0].mxu0
        %1322 = vmatprep.mubr.bf16.mxu0 0
        %1323 = vmatmul.mubr.bf16.gmra.mrb[0].mxu0 %v1231
        %v1324 = vpop.f32.mrb[0].mxu0
        %v1325 = vadd.f32 0.0, %v1324
        %v1326 = vpop.f32.mrb[0].mxu0
        %v1327 = vpop.f32.mrb[0].mxu0
        %v1328 = vadd.f32 0.0, %v1327
        %v1329 = vpop.f32.mrb[0].mxu0
        %1330 = vmatprep.mubr.bf16.mxu0 0
        %1331 = vmatmul.mubr.bf16.gmra.mrb[0].mxu0 %v1234
        %v1332 = vpop.f32.mrb[0].mxu0
        %v1333 = vadd.f32 0.0, %v1332
        %v1334 = vpop.f32.mrb[0].mxu0
        %v1335 = vpop.f32.mrb[0].mxu0
        %v1336 = vadd.f32 0.0, %v1335
        %v1337 = vpop.f32.mrb[0].mxu0
        %1338 = vmatprep.mubr.bf16.mxu0 0
        %1339 = vmatmul.mubr.bf16.gmra.mrb[0].mxu0 %v1237
        %v1340 = vpop.f32.mrb[0].mxu0
        %v1341 = vadd.f32 0.0, %v1340
        %v1342 = vpop.f32.mrb[0].mxu0
        %v1343 = vpop.f32.mrb[0].mxu0
        %v1344 = vadd.f32 0.0, %v1343
        %v1345 = vpop.f32.mrb[0].mxu0
        %1346 = vmatprep.mubr.bf16.mxu0 0
        %1347 = vmatmul.mubr.bf16.gmra.mrb[0].mxu0 %v1240
        %v1348 = vpop.f32.mrb[0].mxu0
        %v1349 = vadd.f32 0.0, %v1348
        %v1350 = vpop.f32.mrb[0].mxu0
        %v1351 = vpop.f32.mrb[0].mxu0
        %v1352 = vadd.f32 0.0, %v1351
        %v1353 = vpop.f32.mrb[0].mxu0
        %1354 = vmatprep.mubr.bf16.mxu0 0
        %1355 = vmatmul.mubr.bf16.gmra.mrb[0].mxu0 %v1243
        %v1356 = vpop.f32.mrb[0].mxu0
        %v1357 = vadd.f32 0.0, %v1356
        %v1358 = vpop.f32.mrb[0].mxu0
        %v1359 = vpop.f32.mrb[0].mxu0
        %v1360 = vadd.f32 0.0, %v1359
        %v1361 = vpop.f32.mrb[0].mxu0
        %1362 = vmatprep.mubr.bf16.mxu0 0
        %1363 = vmatmul.mubr.bf16.gmra.mrb[0].mxu0 %v1246
        %v1364 = vpop.f32.mrb[0].mxu0
        %v1365 = vadd.f32 0.0, %v1364
        %v1366 = vpop.f32.mrb[0].mxu0
        %v1367 = vpop.f32.mrb[0].mxu0
        %v1368 = vadd.f32 0.0, %v1367
        %v1369 = vpop.f32.mrb[0].mxu0
        %1370 = vmatprep.mubr.bf16.mxu0 0
        %1371 = vmatmul.mubr.bf16.gmra.mrb[0].mxu0 %v1249
        %v1372 = vpop.f32.mrb[0].mxu0
        %v1373 = vadd.f32 0.0, %v1372
        %v1374 = vpop.f32.mrb[0].mxu0
        %v1375 = vpop.f32.mrb[0].mxu0
        %v1376 = vadd.f32 0.0, %v1375
        %v1377 = vpop.f32.mrb[0].mxu0
        %1378 = vmatprep.mubr.bf16.mxu0 0
        %1379 = vmatmul.mubr.bf16.gmra.mrb[0].mxu0 %v1252
        %v1380 = vpop.f32.mrb[0].mxu0
        %v1381 = vadd.f32 0.0, %v1380
        %v1382 = vpop.f32.mrb[0].mxu0
        %v1383 = vpop.f32.mrb[0].mxu0
        %v1384 = vadd.f32 0.0, %v1383
        %v1385 = vpop.f32.mrb[0].mxu0
        %1386 = vmatprep.mubr.bf16.mxu0 0
        %1387 = vmatmul.mubr.bf16.gmra.mrb[0].mxu0 %v1255
        %v1388 = vpop.f32.mrb[0].mxu0
        %v1389 = vadd.f32 0.0, %v1388
        %v1390 = vpop.f32.mrb[0].mxu0
        %v1391 = vpop.f32.mrb[0].mxu0
        %v1392 = vadd.f32 0.0, %v1391
        %v1393 = vpop.f32.mrb[0].mxu0
        %1394 = vmatprep.mubr.bf16.mxu0 0
        %1395 = vmatmul.mubr.bf16.gmra.mrb[0].mxu0 %v1258
        %v1396 = vpop.f32.mrb[0].mxu0
        %v1397 = vadd.f32 0.0, %v1396
        %v1398 = vpop.f32.mrb[0].mxu0
        %v1399 = vpop.f32.mrb[0].mxu0
        %v1400 = vadd.f32 0.0, %v1399
        %v1401 = vpop.f32.mrb[0].mxu0
        %1402 = vmatprep.mubr.bf16.mxu0 0
        %1403 = vmatmul.mubr.bf16.gmra.mrb[0].mxu0 %v1261
        %v1404 = vpop.f32.mrb[0].mxu0
        %v1405 = vadd.f32 0.0, %v1404
        %v1406 = vpop.f32.mrb[0].mxu0
        %v1407 = vpop.f32.mrb[0].mxu0
        %v1408 = vadd.f32 0.0, %v1407
        %v1409 = vpop.f32.mrb[0].mxu0
        %1410 = vdwg.mxu0
        %v1411 = vadd.f32 %v1093, %v1301
        %v1412 = vadd.f32 %v1094, %v1304
        %v1413 = vadd.f32 %v1095, %v1309
        %v1414 = vadd.f32 %v1096, %v1312
        %v1415 = vadd.f32 %v1097, %v1317
        %v1416 = vadd.f32 %v1098, %v1320
        %v1417 = vadd.f32 %v1099, %v1325
        %v1418 = vadd.f32 %v1100, %v1328
        %v1419 = vadd.f32 %v1101, %v1333
        %v1420 = vadd.f32 %v1102, %v1336
        %v1421 = vadd.f32 %v1103, %v1341
        %v1422 = vadd.f32 %v1104, %v1344
        %v1423 = vadd.f32 %v1105, %v1349
        %v1424 = vadd.f32 %v1106, %v1352
        %v1425 = vadd.f32 %v1107, %v1357
        %v1426 = vadd.f32 %v1108, %v1360
        %v1427 = vadd.f32 %v1109, %v1365
        %v1428 = vadd.f32 %v1110, %v1368
        %v1429 = vadd.f32 %v1111, %v1373
        %v1430 = vadd.f32 %v1112, %v1376
        %v1431 = vadd.f32 %v1113, %v1381
        %v1432 = vadd.f32 %v1114, %v1384
        %v1433 = vadd.f32 %v1115, %v1389
        %v1434 = vadd.f32 %v1116, %v1392
        %v1435 = vadd.f32 %v1117, %v1397
        %v1436 = vadd.f32 %v1118, %v1400
        %v1437 = vadd.f32 %v1119, %v1405
        %v1438 = vadd.f32 %v1120, %v1408
        %v1439 = vld [vmem:[%s275 + $0x8] sm:$0xf]
        %v1440 = vld [vmem:[%s275 + $0xc] sm:$0xf]
        %v1441 = vld [vmem:[%s275 + $0x10] sm:$0xf]
        %v1442 = vld [vmem:[%s275 + $0x14] sm:$0xf]
        %v1443 = vld [vmem:[%s275 + $0x18] sm:$0xf]
        %v1444 = vld [vmem:[%s275 + $0x1c] sm:$0xf]
        %v1445 = vld [vmem:[%s275 + $0x20] sm:$0xf]
        %v1446 = vld [vmem:[%s275 + $0x24] sm:$0xf]
        %v1447 = vld [vmem:[%s275 + $0x28] sm:$0xf]
        %v1448 = vld [vmem:[%s275 + $0x2c] sm:$0xf]
        %v1449 = vld [vmem:[%s275 + $0x30] sm:$0xf]
        %v1450 = vld [vmem:[%s275 + $0x34] sm:$0xf]
        %v1451 = vld [vmem:[%s275 + $0x38] sm:$0xf]
        %v1452 = vld [vmem:[%s275 + $0x3c] sm:$0xf]
        %v1453 = vld [vmem:[%s275 + $0x40] sm:$0xf]
        %v1454 = vld [vmem:[%s275 + $0x44] sm:$0xf]
        %v1455 = vld [vmem:[%s275 + $0x48] sm:$0xf]
        %v1456 = vld [vmem:[%s275 + $0x4c] sm:$0xf]
        %v1457 = vld [vmem:[%s275 + $0x50] sm:$0xf]
        %v1458 = vld [vmem:[%s275 + $0x54] sm:$0xf]
        %v1459 = vld [vmem:[%s275 + $0x58] sm:$0xf]
        %v1460 = vld [vmem:[%s275 + $0x5c] sm:$0xf]
        %v1461 = vld [vmem:[%s275 + $0x60] sm:$0xf]
        %v1462 = vld [vmem:[%s275 + $0x64] sm:$0xf]
        %v1463 = vld [vmem:[%s275 + $0x68] sm:$0xf]
        %v1464 = vld [vmem:[%s275 + $0x6c] sm:$0xf]
        %v1465 = vld [vmem:[%s275 + $0x70] sm:$0xf]
        %v1466 = vld [vmem:[%s275 + $0x74] sm:$0xf]
        %v1467 = vld [vmem:[%s275 + $0x78] sm:$0x1]
        %s1468 = scalar_lea.vmem %s1, 8
        %v1469 = vld [vmem:[%s1468] sm:$0x3]
        %v1499 = vunpack.c.l.b16 %v1439
        %v1500 = vunpack.c.l.b16 %v1440
        %v1501 = vunpack.c.l.b16 %v1441
        %v1502 = vunpack.c.l.b16 %v1442
        %v1503 = vunpack.c.l.b16 %v1443
        %v1504 = vunpack.c.l.b16 %v1444
        %v1505 = vunpack.c.l.b16 %v1445
        %v1506 = vunpack.c.l.b16 %v1446
        %v1507 = vunpack.c.l.b16 %v1447
        %v1508 = vunpack.c.l.b16 %v1448
        %v1509 = vunpack.c.l.b16 %v1449
        %v1510 = vunpack.c.l.b16 %v1450
        %v1511 = vunpack.c.l.b16 %v1451
        %v1512 = vunpack.c.l.b16 %v1452
        %v1513 = vunpack.c.l.b16 %v1453
        %v1514 = vunpack.c.l.b16 %v1454
        %v1515 = vunpack.c.l.b16 %v1455
        %v1516 = vunpack.c.l.b16 %v1456
        %v1517 = vunpack.c.l.b16 %v1457
        %v1518 = vunpack.c.l.b16 %v1458
        %v1519 = vunpack.c.l.b16 %v1459
        %v1520 = vunpack.c.l.b16 %v1460
        %v1521 = vunpack.c.l.b16 %v1461
        %v1522 = vunpack.c.l.b16 %v1462
        %v1523 = vunpack.c.l.b16 %v1463
        %v1524 = vunpack.c.l.b16 %v1464
        %v1525 = vunpack.c.l.b16 %v1465
        %v1526 = vunpack.c.l.b16 %v1466
        %v1527 = vunpack.c.l.b16 %v1467
        %v1528 = vpack.c.b16 %v1500, %v1499
        %v1529 = vpack.c.b16 %v1502, %v1501
        %v1530 = vpack.c.b16 %v1504, %v1503
        %v1531 = vpack.c.b16 %v1506, %v1505
        %v1532 = vpack.c.b16 %v1508, %v1507
        %v1533 = vpack.c.b16 %v1510, %v1509
        %v1534 = vpack.c.b16 %v1512, %v1511
        %v1535 = vpack.c.b16 %v1514, %v1513
        %v1536 = vpack.c.b16 %v1516, %v1515
        %v1537 = vpack.c.b16 %v1518, %v1517
        %v1538 = vpack.c.b16 %v1520, %v1519
        %v1539 = vpack.c.b16 %v1522, %v1521
        %v1540 = vpack.c.b16 %v1524, %v1523
        %v1541 = vpack.c.b16 %v1526, %v1525
        %v1542 = vpack.c.b16 %v1527, %v1527
        %v1544 = vshrl.u32 %v1528, 16
        %v1546 = vshll.u32 %v1528, 16
        %v1548 = vrot.slane %v1546, 1
        %v1549 = vor.u32 %v1544, %v1548
        %v1551 = vshll.u32 %v1529, 16
        %v1553 = vrot.slane %v1551, 1
        %v1554 = vsel %vm382, %v1549, %v1553
        %v1555 = vshrl.u32 %v1529, 16
        %v1557 = vor.u32 %v1555, %v1553
        %v1559 = vshll.u32 %v1530, 16
        %v1561 = vrot.slane %v1559, 1
        %v1562 = vsel %vm382, %v1557, %v1561
        %v1563 = vshrl.u32 %v1530, 16
        %v1565 = vor.u32 %v1563, %v1561
        %v1567 = vshll.u32 %v1531, 16
        %v1569 = vrot.slane %v1567, 1
        %v1570 = vsel %vm382, %v1565, %v1569
        %v1571 = vshrl.u32 %v1531, 16
        %v1573 = vor.u32 %v1571, %v1569
        %v1575 = vshll.u32 %v1532, 16
        %v1577 = vrot.slane %v1575, 1
        %v1578 = vsel %vm382, %v1573, %v1577
        %v1579 = vshrl.u32 %v1532, 16
        %v1581 = vor.u32 %v1579, %v1577
        %v1583 = vshll.u32 %v1533, 16
        %v1585 = vrot.slane %v1583, 1
        %v1586 = vsel %vm382, %v1581, %v1585
        %v1587 = vshrl.u32 %v1533, 16
        %v1589 = vor.u32 %v1587, %v1585
        %v1591 = vshll.u32 %v1534, 16
        %v1593 = vrot.slane %v1591, 1
        %v1594 = vsel %vm382, %v1589, %v1593
        %v1595 = vshrl.u32 %v1534, 16
        %v1597 = vor.u32 %v1595, %v1593
        %v1599 = vshll.u32 %v1535, 16
        %v1601 = vrot.slane %v1599, 1
        %v1602 = vsel %vm382, %v1597, %v1601
        %v1603 = vshrl.u32 %v1535, 16
        %v1605 = vor.u32 %v1603, %v1601
        %v1607 = vshll.u32 %v1536, 16
        %v1609 = vrot.slane %v1607, 1
        %v1610 = vsel %vm382, %v1605, %v1609
        %v1611 = vshrl.u32 %v1536, 16
        %v1613 = vor.u32 %v1611, %v1609
        %v1615 = vshll.u32 %v1537, 16
        %v1617 = vrot.slane %v1615, 1
        %v1618 = vsel %vm382, %v1613, %v1617
        %v1619 = vshrl.u32 %v1537, 16
        %v1621 = vor.u32 %v1619, %v1617
        %v1623 = vshll.u32 %v1538, 16
        %v1625 = vrot.slane %v1623, 1
        %v1626 = vsel %vm382, %v1621, %v1625
        %v1627 = vshrl.u32 %v1538, 16
        %v1629 = vor.u32 %v1627, %v1625
        %v1631 = vshll.u32 %v1539, 16
        %v1633 = vrot.slane %v1631, 1
        %v1634 = vsel %vm382, %v1629, %v1633
        %v1635 = vshrl.u32 %v1539, 16
        %v1637 = vor.u32 %v1635, %v1633
        %v1639 = vshll.u32 %v1540, 16
        %v1641 = vrot.slane %v1639, 1
        %v1642 = vsel %vm382, %v1637, %v1641
        %v1643 = vshrl.u32 %v1540, 16
        %v1645 = vor.u32 %v1643, %v1641
        %v1647 = vshll.u32 %v1541, 16
        %v1649 = vrot.slane %v1647, 1
        %v1650 = vsel %vm382, %v1645, %v1649
        %v1651 = vshrl.u32 %v1541, 16
        %v1653 = vor.u32 %v1651, %v1649
        %v1655 = vshll.u32 %v1542, 16
        %v1657 = vrot.slane %v1655, 1
        %v1658 = vsel %vm382, %v1653, %v1657
        %v1660 = vsel %vm499, %v1554, 0
        %v1663 = vsel %vm499, %v1562, 0
        %v1666 = vsel %vm499, %v1570, 0
        %v1669 = vsel %vm499, %v1578, 0
        %v1672 = vsel %vm499, %v1586, 0
        %v1675 = vsel %vm499, %v1594, 0
        %v1678 = vsel %vm499, %v1602, 0
        %v1681 = vsel %vm499, %v1610, 0
        %v1684 = vsel %vm499, %v1618, 0
        %v1687 = vsel %vm499, %v1626, 0
        %v1690 = vsel %vm499, %v1634, 0
        %v1693 = vsel %vm499, %v1642, 0
        %v1696 = vsel %vm499, %v1650, 0
        %v1699 = vsel %vm499, %v1658, 0
        %v1702 = vsel %vm542, %v1469, 0
        %1704 = vmatprep.subr.bf16.mxu0 0
        %1705 = vmatpush1.bf16.msra.mxu0 %v1702
        %1706 = vmatprep.subr.bf16.mxu0 0
        %1707 = vmatpush1.bf16.msra.mxu0 0
        %1708 = vmatprep.subr.bf16.mxu0 0
        %1709 = vmatpush1.bf16.msra.mxu0 0
        %1710 = vmatprep.subr.bf16.mxu0 0
        %1711 = vmatpush1.bf16.msra.mxu0 0
        %1712 = vmatprep.subr.bf16.mxu0 0
        %1713 = vmatpush1.bf16.msra.mxu0 0
        %1714 = vmatprep.subr.bf16.mxu0 0
        %1715 = vmatpush1.bf16.msra.mxu0 0
        %1716 = vmatprep.subr.bf16.mxu0 0
        %1717 = vmatpush1.bf16.msra.mxu0 0
        %1718 = vmatprep.subr.bf16.mxu0 0
        %1719 = vmatpush1.bf16.msra.mxu0 0
        %1720 = vmatprep.subr.bf16.mxu0 0
        %1721 = vmatpush1.bf16.msra.mxu0 0
        %1722 = vmatprep.subr.bf16.mxu0 0
        %1723 = vmatpush1.bf16.msra.mxu0 0
        %1724 = vmatprep.subr.bf16.mxu0 0
        %1725 = vmatpush1.bf16.msra.mxu0 0
        %1726 = vmatprep.subr.bf16.mxu0 0
        %1727 = vmatpush1.bf16.msra.mxu0 0
        %1728 = vmatprep.subr.bf16.mxu0 0
        %1729 = vmatpush1.bf16.msra.mxu0 0
        %1730 = vmatprep.subr.bf16.mxu0 0
        %1731 = vmatpush1.bf16.msra.mxu0 0
        %1732 = vmatprep.subr.bf16.mxu0 0
        %1733 = vmatpush1.bf16.msra.mxu0 0
        %1734 = vmatprep.subr.bf16.mxu0 0
        %1735 = vmatpush1.bf16.msra.mxu0 0
        %1736 = vmatprep.mubr.bf16.mxu0 0
        %1737 = vmatmul.mubr.bf16.gmra.mrb[0].mxu0 %v1660
        %v1738 = vpop.f32.mrb[0].mxu0
        %v1739 = vadd.f32 0.0, %v1738
        %v1740 = vpop.f32.mrb[0].mxu0
        %v1741 = vpop.f32.mrb[0].mxu0
        %v1742 = vadd.f32 0.0, %v1741
        %v1743 = vpop.f32.mrb[0].mxu0
        %1744 = vmatprep.mubr.bf16.mxu0 0
        %1745 = vmatmul.mubr.bf16.gmra.mrb[0].mxu0 %v1663
        %v1746 = vpop.f32.mrb[0].mxu0
        %v1747 = vadd.f32 0.0, %v1746
        %v1748 = vpop.f32.mrb[0].mxu0
        %v1749 = vpop.f32.mrb[0].mxu0
        %v1750 = vadd.f32 0.0, %v1749
        %v1751 = vpop.f32.mrb[0].mxu0
        %1752 = vmatprep.mubr.bf16.mxu0 0
        %1753 = vmatmul.mubr.bf16.gmra.mrb[0].mxu0 %v1666
        %v1754 = vpop.f32.mrb[0].mxu0
        %v1755 = vadd.f32 0.0, %v1754
        %v1756 = vpop.f32.mrb[0].mxu0
        %v1757 = vpop.f32.mrb[0].mxu0
        %v1758 = vadd.f32 0.0, %v1757
        %v1759 = vpop.f32.mrb[0].mxu0
        %1760 = vmatprep.mubr.bf16.mxu0 0
        %1761 = vmatmul.mubr.bf16.gmra.mrb[0].mxu0 %v1669
        %v1762 = vpop.f32.mrb[0].mxu0
        %v1763 = vadd.f32 0.0, %v1762
        %v1764 = vpop.f32.mrb[0].mxu0
        %v1765 = vpop.f32.mrb[0].mxu0
        %v1766 = vadd.f32 0.0, %v1765
        %v1767 = vpop.f32.mrb[0].mxu0
        %1768 = vmatprep.mubr.bf16.mxu0 0
        %1769 = vmatmul.mubr.bf16.gmra.mrb[0].mxu0 %v1672
        %v1770 = vpop.f32.mrb[0].mxu0
        %v1771 = vadd.f32 0.0, %v1770
        %v1772 = vpop.f32.mrb[0].mxu0
        %v1773 = vpop.f32.mrb[0].mxu0
        %v1774 = vadd.f32 0.0, %v1773
        %v1775 = vpop.f32.mrb[0].mxu0
        %1776 = vmatprep.mubr.bf16.mxu0 0
        %1777 = vmatmul.mubr.bf16.gmra.mrb[0].mxu0 %v1675
        %v1778 = vpop.f32.mrb[0].mxu0
        %v1779 = vadd.f32 0.0, %v1778
        %v1780 = vpop.f32.mrb[0].mxu0
        %v1781 = vpop.f32.mrb[0].mxu0
        %v1782 = vadd.f32 0.0, %v1781
        %v1783 = vpop.f32.mrb[0].mxu0
        %1784 = vmatprep.mubr.bf16.mxu0 0
        %1785 = vmatmul.mubr.bf16.gmra.mrb[0].mxu0 %v1678
        %v1786 = vpop.f32.mrb[0].mxu0
        %v1787 = vadd.f32 0.0, %v1786
        %v1788 = vpop.f32.mrb[0].mxu0
        %v1789 = vpop.f32.mrb[0].mxu0
        %v1790 = vadd.f32 0.0, %v1789
        %v1791 = vpop.f32.mrb[0].mxu0
        %1792 = vmatprep.mubr.bf16.mxu0 0
        %1793 = vmatmul.mubr.bf16.gmra.mrb[0].mxu0 %v1681
        %v1794 = vpop.f32.mrb[0].mxu0
        %v1795 = vadd.f32 0.0, %v1794
        %v1796 = vpop.f32.mrb[0].mxu0
        %v1797 = vpop.f32.mrb[0].mxu0
        %v1798 = vadd.f32 0.0, %v1797
        %v1799 = vpop.f32.mrb[0].mxu0
        %1800 = vmatprep.mubr.bf16.mxu0 0
        %1801 = vmatmul.mubr.bf16.gmra.mrb[0].mxu0 %v1684
        %v1802 = vpop.f32.mrb[0].mxu0
        %v1803 = vadd.f32 0.0, %v1802
        %v1804 = vpop.f32.mrb[0].mxu0
        %v1805 = vpop.f32.mrb[0].mxu0
        %v1806 = vadd.f32 0.0, %v1805
        %v1807 = vpop.f32.mrb[0].mxu0
        %1808 = vmatprep.mubr.bf16.mxu0 0
        %1809 = vmatmul.mubr.bf16.gmra.mrb[0].mxu0 %v1687
        %v1810 = vpop.f32.mrb[0].mxu0
        %v1811 = vadd.f32 0.0, %v1810
        %v1812 = vpop.f32.mrb[0].mxu0
        %v1813 = vpop.f32.mrb[0].mxu0
        %v1814 = vadd.f32 0.0, %v1813
        %v1815 = vpop.f32.mrb[0].mxu0
        %1816 = vmatprep.mubr.bf16.mxu0 0
        %1817 = vmatmul.mubr.bf16.gmra.mrb[0].mxu0 %v1690
        %v1818 = vpop.f32.mrb[0].mxu0
        %v1819 = vadd.f32 0.0, %v1818
        %v1820 = vpop.f32.mrb[0].mxu0
        %v1821 = vpop.f32.mrb[0].mxu0
        %v1822 = vadd.f32 0.0, %v1821
        %v1823 = vpop.f32.mrb[0].mxu0
        %1824 = vmatprep.mubr.bf16.mxu0 0
        %1825 = vmatmul.mubr.bf16.gmra.mrb[0].mxu0 %v1693
        %v1826 = vpop.f32.mrb[0].mxu0
        %v1827 = vadd.f32 0.0, %v1826
        %v1828 = vpop.f32.mrb[0].mxu0
        %v1829 = vpop.f32.mrb[0].mxu0
        %v1830 = vadd.f32 0.0, %v1829
        %v1831 = vpop.f32.mrb[0].mxu0
        %1832 = vmatprep.mubr.bf16.mxu0 0
        %1833 = vmatmul.mubr.bf16.gmra.mrb[0].mxu0 %v1696
        %v1834 = vpop.f32.mrb[0].mxu0
        %v1835 = vadd.f32 0.0, %v1834
        %v1836 = vpop.f32.mrb[0].mxu0
        %v1837 = vpop.f32.mrb[0].mxu0
        %v1838 = vadd.f32 0.0, %v1837
        %v1839 = vpop.f32.mrb[0].mxu0
        %1840 = vmatprep.mubr.bf16.mxu0 0
        %1841 = vmatmul.mubr.bf16.gmra.mrb[0].mxu0 %v1699
        %v1842 = vpop.f32.mrb[0].mxu0
        %v1843 = vadd.f32 0.0, %v1842
        %v1844 = vpop.f32.mrb[0].mxu0
        %v1845 = vpop.f32.mrb[0].mxu0
        %v1846 = vadd.f32 0.0, %v1845
        %v1847 = vpop.f32.mrb[0].mxu0
        %1848 = vdwg.mxu0
        %v1849 = vadd.f32 %v1411, %v1739
        %v1850 = vadd.f32 %v1412, %v1742
        %v1851 = vadd.f32 %v1413, %v1747
        %v1852 = vadd.f32 %v1414, %v1750
        %v1853 = vadd.f32 %v1415, %v1755
        %v1854 = vadd.f32 %v1416, %v1758
        %v1855 = vadd.f32 %v1417, %v1763
        %v1856 = vadd.f32 %v1418, %v1766
        %v1857 = vadd.f32 %v1419, %v1771
        %v1858 = vadd.f32 %v1420, %v1774
        %v1859 = vadd.f32 %v1421, %v1779
        %v1860 = vadd.f32 %v1422, %v1782
        %v1861 = vadd.f32 %v1423, %v1787
        %v1862 = vadd.f32 %v1424, %v1790
        %v1863 = vadd.f32 %v1425, %v1795
        %v1864 = vadd.f32 %v1426, %v1798
        %v1865 = vadd.f32 %v1427, %v1803
        %v1866 = vadd.f32 %v1428, %v1806
        %v1867 = vadd.f32 %v1429, %v1811
        %v1868 = vadd.f32 %v1430, %v1814
        %v1869 = vadd.f32 %v1431, %v1819
        %v1870 = vadd.f32 %v1432, %v1822
        %v1871 = vadd.f32 %v1433, %v1827
        %v1872 = vadd.f32 %v1434, %v1830
        %v1873 = vadd.f32 %v1435, %v1835
        %v1874 = vadd.f32 %v1436, %v1838
        %v1875 = vadd.f32 %v1437, %v1843
        %v1876 = vadd.f32 %v1438, %v1846
        %v1877 = vld [vmem:[%s275 + $0x8] sm:$0xe]
        %s1878 = scalar_lea.vmem %s1, 10
        %v1879 = vld [vmem:[%s1878] sm:$0x3]
        %v1881 = vunpack.c.l.b16 %v1877
        %v1882 = vpack.c.b16 %v1500, %v1881
        %v1883 = vrot.slane %v1882, 1
        %v1884 = vrot.slane %v1529, 1
        %v1885 = vsel %vm873, %v1883, %v1884
        %v1886 = vrot.slane %v1530, 1
        %v1887 = vsel %vm873, %v1884, %v1886
        %v1888 = vrot.slane %v1531, 1
        %v1889 = vsel %vm873, %v1886, %v1888
        %v1890 = vrot.slane %v1532, 1
        %v1891 = vsel %vm873, %v1888, %v1890
        %v1892 = vrot.slane %v1533, 1
        %v1893 = vsel %vm873, %v1890, %v1892
        %v1894 = vrot.slane %v1534, 1
        %v1895 = vsel %vm873, %v1892, %v1894
        %v1896 = vrot.slane %v1535, 1
        %v1897 = vsel %vm873, %v1894, %v1896
        %v1898 = vrot.slane %v1536, 1
        %v1899 = vsel %vm873, %v1896, %v1898
        %v1900 = vrot.slane %v1537, 1
        %v1901 = vsel %vm873, %v1898, %v1900
        %v1902 = vrot.slane %v1538, 1
        %v1903 = vsel %vm873, %v1900, %v1902
        %v1904 = vrot.slane %v1539, 1
        %v1905 = vsel %vm873, %v1902, %v1904
        %v1906 = vrot.slane %v1540, 1
        %v1907 = vsel %vm873, %v1904, %v1906
        %v1908 = vrot.slane %v1541, 1
        %v1909 = vsel %vm873, %v1906, %v1908
        %v1910 = vrot.slane %v1542, 1
        %v1911 = vsel %vm873, %v1908, %v1910
        %v1913 = vsel %vm499, %v1885, 0
        %v1916 = vsel %vm499, %v1887, 0
        %v1919 = vsel %vm499, %v1889, 0
        %v1922 = vsel %vm499, %v1891, 0
        %v1925 = vsel %vm499, %v1893, 0
        %v1928 = vsel %vm499, %v1895, 0
        %v1931 = vsel %vm499, %v1897, 0
        %v1934 = vsel %vm499, %v1899, 0
        %v1937 = vsel %vm499, %v1901, 0
        %v1940 = vsel %vm499, %v1903, 0
        %v1943 = vsel %vm499, %v1905, 0
        %v1946 = vsel %vm499, %v1907, 0
        %v1949 = vsel %vm499, %v1909, 0
        %v1952 = vsel %vm499, %v1911, 0
        %v1955 = vsel %vm542, %v1879, 0
        %1957 = vmatprep.subr.bf16.mxu0 0
        %1958 = vmatpush1.bf16.msra.mxu0 %v1955
        %1959 = vmatprep.subr.bf16.mxu0 0
        %1960 = vmatpush1.bf16.msra.mxu0 0
        %1961 = vmatprep.subr.bf16.mxu0 0
        %1962 = vmatpush1.bf16.msra.mxu0 0
        %1963 = vmatprep.subr.bf16.mxu0 0
        %1964 = vmatpush1.bf16.msra.mxu0 0
        %1965 = vmatprep.subr.bf16.mxu0 0
        %1966 = vmatpush1.bf16.msra.mxu0 0
        %1967 = vmatprep.subr.bf16.mxu0 0
        %1968 = vmatpush1.bf16.msra.mxu0 0
        %1969 = vmatprep.subr.bf16.mxu0 0
        %1970 = vmatpush1.bf16.msra.mxu0 0
        %1971 = vmatprep.subr.bf16.mxu0 0
        %1972 = vmatpush1.bf16.msra.mxu0 0
        %1973 = vmatprep.subr.bf16.mxu0 0
        %1974 = vmatpush1.bf16.msra.mxu0 0
        %1975 = vmatprep.subr.bf16.mxu0 0
        %1976 = vmatpush1.bf16.msra.mxu0 0
        %1977 = vmatprep.subr.bf16.mxu0 0
        %1978 = vmatpush1.bf16.msra.mxu0 0
        %1979 = vmatprep.subr.bf16.mxu0 0
        %1980 = vmatpush1.bf16.msra.mxu0 0
        %1981 = vmatprep.subr.bf16.mxu0 0
        %1982 = vmatpush1.bf16.msra.mxu0 0
        %1983 = vmatprep.subr.bf16.mxu0 0
        %1984 = vmatpush1.bf16.msra.mxu0 0
        %1985 = vmatprep.subr.bf16.mxu0 0
        %1986 = vmatpush1.bf16.msra.mxu0 0
        %1987 = vmatprep.subr.bf16.mxu0 0
        %1988 = vmatpush1.bf16.msra.mxu0 0
        %1989 = vmatprep.mubr.bf16.mxu0 0
        %1990 = vmatmul.mubr.bf16.gmra.mrb[0].mxu0 %v1913
        %v1991 = vpop.f32.mrb[0].mxu0
        %v1992 = vadd.f32 0.0, %v1991
        %v1993 = vpop.f32.mrb[0].mxu0
        %v1994 = vpop.f32.mrb[0].mxu0
        %v1995 = vadd.f32 0.0, %v1994
        %v1996 = vpop.f32.mrb[0].mxu0
        %1997 = vmatprep.mubr.bf16.mxu0 0
        %1998 = vmatmul.mubr.bf16.gmra.mrb[0].mxu0 %v1916
        %v1999 = vpop.f32.mrb[0].mxu0
        %v2000 = vadd.f32 0.0, %v1999
        %v2001 = vpop.f32.mrb[0].mxu0
        %v2002 = vpop.f32.mrb[0].mxu0
        %v2003 = vadd.f32 0.0, %v2002
        %v2004 = vpop.f32.mrb[0].mxu0
        %2005 = vmatprep.mubr.bf16.mxu0 0
        %2006 = vmatmul.mubr.bf16.gmra.mrb[0].mxu0 %v1919
        %v2007 = vpop.f32.mrb[0].mxu0
        %v2008 = vadd.f32 0.0, %v2007
        %v2009 = vpop.f32.mrb[0].mxu0
        %v2010 = vpop.f32.mrb[0].mxu0
        %v2011 = vadd.f32 0.0, %v2010
        %v2012 = vpop.f32.mrb[0].mxu0
        %2013 = vmatprep.mubr.bf16.mxu0 0
        %2014 = vmatmul.mubr.bf16.gmra.mrb[0].mxu0 %v1922
        %v2015 = vpop.f32.mrb[0].mxu0
        %v2016 = vadd.f32 0.0, %v2015
        %v2017 = vpop.f32.mrb[0].mxu0
        %v2018 = vpop.f32.mrb[0].mxu0
        %v2019 = vadd.f32 0.0, %v2018
        %v2020 = vpop.f32.mrb[0].mxu0
        %2021 = vmatprep.mubr.bf16.mxu0 0
        %2022 = vmatmul.mubr.bf16.gmra.mrb[0].mxu0 %v1925
        %v2023 = vpop.f32.mrb[0].mxu0
        %v2024 = vadd.f32 0.0, %v2023
        %v2025 = vpop.f32.mrb[0].mxu0
        %v2026 = vpop.f32.mrb[0].mxu0
        %v2027 = vadd.f32 0.0, %v2026
        %v2028 = vpop.f32.mrb[0].mxu0
        %2029 = vmatprep.mubr.bf16.mxu0 0
        %2030 = vmatmul.mubr.bf16.gmra.mrb[0].mxu0 %v1928
        %v2031 = vpop.f32.mrb[0].mxu0
        %v2032 = vadd.f32 0.0, %v2031
        %v2033 = vpop.f32.mrb[0].mxu0
        %v2034 = vpop.f32.mrb[0].mxu0
        %v2035 = vadd.f32 0.0, %v2034
        %v2036 = vpop.f32.mrb[0].mxu0
        %2037 = vmatprep.mubr.bf16.mxu0 0
        %2038 = vmatmul.mubr.bf16.gmra.mrb[0].mxu0 %v1931
        %v2039 = vpop.f32.mrb[0].mxu0
        %v2040 = vadd.f32 0.0, %v2039
        %v2041 = vpop.f32.mrb[0].mxu0
        %v2042 = vpop.f32.mrb[0].mxu0
        %v2043 = vadd.f32 0.0, %v2042
        %v2044 = vpop.f32.mrb[0].mxu0
        %2045 = vmatprep.mubr.bf16.mxu0 0
        %2046 = vmatmul.mubr.bf16.gmra.mrb[0].mxu0 %v1934
        %v2047 = vpop.f32.mrb[0].mxu0
        %v2048 = vadd.f32 0.0, %v2047
        %v2049 = vpop.f32.mrb[0].mxu0
        %v2050 = vpop.f32.mrb[0].mxu0
        %v2051 = vadd.f32 0.0, %v2050
        %v2052 = vpop.f32.mrb[0].mxu0
        %2053 = vmatprep.mubr.bf16.mxu0 0
        %2054 = vmatmul.mubr.bf16.gmra.mrb[0].mxu0 %v1937
        %v2055 = vpop.f32.mrb[0].mxu0
        %v2056 = vadd.f32 0.0, %v2055
        %v2057 = vpop.f32.mrb[0].mxu0
        %v2058 = vpop.f32.mrb[0].mxu0
        %v2059 = vadd.f32 0.0, %v2058
        %v2060 = vpop.f32.mrb[0].mxu0
        %2061 = vmatprep.mubr.bf16.mxu0 0
        %2062 = vmatmul.mubr.bf16.gmra.mrb[0].mxu0 %v1940
        %v2063 = vpop.f32.mrb[0].mxu0
        %v2064 = vadd.f32 0.0, %v2063
        %v2065 = vpop.f32.mrb[0].mxu0
        %v2066 = vpop.f32.mrb[0].mxu0
        %v2067 = vadd.f32 0.0, %v2066
        %v2068 = vpop.f32.mrb[0].mxu0
        %2069 = vmatprep.mubr.bf16.mxu0 0
        %2070 = vmatmul.mubr.bf16.gmra.mrb[0].mxu0 %v1943
        %v2071 = vpop.f32.mrb[0].mxu0
        %v2072 = vadd.f32 0.0, %v2071
        %v2073 = vpop.f32.mrb[0].mxu0
        %v2074 = vpop.f32.mrb[0].mxu0
        %v2075 = vadd.f32 0.0, %v2074
        %v2076 = vpop.f32.mrb[0].mxu0
        %2077 = vmatprep.mubr.bf16.mxu0 0
        %2078 = vmatmul.mubr.bf16.gmra.mrb[0].mxu0 %v1946
        %v2079 = vpop.f32.mrb[0].mxu0
        %v2080 = vadd.f32 0.0, %v2079
        %v2081 = vpop.f32.mrb[0].mxu0
        %v2082 = vpop.f32.mrb[0].mxu0
        %v2083 = vadd.f32 0.0, %v2082
        %v2084 = vpop.f32.mrb[0].mxu0
        %2085 = vmatprep.mubr.bf16.mxu0 0
        %2086 = vmatmul.mubr.bf16.gmra.mrb[0].mxu0 %v1949
        %v2087 = vpop.f32.mrb[0].mxu0
        %v2088 = vadd.f32 0.0, %v2087
        %v2089 = vpop.f32.mrb[0].mxu0
        %v2090 = vpop.f32.mrb[0].mxu0
        %v2091 = vadd.f32 0.0, %v2090
        %v2092 = vpop.f32.mrb[0].mxu0
        %2093 = vmatprep.mubr.bf16.mxu0 0
        %2094 = vmatmul.mubr.bf16.gmra.mrb[0].mxu0 %v1952
        %v2095 = vpop.f32.mrb[0].mxu0
        %v2096 = vadd.f32 0.0, %v2095
        %v2097 = vpop.f32.mrb[0].mxu0
        %v2098 = vpop.f32.mrb[0].mxu0
        %v2099 = vadd.f32 0.0, %v2098
        %v2100 = vpop.f32.mrb[0].mxu0
        %2101 = vdwg.mxu0
        %v2102 = vadd.f32 %v1849, %v1992
        %v2103 = vadd.f32 %v1850, %v1995
        %v2104 = vadd.f32 %v1851, %v2000
        %v2105 = vadd.f32 %v1852, %v2003
        %v2106 = vadd.f32 %v1853, %v2008
        %v2107 = vadd.f32 %v1854, %v2011
        %v2108 = vadd.f32 %v1855, %v2016
        %v2109 = vadd.f32 %v1856, %v2019
        %v2110 = vadd.f32 %v1857, %v2024
        %v2111 = vadd.f32 %v1858, %v2027
        %v2112 = vadd.f32 %v1859, %v2032
        %v2113 = vadd.f32 %v1860, %v2035
        %v2114 = vadd.f32 %v1861, %v2040
        %v2115 = vadd.f32 %v1862, %v2043
        %v2116 = vadd.f32 %v1863, %v2048
        %v2117 = vadd.f32 %v1864, %v2051
        %v2118 = vadd.f32 %v1865, %v2056
        %v2119 = vadd.f32 %v1866, %v2059
        %v2120 = vadd.f32 %v1867, %v2064
        %v2121 = vadd.f32 %v1868, %v2067
        %v2122 = vadd.f32 %v1869, %v2072
        %v2123 = vadd.f32 %v1870, %v2075
        %v2124 = vadd.f32 %v1871, %v2080
        %v2125 = vadd.f32 %v1872, %v2083
        %v2126 = vadd.f32 %v1873, %v2088
        %v2127 = vadd.f32 %v1874, %v2091
        %v2128 = vadd.f32 %v1875, %v2096
        %v2129 = vadd.f32 %v1876, %v2099
        %v2130 = vld [vmem:[%s275 + $0x10] sm:$0xf]
        %v2131 = vld [vmem:[%s275 + $0x14] sm:$0xf]
        %v2132 = vld [vmem:[%s275 + $0x18] sm:$0xf]
        %v2133 = vld [vmem:[%s275 + $0x1c] sm:$0xf]
        %v2134 = vld [vmem:[%s275 + $0x20] sm:$0xf]
        %v2135 = vld [vmem:[%s275 + $0x24] sm:$0xf]
        %v2136 = vld [vmem:[%s275 + $0x28] sm:$0xf]
        %v2137 = vld [vmem:[%s275 + $0x2c] sm:$0xf]
        %v2138 = vld [vmem:[%s275 + $0x30] sm:$0xf]
        %v2139 = vld [vmem:[%s275 + $0x34] sm:$0xf]
        %v2140 = vld [vmem:[%s275 + $0x38] sm:$0xf]
        %v2141 = vld [vmem:[%s275 + $0x3c] sm:$0xf]
        %v2142 = vld [vmem:[%s275 + $0x40] sm:$0xf]
        %v2143 = vld [vmem:[%s275 + $0x44] sm:$0xf]
        %v2144 = vld [vmem:[%s275 + $0x48] sm:$0xf]
        %v2145 = vld [vmem:[%s275 + $0x4c] sm:$0xf]
        %v2146 = vld [vmem:[%s275 + $0x50] sm:$0xf]
        %v2147 = vld [vmem:[%s275 + $0x54] sm:$0xf]
        %v2148 = vld [vmem:[%s275 + $0x58] sm:$0xf]
        %v2149 = vld [vmem:[%s275 + $0x5c] sm:$0xf]
        %v2150 = vld [vmem:[%s275 + $0x60] sm:$0xf]
        %v2151 = vld [vmem:[%s275 + $0x64] sm:$0xf]
        %v2152 = vld [vmem:[%s275 + $0x68] sm:$0xf]
        %v2153 = vld [vmem:[%s275 + $0x6c] sm:$0xf]
        %v2154 = vld [vmem:[%s275 + $0x70] sm:$0xf]
        %v2155 = vld [vmem:[%s275 + $0x74] sm:$0xf]
        %v2156 = vld [vmem:[%s275 + $0x78] sm:$0xf]
        %v2157 = vld [vmem:[%s275 + $0x7c] sm:$0xf]
        %s2158 = scalar_lea.vmem %s1, 12
        %v2159 = vld [vmem:[%s2158] sm:$0x3]
        %v2188 = vunpack.c.l.b16 %v2130
        %v2189 = vunpack.c.l.b16 %v2131
        %v2190 = vunpack.c.l.b16 %v2132
        %v2191 = vunpack.c.l.b16 %v2133
        %v2192 = vunpack.c.l.b16 %v2134
        %v2193 = vunpack.c.l.b16 %v2135
        %v2194 = vunpack.c.l.b16 %v2136
        %v2195 = vunpack.c.l.b16 %v2137
        %v2196 = vunpack.c.l.b16 %v2138
        %v2197 = vunpack.c.l.b16 %v2139
        %v2198 = vunpack.c.l.b16 %v2140
        %v2199 = vunpack.c.l.b16 %v2141
        %v2200 = vunpack.c.l.b16 %v2142
        %v2201 = vunpack.c.l.b16 %v2143
        %v2202 = vunpack.c.l.b16 %v2144
        %v2203 = vunpack.c.l.b16 %v2145
        %v2204 = vunpack.c.l.b16 %v2146
        %v2205 = vunpack.c.l.b16 %v2147
        %v2206 = vunpack.c.l.b16 %v2148
        %v2207 = vunpack.c.l.b16 %v2149
        %v2208 = vunpack.c.l.b16 %v2150
        %v2209 = vunpack.c.l.b16 %v2151
        %v2210 = vunpack.c.l.b16 %v2152
        %v2211 = vunpack.c.l.b16 %v2153
        %v2212 = vunpack.c.l.b16 %v2154
        %v2213 = vunpack.c.l.b16 %v2155
        %v2214 = vunpack.c.l.b16 %v2156
        %v2215 = vunpack.c.l.b16 %v2157
        %v2216 = vpack.c.b16 %v2189, %v2188
        %v2217 = vpack.c.b16 %v2191, %v2190
        %v2218 = vpack.c.b16 %v2193, %v2192
        %v2219 = vpack.c.b16 %v2195, %v2194
        %v2220 = vpack.c.b16 %v2197, %v2196
        %v2221 = vpack.c.b16 %v2199, %v2198
        %v2222 = vpack.c.b16 %v2201, %v2200
        %v2223 = vpack.c.b16 %v2203, %v2202
        %v2224 = vpack.c.b16 %v2205, %v2204
        %v2225 = vpack.c.b16 %v2207, %v2206
        %v2226 = vpack.c.b16 %v2209, %v2208
        %v2227 = vpack.c.b16 %v2211, %v2210
        %v2228 = vpack.c.b16 %v2213, %v2212
        %v2229 = vpack.c.b16 %v2215, %v2214
        %v2231 = vsel %vm499, %v2216, 0
        %v2234 = vsel %vm499, %v2217, 0
        %v2237 = vsel %vm499, %v2218, 0
        %v2240 = vsel %vm499, %v2219, 0
        %v2243 = vsel %vm499, %v2220, 0
        %v2246 = vsel %vm499, %v2221, 0
        %v2249 = vsel %vm499, %v2222, 0
        %v2252 = vsel %vm499, %v2223, 0
        %v2255 = vsel %vm499, %v2224, 0
        %v2258 = vsel %vm499, %v2225, 0
        %v2261 = vsel %vm499, %v2226, 0
        %v2264 = vsel %vm499, %v2227, 0
        %v2267 = vsel %vm499, %v2228, 0
        %v2270 = vsel %vm499, %v2229, 0
        %v2273 = vsel %vm542, %v2159, 0
        %2275 = vmatprep.subr.bf16.mxu0 0
        %2276 = vmatpush1.bf16.msra.mxu0 %v2273
        %2277 = vmatprep.subr.bf16.mxu0 0
        %2278 = vmatpush1.bf16.msra.mxu0 0
        %2279 = vmatprep.subr.bf16.mxu0 0
        %2280 = vmatpush1.bf16.msra.mxu0 0
        %2281 = vmatprep.subr.bf16.mxu0 0
        %2282 = vmatpush1.bf16.msra.mxu0 0
        %2283 = vmatprep.subr.bf16.mxu0 0
        %2284 = vmatpush1.bf16.msra.mxu0 0
        %2285 = vmatprep.subr.bf16.mxu0 0
        %2286 = vmatpush1.bf16.msra.mxu0 0
        %2287 = vmatprep.subr.bf16.mxu0 0
        %2288 = vmatpush1.bf16.msra.mxu0 0
        %2289 = vmatprep.subr.bf16.mxu0 0
        %2290 = vmatpush1.bf16.msra.mxu0 0
        %2291 = vmatprep.subr.bf16.mxu0 0
        %2292 = vmatpush1.bf16.msra.mxu0 0
        %2293 = vmatprep.subr.bf16.mxu0 0
        %2294 = vmatpush1.bf16.msra.mxu0 0
        %2295 = vmatprep.subr.bf16.mxu0 0
        %2296 = vmatpush1.bf16.msra.mxu0 0
        %2297 = vmatprep.subr.bf16.mxu0 0
        %2298 = vmatpush1.bf16.msra.mxu0 0
        %2299 = vmatprep.subr.bf16.mxu0 0
        %2300 = vmatpush1.bf16.msra.mxu0 0
        %2301 = vmatprep.subr.bf16.mxu0 0
        %2302 = vmatpush1.bf16.msra.mxu0 0
        %2303 = vmatprep.subr.bf16.mxu0 0
        %2304 = vmatpush1.bf16.msra.mxu0 0
        %2305 = vmatprep.subr.bf16.mxu0 0
        %2306 = vmatpush1.bf16.msra.mxu0 0
        %2307 = vmatprep.mubr.bf16.mxu0 0
        %2308 = vmatmul.mubr.bf16.gmra.mrb[0].mxu0 %v2231
        %v2309 = vpop.f32.mrb[0].mxu0
        %v2310 = vadd.f32 0.0, %v2309
        %v2311 = vpop.f32.mrb[0].mxu0
        %v2312 = vpop.f32.mrb[0].mxu0
        %v2313 = vadd.f32 0.0, %v2312
        %v2314 = vpop.f32.mrb[0].mxu0
        %2315 = vmatprep.mubr.bf16.mxu0 0
        %2316 = vmatmul.mubr.bf16.gmra.mrb[0].mxu0 %v2234
        %v2317 = vpop.f32.mrb[0].mxu0
        %v2318 = vadd.f32 0.0, %v2317
        %v2319 = vpop.f32.mrb[0].mxu0
        %v2320 = vpop.f32.mrb[0].mxu0
        %v2321 = vadd.f32 0.0, %v2320
        %v2322 = vpop.f32.mrb[0].mxu0
        %2323 = vmatprep.mubr.bf16.mxu0 0
        %2324 = vmatmul.mubr.bf16.gmra.mrb[0].mxu0 %v2237
        %v2325 = vpop.f32.mrb[0].mxu0
        %v2326 = vadd.f32 0.0, %v2325
        %v2327 = vpop.f32.mrb[0].mxu0
        %v2328 = vpop.f32.mrb[0].mxu0
        %v2329 = vadd.f32 0.0, %v2328
        %v2330 = vpop.f32.mrb[0].mxu0
        %2331 = vmatprep.mubr.bf16.mxu0 0
        %2332 = vmatmul.mubr.bf16.gmra.mrb[0].mxu0 %v2240
        %v2333 = vpop.f32.mrb[0].mxu0
        %v2334 = vadd.f32 0.0, %v2333
        %v2335 = vpop.f32.mrb[0].mxu0
        %v2336 = vpop.f32.mrb[0].mxu0
        %v2337 = vadd.f32 0.0, %v2336
        %v2338 = vpop.f32.mrb[0].mxu0
        %2339 = vmatprep.mubr.bf16.mxu0 0
        %2340 = vmatmul.mubr.bf16.gmra.mrb[0].mxu0 %v2243
        %v2341 = vpop.f32.mrb[0].mxu0
        %v2342 = vadd.f32 0.0, %v2341
        %v2343 = vpop.f32.mrb[0].mxu0
        %v2344 = vpop.f32.mrb[0].mxu0
        %v2345 = vadd.f32 0.0, %v2344
        %v2346 = vpop.f32.mrb[0].mxu0
        %2347 = vmatprep.mubr.bf16.mxu0 0
        %2348 = vmatmul.mubr.bf16.gmra.mrb[0].mxu0 %v2246
        %v2349 = vpop.f32.mrb[0].mxu0
        %v2350 = vadd.f32 0.0, %v2349
        %v2351 = vpop.f32.mrb[0].mxu0
        %v2352 = vpop.f32.mrb[0].mxu0
        %v2353 = vadd.f32 0.0, %v2352
        %v2354 = vpop.f32.mrb[0].mxu0
        %2355 = vmatprep.mubr.bf16.mxu0 0
        %2356 = vmatmul.mubr.bf16.gmra.mrb[0].mxu0 %v2249
        %v2357 = vpop.f32.mrb[0].mxu0
        %v2358 = vadd.f32 0.0, %v2357
        %v2359 = vpop.f32.mrb[0].mxu0
        %v2360 = vpop.f32.mrb[0].mxu0
        %v2361 = vadd.f32 0.0, %v2360
        %v2362 = vpop.f32.mrb[0].mxu0
        %2363 = vmatprep.mubr.bf16.mxu0 0
        %2364 = vmatmul.mubr.bf16.gmra.mrb[0].mxu0 %v2252
        %v2365 = vpop.f32.mrb[0].mxu0
        %v2366 = vadd.f32 0.0, %v2365
        %v2367 = vpop.f32.mrb[0].mxu0
        %v2368 = vpop.f32.mrb[0].mxu0
        %v2369 = vadd.f32 0.0, %v2368
        %v2370 = vpop.f32.mrb[0].mxu0
        %2371 = vmatprep.mubr.bf16.mxu0 0
        %2372 = vmatmul.mubr.bf16.gmra.mrb[0].mxu0 %v2255
        %v2373 = vpop.f32.mrb[0].mxu0
        %v2374 = vadd.f32 0.0, %v2373
        %v2375 = vpop.f32.mrb[0].mxu0
        %v2376 = vpop.f32.mrb[0].mxu0
        %v2377 = vadd.f32 0.0, %v2376
        %v2378 = vpop.f32.mrb[0].mxu0
        %2379 = vmatprep.mubr.bf16.mxu0 0
        %2380 = vmatmul.mubr.bf16.gmra.mrb[0].mxu0 %v2258
        %v2381 = vpop.f32.mrb[0].mxu0
        %v2382 = vadd.f32 0.0, %v2381
        %v2383 = vpop.f32.mrb[0].mxu0
        %v2384 = vpop.f32.mrb[0].mxu0
        %v2385 = vadd.f32 0.0, %v2384
        %v2386 = vpop.f32.mrb[0].mxu0
        %2387 = vmatprep.mubr.bf16.mxu0 0
        %2388 = vmatmul.mubr.bf16.gmra.mrb[0].mxu0 %v2261
        %v2389 = vpop.f32.mrb[0].mxu0
        %v2390 = vadd.f32 0.0, %v2389
        %v2391 = vpop.f32.mrb[0].mxu0
        %v2392 = vpop.f32.mrb[0].mxu0
        %v2393 = vadd.f32 0.0, %v2392
        %v2394 = vpop.f32.mrb[0].mxu0
        %2395 = vmatprep.mubr.bf16.mxu0 0
        %2396 = vmatmul.mubr.bf16.gmra.mrb[0].mxu0 %v2264
        %v2397 = vpop.f32.mrb[0].mxu0
        %v2398 = vadd.f32 0.0, %v2397
        %v2399 = vpop.f32.mrb[0].mxu0
        %v2400 = vpop.f32.mrb[0].mxu0
        %v2401 = vadd.f32 0.0, %v2400
        %v2402 = vpop.f32.mrb[0].mxu0
        %2403 = vmatprep.mubr.bf16.mxu0 0
        %2404 = vmatmul.mubr.bf16.gmra.mrb[0].mxu0 %v2267
        %v2405 = vpop.f32.mrb[0].mxu0
        %v2406 = vadd.f32 0.0, %v2405
        %v2407 = vpop.f32.mrb[0].mxu0
        %v2408 = vpop.f32.mrb[0].mxu0
        %v2409 = vadd.f32 0.0, %v2408
        %v2410 = vpop.f32.mrb[0].mxu0
        %2411 = vmatprep.mubr.bf16.mxu0 0
        %2412 = vmatmul.mubr.bf16.gmra.mrb[0].mxu0 %v2270
        %v2413 = vpop.f32.mrb[0].mxu0
        %v2414 = vadd.f32 0.0, %v2413
        %v2415 = vpop.f32.mrb[0].mxu0
        %v2416 = vpop.f32.mrb[0].mxu0
        %v2417 = vadd.f32 0.0, %v2416
        %v2418 = vpop.f32.mrb[0].mxu0
        %2419 = vdwg.mxu0
        %v2420 = vadd.f32 %v2102, %v2310
        %v2421 = vadd.f32 %v2103, %v2313
        %v2422 = vadd.f32 %v2104, %v2318
        %v2423 = vadd.f32 %v2105, %v2321
        %v2424 = vadd.f32 %v2106, %v2326
        %v2425 = vadd.f32 %v2107, %v2329
        %v2426 = vadd.f32 %v2108, %v2334
        %v2427 = vadd.f32 %v2109, %v2337
        %v2428 = vadd.f32 %v2110, %v2342
        %v2429 = vadd.f32 %v2111, %v2345
        %v2430 = vadd.f32 %v2112, %v2350
        %v2431 = vadd.f32 %v2113, %v2353
        %v2432 = vadd.f32 %v2114, %v2358
        %v2433 = vadd.f32 %v2115, %v2361
        %v2434 = vadd.f32 %v2116, %v2366
        %v2435 = vadd.f32 %v2117, %v2369
        %v2436 = vadd.f32 %v2118, %v2374
        %v2437 = vadd.f32 %v2119, %v2377
        %v2438 = vadd.f32 %v2120, %v2382
        %v2439 = vadd.f32 %v2121, %v2385
        %v2440 = vadd.f32 %v2122, %v2390
        %v2441 = vadd.f32 %v2123, %v2393
        %v2442 = vadd.f32 %v2124, %v2398
        %v2443 = vadd.f32 %v2125, %v2401
        %v2444 = vadd.f32 %v2126, %v2406
        %v2445 = vadd.f32 %v2127, %v2409
        %v2446 = vadd.f32 %v2128, %v2414
        %v2447 = vadd.f32 %v2129, %v2417
        %v2448 = vld [vmem:[%s275 + $0x10] sm:$0xf]
        %v2449 = vld [vmem:[%s275 + $0x14] sm:$0xf]
        %v2450 = vld [vmem:[%s275 + $0x18] sm:$0xf]
        %v2451 = vld [vmem:[%s275 + $0x1c] sm:$0xf]
        %v2452 = vld [vmem:[%s275 + $0x20] sm:$0xf]
        %v2453 = vld [vmem:[%s275 + $0x24] sm:$0xf]
        %v2454 = vld [vmem:[%s275 + $0x28] sm:$0xf]
        %v2455 = vld [vmem:[%s275 + $0x2c] sm:$0xf]
        %v2456 = vld [vmem:[%s275 + $0x30] sm:$0xf]
        %v2457 = vld [vmem:[%s275 + $0x34] sm:$0xf]
        %v2458 = vld [vmem:[%s275 + $0x38] sm:$0xf]
        %v2459 = vld [vmem:[%s275 + $0x3c] sm:$0xf]
        %v2460 = vld [vmem:[%s275 + $0x40] sm:$0xf]
        %v2461 = vld [vmem:[%s275 + $0x44] sm:$0xf]
        %v2462 = vld [vmem:[%s275 + $0x48] sm:$0xf]
        %v2463 = vld [vmem:[%s275 + $0x4c] sm:$0xf]
        %v2464 = vld [vmem:[%s275 + $0x50] sm:$0xf]
        %v2465 = vld [vmem:[%s275 + $0x54] sm:$0xf]
        %v2466 = vld [vmem:[%s275 + $0x58] sm:$0xf]
        %v2467 = vld [vmem:[%s275 + $0x5c] sm:$0xf]
        %v2468 = vld [vmem:[%s275 + $0x60] sm:$0xf]
        %v2469 = vld [vmem:[%s275 + $0x64] sm:$0xf]
        %v2470 = vld [vmem:[%s275 + $0x68] sm:$0xf]
        %v2471 = vld [vmem:[%s275 + $0x6c] sm:$0xf]
        %v2472 = vld [vmem:[%s275 + $0x70] sm:$0xf]
        %v2473 = vld [vmem:[%s275 + $0x74] sm:$0xf]
        %v2474 = vld [vmem:[%s275 + $0x78] sm:$0xf]
        %v2475 = vld [vmem:[%s275 + $0x7c] sm:$0xf]
        %v2476 = vld [vmem:[%s275 + $0x80] sm:$0x1]
        %s2477 = scalar_lea.vmem %s1, 14
        %v2478 = vld [vmem:[%s2477] sm:$0x3]
        %v2508 = vunpack.c.l.b16 %v2448
        %v2509 = vunpack.c.l.b16 %v2449
        %v2510 = vunpack.c.l.b16 %v2450
        %v2511 = vunpack.c.l.b16 %v2451
        %v2512 = vunpack.c.l.b16 %v2452
        %v2513 = vunpack.c.l.b16 %v2453
        %v2514 = vunpack.c.l.b16 %v2454
        %v2515 = vunpack.c.l.b16 %v2455
        %v2516 = vunpack.c.l.b16 %v2456
        %v2517 = vunpack.c.l.b16 %v2457
        %v2518 = vunpack.c.l.b16 %v2458
        %v2519 = vunpack.c.l.b16 %v2459
        %v2520 = vunpack.c.l.b16 %v2460
        %v2521 = vunpack.c.l.b16 %v2461
        %v2522 = vunpack.c.l.b16 %v2462
        %v2523 = vunpack.c.l.b16 %v2463
        %v2524 = vunpack.c.l.b16 %v2464
        %v2525 = vunpack.c.l.b16 %v2465
        %v2526 = vunpack.c.l.b16 %v2466
        %v2527 = vunpack.c.l.b16 %v2467
        %v2528 = vunpack.c.l.b16 %v2468
        %v2529 = vunpack.c.l.b16 %v2469
        %v2530 = vunpack.c.l.b16 %v2470
        %v2531 = vunpack.c.l.b16 %v2471
        %v2532 = vunpack.c.l.b16 %v2472
        %v2533 = vunpack.c.l.b16 %v2473
        %v2534 = vunpack.c.l.b16 %v2474
        %v2535 = vunpack.c.l.b16 %v2475
        %v2536 = vunpack.c.l.b16 %v2476
        %v2537 = vpack.c.b16 %v2509, %v2508
        %v2538 = vpack.c.b16 %v2511, %v2510
        %v2539 = vpack.c.b16 %v2513, %v2512
        %v2540 = vpack.c.b16 %v2515, %v2514
        %v2541 = vpack.c.b16 %v2517, %v2516
        %v2542 = vpack.c.b16 %v2519, %v2518
        %v2543 = vpack.c.b16 %v2521, %v2520
        %v2544 = vpack.c.b16 %v2523, %v2522
        %v2545 = vpack.c.b16 %v2525, %v2524
        %v2546 = vpack.c.b16 %v2527, %v2526
        %v2547 = vpack.c.b16 %v2529, %v2528
        %v2548 = vpack.c.b16 %v2531, %v2530
        %v2549 = vpack.c.b16 %v2533, %v2532
        %v2550 = vpack.c.b16 %v2535, %v2534
        %v2551 = vpack.c.b16 %v2536, %v2536
        %v2553 = vshrl.u32 %v2537, 16
        %v2555 = vshll.u32 %v2537, 16
        %v2557 = vrot.slane %v2555, 1
        %v2558 = vor.u32 %v2553, %v2557
        %v2560 = vshll.u32 %v2538, 16
        %v2562 = vrot.slane %v2560, 1
        %v2563 = vsel %vm382, %v2558, %v2562
        %v2564 = vshrl.u32 %v2538, 16
        %v2566 = vor.u32 %v2564, %v2562
        %v2568 = vshll.u32 %v2539, 16
        %v2570 = vrot.slane %v2568, 1
        %v2571 = vsel %vm382, %v2566, %v2570
        %v2572 = vshrl.u32 %v2539, 16
        %v2574 = vor.u32 %v2572, %v2570
        %v2576 = vshll.u32 %v2540, 16
        %v2578 = vrot.slane %v2576, 1
        %v2579 = vsel %vm382, %v2574, %v2578
        %v2580 = vshrl.u32 %v2540, 16
        %v2582 = vor.u32 %v2580, %v2578
        %v2584 = vshll.u32 %v2541, 16
        %v2586 = vrot.slane %v2584, 1
        %v2587 = vsel %vm382, %v2582, %v2586
        %v2588 = vshrl.u32 %v2541, 16
        %v2590 = vor.u32 %v2588, %v2586
        %v2592 = vshll.u32 %v2542, 16
        %v2594 = vrot.slane %v2592, 1
        %v2595 = vsel %vm382, %v2590, %v2594
        %v2596 = vshrl.u32 %v2542, 16
        %v2598 = vor.u32 %v2596, %v2594
        %v2600 = vshll.u32 %v2543, 16
        %v2602 = vrot.slane %v2600, 1
        %v2603 = vsel %vm382, %v2598, %v2602
        %v2604 = vshrl.u32 %v2543, 16
        %v2606 = vor.u32 %v2604, %v2602
        %v2608 = vshll.u32 %v2544, 16
        %v2610 = vrot.slane %v2608, 1
        %v2611 = vsel %vm382, %v2606, %v2610
        %v2612 = vshrl.u32 %v2544, 16
        %v2614 = vor.u32 %v2612, %v2610
        %v2616 = vshll.u32 %v2545, 16
        %v2618 = vrot.slane %v2616, 1
        %v2619 = vsel %vm382, %v2614, %v2618
        %v2620 = vshrl.u32 %v2545, 16
        %v2622 = vor.u32 %v2620, %v2618
        %v2624 = vshll.u32 %v2546, 16
        %v2626 = vrot.slane %v2624, 1
        %v2627 = vsel %vm382, %v2622, %v2626
        %v2628 = vshrl.u32 %v2546, 16
        %v2630 = vor.u32 %v2628, %v2626
        %v2632 = vshll.u32 %v2547, 16
        %v2634 = vrot.slane %v2632, 1
        %v2635 = vsel %vm382, %v2630, %v2634
        %v2636 = vshrl.u32 %v2547, 16
        %v2638 = vor.u32 %v2636, %v2634
        %v2640 = vshll.u32 %v2548, 16
        %v2642 = vrot.slane %v2640, 1
        %v2643 = vsel %vm382, %v2638, %v2642
        %v2644 = vshrl.u32 %v2548, 16
        %v2646 = vor.u32 %v2644, %v2642
        %v2648 = vshll.u32 %v2549, 16
        %v2650 = vrot.slane %v2648, 1
        %v2651 = vsel %vm382, %v2646, %v2650
        %v2652 = vshrl.u32 %v2549, 16
        %v2654 = vor.u32 %v2652, %v2650
        %v2656 = vshll.u32 %v2550, 16
        %v2658 = vrot.slane %v2656, 1
        %v2659 = vsel %vm382, %v2654, %v2658
        %v2660 = vshrl.u32 %v2550, 16
        %v2662 = vor.u32 %v2660, %v2658
        %v2664 = vshll.u32 %v2551, 16
        %v2666 = vrot.slane %v2664, 1
        %v2667 = vsel %vm382, %v2662, %v2666
        %v2669 = vsel %vm499, %v2563, 0
        %v2672 = vsel %vm499, %v2571, 0
        %v2675 = vsel %vm499, %v2579, 0
        %v2678 = vsel %vm499, %v2587, 0
        %v2681 = vsel %vm499, %v2595, 0
        %v2684 = vsel %vm499, %v2603, 0
        %v2687 = vsel %vm499, %v2611, 0
        %v2690 = vsel %vm499, %v2619, 0
        %v2693 = vsel %vm499, %v2627, 0
        %v2696 = vsel %vm499, %v2635, 0
        %v2699 = vsel %vm499, %v2643, 0
        %v2702 = vsel %vm499, %v2651, 0
        %v2705 = vsel %vm499, %v2659, 0
        %v2708 = vsel %vm499, %v2667, 0
        %v2711 = vsel %vm542, %v2478, 0
        %2713 = vmatprep.subr.bf16.mxu0 0
        %2714 = vmatpush1.bf16.msra.mxu0 %v2711
        %2715 = vmatprep.subr.bf16.mxu0 0
        %2716 = vmatpush1.bf16.msra.mxu0 0
        %2717 = vmatprep.subr.bf16.mxu0 0
        %2718 = vmatpush1.bf16.msra.mxu0 0
        %2719 = vmatprep.subr.bf16.mxu0 0
        %2720 = vmatpush1.bf16.msra.mxu0 0
        %2721 = vmatprep.subr.bf16.mxu0 0
        %2722 = vmatpush1.bf16.msra.mxu0 0
        %2723 = vmatprep.subr.bf16.mxu0 0
        %2724 = vmatpush1.bf16.msra.mxu0 0
        %2725 = vmatprep.subr.bf16.mxu0 0
        %2726 = vmatpush1.bf16.msra.mxu0 0
        %2727 = vmatprep.subr.bf16.mxu0 0
        %2728 = vmatpush1.bf16.msra.mxu0 0
        %2729 = vmatprep.subr.bf16.mxu0 0
        %2730 = vmatpush1.bf16.msra.mxu0 0
        %2731 = vmatprep.subr.bf16.mxu0 0
        %2732 = vmatpush1.bf16.msra.mxu0 0
        %2733 = vmatprep.subr.bf16.mxu0 0
        %2734 = vmatpush1.bf16.msra.mxu0 0
        %2735 = vmatprep.subr.bf16.mxu0 0
        %2736 = vmatpush1.bf16.msra.mxu0 0
        %2737 = vmatprep.subr.bf16.mxu0 0
        %2738 = vmatpush1.bf16.msra.mxu0 0
        %2739 = vmatprep.subr.bf16.mxu0 0
        %2740 = vmatpush1.bf16.msra.mxu0 0
        %2741 = vmatprep.subr.bf16.mxu0 0
        %2742 = vmatpush1.bf16.msra.mxu0 0
        %2743 = vmatprep.subr.bf16.mxu0 0
        %2744 = vmatpush1.bf16.msra.mxu0 0
        %2745 = vmatprep.mubr.bf16.mxu0 0
        %2746 = vmatmul.mubr.bf16.gmra.mrb[0].mxu0 %v2669
        %v2747 = vpop.f32.mrb[0].mxu0
        %v2748 = vadd.f32 0.0, %v2747
        %v2749 = vpop.f32.mrb[0].mxu0
        %v2750 = vpop.f32.mrb[0].mxu0
        %v2751 = vadd.f32 0.0, %v2750
        %v2752 = vpop.f32.mrb[0].mxu0
        %2753 = vmatprep.mubr.bf16.mxu0 0
        %2754 = vmatmul.mubr.bf16.gmra.mrb[0].mxu0 %v2672
        %v2755 = vpop.f32.mrb[0].mxu0
        %v2756 = vadd.f32 0.0, %v2755
        %v2757 = vpop.f32.mrb[0].mxu0
        %v2758 = vpop.f32.mrb[0].mxu0
        %v2759 = vadd.f32 0.0, %v2758
        %v2760 = vpop.f32.mrb[0].mxu0
        %2761 = vmatprep.mubr.bf16.mxu0 0
        %2762 = vmatmul.mubr.bf16.gmra.mrb[0].mxu0 %v2675
        %v2763 = vpop.f32.mrb[0].mxu0
        %v2764 = vadd.f32 0.0, %v2763
        %v2765 = vpop.f32.mrb[0].mxu0
        %v2766 = vpop.f32.mrb[0].mxu0
        %v2767 = vadd.f32 0.0, %v2766
        %v2768 = vpop.f32.mrb[0].mxu0
        %2769 = vmatprep.mubr.bf16.mxu0 0
        %2770 = vmatmul.mubr.bf16.gmra.mrb[0].mxu0 %v2678
        %v2771 = vpop.f32.mrb[0].mxu0
        %v2772 = vadd.f32 0.0, %v2771
        %v2773 = vpop.f32.mrb[0].mxu0
        %v2774 = vpop.f32.mrb[0].mxu0
        %v2775 = vadd.f32 0.0, %v2774
        %v2776 = vpop.f32.mrb[0].mxu0
        %2777 = vmatprep.mubr.bf16.mxu0 0
        %2778 = vmatmul.mubr.bf16.gmra.mrb[0].mxu0 %v2681
        %v2779 = vpop.f32.mrb[0].mxu0
        %v2780 = vadd.f32 0.0, %v2779
        %v2781 = vpop.f32.mrb[0].mxu0
        %v2782 = vpop.f32.mrb[0].mxu0
        %v2783 = vadd.f32 0.0, %v2782
        %v2784 = vpop.f32.mrb[0].mxu0
        %2785 = vmatprep.mubr.bf16.mxu0 0
        %2786 = vmatmul.mubr.bf16.gmra.mrb[0].mxu0 %v2684
        %v2787 = vpop.f32.mrb[0].mxu0
        %v2788 = vadd.f32 0.0, %v2787
        %v2789 = vpop.f32.mrb[0].mxu0
        %v2790 = vpop.f32.mrb[0].mxu0
        %v2791 = vadd.f32 0.0, %v2790
        %v2792 = vpop.f32.mrb[0].mxu0
        %2793 = vmatprep.mubr.bf16.mxu0 0
        %2794 = vmatmul.mubr.bf16.gmra.mrb[0].mxu0 %v2687
        %v2795 = vpop.f32.mrb[0].mxu0
        %v2796 = vadd.f32 0.0, %v2795
        %v2797 = vpop.f32.mrb[0].mxu0
        %v2798 = vpop.f32.mrb[0].mxu0
        %v2799 = vadd.f32 0.0, %v2798
        %v2800 = vpop.f32.mrb[0].mxu0
        %2801 = vmatprep.mubr.bf16.mxu0 0
        %2802 = vmatmul.mubr.bf16.gmra.mrb[0].mxu0 %v2690
        %v2803 = vpop.f32.mrb[0].mxu0
        %v2804 = vadd.f32 0.0, %v2803
        %v2805 = vpop.f32.mrb[0].mxu0
        %v2806 = vpop.f32.mrb[0].mxu0
        %v2807 = vadd.f32 0.0, %v2806
        %v2808 = vpop.f32.mrb[0].mxu0
        %2809 = vmatprep.mubr.bf16.mxu0 0
        %2810 = vmatmul.mubr.bf16.gmra.mrb[0].mxu0 %v2693
        %v2811 = vpop.f32.mrb[0].mxu0
        %v2812 = vadd.f32 0.0, %v2811
        %v2813 = vpop.f32.mrb[0].mxu0
        %v2814 = vpop.f32.mrb[0].mxu0
        %v2815 = vadd.f32 0.0, %v2814
        %v2816 = vpop.f32.mrb[0].mxu0
        %2817 = vmatprep.mubr.bf16.mxu0 0
        %2818 = vmatmul.mubr.bf16.gmra.mrb[0].mxu0 %v2696
        %v2819 = vpop.f32.mrb[0].mxu0
        %v2820 = vadd.f32 0.0, %v2819
        %v2821 = vpop.f32.mrb[0].mxu0
        %v2822 = vpop.f32.mrb[0].mxu0
        %v2823 = vadd.f32 0.0, %v2822
        %v2824 = vpop.f32.mrb[0].mxu0
        %2825 = vmatprep.mubr.bf16.mxu0 0
        %2826 = vmatmul.mubr.bf16.gmra.mrb[0].mxu0 %v2699
        %v2827 = vpop.f32.mrb[0].mxu0
        %v2828 = vadd.f32 0.0, %v2827
        %v2829 = vpop.f32.mrb[0].mxu0
        %v2830 = vpop.f32.mrb[0].mxu0
        %v2831 = vadd.f32 0.0, %v2830
        %v2832 = vpop.f32.mrb[0].mxu0
        %2833 = vmatprep.mubr.bf16.mxu0 0
        %2834 = vmatmul.mubr.bf16.gmra.mrb[0].mxu0 %v2702
        %v2835 = vpop.f32.mrb[0].mxu0
        %v2836 = vadd.f32 0.0, %v2835
        %v2837 = vpop.f32.mrb[0].mxu0
        %v2838 = vpop.f32.mrb[0].mxu0
        %v2839 = vadd.f32 0.0, %v2838
        %v2840 = vpop.f32.mrb[0].mxu0
        %2841 = vmatprep.mubr.bf16.mxu0 0
        %2842 = vmatmul.mubr.bf16.gmra.mrb[0].mxu0 %v2705
        %v2843 = vpop.f32.mrb[0].mxu0
        %v2844 = vadd.f32 0.0, %v2843
        %v2845 = vpop.f32.mrb[0].mxu0
        %v2846 = vpop.f32.mrb[0].mxu0
        %v2847 = vadd.f32 0.0, %v2846
        %v2848 = vpop.f32.mrb[0].mxu0
        %2849 = vmatprep.mubr.bf16.mxu0 0
        %2850 = vmatmul.mubr.bf16.gmra.mrb[0].mxu0 %v2708
        %v2851 = vpop.f32.mrb[0].mxu0
        %v2852 = vadd.f32 0.0, %v2851
        %v2853 = vpop.f32.mrb[0].mxu0
        %v2854 = vpop.f32.mrb[0].mxu0
        %v2855 = vadd.f32 0.0, %v2854
        %v2856 = vpop.f32.mrb[0].mxu0
        %2857 = vdwg.mxu0
        %v2858 = vadd.f32 %v2420, %v2748
        %v2859 = vadd.f32 %v2421, %v2751
        %v2860 = vadd.f32 %v2422, %v2756
        %v2861 = vadd.f32 %v2423, %v2759
        %v2862 = vadd.f32 %v2424, %v2764
        %v2863 = vadd.f32 %v2425, %v2767
        %v2864 = vadd.f32 %v2426, %v2772
        %v2865 = vadd.f32 %v2427, %v2775
        %v2866 = vadd.f32 %v2428, %v2780
        %v2867 = vadd.f32 %v2429, %v2783
        %v2868 = vadd.f32 %v2430, %v2788
        %v2869 = vadd.f32 %v2431, %v2791
        %v2870 = vadd.f32 %v2432, %v2796
        %v2871 = vadd.f32 %v2433, %v2799
        %v2872 = vadd.f32 %v2434, %v2804
        %v2873 = vadd.f32 %v2435, %v2807
        %v2874 = vadd.f32 %v2436, %v2812
        %v2875 = vadd.f32 %v2437, %v2815
        %v2876 = vadd.f32 %v2438, %v2820
        %v2877 = vadd.f32 %v2439, %v2823
        %v2878 = vadd.f32 %v2440, %v2828
        %v2879 = vadd.f32 %v2441, %v2831
        %v2880 = vadd.f32 %v2442, %v2836
        %v2881 = vadd.f32 %v2443, %v2839
        %v2882 = vadd.f32 %v2444, %v2844
        %v2883 = vadd.f32 %v2445, %v2847
        %v2884 = vadd.f32 %v2446, %v2852
        %v2885 = vadd.f32 %v2447, %v2855
        %v2886 = vld [vmem:[%s275 + $0x10] sm:$0xe]
        %s2887 = scalar_lea.vmem %s1, 16
        %v2888 = vld [vmem:[%s2887] sm:$0x3]
        %v2890 = vunpack.c.l.b16 %v2886
        %v2891 = vpack.c.b16 %v2509, %v2890
        %v2892 = vrot.slane %v2891, 1
        %v2893 = vrot.slane %v2538, 1
        %v2894 = vsel %vm873, %v2892, %v2893
        %v2895 = vrot.slane %v2539, 1
        %v2896 = vsel %vm873, %v2893, %v2895
        %v2897 = vrot.slane %v2540, 1
        %v2898 = vsel %vm873, %v2895, %v2897
        %v2899 = vrot.slane %v2541, 1
        %v2900 = vsel %vm873, %v2897, %v2899
        %v2901 = vrot.slane %v2542, 1
        %v2902 = vsel %vm873, %v2899, %v2901
        %v2903 = vrot.slane %v2543, 1
        %v2904 = vsel %vm873, %v2901, %v2903
        %v2905 = vrot.slane %v2544, 1
        %v2906 = vsel %vm873, %v2903, %v2905
        %v2907 = vrot.slane %v2545, 1
        %v2908 = vsel %vm873, %v2905, %v2907
        %v2909 = vrot.slane %v2546, 1
        %v2910 = vsel %vm873, %v2907, %v2909
        %v2911 = vrot.slane %v2547, 1
        %v2912 = vsel %vm873, %v2909, %v2911
        %v2913 = vrot.slane %v2548, 1
        %v2914 = vsel %vm873, %v2911, %v2913
        %v2915 = vrot.slane %v2549, 1
        %v2916 = vsel %vm873, %v2913, %v2915
        %v2917 = vrot.slane %v2550, 1
        %v2918 = vsel %vm873, %v2915, %v2917
        %v2919 = vrot.slane %v2551, 1
        %v2920 = vsel %vm873, %v2917, %v2919
        %v2922 = vsel %vm499, %v2894, 0
        %v2925 = vsel %vm499, %v2896, 0
        %v2928 = vsel %vm499, %v2898, 0
        %v2931 = vsel %vm499, %v2900, 0
        %v2934 = vsel %vm499, %v2902, 0
        %v2937 = vsel %vm499, %v2904, 0
        %v2940 = vsel %vm499, %v2906, 0
        %v2943 = vsel %vm499, %v2908, 0
        %v2946 = vsel %vm499, %v2910, 0
        %v2949 = vsel %vm499, %v2912, 0
        %v2952 = vsel %vm499, %v2914, 0
        %v2955 = vsel %vm499, %v2916, 0
        %v2958 = vsel %vm499, %v2918, 0
        %v2961 = vsel %vm499, %v2920, 0
        %v2964 = vsel %vm542, %v2888, 0
        %2966 = vmatprep.subr.bf16.mxu0 0
        %2967 = vmatpush1.bf16.msra.mxu0 %v2964
        %2968 = vmatprep.subr.bf16.mxu0 0
        %2969 = vmatpush1.bf16.msra.mxu0 0
        %2970 = vmatprep.subr.bf16.mxu0 0
        %2971 = vmatpush1.bf16.msra.mxu0 0
        %2972 = vmatprep.subr.bf16.mxu0 0
        %2973 = vmatpush1.bf16.msra.mxu0 0
        %2974 = vmatprep.subr.bf16.mxu0 0
        %2975 = vmatpush1.bf16.msra.mxu0 0
        %2976 = vmatprep.subr.bf16.mxu0 0
        %2977 = vmatpush1.bf16.msra.mxu0 0
        %2978 = vmatprep.subr.bf16.mxu0 0
        %2979 = vmatpush1.bf16.msra.mxu0 0
        %2980 = vmatprep.subr.bf16.mxu0 0
        %2981 = vmatpush1.bf16.msra.mxu0 0
        %2982 = vmatprep.subr.bf16.mxu0 0
        %2983 = vmatpush1.bf16.msra.mxu0 0
        %2984 = vmatprep.subr.bf16.mxu0 0
        %2985 = vmatpush1.bf16.msra.mxu0 0
        %2986 = vmatprep.subr.bf16.mxu0 0
        %2987 = vmatpush1.bf16.msra.mxu0 0
        %2988 = vmatprep.subr.bf16.mxu0 0
        %2989 = vmatpush1.bf16.msra.mxu0 0
        %2990 = vmatprep.subr.bf16.mxu0 0
        %2991 = vmatpush1.bf16.msra.mxu0 0
        %2992 = vmatprep.subr.bf16.mxu0 0
        %2993 = vmatpush1.bf16.msra.mxu0 0
        %2994 = vmatprep.subr.bf16.mxu0 0
        %2995 = vmatpush1.bf16.msra.mxu0 0
        %2996 = vmatprep.subr.bf16.mxu0 0
        %2997 = vmatpush1.bf16.msra.mxu0 0
        %2998 = vmatprep.mubr.bf16.mxu0 0
        %2999 = vmatmul.mubr.bf16.gmra.mrb[0].mxu0 %v2922
        %v3000 = vpop.f32.mrb[0].mxu0
        %v3001 = vadd.f32 0.0, %v3000
        %v3002 = vpop.f32.mrb[0].mxu0
        %v3003 = vpop.f32.mrb[0].mxu0
        %v3004 = vadd.f32 0.0, %v3003
        %v3005 = vpop.f32.mrb[0].mxu0
        %3006 = vmatprep.mubr.bf16.mxu0 0
        %3007 = vmatmul.mubr.bf16.gmra.mrb[0].mxu0 %v2925
        %v3008 = vpop.f32.mrb[0].mxu0
        %v3009 = vadd.f32 0.0, %v3008
        %v3010 = vpop.f32.mrb[0].mxu0
        %v3011 = vpop.f32.mrb[0].mxu0
        %v3012 = vadd.f32 0.0, %v3011
        %v3013 = vpop.f32.mrb[0].mxu0
        %3014 = vmatprep.mubr.bf16.mxu0 0
        %3015 = vmatmul.mubr.bf16.gmra.mrb[0].mxu0 %v2928
        %v3016 = vpop.f32.mrb[0].mxu0
        %v3017 = vadd.f32 0.0, %v3016
        %v3018 = vpop.f32.mrb[0].mxu0
        %v3019 = vpop.f32.mrb[0].mxu0
        %v3020 = vadd.f32 0.0, %v3019
        %v3021 = vpop.f32.mrb[0].mxu0
        %3022 = vmatprep.mubr.bf16.mxu0 0
        %3023 = vmatmul.mubr.bf16.gmra.mrb[0].mxu0 %v2931
        %v3024 = vpop.f32.mrb[0].mxu0
        %v3025 = vadd.f32 0.0, %v3024
        %v3026 = vpop.f32.mrb[0].mxu0
        %v3027 = vpop.f32.mrb[0].mxu0
        %v3028 = vadd.f32 0.0, %v3027
        %v3029 = vpop.f32.mrb[0].mxu0
        %3030 = vmatprep.mubr.bf16.mxu0 0
        %3031 = vmatmul.mubr.bf16.gmra.mrb[0].mxu0 %v2934
        %v3032 = vpop.f32.mrb[0].mxu0
        %v3033 = vadd.f32 0.0, %v3032
        %v3034 = vpop.f32.mrb[0].mxu0
        %v3035 = vpop.f32.mrb[0].mxu0
        %v3036 = vadd.f32 0.0, %v3035
        %v3037 = vpop.f32.mrb[0].mxu0
        %3038 = vmatprep.mubr.bf16.mxu0 0
        %3039 = vmatmul.mubr.bf16.gmra.mrb[0].mxu0 %v2937
        %v3040 = vpop.f32.mrb[0].mxu0
        %v3041 = vadd.f32 0.0, %v3040
        %v3042 = vpop.f32.mrb[0].mxu0
        %v3043 = vpop.f32.mrb[0].mxu0
        %v3044 = vadd.f32 0.0, %v3043
        %v3045 = vpop.f32.mrb[0].mxu0
        %3046 = vmatprep.mubr.bf16.mxu0 0
        %3047 = vmatmul.mubr.bf16.gmra.mrb[0].mxu0 %v2940
        %v3048 = vpop.f32.mrb[0].mxu0
        %v3049 = vadd.f32 0.0, %v3048
        %v3050 = vpop.f32.mrb[0].mxu0
        %v3051 = vpop.f32.mrb[0].mxu0
        %v3052 = vadd.f32 0.0, %v3051
        %v3053 = vpop.f32.mrb[0].mxu0
        %3054 = vmatprep.mubr.bf16.mxu0 0
        %3055 = vmatmul.mubr.bf16.gmra.mrb[0].mxu0 %v2943
        %v3056 = vpop.f32.mrb[0].mxu0
        %v3057 = vadd.f32 0.0, %v3056
        %v3058 = vpop.f32.mrb[0].mxu0
        %v3059 = vpop.f32.mrb[0].mxu0
        %v3060 = vadd.f32 0.0, %v3059
        %v3061 = vpop.f32.mrb[0].mxu0
        %3062 = vmatprep.mubr.bf16.mxu0 0
        %3063 = vmatmul.mubr.bf16.gmra.mrb[0].mxu0 %v2946
        %v3064 = vpop.f32.mrb[0].mxu0
        %v3065 = vadd.f32 0.0, %v3064
        %v3066 = vpop.f32.mrb[0].mxu0
        %v3067 = vpop.f32.mrb[0].mxu0
        %v3068 = vadd.f32 0.0, %v3067
        %v3069 = vpop.f32.mrb[0].mxu0
        %3070 = vmatprep.mubr.bf16.mxu0 0
        %3071 = vmatmul.mubr.bf16.gmra.mrb[0].mxu0 %v2949
        %v3072 = vpop.f32.mrb[0].mxu0
        %v3073 = vadd.f32 0.0, %v3072
        %v3074 = vpop.f32.mrb[0].mxu0
        %v3075 = vpop.f32.mrb[0].mxu0
        %v3076 = vadd.f32 0.0, %v3075
        %v3077 = vpop.f32.mrb[0].mxu0
        %3078 = vmatprep.mubr.bf16.mxu0 0
        %3079 = vmatmul.mubr.bf16.gmra.mrb[0].mxu0 %v2952
        %v3080 = vpop.f32.mrb[0].mxu0
        %v3081 = vadd.f32 0.0, %v3080
        %v3082 = vpop.f32.mrb[0].mxu0
        %v3083 = vpop.f32.mrb[0].mxu0
        %v3084 = vadd.f32 0.0, %v3083
        %v3085 = vpop.f32.mrb[0].mxu0
        %3086 = vmatprep.mubr.bf16.mxu0 0
        %3087 = vmatmul.mubr.bf16.gmra.mrb[0].mxu0 %v2955
        %v3088 = vpop.f32.mrb[0].mxu0
        %v3089 = vadd.f32 0.0, %v3088
        %v3090 = vpop.f32.mrb[0].mxu0
        %v3091 = vpop.f32.mrb[0].mxu0
        %v3092 = vadd.f32 0.0, %v3091
        %v3093 = vpop.f32.mrb[0].mxu0
        %3094 = vmatprep.mubr.bf16.mxu0 0
        %3095 = vmatmul.mubr.bf16.gmra.mrb[0].mxu0 %v2958
        %v3096 = vpop.f32.mrb[0].mxu0
        %v3097 = vadd.f32 0.0, %v3096
        %v3098 = vpop.f32.mrb[0].mxu0
        %v3099 = vpop.f32.mrb[0].mxu0
        %v3100 = vadd.f32 0.0, %v3099
        %v3101 = vpop.f32.mrb[0].mxu0
        %3102 = vmatprep.mubr.bf16.mxu0 0
        %3103 = vmatmul.mubr.bf16.gmra.mrb[0].mxu0 %v2961
        %v3104 = vpop.f32.mrb[0].mxu0
        %v3105 = vadd.f32 0.0, %v3104
        %v3106 = vpop.f32.mrb[0].mxu0
        %v3107 = vpop.f32.mrb[0].mxu0
        %v3108 = vadd.f32 0.0, %v3107
        %v3109 = vpop.f32.mrb[0].mxu0
        %3110 = vdwg.mxu0
        %v3111 = vadd.f32 %v2858, %v3001
        %v3112 = vadd.f32 %v2859, %v3004
        %v3113 = vadd.f32 %v2860, %v3009
        %v3114 = vadd.f32 %v2861, %v3012
        %v3115 = vadd.f32 %v2862, %v3017
        %v3116 = vadd.f32 %v2863, %v3020
        %v3117 = vadd.f32 %v2864, %v3025
        %v3118 = vadd.f32 %v2865, %v3028
        %v3119 = vadd.f32 %v2866, %v3033
        %v3120 = vadd.f32 %v2867, %v3036
        %v3121 = vadd.f32 %v2868, %v3041
        %v3122 = vadd.f32 %v2869, %v3044
        %v3123 = vadd.f32 %v2870, %v3049
        %v3124 = vadd.f32 %v2871, %v3052
        %v3125 = vadd.f32 %v2872, %v3057
        %v3126 = vadd.f32 %v2873, %v3060
        %v3127 = vadd.f32 %v2874, %v3065
        %v3128 = vadd.f32 %v2875, %v3068
        %v3129 = vadd.f32 %v2876, %v3073
        %v3130 = vadd.f32 %v2877, %v3076
        %v3131 = vadd.f32 %v2878, %v3081
        %v3132 = vadd.f32 %v2879, %v3084
        %v3133 = vadd.f32 %v2880, %v3089
        %v3134 = vadd.f32 %v2881, %v3092
        %v3135 = vadd.f32 %v2882, %v3097
        %v3136 = vadd.f32 %v2883, %v3100
        %v3137 = vadd.f32 %v2884, %v3105
        %v3138 = vadd.f32 %v2885, %v3108
        %v3139 = vld [vmem:[%s2] sm:$0x1]
        %v3141 = vlaneseq
        %v3142 = vshrl.u32 %v3141, 7
        %v3143 = vsub.s32 0, %v3142
        %v3144 = vrot.slane %v3139, %v3143
        %v3146 = vadd.f32 %v3111, %v3144
        %v3147 = vadd.f32 %v3112, %v3144
        %v3148 = vadd.f32 %v3113, %v3144
        %v3149 = vadd.f32 %v3114, %v3144
        %v3150 = vadd.f32 %v3115, %v3144
        %v3151 = vadd.f32 %v3116, %v3144
        %v3152 = vadd.f32 %v3117, %v3144
        %v3153 = vadd.f32 %v3118, %v3144
        %v3154 = vadd.f32 %v3119, %v3144
        %v3155 = vadd.f32 %v3120, %v3144
        %v3156 = vadd.f32 %v3121, %v3144
        %v3157 = vadd.f32 %v3122, %v3144
        %v3158 = vadd.f32 %v3123, %v3144
        %v3159 = vadd.f32 %v3124, %v3144
        %v3160 = vadd.f32 %v3125, %v3144
        %v3161 = vadd.f32 %v3126, %v3144
        %v3162 = vadd.f32 %v3127, %v3144
        %v3163 = vadd.f32 %v3128, %v3144
        %v3164 = vadd.f32 %v3129, %v3144
        %v3165 = vadd.f32 %v3130, %v3144
        %v3166 = vadd.f32 %v3131, %v3144
        %v3167 = vadd.f32 %v3132, %v3144
        %v3168 = vadd.f32 %v3133, %v3144
        %v3169 = vadd.f32 %v3134, %v3144
        %v3170 = vadd.f32 %v3135, %v3144
        %v3171 = vadd.f32 %v3136, %v3144
        %v3172 = vadd.f32 %v3137, %v3144
        %v3173 = vadd.f32 %v3138, %v3144
        %v3174 = vpack.c.bf16 %v3147, %v3146
        %v3175 = vpack.c.bf16 %v3149, %v3148
        %v3176 = vpack.c.bf16 %v3151, %v3150
        %v3177 = vpack.c.bf16 %v3153, %v3152
        %v3178 = vpack.c.bf16 %v3155, %v3154
        %v3179 = vpack.c.bf16 %v3157, %v3156
        %v3180 = vpack.c.bf16 %v3159, %v3158
        %v3181 = vpack.c.bf16 %v3161, %v3160
        %v3182 = vpack.c.bf16 %v3163, %v3162
        %v3183 = vpack.c.bf16 %v3165, %v3164
        %v3184 = vpack.c.bf16 %v3167, %v3166
        %v3185 = vpack.c.bf16 %v3169, %v3168
        %v3186 = vpack.c.bf16 %v3171, %v3170
        %v3187 = vpack.c.bf16 %v3173, %v3172
        %v3202 = vunpack.c.l.b16 %v3174
        %v3203 = vunpack.c.h.b16 %v3174
        %v3204 = vunpack.c.l.b16 %v3175
        %v3205 = vunpack.c.h.b16 %v3175
        %v3206 = vunpack.c.l.b16 %v3176
        %v3207 = vunpack.c.h.b16 %v3176
        %v3208 = vunpack.c.l.b16 %v3177
        %v3209 = vunpack.c.h.b16 %v3177
        %v3210 = vunpack.c.l.b16 %v3178
        %v3211 = vunpack.c.h.b16 %v3178
        %v3212 = vunpack.c.l.b16 %v3179
        %v3213 = vunpack.c.h.b16 %v3179
        %v3214 = vunpack.c.l.b16 %v3180
        %v3215 = vunpack.c.h.b16 %v3180
        %v3216 = vunpack.c.l.b16 %v3181
        %v3217 = vunpack.c.h.b16 %v3181
        %v3218 = vunpack.c.l.b16 %v3182
        %v3219 = vunpack.c.h.b16 %v3182
        %v3220 = vunpack.c.l.b16 %v3183
        %v3221 = vunpack.c.h.b16 %v3183
        %v3222 = vunpack.c.l.b16 %v3184
        %v3223 = vunpack.c.h.b16 %v3184
        %v3224 = vunpack.c.l.b16 %v3185
        %v3225 = vunpack.c.h.b16 %v3185
        %v3226 = vunpack.c.l.b16 %v3186
        %v3227 = vunpack.c.h.b16 %v3186
        %v3228 = vunpack.c.l.b16 %v3187
        %v3229 = vunpack.c.h.b16 %v3187
        %v3230 = vpack.c.b16 %v3202, %v3202
        %v3231 = vpack.c.b16 %v3203, %v3203
        %v3232 = vpack.c.b16 %v3204, %v3204
        %v3233 = vpack.c.b16 %v3205, %v3205
        %v3234 = vpack.c.b16 %v3206, %v3206
        %v3235 = vpack.c.b16 %v3207, %v3207
        %v3236 = vpack.c.b16 %v3208, %v3208
        %v3237 = vpack.c.b16 %v3209, %v3209
        %v3238 = vpack.c.b16 %v3210, %v3210
        %v3239 = vpack.c.b16 %v3211, %v3211
        %v3240 = vpack.c.b16 %v3212, %v3212
        %v3241 = vpack.c.b16 %v3213, %v3213
        %v3242 = vpack.c.b16 %v3214, %v3214
        %v3243 = vpack.c.b16 %v3215, %v3215
        %v3244 = vpack.c.b16 %v3216, %v3216
        %v3245 = vpack.c.b16 %v3217, %v3217
        %v3246 = vpack.c.b16 %v3218, %v3218
        %v3247 = vpack.c.b16 %v3219, %v3219
        %v3248 = vpack.c.b16 %v3220, %v3220
        %v3249 = vpack.c.b16 %v3221, %v3221
        %v3250 = vpack.c.b16 %v3222, %v3222
        %v3251 = vpack.c.b16 %v3223, %v3223
        %v3252 = vpack.c.b16 %v3224, %v3224
        %v3253 = vpack.c.b16 %v3225, %v3225
        %v3254 = vpack.c.b16 %v3226, %v3226
        %v3255 = vpack.c.b16 %v3227, %v3227
        %v3256 = vpack.c.b16 %v3228, %v3228
        %v3257 = vpack.c.b16 %v3229, %v3229
        %3286 = vst [vmem:[#allocation2] sm:$0xf] %v3230
        %3287 = vst [vmem:[#allocation2 + $0x4] sm:$0xf] %v3231
        %3288 = vst [vmem:[#allocation2 + $0x8] sm:$0xf] %v3232
        %3289 = vst [vmem:[#allocation2 + $0xc] sm:$0xf] %v3233
        %3290 = vst [vmem:[#allocation2 + $0x10] sm:$0xf] %v3234
        %3291 = vst [vmem:[#allocation2 + $0x14] sm:$0xf] %v3235
        %3292 = vst [vmem:[#allocation2 + $0x18] sm:$0xf] %v3236
        %3293 = vst [vmem:[#allocation2 + $0x1c] sm:$0xf] %v3237
        %3294 = vst [vmem:[#allocation2 + $0x20] sm:$0xf] %v3238
        %3295 = vst [vmem:[#allocation2 + $0x24] sm:$0xf] %v3239
        %3296 = vst [vmem:[#allocation2 + $0x28] sm:$0xf] %v3240
        %3297 = vst [vmem:[#allocation2 + $0x2c] sm:$0xf] %v3241
        %3298 = vst [vmem:[#allocation2 + $0x30] sm:$0xf] %v3242
        %3299 = vst [vmem:[#allocation2 + $0x34] sm:$0xf] %v3243
        %3300 = vst [vmem:[#allocation2 + $0x38] sm:$0xf] %v3244
        %3301 = vst [vmem:[#allocation2 + $0x3c] sm:$0xf] %v3245
        %3302 = vst [vmem:[#allocation2 + $0x40] sm:$0xf] %v3246
        %3303 = vst [vmem:[#allocation2 + $0x44] sm:$0xf] %v3247
        %3304 = vst [vmem:[#allocation2 + $0x48] sm:$0xf] %v3248
        %3305 = vst [vmem:[#allocation2 + $0x4c] sm:$0xf] %v3249
        %3306 = vst [vmem:[#allocation2 + $0x50] sm:$0xf] %v3250
        %3307 = vst [vmem:[#allocation2 + $0x54] sm:$0xf] %v3251
        %3308 = vst [vmem:[#allocation2 + $0x58] sm:$0xf] %v3252
        %3309 = vst [vmem:[#allocation2 + $0x5c] sm:$0xf] %v3253
        %3310 = vst [vmem:[#allocation2 + $0x60] sm:$0xf] %v3254
        %3311 = vst [vmem:[#allocation2 + $0x64] sm:$0xf] %v3255
        %3312 = vst [vmem:[#allocation2 + $0x68] sm:$0xf] %v3256
        %3313 = vst [vmem:[#allocation2 + $0x6c] sm:$0xf] %v3257
        %3314 = vst [vmem:[#allocation2 + $0x70] sm:$0xf] 0
        %v3315 = vld [vmem:[#allocation2] sm:$0xf]
        %v3316 = vld [vmem:[#allocation2 + $0x4] sm:$0xf]
        %v3317 = vld [vmem:[#allocation2 + $0x8] sm:$0xf]
        %v3318 = vld [vmem:[#allocation2 + $0xc] sm:$0xf]
        %v3319 = vld [vmem:[#allocation2 + $0x10] sm:$0xf]
        %v3320 = vld [vmem:[#allocation2 + $0x14] sm:$0xf]
        %v3321 = vld [vmem:[#allocation2 + $0x18] sm:$0xf]
        %v3322 = vld [vmem:[#allocation2 + $0x1c] sm:$0xf]
        %v3323 = vld [vmem:[#allocation2 + $0x20] sm:$0xf]
        %v3324 = vld [vmem:[#allocation2 + $0x24] sm:$0xf]
        %v3325 = vld [vmem:[#allocation2 + $0x28] sm:$0xf]
        %v3326 = vld [vmem:[#allocation2 + $0x2c] sm:$0xf]
        %v3327 = vld [vmem:[#allocation2 + $0x30] sm:$0xf]
        %v3328 = vld [vmem:[#allocation2 + $0x34] sm:$0xf]
        %v3329 = vld [vmem:[#allocation2 + $0x38] sm:$0xf]
        %v3330 = vld [vmem:[#allocation2 + $0x3c] sm:$0xf]
        %v3331 = vld [vmem:[#allocation2 + $0x40] sm:$0xf]
        %v3332 = vld [vmem:[#allocation2 + $0x44] sm:$0xf]
        %v3333 = vld [vmem:[#allocation2 + $0x48] sm:$0xf]
        %v3334 = vld [vmem:[#allocation2 + $0x4c] sm:$0xf]
        %v3335 = vld [vmem:[#allocation2 + $0x50] sm:$0xf]
        %v3336 = vld [vmem:[#allocation2 + $0x54] sm:$0xf]
        %v3337 = vld [vmem:[#allocation2 + $0x58] sm:$0xf]
        %v3338 = vld [vmem:[#allocation2 + $0x5c] sm:$0xf]
        %v3339 = vld [vmem:[%s3] sm:$0xf]
        %v3340 = vld [vmem:[%s3 + $0x4] sm:$0xf]
        %v3341 = vld [vmem:[%s3 + $0x8] sm:$0xf]
        %v3342 = vld [vmem:[%s3 + $0xc] sm:$0xf]
        %v3343 = vld [vmem:[%s3 + $0x10] sm:$0xf]
        %v3344 = vld [vmem:[%s3 + $0x14] sm:$0xf]
        %v3345 = vld [vmem:[%s3 + $0x18] sm:$0xf]
        %v3346 = vld [vmem:[%s3 + $0x1c] sm:$0xf]
        %v3347 = vld [vmem:[%s3 + $0x20] sm:$0xf]
        %v3348 = vld [vmem:[%s3 + $0x24] sm:$0xf]
        %v3349 = vld [vmem:[%s3 + $0x28] sm:$0xf]
        %v3350 = vld [vmem:[%s3 + $0x2c] sm:$0xf]
        %v3351 = vld [vmem:[%s3 + $0x30] sm:$0xf]
        %v3352 = vld [vmem:[%s3 + $0x34] sm:$0xf]
        %v3353 = vld [vmem:[%s3 + $0x38] sm:$0xf]
        %v3354 = vld [vmem:[%s3 + $0x3c] sm:$0xf]
        %v3355 = vld [vmem:[#allocation2 + $0x60] sm:$0x1]
        %s3356 = scalar_lea.vmem %s3, 64
        %v3357 = vld [vmem:[%s3356] sm:$0xf]
        %v3358 = vld [vmem:[%s3356 + $0x4] sm:$0xf]
        %v3359 = vld [vmem:[%s3356 + $0x8] sm:$0xf]
        %v3360 = vld [vmem:[%s3356 + $0xc] sm:$0xf]
        %v3361 = vld [vmem:[%s3356 + $0x10] sm:$0xf]
        %v3362 = vld [vmem:[%s3356 + $0x14] sm:$0xf]
        %v3363 = vld [vmem:[%s3356 + $0x18] sm:$0xf]
        %v3364 = vld [vmem:[%s3356 + $0x1c] sm:$0xf]
        %v3365 = vld [vmem:[%s3356 + $0x20] sm:$0xf]
        %v3366 = vld [vmem:[%s3356 + $0x24] sm:$0xf]
        %v3367 = vld [vmem:[%s3356 + $0x28] sm:$0xf]
        %v3368 = vld [vmem:[%s3356 + $0x2c] sm:$0xf]
        %v3369 = vld [vmem:[%s3356 + $0x30] sm:$0xf]
        %v3370 = vld [vmem:[%s3356 + $0x34] sm:$0xf]
        %v3371 = vld [vmem:[%s3356 + $0x38] sm:$0xf]
        %v3372 = vld [vmem:[%s3356 + $0x3c] sm:$0xf]
        %v3398 = vunpack.c.l.b16 %v3315
        %v3399 = vunpack.c.l.b16 %v3316
        %v3400 = vunpack.c.l.b16 %v3317
        %v3401 = vunpack.c.l.b16 %v3318
        %v3402 = vunpack.c.l.b16 %v3319
        %v3403 = vunpack.c.l.b16 %v3320
        %v3404 = vunpack.c.l.b16 %v3321
        %v3405 = vunpack.c.l.b16 %v3322
        %v3406 = vunpack.c.l.b16 %v3323
        %v3407 = vunpack.c.l.b16 %v3324
        %v3408 = vunpack.c.l.b16 %v3325
        %v3409 = vunpack.c.l.b16 %v3326
        %v3410 = vunpack.c.l.b16 %v3327
        %v3411 = vunpack.c.l.b16 %v3328
        %v3412 = vunpack.c.l.b16 %v3329
        %v3413 = vunpack.c.l.b16 %v3330
        %v3414 = vunpack.c.l.b16 %v3331
        %v3415 = vunpack.c.l.b16 %v3332
        %v3416 = vunpack.c.l.b16 %v3333
        %v3417 = vunpack.c.l.b16 %v3334
        %v3418 = vunpack.c.l.b16 %v3335
        %v3419 = vunpack.c.l.b16 %v3336
        %v3420 = vunpack.c.l.b16 %v3337
        %v3421 = vunpack.c.l.b16 %v3338
        %v3422 = vunpack.c.l.b16 %v3355
        %v3423 = vpack.c.b16 %v3399, %v3398
        %v3424 = vpack.c.b16 %v3401, %v3400
        %v3425 = vpack.c.b16 %v3403, %v3402
        %v3426 = vpack.c.b16 %v3405, %v3404
        %v3427 = vpack.c.b16 %v3407, %v3406
        %v3428 = vpack.c.b16 %v3409, %v3408
        %v3429 = vpack.c.b16 %v3411, %v3410
        %v3430 = vpack.c.b16 %v3413, %v3412
        %v3431 = vpack.c.b16 %v3415, %v3414
        %v3432 = vpack.c.b16 %v3417, %v3416
        %v3433 = vpack.c.b16 %v3419, %v3418
        %v3434 = vpack.c.b16 %v3421, %v3420
        %v3435 = vpack.c.b16 %v3422, %v3422
        %v3437 = vshrl.u32 %v3423, 16
        %v3439 = vshll.u32 %v3423, 16
        %v3441 = vrot.slane %v3439, 1
        %v3442 = vor.u32 %v3437, %v3441
        %v3444 = vshll.u32 %v3424, 16
        %v3446 = vrot.slane %v3444, 1
        %v3447 = vsel %vm382, %v3442, %v3446
        %v3448 = vshrl.u32 %v3424, 16
        %v3450 = vor.u32 %v3448, %v3446
        %v3452 = vshll.u32 %v3425, 16
        %v3454 = vrot.slane %v3452, 1
        %v3455 = vsel %vm382, %v3450, %v3454
        %v3456 = vshrl.u32 %v3425, 16
        %v3458 = vor.u32 %v3456, %v3454
        %v3460 = vshll.u32 %v3426, 16
        %v3462 = vrot.slane %v3460, 1
        %v3463 = vsel %vm382, %v3458, %v3462
        %v3464 = vshrl.u32 %v3426, 16
        %v3466 = vor.u32 %v3464, %v3462
        %v3468 = vshll.u32 %v3427, 16
        %v3470 = vrot.slane %v3468, 1
        %v3471 = vsel %vm382, %v3466, %v3470
        %v3472 = vshrl.u32 %v3427, 16
        %v3474 = vor.u32 %v3472, %v3470
        %v3476 = vshll.u32 %v3428, 16
        %v3478 = vrot.slane %v3476, 1
        %v3479 = vsel %vm382, %v3474, %v3478
        %v3480 = vshrl.u32 %v3428, 16
        %v3482 = vor.u32 %v3480, %v3478
        %v3484 = vshll.u32 %v3429, 16
        %v3486 = vrot.slane %v3484, 1
        %v3487 = vsel %vm382, %v3482, %v3486
        %v3488 = vshrl.u32 %v3429, 16
        %v3490 = vor.u32 %v3488, %v3486
        %v3492 = vshll.u32 %v3430, 16
        %v3494 = vrot.slane %v3492, 1
        %v3495 = vsel %vm382, %v3490, %v3494
        %v3496 = vshrl.u32 %v3430, 16
        %v3498 = vor.u32 %v3496, %v3494
        %v3500 = vshll.u32 %v3431, 16
        %v3502 = vrot.slane %v3500, 1
        %v3503 = vsel %vm382, %v3498, %v3502
        %v3504 = vshrl.u32 %v3431, 16
        %v3506 = vor.u32 %v3504, %v3502
        %v3508 = vshll.u32 %v3432, 16
        %v3510 = vrot.slane %v3508, 1
        %v3511 = vsel %vm382, %v3506, %v3510
        %v3512 = vshrl.u32 %v3432, 16
        %v3514 = vor.u32 %v3512, %v3510
        %v3516 = vshll.u32 %v3433, 16
        %v3518 = vrot.slane %v3516, 1
        %v3519 = vsel %vm382, %v3514, %v3518
        %v3520 = vshrl.u32 %v3433, 16
        %v3522 = vor.u32 %v3520, %v3518
        %v3524 = vshll.u32 %v3434, 16
        %v3526 = vrot.slane %v3524, 1
        %v3527 = vsel %vm382, %v3522, %v3526
        %v3528 = vshrl.u32 %v3434, 16
        %v3530 = vor.u32 %v3528, %v3526
        %v3532 = vshll.u32 %v3435, 16
        %v3534 = vrot.slane %v3532, 1
        %v3535 = vsel %vm382, %v3530, %v3534
        %v3564 = vunpack.c.l.b16 %v3357
        %v3565 = vunpack.c.l.b16 %v3358
        %v3566 = vunpack.c.l.b16 %v3359
        %v3567 = vunpack.c.l.b16 %v3360
        %v3568 = vunpack.c.l.b16 %v3361
        %v3569 = vunpack.c.l.b16 %v3362
        %v3570 = vunpack.c.l.b16 %v3363
        %v3571 = vunpack.c.l.b16 %v3364
        %v3572 = vunpack.c.l.b16 %v3365
        %v3573 = vunpack.c.l.b16 %v3366
        %v3574 = vunpack.c.l.b16 %v3367
        %v3575 = vunpack.c.l.b16 %v3368
        %v3576 = vunpack.c.l.b16 %v3369
        %v3577 = vunpack.c.l.b16 %v3370
        %v3578 = vunpack.c.l.b16 %v3371
        %v3579 = vunpack.c.l.b16 %v3372
        %v3580 = vpack.c.b16 %v3565, %v3564
        %v3581 = vpack.c.b16 %v3567, %v3566
        %v3582 = vpack.c.b16 %v3569, %v3568
        %v3583 = vpack.c.b16 %v3571, %v3570
        %v3584 = vpack.c.b16 %v3573, %v3572
        %v3585 = vpack.c.b16 %v3575, %v3574
        %v3586 = vpack.c.b16 %v3577, %v3576
        %v3587 = vpack.c.b16 %v3579, %v3578
        %3596 = vmatprep.subr.bf16.mxu0 0
        %3597 = vmatpush1.bf16.msra.mxu0 %v3580
        %3598 = vmatprep.subr.bf16.mxu0 0
        %3599 = vmatpush1.bf16.msra.mxu0 %v3581
        %3600 = vmatprep.subr.bf16.mxu0 0
        %3601 = vmatpush1.bf16.msra.mxu0 %v3582
        %3602 = vmatprep.subr.bf16.mxu0 0
        %3603 = vmatpush1.bf16.msra.mxu0 %v3583
        %3604 = vmatprep.subr.bf16.mxu0 0
        %3605 = vmatpush1.bf16.msra.mxu0 %v3584
        %3606 = vmatprep.subr.bf16.mxu0 0
        %3607 = vmatpush1.bf16.msra.mxu0 %v3585
        %3608 = vmatprep.subr.bf16.mxu0 0
        %3609 = vmatpush1.bf16.msra.mxu0 %v3586
        %3610 = vmatprep.subr.bf16.mxu0 0
        %3611 = vmatpush1.bf16.msra.mxu0 %v3587
        %3612 = vmatprep.subr.bf16.mxu0 0
        %3613 = vmatpush1.bf16.msra.mxu0 0
        %3614 = vmatprep.subr.bf16.mxu0 0
        %3615 = vmatpush1.bf16.msra.mxu0 0
        %3616 = vmatprep.subr.bf16.mxu0 0
        %3617 = vmatpush1.bf16.msra.mxu0 0
        %3618 = vmatprep.subr.bf16.mxu0 0
        %3619 = vmatpush1.bf16.msra.mxu0 0
        %3620 = vmatprep.subr.bf16.mxu0 0
        %3621 = vmatpush1.bf16.msra.mxu0 0
        %3622 = vmatprep.subr.bf16.mxu0 0
        %3623 = vmatpush1.bf16.msra.mxu0 0
        %3624 = vmatprep.subr.bf16.mxu0 0
        %3625 = vmatpush1.bf16.msra.mxu0 0
        %3626 = vmatprep.subr.bf16.mxu0 0
        %3627 = vmatpush1.bf16.msra.mxu0 0
        %3628 = vmatprep.mubr.bf16.mxu0 0
        %3629 = vmatmul.mubr.bf16.gmra.mrb[0].mxu0 %v3447
        %v3630 = vpop.f32.mrb[0].mxu0
        %v3631 = vadd.f32 0.0, %v3630
        %v3632 = vpop.f32.mrb[0].mxu0
        %v3633 = vpop.f32.mrb[0].mxu0
        %v3634 = vadd.f32 0.0, %v3633
        %v3635 = vpop.f32.mrb[0].mxu0
        %3636 = vmatprep.mubr.bf16.mxu0 0
        %3637 = vmatmul.mubr.bf16.gmra.mrb[0].mxu0 %v3455
        %v3638 = vpop.f32.mrb[0].mxu0
        %v3639 = vadd.f32 0.0, %v3638
        %v3640 = vpop.f32.mrb[0].mxu0
        %v3641 = vpop.f32.mrb[0].mxu0
        %v3642 = vadd.f32 0.0, %v3641
        %v3643 = vpop.f32.mrb[0].mxu0
        %3644 = vmatprep.mubr.bf16.mxu0 0
        %3645 = vmatmul.mubr.bf16.gmra.mrb[0].mxu0 %v3463
        %v3646 = vpop.f32.mrb[0].mxu0
        %v3647 = vadd.f32 0.0, %v3646
        %v3648 = vpop.f32.mrb[0].mxu0
        %v3649 = vpop.f32.mrb[0].mxu0
        %v3650 = vadd.f32 0.0, %v3649
        %v3651 = vpop.f32.mrb[0].mxu0
        %3652 = vmatprep.mubr.bf16.mxu0 0
        %3653 = vmatmul.mubr.bf16.gmra.mrb[0].mxu0 %v3471
        %v3654 = vpop.f32.mrb[0].mxu0
        %v3655 = vadd.f32 0.0, %v3654
        %v3656 = vpop.f32.mrb[0].mxu0
        %v3657 = vpop.f32.mrb[0].mxu0
        %v3658 = vadd.f32 0.0, %v3657
        %v3659 = vpop.f32.mrb[0].mxu0
        %3660 = vmatprep.mubr.bf16.mxu0 0
        %3661 = vmatmul.mubr.bf16.gmra.mrb[0].mxu0 %v3479
        %v3662 = vpop.f32.mrb[0].mxu0
        %v3663 = vadd.f32 0.0, %v3662
        %v3664 = vpop.f32.mrb[0].mxu0
        %v3665 = vpop.f32.mrb[0].mxu0
        %v3666 = vadd.f32 0.0, %v3665
        %v3667 = vpop.f32.mrb[0].mxu0
        %3668 = vmatprep.mubr.bf16.mxu0 0
        %3669 = vmatmul.mubr.bf16.gmra.mrb[0].mxu0 %v3487
        %v3670 = vpop.f32.mrb[0].mxu0
        %v3671 = vadd.f32 0.0, %v3670
        %v3672 = vpop.f32.mrb[0].mxu0
        %v3673 = vpop.f32.mrb[0].mxu0
        %v3674 = vadd.f32 0.0, %v3673
        %v3675 = vpop.f32.mrb[0].mxu0
        %3676 = vmatprep.mubr.bf16.mxu0 0
        %3677 = vmatmul.mubr.bf16.gmra.mrb[0].mxu0 %v3495
        %v3678 = vpop.f32.mrb[0].mxu0
        %v3679 = vadd.f32 0.0, %v3678
        %v3680 = vpop.f32.mrb[0].mxu0
        %v3681 = vpop.f32.mrb[0].mxu0
        %v3682 = vadd.f32 0.0, %v3681
        %v3683 = vpop.f32.mrb[0].mxu0
        %3684 = vmatprep.mubr.bf16.mxu0 0
        %3685 = vmatmul.mubr.bf16.gmra.mrb[0].mxu0 %v3503
        %v3686 = vpop.f32.mrb[0].mxu0
        %v3687 = vadd.f32 0.0, %v3686
        %v3688 = vpop.f32.mrb[0].mxu0
        %v3689 = vpop.f32.mrb[0].mxu0
        %v3690 = vadd.f32 0.0, %v3689
        %v3691 = vpop.f32.mrb[0].mxu0
        %3692 = vmatprep.mubr.bf16.mxu0 0
        %3693 = vmatmul.mubr.bf16.gmra.mrb[0].mxu0 %v3511
        %v3694 = vpop.f32.mrb[0].mxu0
        %v3695 = vadd.f32 0.0, %v3694
        %v3696 = vpop.f32.mrb[0].mxu0
        %v3697 = vpop.f32.mrb[0].mxu0
        %v3698 = vadd.f32 0.0, %v3697
        %v3699 = vpop.f32.mrb[0].mxu0
        %3700 = vmatprep.mubr.bf16.mxu0 0
        %3701 = vmatmul.mubr.bf16.gmra.mrb[0].mxu0 %v3519
        %v3702 = vpop.f32.mrb[0].mxu0
        %v3703 = vadd.f32 0.0, %v3702
        %v3704 = vpop.f32.mrb[0].mxu0
        %v3705 = vpop.f32.mrb[0].mxu0
        %v3706 = vadd.f32 0.0, %v3705
        %v3707 = vpop.f32.mrb[0].mxu0
        %3708 = vmatprep.mubr.bf16.mxu0 0
        %3709 = vmatmul.mubr.bf16.gmra.mrb[0].mxu0 %v3527
        %v3710 = vpop.f32.mrb[0].mxu0
        %v3711 = vadd.f32 0.0, %v3710
        %v3712 = vpop.f32.mrb[0].mxu0
        %v3713 = vpop.f32.mrb[0].mxu0
        %v3714 = vadd.f32 0.0, %v3713
        %v3715 = vpop.f32.mrb[0].mxu0
        %3716 = vmatprep.mubr.bf16.mxu0 0
        %3717 = vmatmul.mubr.bf16.gmra.mrb[0].mxu0 %v3535
        %v3718 = vpop.f32.mrb[0].mxu0
        %v3719 = vadd.f32 0.0, %v3718
        %v3720 = vpop.f32.mrb[0].mxu0
        %v3721 = vpop.f32.mrb[0].mxu0
        %v3722 = vadd.f32 0.0, %v3721
        %v3723 = vpop.f32.mrb[0].mxu0
        %3724 = vdwg.mxu0
        %v3753 = vunpack.c.l.b16 %v3339
        %v3754 = vunpack.c.l.b16 %v3340
        %v3755 = vunpack.c.l.b16 %v3341
        %v3756 = vunpack.c.l.b16 %v3342
        %v3757 = vunpack.c.l.b16 %v3343
        %v3758 = vunpack.c.l.b16 %v3344
        %v3759 = vunpack.c.l.b16 %v3345
        %v3760 = vunpack.c.l.b16 %v3346
        %v3761 = vunpack.c.l.b16 %v3347
        %v3762 = vunpack.c.l.b16 %v3348
        %v3763 = vunpack.c.l.b16 %v3349
        %v3764 = vunpack.c.l.b16 %v3350
        %v3765 = vunpack.c.l.b16 %v3351
        %v3766 = vunpack.c.l.b16 %v3352
        %v3767 = vunpack.c.l.b16 %v3353
        %v3768 = vunpack.c.l.b16 %v3354
        %v3769 = vpack.c.b16 %v3754, %v3753
        %v3770 = vpack.c.b16 %v3756, %v3755
        %v3771 = vpack.c.b16 %v3758, %v3757
        %v3772 = vpack.c.b16 %v3760, %v3759
        %v3773 = vpack.c.b16 %v3762, %v3761
        %v3774 = vpack.c.b16 %v3764, %v3763
        %v3775 = vpack.c.b16 %v3766, %v3765
        %v3776 = vpack.c.b16 %v3768, %v3767
        %3785 = vmatprep.subr.bf16.mxu0 0
        %3786 = vmatpush1.bf16.msra.mxu0 %v3769
        %3787 = vmatprep.subr.bf16.mxu0 0
        %3788 = vmatpush1.bf16.msra.mxu0 %v3770
        %3789 = vmatprep.subr.bf16.mxu0 0
        %3790 = vmatpush1.bf16.msra.mxu0 %v3771
        %3791 = vmatprep.subr.bf16.mxu0 0
        %3792 = vmatpush1.bf16.msra.mxu0 %v3772
        %3793 = vmatprep.subr.bf16.mxu0 0
        %3794 = vmatpush1.bf16.msra.mxu0 %v3773
        %3795 = vmatprep.subr.bf16.mxu0 0
        %3796 = vmatpush1.bf16.msra.mxu0 %v3774
        %3797 = vmatprep.subr.bf16.mxu0 0
        %3798 = vmatpush1.bf16.msra.mxu0 %v3775
        %3799 = vmatprep.subr.bf16.mxu0 0
        %3800 = vmatpush1.bf16.msra.mxu0 %v3776
        %3801 = vmatprep.subr.bf16.mxu0 0
        %3802 = vmatpush1.bf16.msra.mxu0 0
        %3803 = vmatprep.subr.bf16.mxu0 0
        %3804 = vmatpush1.bf16.msra.mxu0 0
        %3805 = vmatprep.subr.bf16.mxu0 0
        %3806 = vmatpush1.bf16.msra.mxu0 0
        %3807 = vmatprep.subr.bf16.mxu0 0
        %3808 = vmatpush1.bf16.msra.mxu0 0
        %3809 = vmatprep.subr.bf16.mxu0 0
        %3810 = vmatpush1.bf16.msra.mxu0 0
        %3811 = vmatprep.subr.bf16.mxu0 0
        %3812 = vmatpush1.bf16.msra.mxu0 0
        %3813 = vmatprep.subr.bf16.mxu0 0
        %3814 = vmatpush1.bf16.msra.mxu0 0
        %3815 = vmatprep.subr.bf16.mxu0 0
        %3816 = vmatpush1.bf16.msra.mxu0 0
        %3817 = vmatprep.mubr.bf16.mxu0 0
        %3818 = vmatmul.mubr.bf16.gmra.mrb[0].mxu0 %v3423
        %v3819 = vpop.f32.mrb[0].mxu0
        %v3820 = vadd.f32 %v3631, %v3819
        %v3821 = vpop.f32.mrb[0].mxu0
        %v3822 = vpop.f32.mrb[0].mxu0
        %v3823 = vadd.f32 %v3634, %v3822
        %v3824 = vpop.f32.mrb[0].mxu0
        %3825 = vmatprep.mubr.bf16.mxu0 0
        %3826 = vmatmul.mubr.bf16.gmra.mrb[0].mxu0 %v3424
        %v3827 = vpop.f32.mrb[0].mxu0
        %v3828 = vadd.f32 %v3639, %v3827
        %v3829 = vpop.f32.mrb[0].mxu0
        %v3830 = vpop.f32.mrb[0].mxu0
        %v3831 = vadd.f32 %v3642, %v3830
        %v3832 = vpop.f32.mrb[0].mxu0
        %3833 = vmatprep.mubr.bf16.mxu0 0
        %3834 = vmatmul.mubr.bf16.gmra.mrb[0].mxu0 %v3425
        %v3835 = vpop.f32.mrb[0].mxu0
        %v3836 = vadd.f32 %v3647, %v3835
        %v3837 = vpop.f32.mrb[0].mxu0
        %v3838 = vpop.f32.mrb[0].mxu0
        %v3839 = vadd.f32 %v3650, %v3838
        %v3840 = vpop.f32.mrb[0].mxu0
        %3841 = vmatprep.mubr.bf16.mxu0 0
        %3842 = vmatmul.mubr.bf16.gmra.mrb[0].mxu0 %v3426
        %v3843 = vpop.f32.mrb[0].mxu0
        %v3844 = vadd.f32 %v3655, %v3843
        %v3845 = vpop.f32.mrb[0].mxu0
        %v3846 = vpop.f32.mrb[0].mxu0
        %v3847 = vadd.f32 %v3658, %v3846
        %v3848 = vpop.f32.mrb[0].mxu0
        %3849 = vmatprep.mubr.bf16.mxu0 0
        %3850 = vmatmul.mubr.bf16.gmra.mrb[0].mxu0 %v3427
        %v3851 = vpop.f32.mrb[0].mxu0
        %v3852 = vadd.f32 %v3663, %v3851
        %v3853 = vpop.f32.mrb[0].mxu0
        %v3854 = vpop.f32.mrb[0].mxu0
        %v3855 = vadd.f32 %v3666, %v3854
        %v3856 = vpop.f32.mrb[0].mxu0
        %3857 = vmatprep.mubr.bf16.mxu0 0
        %3858 = vmatmul.mubr.bf16.gmra.mrb[0].mxu0 %v3428
        %v3859 = vpop.f32.mrb[0].mxu0
        %v3860 = vadd.f32 %v3671, %v3859
        %v3861 = vpop.f32.mrb[0].mxu0
        %v3862 = vpop.f32.mrb[0].mxu0
        %v3863 = vadd.f32 %v3674, %v3862
        %v3864 = vpop.f32.mrb[0].mxu0
        %3865 = vmatprep.mubr.bf16.mxu0 0
        %3866 = vmatmul.mubr.bf16.gmra.mrb[0].mxu0 %v3429
        %v3867 = vpop.f32.mrb[0].mxu0
        %v3868 = vadd.f32 %v3679, %v3867
        %v3869 = vpop.f32.mrb[0].mxu0
        %v3870 = vpop.f32.mrb[0].mxu0
        %v3871 = vadd.f32 %v3682, %v3870
        %v3872 = vpop.f32.mrb[0].mxu0
        %3873 = vmatprep.mubr.bf16.mxu0 0
        %3874 = vmatmul.mubr.bf16.gmra.mrb[0].mxu0 %v3430
        %v3875 = vpop.f32.mrb[0].mxu0
        %v3876 = vadd.f32 %v3687, %v3875
        %v3877 = vpop.f32.mrb[0].mxu0
        %v3878 = vpop.f32.mrb[0].mxu0
        %v3879 = vadd.f32 %v3690, %v3878
        %v3880 = vpop.f32.mrb[0].mxu0
        %3881 = vmatprep.mubr.bf16.mxu0 0
        %3882 = vmatmul.mubr.bf16.gmra.mrb[0].mxu0 %v3431
        %v3883 = vpop.f32.mrb[0].mxu0
        %v3884 = vadd.f32 %v3695, %v3883
        %v3885 = vpop.f32.mrb[0].mxu0
        %v3886 = vpop.f32.mrb[0].mxu0
        %v3887 = vadd.f32 %v3698, %v3886
        %v3888 = vpop.f32.mrb[0].mxu0
        %3889 = vmatprep.mubr.bf16.mxu0 0
        %3890 = vmatmul.mubr.bf16.gmra.mrb[0].mxu0 %v3432
        %v3891 = vpop.f32.mrb[0].mxu0
        %v3892 = vadd.f32 %v3703, %v3891
        %v3893 = vpop.f32.mrb[0].mxu0
        %v3894 = vpop.f32.mrb[0].mxu0
        %v3895 = vadd.f32 %v3706, %v3894
        %v3896 = vpop.f32.mrb[0].mxu0
        %3897 = vmatprep.mubr.bf16.mxu0 0
        %3898 = vmatmul.mubr.bf16.gmra.mrb[0].mxu0 %v3433
        %v3899 = vpop.f32.mrb[0].mxu0
        %v3900 = vadd.f32 %v3711, %v3899
        %v3901 = vpop.f32.mrb[0].mxu0
        %v3902 = vpop.f32.mrb[0].mxu0
        %v3903 = vadd.f32 %v3714, %v3902
        %v3904 = vpop.f32.mrb[0].mxu0
        %3905 = vmatprep.mubr.bf16.mxu0 0
        %3906 = vmatmul.mubr.bf16.gmra.mrb[0].mxu0 %v3434
        %v3907 = vpop.f32.mrb[0].mxu0
        %v3908 = vadd.f32 %v3719, %v3907
        %v3909 = vpop.f32.mrb[0].mxu0
        %v3910 = vpop.f32.mrb[0].mxu0
        %v3911 = vadd.f32 %v3722, %v3910
        %v3912 = vpop.f32.mrb[0].mxu0
        %3913 = vdwg.mxu0
        %v3914 = vld [vmem:[#allocation2] sm:$0xe]
        %s3915 = scalar_lea.vmem %s3, 128
        %v3916 = vld [vmem:[%s3915] sm:$0xf]
        %v3917 = vld [vmem:[%s3915 + $0x4] sm:$0xf]
        %v3918 = vld [vmem:[%s3915 + $0x8] sm:$0xf]
        %v3919 = vld [vmem:[%s3915 + $0xc] sm:$0xf]
        %v3920 = vld [vmem:[%s3915 + $0x10] sm:$0xf]
        %v3921 = vld [vmem:[%s3915 + $0x14] sm:$0xf]
        %v3922 = vld [vmem:[%s3915 + $0x18] sm:$0xf]
        %v3923 = vld [vmem:[%s3915 + $0x1c] sm:$0xf]
        %v3924 = vld [vmem:[%s3915 + $0x20] sm:$0xf]
        %v3925 = vld [vmem:[%s3915 + $0x24] sm:$0xf]
        %v3926 = vld [vmem:[%s3915 + $0x28] sm:$0xf]
        %v3927 = vld [vmem:[%s3915 + $0x2c] sm:$0xf]
        %v3928 = vld [vmem:[%s3915 + $0x30] sm:$0xf]
        %v3929 = vld [vmem:[%s3915 + $0x34] sm:$0xf]
        %v3930 = vld [vmem:[%s3915 + $0x38] sm:$0xf]
        %v3931 = vld [vmem:[%s3915 + $0x3c] sm:$0xf]
        %v3933 = vunpack.c.l.b16 %v3914
        %v3934 = vpack.c.b16 %v3399, %v3933
        %v3935 = vrot.slane %v3934, 1
        %v3936 = vrot.slane %v3424, 1
        %v3937 = vsel %vm873, %v3935, %v3936
        %v3938 = vrot.slane %v3425, 1
        %v3939 = vsel %vm873, %v3936, %v3938
        %v3940 = vrot.slane %v3426, 1
        %v3941 = vsel %vm873, %v3938, %v3940
        %v3942 = vrot.slane %v3427, 1
        %v3943 = vsel %vm873, %v3940, %v3942
        %v3944 = vrot.slane %v3428, 1
        %v3945 = vsel %vm873, %v3942, %v3944
        %v3946 = vrot.slane %v3429, 1
        %v3947 = vsel %vm873, %v3944, %v3946
        %v3948 = vrot.slane %v3430, 1
        %v3949 = vsel %vm873, %v3946, %v3948
        %v3950 = vrot.slane %v3431, 1
        %v3951 = vsel %vm873, %v3948, %v3950
        %v3952 = vrot.slane %v3432, 1
        %v3953 = vsel %vm873, %v3950, %v3952
        %v3954 = vrot.slane %v3433, 1
        %v3955 = vsel %vm873, %v3952, %v3954
        %v3956 = vrot.slane %v3434, 1
        %v3957 = vsel %vm873, %v3954, %v3956
        %v3958 = vrot.slane %v3435, 1
        %v3959 = vsel %vm873, %v3956, %v3958
        %v3988 = vunpack.c.l.b16 %v3916
        %v3989 = vunpack.c.l.b16 %v3917
        %v3990 = vunpack.c.l.b16 %v3918
        %v3991 = vunpack.c.l.b16 %v3919
        %v3992 = vunpack.c.l.b16 %v3920
        %v3993 = vunpack.c.l.b16 %v3921
        %v3994 = vunpack.c.l.b16 %v3922
        %v3995 = vunpack.c.l.b16 %v3923
        %v3996 = vunpack.c.l.b16 %v3924
        %v3997 = vunpack.c.l.b16 %v3925
        %v3998 = vunpack.c.l.b16 %v3926
        %v3999 = vunpack.c.l.b16 %v3927
        %v4000 = vunpack.c.l.b16 %v3928
        %v4001 = vunpack.c.l.b16 %v3929
        %v4002 = vunpack.c.l.b16 %v3930
        %v4003 = vunpack.c.l.b16 %v3931
        %v4004 = vpack.c.b16 %v3989, %v3988
        %v4005 = vpack.c.b16 %v3991, %v3990
        %v4006 = vpack.c.b16 %v3993, %v3992
        %v4007 = vpack.c.b16 %v3995, %v3994
        %v4008 = vpack.c.b16 %v3997, %v3996
        %v4009 = vpack.c.b16 %v3999, %v3998
        %v4010 = vpack.c.b16 %v4001, %v4000
        %v4011 = vpack.c.b16 %v4003, %v4002
        %4020 = vmatprep.subr.bf16.mxu0 0
        %4021 = vmatpush1.bf16.msra.mxu0 %v4004
        %4022 = vmatprep.subr.bf16.mxu0 0
        %4023 = vmatpush1.bf16.msra.mxu0 %v4005
        %4024 = vmatprep.subr.bf16.mxu0 0
        %4025 = vmatpush1.bf16.msra.mxu0 %v4006
        %4026 = vmatprep.subr.bf16.mxu0 0
        %4027 = vmatpush1.bf16.msra.mxu0 %v4007
        %4028 = vmatprep.subr.bf16.mxu0 0
        %4029 = vmatpush1.bf16.msra.mxu0 %v4008
        %4030 = vmatprep.subr.bf16.mxu0 0
        %4031 = vmatpush1.bf16.msra.mxu0 %v4009
        %4032 = vmatprep.subr.bf16.mxu0 0
        %4033 = vmatpush1.bf16.msra.mxu0 %v4010
        %4034 = vmatprep.subr.bf16.mxu0 0
        %4035 = vmatpush1.bf16.msra.mxu0 %v4011
        %4036 = vmatprep.subr.bf16.mxu0 0
        %4037 = vmatpush1.bf16.msra.mxu0 0
        %4038 = vmatprep.subr.bf16.mxu0 0
        %4039 = vmatpush1.bf16.msra.mxu0 0
        %4040 = vmatprep.subr.bf16.mxu0 0
        %4041 = vmatpush1.bf16.msra.mxu0 0
        %4042 = vmatprep.subr.bf16.mxu0 0
        %4043 = vmatpush1.bf16.msra.mxu0 0
        %4044 = vmatprep.subr.bf16.mxu0 0
        %4045 = vmatpush1.bf16.msra.mxu0 0
        %4046 = vmatprep.subr.bf16.mxu0 0
        %4047 = vmatpush1.bf16.msra.mxu0 0
        %4048 = vmatprep.subr.bf16.mxu0 0
        %4049 = vmatpush1.bf16.msra.mxu0 0
        %4050 = vmatprep.subr.bf16.mxu0 0
        %4051 = vmatpush1.bf16.msra.mxu0 0
        %4052 = vmatprep.mubr.bf16.mxu0 0
        %4053 = vmatmul.mubr.bf16.gmra.mrb[0].mxu0 %v3937
        %v4054 = vpop.f32.mrb[0].mxu0
        %v4055 = vadd.f32 0.0, %v4054
        %v4056 = vpop.f32.mrb[0].mxu0
        %v4057 = vpop.f32.mrb[0].mxu0
        %v4058 = vadd.f32 0.0, %v4057
        %v4059 = vpop.f32.mrb[0].mxu0
        %4060 = vmatprep.mubr.bf16.mxu0 0
        %4061 = vmatmul.mubr.bf16.gmra.mrb[0].mxu0 %v3939
        %v4062 = vpop.f32.mrb[0].mxu0
        %v4063 = vadd.f32 0.0, %v4062
        %v4064 = vpop.f32.mrb[0].mxu0
        %v4065 = vpop.f32.mrb[0].mxu0
        %v4066 = vadd.f32 0.0, %v4065
        %v4067 = vpop.f32.mrb[0].mxu0
        %4068 = vmatprep.mubr.bf16.mxu0 0
        %4069 = vmatmul.mubr.bf16.gmra.mrb[0].mxu0 %v3941
        %v4070 = vpop.f32.mrb[0].mxu0
        %v4071 = vadd.f32 0.0, %v4070
        %v4072 = vpop.f32.mrb[0].mxu0
        %v4073 = vpop.f32.mrb[0].mxu0
        %v4074 = vadd.f32 0.0, %v4073
        %v4075 = vpop.f32.mrb[0].mxu0
        %4076 = vmatprep.mubr.bf16.mxu0 0
        %4077 = vmatmul.mubr.bf16.gmra.mrb[0].mxu0 %v3943
        %v4078 = vpop.f32.mrb[0].mxu0
        %v4079 = vadd.f32 0.0, %v4078
        %v4080 = vpop.f32.mrb[0].mxu0
        %v4081 = vpop.f32.mrb[0].mxu0
        %v4082 = vadd.f32 0.0, %v4081
        %v4083 = vpop.f32.mrb[0].mxu0
        %4084 = vmatprep.mubr.bf16.mxu0 0
        %4085 = vmatmul.mubr.bf16.gmra.mrb[0].mxu0 %v3945
        %v4086 = vpop.f32.mrb[0].mxu0
        %v4087 = vadd.f32 0.0, %v4086
        %v4088 = vpop.f32.mrb[0].mxu0
        %v4089 = vpop.f32.mrb[0].mxu0
        %v4090 = vadd.f32 0.0, %v4089
        %v4091 = vpop.f32.mrb[0].mxu0
        %4092 = vmatprep.mubr.bf16.mxu0 0
        %4093 = vmatmul.mubr.bf16.gmra.mrb[0].mxu0 %v3947
        %v4094 = vpop.f32.mrb[0].mxu0
        %v4095 = vadd.f32 0.0, %v4094
        %v4096 = vpop.f32.mrb[0].mxu0
        %v4097 = vpop.f32.mrb[0].mxu0
        %v4098 = vadd.f32 0.0, %v4097
        %v4099 = vpop.f32.mrb[0].mxu0
        %4100 = vmatprep.mubr.bf16.mxu0 0
        %4101 = vmatmul.mubr.bf16.gmra.mrb[0].mxu0 %v3949
        %v4102 = vpop.f32.mrb[0].mxu0
        %v4103 = vadd.f32 0.0, %v4102
        %v4104 = vpop.f32.mrb[0].mxu0
        %v4105 = vpop.f32.mrb[0].mxu0
        %v4106 = vadd.f32 0.0, %v4105
        %v4107 = vpop.f32.mrb[0].mxu0
        %4108 = vmatprep.mubr.bf16.mxu0 0
        %4109 = vmatmul.mubr.bf16.gmra.mrb[0].mxu0 %v3951
        %v4110 = vpop.f32.mrb[0].mxu0
        %v4111 = vadd.f32 0.0, %v4110
        %v4112 = vpop.f32.mrb[0].mxu0
        %v4113 = vpop.f32.mrb[0].mxu0
        %v4114 = vadd.f32 0.0, %v4113
        %v4115 = vpop.f32.mrb[0].mxu0
        %4116 = vmatprep.mubr.bf16.mxu0 0
        %4117 = vmatmul.mubr.bf16.gmra.mrb[0].mxu0 %v3953
        %v4118 = vpop.f32.mrb[0].mxu0
        %v4119 = vadd.f32 0.0, %v4118
        %v4120 = vpop.f32.mrb[0].mxu0
        %v4121 = vpop.f32.mrb[0].mxu0
        %v4122 = vadd.f32 0.0, %v4121
        %v4123 = vpop.f32.mrb[0].mxu0
        %4124 = vmatprep.mubr.bf16.mxu0 0
        %4125 = vmatmul.mubr.bf16.gmra.mrb[0].mxu0 %v3955
        %v4126 = vpop.f32.mrb[0].mxu0
        %v4127 = vadd.f32 0.0, %v4126
        %v4128 = vpop.f32.mrb[0].mxu0
        %v4129 = vpop.f32.mrb[0].mxu0
        %v4130 = vadd.f32 0.0, %v4129
        %v4131 = vpop.f32.mrb[0].mxu0
        %4132 = vmatprep.mubr.bf16.mxu0 0
        %4133 = vmatmul.mubr.bf16.gmra.mrb[0].mxu0 %v3957
        %v4134 = vpop.f32.mrb[0].mxu0
        %v4135 = vadd.f32 0.0, %v4134
        %v4136 = vpop.f32.mrb[0].mxu0
        %v4137 = vpop.f32.mrb[0].mxu0
        %v4138 = vadd.f32 0.0, %v4137
        %v4139 = vpop.f32.mrb[0].mxu0
        %4140 = vmatprep.mubr.bf16.mxu0 0
        %4141 = vmatmul.mubr.bf16.gmra.mrb[0].mxu0 %v3959
        %v4142 = vpop.f32.mrb[0].mxu0
        %v4143 = vadd.f32 0.0, %v4142
        %v4144 = vpop.f32.mrb[0].mxu0
        %v4145 = vpop.f32.mrb[0].mxu0
        %v4146 = vadd.f32 0.0, %v4145
        %v4147 = vpop.f32.mrb[0].mxu0
        %4148 = vdwg.mxu0
        %v4149 = vadd.f32 %v3820, %v4055
        %v4150 = vadd.f32 %v3823, %v4058
        %v4151 = vadd.f32 %v3828, %v4063
        %v4152 = vadd.f32 %v3831, %v4066
        %v4153 = vadd.f32 %v3836, %v4071
        %v4154 = vadd.f32 %v3839, %v4074
        %v4155 = vadd.f32 %v3844, %v4079
        %v4156 = vadd.f32 %v3847, %v4082
        %v4157 = vadd.f32 %v3852, %v4087
        %v4158 = vadd.f32 %v3855, %v4090
        %v4159 = vadd.f32 %v3860, %v4095
        %v4160 = vadd.f32 %v3863, %v4098
        %v4161 = vadd.f32 %v3868, %v4103
        %v4162 = vadd.f32 %v3871, %v4106
        %v4163 = vadd.f32 %v3876, %v4111
        %v4164 = vadd.f32 %v3879, %v4114
        %v4165 = vadd.f32 %v3884, %v4119
        %v4166 = vadd.f32 %v3887, %v4122
        %v4167 = vadd.f32 %v3892, %v4127
        %v4168 = vadd.f32 %v3895, %v4130
        %v4169 = vadd.f32 %v3900, %v4135
        %v4170 = vadd.f32 %v3903, %v4138
        %v4171 = vadd.f32 %v3908, %v4143
        %v4172 = vadd.f32 %v3911, %v4146
        %v4173 = vld [vmem:[#allocation2 + $0x8] sm:$0xf]
        %v4174 = vld [vmem:[#allocation2 + $0xc] sm:$0xf]
        %v4175 = vld [vmem:[#allocation2 + $0x10] sm:$0xf]
        %v4176 = vld [vmem:[#allocation2 + $0x14] sm:$0xf]
        %v4177 = vld [vmem:[#allocation2 + $0x18] sm:$0xf]
        %v4178 = vld [vmem:[#allocation2 + $0x1c] sm:$0xf]
        %v4179 = vld [vmem:[#allocation2 + $0x20] sm:$0xf]
        %v4180 = vld [vmem:[#allocation2 + $0x24] sm:$0xf]
        %v4181 = vld [vmem:[#allocation2 + $0x28] sm:$0xf]
        %v4182 = vld [vmem:[#allocation2 + $0x2c] sm:$0xf]
        %v4183 = vld [vmem:[#allocation2 + $0x30] sm:$0xf]
        %v4184 = vld [vmem:[#allocation2 + $0x34] sm:$0xf]
        %v4185 = vld [vmem:[#allocation2 + $0x38] sm:$0xf]
        %v4186 = vld [vmem:[#allocation2 + $0x3c] sm:$0xf]
        %v4187 = vld [vmem:[#allocation2 + $0x40] sm:$0xf]
        %v4188 = vld [vmem:[#allocation2 + $0x44] sm:$0xf]
        %v4189 = vld [vmem:[#allocation2 + $0x48] sm:$0xf]
        %v4190 = vld [vmem:[#allocation2 + $0x4c] sm:$0xf]
        %v4191 = vld [vmem:[#allocation2 + $0x50] sm:$0xf]
        %v4192 = vld [vmem:[#allocation2 + $0x54] sm:$0xf]
        %v4193 = vld [vmem:[#allocation2 + $0x58] sm:$0xf]
        %v4194 = vld [vmem:[#allocation2 + $0x5c] sm:$0xf]
        %v4195 = vld [vmem:[#allocation2 + $0x60] sm:$0xf]
        %v4196 = vld [vmem:[#allocation2 + $0x64] sm:$0xf]
        %s4197 = scalar_lea.vmem %s3, 192
        %v4198 = vld [vmem:[%s4197] sm:$0xf]
        %v4199 = vld [vmem:[%s4197 + $0x4] sm:$0xf]
        %v4200 = vld [vmem:[%s4197 + $0x8] sm:$0xf]
        %v4201 = vld [vmem:[%s4197 + $0xc] sm:$0xf]
        %v4202 = vld [vmem:[%s4197 + $0x10] sm:$0xf]
        %v4203 = vld [vmem:[%s4197 + $0x14] sm:$0xf]
        %v4204 = vld [vmem:[%s4197 + $0x18] sm:$0xf]
        %v4205 = vld [vmem:[%s4197 + $0x1c] sm:$0xf]
        %v4206 = vld [vmem:[%s4197 + $0x20] sm:$0xf]
        %v4207 = vld [vmem:[%s4197 + $0x24] sm:$0xf]
        %v4208 = vld [vmem:[%s4197 + $0x28] sm:$0xf]
        %v4209 = vld [vmem:[%s4197 + $0x2c] sm:$0xf]
        %v4210 = vld [vmem:[%s4197 + $0x30] sm:$0xf]
        %v4211 = vld [vmem:[%s4197 + $0x34] sm:$0xf]
        %v4212 = vld [vmem:[%s4197 + $0x38] sm:$0xf]
        %v4213 = vld [vmem:[%s4197 + $0x3c] sm:$0xf]
        %v4238 = vunpack.c.l.b16 %v4173
        %v4239 = vunpack.c.l.b16 %v4174
        %v4240 = vunpack.c.l.b16 %v4175
        %v4241 = vunpack.c.l.b16 %v4176
        %v4242 = vunpack.c.l.b16 %v4177
        %v4243 = vunpack.c.l.b16 %v4178
        %v4244 = vunpack.c.l.b16 %v4179
        %v4245 = vunpack.c.l.b16 %v4180
        %v4246 = vunpack.c.l.b16 %v4181
        %v4247 = vunpack.c.l.b16 %v4182
        %v4248 = vunpack.c.l.b16 %v4183
        %v4249 = vunpack.c.l.b16 %v4184
        %v4250 = vunpack.c.l.b16 %v4185
        %v4251 = vunpack.c.l.b16 %v4186
        %v4252 = vunpack.c.l.b16 %v4187
        %v4253 = vunpack.c.l.b16 %v4188
        %v4254 = vunpack.c.l.b16 %v4189
        %v4255 = vunpack.c.l.b16 %v4190
        %v4256 = vunpack.c.l.b16 %v4191
        %v4257 = vunpack.c.l.b16 %v4192
        %v4258 = vunpack.c.l.b16 %v4193
        %v4259 = vunpack.c.l.b16 %v4194
        %v4260 = vunpack.c.l.b16 %v4195
        %v4261 = vunpack.c.l.b16 %v4196
        %v4262 = vpack.c.b16 %v4239, %v4238
        %v4263 = vpack.c.b16 %v4241, %v4240
        %v4264 = vpack.c.b16 %v4243, %v4242
        %v4265 = vpack.c.b16 %v4245, %v4244
        %v4266 = vpack.c.b16 %v4247, %v4246
        %v4267 = vpack.c.b16 %v4249, %v4248
        %v4268 = vpack.c.b16 %v4251, %v4250
        %v4269 = vpack.c.b16 %v4253, %v4252
        %v4270 = vpack.c.b16 %v4255, %v4254
        %v4271 = vpack.c.b16 %v4257, %v4256
        %v4272 = vpack.c.b16 %v4259, %v4258
        %v4273 = vpack.c.b16 %v4261, %v4260
        %v4302 = vunpack.c.l.b16 %v4198
        %v4303 = vunpack.c.l.b16 %v4199
        %v4304 = vunpack.c.l.b16 %v4200
        %v4305 = vunpack.c.l.b16 %v4201
        %v4306 = vunpack.c.l.b16 %v4202
        %v4307 = vunpack.c.l.b16 %v4203
        %v4308 = vunpack.c.l.b16 %v4204
        %v4309 = vunpack.c.l.b16 %v4205
        %v4310 = vunpack.c.l.b16 %v4206
        %v4311 = vunpack.c.l.b16 %v4207
        %v4312 = vunpack.c.l.b16 %v4208
        %v4313 = vunpack.c.l.b16 %v4209
        %v4314 = vunpack.c.l.b16 %v4210
        %v4315 = vunpack.c.l.b16 %v4211
        %v4316 = vunpack.c.l.b16 %v4212
        %v4317 = vunpack.c.l.b16 %v4213
        %v4318 = vpack.c.b16 %v4303, %v4302
        %v4319 = vpack.c.b16 %v4305, %v4304
        %v4320 = vpack.c.b16 %v4307, %v4306
        %v4321 = vpack.c.b16 %v4309, %v4308
        %v4322 = vpack.c.b16 %v4311, %v4310
        %v4323 = vpack.c.b16 %v4313, %v4312
        %v4324 = vpack.c.b16 %v4315, %v4314
        %v4325 = vpack.c.b16 %v4317, %v4316
        %4334 = vmatprep.subr.bf16.mxu0 0
        %4335 = vmatpush1.bf16.msra.mxu0 %v4318
        %4336 = vmatprep.subr.bf16.mxu0 0
        %4337 = vmatpush1.bf16.msra.mxu0 %v4319
        %4338 = vmatprep.subr.bf16.mxu0 0
        %4339 = vmatpush1.bf16.msra.mxu0 %v4320
        %4340 = vmatprep.subr.bf16.mxu0 0
        %4341 = vmatpush1.bf16.msra.mxu0 %v4321
        %4342 = vmatprep.subr.bf16.mxu0 0
        %4343 = vmatpush1.bf16.msra.mxu0 %v4322
        %4344 = vmatprep.subr.bf16.mxu0 0
        %4345 = vmatpush1.bf16.msra.mxu0 %v4323
        %4346 = vmatprep.subr.bf16.mxu0 0
        %4347 = vmatpush1.bf16.msra.mxu0 %v4324
        %4348 = vmatprep.subr.bf16.mxu0 0
        %4349 = vmatpush1.bf16.msra.mxu0 %v4325
        %4350 = vmatprep.subr.bf16.mxu0 0
        %4351 = vmatpush1.bf16.msra.mxu0 0
        %4352 = vmatprep.subr.bf16.mxu0 0
        %4353 = vmatpush1.bf16.msra.mxu0 0
        %4354 = vmatprep.subr.bf16.mxu0 0
        %4355 = vmatpush1.bf16.msra.mxu0 0
        %4356 = vmatprep.subr.bf16.mxu0 0
        %4357 = vmatpush1.bf16.msra.mxu0 0
        %4358 = vmatprep.subr.bf16.mxu0 0
        %4359 = vmatpush1.bf16.msra.mxu0 0
        %4360 = vmatprep.subr.bf16.mxu0 0
        %4361 = vmatpush1.bf16.msra.mxu0 0
        %4362 = vmatprep.subr.bf16.mxu0 0
        %4363 = vmatpush1.bf16.msra.mxu0 0
        %4364 = vmatprep.subr.bf16.mxu0 0
        %4365 = vmatpush1.bf16.msra.mxu0 0
        %4366 = vmatprep.mubr.bf16.mxu0 0
        %4367 = vmatmul.mubr.bf16.gmra.mrb[0].mxu0 %v4262
        %v4368 = vpop.f32.mrb[0].mxu0
        %v4369 = vadd.f32 0.0, %v4368
        %v4370 = vpop.f32.mrb[0].mxu0
        %v4371 = vpop.f32.mrb[0].mxu0
        %v4372 = vadd.f32 0.0, %v4371
        %v4373 = vpop.f32.mrb[0].mxu0
        %4374 = vmatprep.mubr.bf16.mxu0 0
        %4375 = vmatmul.mubr.bf16.gmra.mrb[0].mxu0 %v4263
        %v4376 = vpop.f32.mrb[0].mxu0
        %v4377 = vadd.f32 0.0, %v4376
        %v4378 = vpop.f32.mrb[0].mxu0
        %v4379 = vpop.f32.mrb[0].mxu0
        %v4380 = vadd.f32 0.0, %v4379
        %v4381 = vpop.f32.mrb[0].mxu0
        %4382 = vmatprep.mubr.bf16.mxu0 0
        %4383 = vmatmul.mubr.bf16.gmra.mrb[0].mxu0 %v4264
        %v4384 = vpop.f32.mrb[0].mxu0
        %v4385 = vadd.f32 0.0, %v4384
        %v4386 = vpop.f32.mrb[0].mxu0
        %v4387 = vpop.f32.mrb[0].mxu0
        %v4388 = vadd.f32 0.0, %v4387
        %v4389 = vpop.f32.mrb[0].mxu0
        %4390 = vmatprep.mubr.bf16.mxu0 0
        %4391 = vmatmul.mubr.bf16.gmra.mrb[0].mxu0 %v4265
        %v4392 = vpop.f32.mrb[0].mxu0
        %v4393 = vadd.f32 0.0, %v4392
        %v4394 = vpop.f32.mrb[0].mxu0
        %v4395 = vpop.f32.mrb[0].mxu0
        %v4396 = vadd.f32 0.0, %v4395
        %v4397 = vpop.f32.mrb[0].mxu0
        %4398 = vmatprep.mubr.bf16.mxu0 0
        %4399 = vmatmul.mubr.bf16.gmra.mrb[0].mxu0 %v4266
        %v4400 = vpop.f32.mrb[0].mxu0
        %v4401 = vadd.f32 0.0, %v4400
        %v4402 = vpop.f32.mrb[0].mxu0
        %v4403 = vpop.f32.mrb[0].mxu0
        %v4404 = vadd.f32 0.0, %v4403
        %v4405 = vpop.f32.mrb[0].mxu0
        %4406 = vmatprep.mubr.bf16.mxu0 0
        %4407 = vmatmul.mubr.bf16.gmra.mrb[0].mxu0 %v4267
        %v4408 = vpop.f32.mrb[0].mxu0
        %v4409 = vadd.f32 0.0, %v4408
        %v4410 = vpop.f32.mrb[0].mxu0
        %v4411 = vpop.f32.mrb[0].mxu0
        %v4412 = vadd.f32 0.0, %v4411
        %v4413 = vpop.f32.mrb[0].mxu0
        %4414 = vmatprep.mubr.bf16.mxu0 0
        %4415 = vmatmul.mubr.bf16.gmra.mrb[0].mxu0 %v4268
        %v4416 = vpop.f32.mrb[0].mxu0
        %v4417 = vadd.f32 0.0, %v4416
        %v4418 = vpop.f32.mrb[0].mxu0
        %v4419 = vpop.f32.mrb[0].mxu0
        %v4420 = vadd.f32 0.0, %v4419
        %v4421 = vpop.f32.mrb[0].mxu0
        %4422 = vmatprep.mubr.bf16.mxu0 0
        %4423 = vmatmul.mubr.bf16.gmra.mrb[0].mxu0 %v4269
        %v4424 = vpop.f32.mrb[0].mxu0
        %v4425 = vadd.f32 0.0, %v4424
        %v4426 = vpop.f32.mrb[0].mxu0
        %v4427 = vpop.f32.mrb[0].mxu0
        %v4428 = vadd.f32 0.0, %v4427
        %v4429 = vpop.f32.mrb[0].mxu0
        %4430 = vmatprep.mubr.bf16.mxu0 0
        %4431 = vmatmul.mubr.bf16.gmra.mrb[0].mxu0 %v4270
        %v4432 = vpop.f32.mrb[0].mxu0
        %v4433 = vadd.f32 0.0, %v4432
        %v4434 = vpop.f32.mrb[0].mxu0
        %v4435 = vpop.f32.mrb[0].mxu0
        %v4436 = vadd.f32 0.0, %v4435
        %v4437 = vpop.f32.mrb[0].mxu0
        %4438 = vmatprep.mubr.bf16.mxu0 0
        %4439 = vmatmul.mubr.bf16.gmra.mrb[0].mxu0 %v4271
        %v4440 = vpop.f32.mrb[0].mxu0
        %v4441 = vadd.f32 0.0, %v4440
        %v4442 = vpop.f32.mrb[0].mxu0
        %v4443 = vpop.f32.mrb[0].mxu0
        %v4444 = vadd.f32 0.0, %v4443
        %v4445 = vpop.f32.mrb[0].mxu0
        %4446 = vmatprep.mubr.bf16.mxu0 0
        %4447 = vmatmul.mubr.bf16.gmra.mrb[0].mxu0 %v4272
        %v4448 = vpop.f32.mrb[0].mxu0
        %v4449 = vadd.f32 0.0, %v4448
        %v4450 = vpop.f32.mrb[0].mxu0
        %v4451 = vpop.f32.mrb[0].mxu0
        %v4452 = vadd.f32 0.0, %v4451
        %v4453 = vpop.f32.mrb[0].mxu0
        %4454 = vmatprep.mubr.bf16.mxu0 0
        %4455 = vmatmul.mubr.bf16.gmra.mrb[0].mxu0 %v4273
        %v4456 = vpop.f32.mrb[0].mxu0
        %v4457 = vadd.f32 0.0, %v4456
        %v4458 = vpop.f32.mrb[0].mxu0
        %v4459 = vpop.f32.mrb[0].mxu0
        %v4460 = vadd.f32 0.0, %v4459
        %v4461 = vpop.f32.mrb[0].mxu0
        %4462 = vdwg.mxu0
        %v4463 = vadd.f32 %v4149, %v4369
        %v4464 = vadd.f32 %v4150, %v4372
        %v4465 = vadd.f32 %v4151, %v4377
        %v4466 = vadd.f32 %v4152, %v4380
        %v4467 = vadd.f32 %v4153, %v4385
        %v4468 = vadd.f32 %v4154, %v4388
        %v4469 = vadd.f32 %v4155, %v4393
        %v4470 = vadd.f32 %v4156, %v4396
        %v4471 = vadd.f32 %v4157, %v4401
        %v4472 = vadd.f32 %v4158, %v4404
        %v4473 = vadd.f32 %v4159, %v4409
        %v4474 = vadd.f32 %v4160, %v4412
        %v4475 = vadd.f32 %v4161, %v4417
        %v4476 = vadd.f32 %v4162, %v4420
        %v4477 = vadd.f32 %v4163, %v4425
        %v4478 = vadd.f32 %v4164, %v4428
        %v4479 = vadd.f32 %v4165, %v4433
        %v4480 = vadd.f32 %v4166, %v4436
        %v4481 = vadd.f32 %v4167, %v4441
        %v4482 = vadd.f32 %v4168, %v4444
        %v4483 = vadd.f32 %v4169, %v4449
        %v4484 = vadd.f32 %v4170, %v4452
        %v4485 = vadd.f32 %v4171, %v4457
        %v4486 = vadd.f32 %v4172, %v4460
        %v4487 = vld [vmem:[#allocation2 + $0x8] sm:$0xf]
        %v4488 = vld [vmem:[#allocation2 + $0xc] sm:$0xf]
        %v4489 = vld [vmem:[#allocation2 + $0x10] sm:$0xf]
        %v4490 = vld [vmem:[#allocation2 + $0x14] sm:$0xf]
        %v4491 = vld [vmem:[#allocation2 + $0x18] sm:$0xf]
        %v4492 = vld [vmem:[#allocation2 + $0x1c] sm:$0xf]
        %v4493 = vld [vmem:[#allocation2 + $0x20] sm:$0xf]
        %v4494 = vld [vmem:[#allocation2 + $0x24] sm:$0xf]
        %v4495 = vld [vmem:[#allocation2 + $0x28] sm:$0xf]
        %v4496 = vld [vmem:[#allocation2 + $0x2c] sm:$0xf]
        %v4497 = vld [vmem:[#allocation2 + $0x30] sm:$0xf]
        %v4498 = vld [vmem:[#allocation2 + $0x34] sm:$0xf]
        %v4499 = vld [vmem:[#allocation2 + $0x38] sm:$0xf]
        %v4500 = vld [vmem:[#allocation2 + $0x3c] sm:$0xf]
        %v4501 = vld [vmem:[#allocation2 + $0x40] sm:$0xf]
        %v4502 = vld [vmem:[#allocation2 + $0x44] sm:$0xf]
        %v4503 = vld [vmem:[#allocation2 + $0x48] sm:$0xf]
        %v4504 = vld [vmem:[#allocation2 + $0x4c] sm:$0xf]
        %v4505 = vld [vmem:[#allocation2 + $0x50] sm:$0xf]
        %v4506 = vld [vmem:[#allocation2 + $0x54] sm:$0xf]
        %v4507 = vld [vmem:[#allocation2 + $0x58] sm:$0xf]
        %v4508 = vld [vmem:[#allocation2 + $0x5c] sm:$0xf]
        %v4509 = vld [vmem:[#allocation2 + $0x60] sm:$0xf]
        %v4510 = vld [vmem:[#allocation2 + $0x64] sm:$0xf]
        %v4511 = vld [vmem:[#allocation2 + $0x68] sm:$0x1]
        %s4512 = scalar_lea.vmem %s3, 256
        %v4513 = vld [vmem:[%s4512] sm:$0xf]
        %v4514 = vld [vmem:[%s4512 + $0x4] sm:$0xf]
        %v4515 = vld [vmem:[%s4512 + $0x8] sm:$0xf]
        %v4516 = vld [vmem:[%s4512 + $0xc] sm:$0xf]
        %v4517 = vld [vmem:[%s4512 + $0x10] sm:$0xf]
        %v4518 = vld [vmem:[%s4512 + $0x14] sm:$0xf]
        %v4519 = vld [vmem:[%s4512 + $0x18] sm:$0xf]
        %v4520 = vld [vmem:[%s4512 + $0x1c] sm:$0xf]
        %v4521 = vld [vmem:[%s4512 + $0x20] sm:$0xf]
        %v4522 = vld [vmem:[%s4512 + $0x24] sm:$0xf]
        %v4523 = vld [vmem:[%s4512 + $0x28] sm:$0xf]
        %v4524 = vld [vmem:[%s4512 + $0x2c] sm:$0xf]
        %v4525 = vld [vmem:[%s4512 + $0x30] sm:$0xf]
        %v4526 = vld [vmem:[%s4512 + $0x34] sm:$0xf]
        %v4527 = vld [vmem:[%s4512 + $0x38] sm:$0xf]
        %v4528 = vld [vmem:[%s4512 + $0x3c] sm:$0xf]
        %v4554 = vunpack.c.l.b16 %v4487
        %v4555 = vunpack.c.l.b16 %v4488
        %v4556 = vunpack.c.l.b16 %v4489
        %v4557 = vunpack.c.l.b16 %v4490
        %v4558 = vunpack.c.l.b16 %v4491
        %v4559 = vunpack.c.l.b16 %v4492
        %v4560 = vunpack.c.l.b16 %v4493
        %v4561 = vunpack.c.l.b16 %v4494
        %v4562 = vunpack.c.l.b16 %v4495
        %v4563 = vunpack.c.l.b16 %v4496
        %v4564 = vunpack.c.l.b16 %v4497
        %v4565 = vunpack.c.l.b16 %v4498
        %v4566 = vunpack.c.l.b16 %v4499
        %v4567 = vunpack.c.l.b16 %v4500
        %v4568 = vunpack.c.l.b16 %v4501
        %v4569 = vunpack.c.l.b16 %v4502
        %v4570 = vunpack.c.l.b16 %v4503
        %v4571 = vunpack.c.l.b16 %v4504
        %v4572 = vunpack.c.l.b16 %v4505
        %v4573 = vunpack.c.l.b16 %v4506
        %v4574 = vunpack.c.l.b16 %v4507
        %v4575 = vunpack.c.l.b16 %v4508
        %v4576 = vunpack.c.l.b16 %v4509
        %v4577 = vunpack.c.l.b16 %v4510
        %v4578 = vunpack.c.l.b16 %v4511
        %v4579 = vpack.c.b16 %v4555, %v4554
        %v4580 = vpack.c.b16 %v4557, %v4556
        %v4581 = vpack.c.b16 %v4559, %v4558
        %v4582 = vpack.c.b16 %v4561, %v4560
        %v4583 = vpack.c.b16 %v4563, %v4562
        %v4584 = vpack.c.b16 %v4565, %v4564
        %v4585 = vpack.c.b16 %v4567, %v4566
        %v4586 = vpack.c.b16 %v4569, %v4568
        %v4587 = vpack.c.b16 %v4571, %v4570
        %v4588 = vpack.c.b16 %v4573, %v4572
        %v4589 = vpack.c.b16 %v4575, %v4574
        %v4590 = vpack.c.b16 %v4577, %v4576
        %v4591 = vpack.c.b16 %v4578, %v4578
        %v4593 = vshrl.u32 %v4579, 16
        %v4595 = vshll.u32 %v4579, 16
        %v4597 = vrot.slane %v4595, 1
        %v4598 = vor.u32 %v4593, %v4597
        %v4600 = vshll.u32 %v4580, 16
        %v4602 = vrot.slane %v4600, 1
        %v4603 = vsel %vm382, %v4598, %v4602
        %v4604 = vshrl.u32 %v4580, 16
        %v4606 = vor.u32 %v4604, %v4602
        %v4608 = vshll.u32 %v4581, 16
        %v4610 = vrot.slane %v4608, 1
        %v4611 = vsel %vm382, %v4606, %v4610
        %v4612 = vshrl.u32 %v4581, 16
        %v4614 = vor.u32 %v4612, %v4610
        %v4616 = vshll.u32 %v4582, 16
        %v4618 = vrot.slane %v4616, 1
        %v4619 = vsel %vm382, %v4614, %v4618
        %v4620 = vshrl.u32 %v4582, 16
        %v4622 = vor.u32 %v4620, %v4618
        %v4624 = vshll.u32 %v4583, 16
        %v4626 = vrot.slane %v4624, 1
        %v4627 = vsel %vm382, %v4622, %v4626
        %v4628 = vshrl.u32 %v4583, 16
        %v4630 = vor.u32 %v4628, %v4626
        %v4632 = vshll.u32 %v4584, 16
        %v4634 = vrot.slane %v4632, 1
        %v4635 = vsel %vm382, %v4630, %v4634
        %v4636 = vshrl.u32 %v4584, 16
        %v4638 = vor.u32 %v4636, %v4634
        %v4640 = vshll.u32 %v4585, 16
        %v4642 = vrot.slane %v4640, 1
        %v4643 = vsel %vm382, %v4638, %v4642
        %v4644 = vshrl.u32 %v4585, 16
        %v4646 = vor.u32 %v4644, %v4642
        %v4648 = vshll.u32 %v4586, 16
        %v4650 = vrot.slane %v4648, 1
        %v4651 = vsel %vm382, %v4646, %v4650
        %v4652 = vshrl.u32 %v4586, 16
        %v4654 = vor.u32 %v4652, %v4650
        %v4656 = vshll.u32 %v4587, 16
        %v4658 = vrot.slane %v4656, 1
        %v4659 = vsel %vm382, %v4654, %v4658
        %v4660 = vshrl.u32 %v4587, 16
        %v4662 = vor.u32 %v4660, %v4658
        %v4664 = vshll.u32 %v4588, 16
        %v4666 = vrot.slane %v4664, 1
        %v4667 = vsel %vm382, %v4662, %v4666
        %v4668 = vshrl.u32 %v4588, 16
        %v4670 = vor.u32 %v4668, %v4666
        %v4672 = vshll.u32 %v4589, 16
        %v4674 = vrot.slane %v4672, 1
        %v4675 = vsel %vm382, %v4670, %v4674
        %v4676 = vshrl.u32 %v4589, 16
        %v4678 = vor.u32 %v4676, %v4674
        %v4680 = vshll.u32 %v4590, 16
        %v4682 = vrot.slane %v4680, 1
        %v4683 = vsel %vm382, %v4678, %v4682
        %v4684 = vshrl.u32 %v4590, 16
        %v4686 = vor.u32 %v4684, %v4682
        %v4688 = vshll.u32 %v4591, 16
        %v4690 = vrot.slane %v4688, 1
        %v4691 = vsel %vm382, %v4686, %v4690
        %v4720 = vunpack.c.l.b16 %v4513
        %v4721 = vunpack.c.l.b16 %v4514
        %v4722 = vunpack.c.l.b16 %v4515
        %v4723 = vunpack.c.l.b16 %v4516
        %v4724 = vunpack.c.l.b16 %v4517
        %v4725 = vunpack.c.l.b16 %v4518
        %v4726 = vunpack.c.l.b16 %v4519
        %v4727 = vunpack.c.l.b16 %v4520
        %v4728 = vunpack.c.l.b16 %v4521
        %v4729 = vunpack.c.l.b16 %v4522
        %v4730 = vunpack.c.l.b16 %v4523
        %v4731 = vunpack.c.l.b16 %v4524
        %v4732 = vunpack.c.l.b16 %v4525
        %v4733 = vunpack.c.l.b16 %v4526
        %v4734 = vunpack.c.l.b16 %v4527
        %v4735 = vunpack.c.l.b16 %v4528
        %v4736 = vpack.c.b16 %v4721, %v4720
        %v4737 = vpack.c.b16 %v4723, %v4722
        %v4738 = vpack.c.b16 %v4725, %v4724
        %v4739 = vpack.c.b16 %v4727, %v4726
        %v4740 = vpack.c.b16 %v4729, %v4728
        %v4741 = vpack.c.b16 %v4731, %v4730
        %v4742 = vpack.c.b16 %v4733, %v4732
        %v4743 = vpack.c.b16 %v4735, %v4734
        %4752 = vmatprep.subr.bf16.mxu0 0
        %4753 = vmatpush1.bf16.msra.mxu0 %v4736
        %4754 = vmatprep.subr.bf16.mxu0 0
        %4755 = vmatpush1.bf16.msra.mxu0 %v4737
        %4756 = vmatprep.subr.bf16.mxu0 0
        %4757 = vmatpush1.bf16.msra.mxu0 %v4738
        %4758 = vmatprep.subr.bf16.mxu0 0
        %4759 = vmatpush1.bf16.msra.mxu0 %v4739
        %4760 = vmatprep.subr.bf16.mxu0 0
        %4761 = vmatpush1.bf16.msra.mxu0 %v4740
        %4762 = vmatprep.subr.bf16.mxu0 0
        %4763 = vmatpush1.bf16.msra.mxu0 %v4741
        %4764 = vmatprep.subr.bf16.mxu0 0
        %4765 = vmatpush1.bf16.msra.mxu0 %v4742
        %4766 = vmatprep.subr.bf16.mxu0 0
        %4767 = vmatpush1.bf16.msra.mxu0 %v4743
        %4768 = vmatprep.subr.bf16.mxu0 0
        %4769 = vmatpush1.bf16.msra.mxu0 0
        %4770 = vmatprep.subr.bf16.mxu0 0
        %4771 = vmatpush1.bf16.msra.mxu0 0
        %4772 = vmatprep.subr.bf16.mxu0 0
        %4773 = vmatpush1.bf16.msra.mxu0 0
        %4774 = vmatprep.subr.bf16.mxu0 0
        %4775 = vmatpush1.bf16.msra.mxu0 0
        %4776 = vmatprep.subr.bf16.mxu0 0
        %4777 = vmatpush1.bf16.msra.mxu0 0
        %4778 = vmatprep.subr.bf16.mxu0 0
        %4779 = vmatpush1.bf16.msra.mxu0 0
        %4780 = vmatprep.subr.bf16.mxu0 0
        %4781 = vmatpush1.bf16.msra.mxu0 0
        %4782 = vmatprep.subr.bf16.mxu0 0
        %4783 = vmatpush1.bf16.msra.mxu0 0
        %4784 = vmatprep.mubr.bf16.mxu0 0
        %4785 = vmatmul.mubr.bf16.gmra.mrb[0].mxu0 %v4603
        %v4786 = vpop.f32.mrb[0].mxu0
        %v4787 = vadd.f32 0.0, %v4786
        %v4788 = vpop.f32.mrb[0].mxu0
        %v4789 = vpop.f32.mrb[0].mxu0
        %v4790 = vadd.f32 0.0, %v4789
        %v4791 = vpop.f32.mrb[0].mxu0
        %4792 = vmatprep.mubr.bf16.mxu0 0
        %4793 = vmatmul.mubr.bf16.gmra.mrb[0].mxu0 %v4611
        %v4794 = vpop.f32.mrb[0].mxu0
        %v4795 = vadd.f32 0.0, %v4794
        %v4796 = vpop.f32.mrb[0].mxu0
        %v4797 = vpop.f32.mrb[0].mxu0
        %v4798 = vadd.f32 0.0, %v4797
        %v4799 = vpop.f32.mrb[0].mxu0
        %4800 = vmatprep.mubr.bf16.mxu0 0
        %4801 = vmatmul.mubr.bf16.gmra.mrb[0].mxu0 %v4619
        %v4802 = vpop.f32.mrb[0].mxu0
        %v4803 = vadd.f32 0.0, %v4802
        %v4804 = vpop.f32.mrb[0].mxu0
        %v4805 = vpop.f32.mrb[0].mxu0
        %v4806 = vadd.f32 0.0, %v4805
        %v4807 = vpop.f32.mrb[0].mxu0
        %4808 = vmatprep.mubr.bf16.mxu0 0
        %4809 = vmatmul.mubr.bf16.gmra.mrb[0].mxu0 %v4627
        %v4810 = vpop.f32.mrb[0].mxu0
        %v4811 = vadd.f32 0.0, %v4810
        %v4812 = vpop.f32.mrb[0].mxu0
        %v4813 = vpop.f32.mrb[0].mxu0
        %v4814 = vadd.f32 0.0, %v4813
        %v4815 = vpop.f32.mrb[0].mxu0
        %4816 = vmatprep.mubr.bf16.mxu0 0
        %4817 = vmatmul.mubr.bf16.gmra.mrb[0].mxu0 %v4635
        %v4818 = vpop.f32.mrb[0].mxu0
        %v4819 = vadd.f32 0.0, %v4818
        %v4820 = vpop.f32.mrb[0].mxu0
        %v4821 = vpop.f32.mrb[0].mxu0
        %v4822 = vadd.f32 0.0, %v4821
        %v4823 = vpop.f32.mrb[0].mxu0
        %4824 = vmatprep.mubr.bf16.mxu0 0
        %4825 = vmatmul.mubr.bf16.gmra.mrb[0].mxu0 %v4643
        %v4826 = vpop.f32.mrb[0].mxu0
        %v4827 = vadd.f32 0.0, %v4826
        %v4828 = vpop.f32.mrb[0].mxu0
        %v4829 = vpop.f32.mrb[0].mxu0
        %v4830 = vadd.f32 0.0, %v4829
        %v4831 = vpop.f32.mrb[0].mxu0
        %4832 = vmatprep.mubr.bf16.mxu0 0
        %4833 = vmatmul.mubr.bf16.gmra.mrb[0].mxu0 %v4651
        %v4834 = vpop.f32.mrb[0].mxu0
        %v4835 = vadd.f32 0.0, %v4834
        %v4836 = vpop.f32.mrb[0].mxu0
        %v4837 = vpop.f32.mrb[0].mxu0
        %v4838 = vadd.f32 0.0, %v4837
        %v4839 = vpop.f32.mrb[0].mxu0
        %4840 = vmatprep.mubr.bf16.mxu0 0
        %4841 = vmatmul.mubr.bf16.gmra.mrb[0].mxu0 %v4659
        %v4842 = vpop.f32.mrb[0].mxu0
        %v4843 = vadd.f32 0.0, %v4842
        %v4844 = vpop.f32.mrb[0].mxu0
        %v4845 = vpop.f32.mrb[0].mxu0
        %v4846 = vadd.f32 0.0, %v4845
        %v4847 = vpop.f32.mrb[0].mxu0
        %4848 = vmatprep.mubr.bf16.mxu0 0
        %4849 = vmatmul.mubr.bf16.gmra.mrb[0].mxu0 %v4667
        %v4850 = vpop.f32.mrb[0].mxu0
        %v4851 = vadd.f32 0.0, %v4850
        %v4852 = vpop.f32.mrb[0].mxu0
        %v4853 = vpop.f32.mrb[0].mxu0
        %v4854 = vadd.f32 0.0, %v4853
        %v4855 = vpop.f32.mrb[0].mxu0
        %4856 = vmatprep.mubr.bf16.mxu0 0
        %4857 = vmatmul.mubr.bf16.gmra.mrb[0].mxu0 %v4675
        %v4858 = vpop.f32.mrb[0].mxu0
        %v4859 = vadd.f32 0.0, %v4858
        %v4860 = vpop.f32.mrb[0].mxu0
        %v4861 = vpop.f32.mrb[0].mxu0
        %v4862 = vadd.f32 0.0, %v4861
        %v4863 = vpop.f32.mrb[0].mxu0
        %4864 = vmatprep.mubr.bf16.mxu0 0
        %4865 = vmatmul.mubr.bf16.gmra.mrb[0].mxu0 %v4683
        %v4866 = vpop.f32.mrb[0].mxu0
        %v4867 = vadd.f32 0.0, %v4866
        %v4868 = vpop.f32.mrb[0].mxu0
        %v4869 = vpop.f32.mrb[0].mxu0
        %v4870 = vadd.f32 0.0, %v4869
        %v4871 = vpop.f32.mrb[0].mxu0
        %4872 = vmatprep.mubr.bf16.mxu0 0
        %4873 = vmatmul.mubr.bf16.gmra.mrb[0].mxu0 %v4691
        %v4874 = vpop.f32.mrb[0].mxu0
        %v4875 = vadd.f32 0.0, %v4874
        %v4876 = vpop.f32.mrb[0].mxu0
        %v4877 = vpop.f32.mrb[0].mxu0
        %v4878 = vadd.f32 0.0, %v4877
        %v4879 = vpop.f32.mrb[0].mxu0
        %4880 = vdwg.mxu0
        %v4881 = vadd.f32 %v4463, %v4787
        %v4882 = vadd.f32 %v4464, %v4790
        %v4883 = vadd.f32 %v4465, %v4795
        %v4884 = vadd.f32 %v4466, %v4798
        %v4885 = vadd.f32 %v4467, %v4803
        %v4886 = vadd.f32 %v4468, %v4806
        %v4887 = vadd.f32 %v4469, %v4811
        %v4888 = vadd.f32 %v4470, %v4814
        %v4889 = vadd.f32 %v4471, %v4819
        %v4890 = vadd.f32 %v4472, %v4822
        %v4891 = vadd.f32 %v4473, %v4827
        %v4892 = vadd.f32 %v4474, %v4830
        %v4893 = vadd.f32 %v4475, %v4835
        %v4894 = vadd.f32 %v4476, %v4838
        %v4895 = vadd.f32 %v4477, %v4843
        %v4896 = vadd.f32 %v4478, %v4846
        %v4897 = vadd.f32 %v4479, %v4851
        %v4898 = vadd.f32 %v4480, %v4854
        %v4899 = vadd.f32 %v4481, %v4859
        %v4900 = vadd.f32 %v4482, %v4862
        %v4901 = vadd.f32 %v4483, %v4867
        %v4902 = vadd.f32 %v4484, %v4870
        %v4903 = vadd.f32 %v4485, %v4875
        %v4904 = vadd.f32 %v4486, %v4878
        %v4905 = vld [vmem:[#allocation2 + $0x8] sm:$0xe]
        %s4906 = scalar_lea.vmem %s3, 320
        %v4907 = vld [vmem:[%s4906] sm:$0xf]
        %v4908 = vld [vmem:[%s4906 + $0x4] sm:$0xf]
        %v4909 = vld [vmem:[%s4906 + $0x8] sm:$0xf]
        %v4910 = vld [vmem:[%s4906 + $0xc] sm:$0xf]
        %v4911 = vld [vmem:[%s4906 + $0x10] sm:$0xf]
        %v4912 = vld [vmem:[%s4906 + $0x14] sm:$0xf]
        %v4913 = vld [vmem:[%s4906 + $0x18] sm:$0xf]
        %v4914 = vld [vmem:[%s4906 + $0x1c] sm:$0xf]
        %v4915 = vld [vmem:[%s4906 + $0x20] sm:$0xf]
        %v4916 = vld [vmem:[%s4906 + $0x24] sm:$0xf]
        %v4917 = vld [vmem:[%s4906 + $0x28] sm:$0xf]
        %v4918 = vld [vmem:[%s4906 + $0x2c] sm:$0xf]
        %v4919 = vld [vmem:[%s4906 + $0x30] sm:$0xf]
        %v4920 = vld [vmem:[%s4906 + $0x34] sm:$0xf]
        %v4921 = vld [vmem:[%s4906 + $0x38] sm:$0xf]
        %v4922 = vld [vmem:[%s4906 + $0x3c] sm:$0xf]
        %v4924 = vunpack.c.l.b16 %v4905
        %v4925 = vpack.c.b16 %v4555, %v4924
        %v4926 = vrot.slane %v4925, 1
        %v4927 = vrot.slane %v4580, 1
        %v4928 = vsel %vm873, %v4926, %v4927
        %v4929 = vrot.slane %v4581, 1
        %v4930 = vsel %vm873, %v4927, %v4929
        %v4931 = vrot.slane %v4582, 1
        %v4932 = vsel %vm873, %v4929, %v4931
        %v4933 = vrot.slane %v4583, 1
        %v4934 = vsel %vm873, %v4931, %v4933
        %v4935 = vrot.slane %v4584, 1
        %v4936 = vsel %vm873, %v4933, %v4935
        %v4937 = vrot.slane %v4585, 1
        %v4938 = vsel %vm873, %v4935, %v4937
        %v4939 = vrot.slane %v4586, 1
        %v4940 = vsel %vm873, %v4937, %v4939
        %v4941 = vrot.slane %v4587, 1
        %v4942 = vsel %vm873, %v4939, %v4941
        %v4943 = vrot.slane %v4588, 1
        %v4944 = vsel %vm873, %v4941, %v4943
        %v4945 = vrot.slane %v4589, 1
        %v4946 = vsel %vm873, %v4943, %v4945
        %v4947 = vrot.slane %v4590, 1
        %v4948 = vsel %vm873, %v4945, %v4947
        %v4949 = vrot.slane %v4591, 1
        %v4950 = vsel %vm873, %v4947, %v4949
        %v4979 = vunpack.c.l.b16 %v4907
        %v4980 = vunpack.c.l.b16 %v4908
        %v4981 = vunpack.c.l.b16 %v4909
        %v4982 = vunpack.c.l.b16 %v4910
        %v4983 = vunpack.c.l.b16 %v4911
        %v4984 = vunpack.c.l.b16 %v4912
        %v4985 = vunpack.c.l.b16 %v4913
        %v4986 = vunpack.c.l.b16 %v4914
        %v4987 = vunpack.c.l.b16 %v4915
        %v4988 = vunpack.c.l.b16 %v4916
        %v4989 = vunpack.c.l.b16 %v4917
        %v4990 = vunpack.c.l.b16 %v4918
        %v4991 = vunpack.c.l.b16 %v4919
        %v4992 = vunpack.c.l.b16 %v4920
        %v4993 = vunpack.c.l.b16 %v4921
        %v4994 = vunpack.c.l.b16 %v4922
        %v4995 = vpack.c.b16 %v4980, %v4979
        %v4996 = vpack.c.b16 %v4982, %v4981
        %v4997 = vpack.c.b16 %v4984, %v4983
        %v4998 = vpack.c.b16 %v4986, %v4985
        %v4999 = vpack.c.b16 %v4988, %v4987
        %v5000 = vpack.c.b16 %v4990, %v4989
        %v5001 = vpack.c.b16 %v4992, %v4991
        %v5002 = vpack.c.b16 %v4994, %v4993
        %5011 = vmatprep.subr.bf16.mxu0 0
        %5012 = vmatpush1.bf16.msra.mxu0 %v4995
        %5013 = vmatprep.subr.bf16.mxu0 0
        %5014 = vmatpush1.bf16.msra.mxu0 %v4996
        %5015 = vmatprep.subr.bf16.mxu0 0
        %5016 = vmatpush1.bf16.msra.mxu0 %v4997
        %5017 = vmatprep.subr.bf16.mxu0 0
        %5018 = vmatpush1.bf16.msra.mxu0 %v4998
        %5019 = vmatprep.subr.bf16.mxu0 0
        %5020 = vmatpush1.bf16.msra.mxu0 %v4999
        %5021 = vmatprep.subr.bf16.mxu0 0
        %5022 = vmatpush1.bf16.msra.mxu0 %v5000
        %5023 = vmatprep.subr.bf16.mxu0 0
        %5024 = vmatpush1.bf16.msra.mxu0 %v5001
        %5025 = vmatprep.subr.bf16.mxu0 0
        %5026 = vmatpush1.bf16.msra.mxu0 %v5002
        %5027 = vmatprep.subr.bf16.mxu0 0
        %5028 = vmatpush1.bf16.msra.mxu0 0
        %5029 = vmatprep.subr.bf16.mxu0 0
        %5030 = vmatpush1.bf16.msra.mxu0 0
        %5031 = vmatprep.subr.bf16.mxu0 0
        %5032 = vmatpush1.bf16.msra.mxu0 0
        %5033 = vmatprep.subr.bf16.mxu0 0
        %5034 = vmatpush1.bf16.msra.mxu0 0
        %5035 = vmatprep.subr.bf16.mxu0 0
        %5036 = vmatpush1.bf16.msra.mxu0 0
        %5037 = vmatprep.subr.bf16.mxu0 0
        %5038 = vmatpush1.bf16.msra.mxu0 0
        %5039 = vmatprep.subr.bf16.mxu0 0
        %5040 = vmatpush1.bf16.msra.mxu0 0
        %5041 = vmatprep.subr.bf16.mxu0 0
        %5042 = vmatpush1.bf16.msra.mxu0 0
        %5043 = vmatprep.mubr.bf16.mxu0 0
        %5044 = vmatmul.mubr.bf16.gmra.mrb[0].mxu0 %v4928
        %v5045 = vpop.f32.mrb[0].mxu0
        %v5046 = vadd.f32 0.0, %v5045
        %v5047 = vpop.f32.mrb[0].mxu0
        %v5048 = vpop.f32.mrb[0].mxu0
        %v5049 = vadd.f32 0.0, %v5048
        %v5050 = vpop.f32.mrb[0].mxu0
        %5051 = vmatprep.mubr.bf16.mxu0 0
        %5052 = vmatmul.mubr.bf16.gmra.mrb[0].mxu0 %v4930
        %v5053 = vpop.f32.mrb[0].mxu0
        %v5054 = vadd.f32 0.0, %v5053
        %v5055 = vpop.f32.mrb[0].mxu0
        %v5056 = vpop.f32.mrb[0].mxu0
        %v5057 = vadd.f32 0.0, %v5056
        %v5058 = vpop.f32.mrb[0].mxu0
        %5059 = vmatprep.mubr.bf16.mxu0 0
        %5060 = vmatmul.mubr.bf16.gmra.mrb[0].mxu0 %v4932
        %v5061 = vpop.f32.mrb[0].mxu0
        %v5062 = vadd.f32 0.0, %v5061
        %v5063 = vpop.f32.mrb[0].mxu0
        %v5064 = vpop.f32.mrb[0].mxu0
        %v5065 = vadd.f32 0.0, %v5064
        %v5066 = vpop.f32.mrb[0].mxu0
        %5067 = vmatprep.mubr.bf16.mxu0 0
        %5068 = vmatmul.mubr.bf16.gmra.mrb[0].mxu0 %v4934
        %v5069 = vpop.f32.mrb[0].mxu0
        %v5070 = vadd.f32 0.0, %v5069
        %v5071 = vpop.f32.mrb[0].mxu0
        %v5072 = vpop.f32.mrb[0].mxu0
        %v5073 = vadd.f32 0.0, %v5072
        %v5074 = vpop.f32.mrb[0].mxu0
        %5075 = vmatprep.mubr.bf16.mxu0 0
        %5076 = vmatmul.mubr.bf16.gmra.mrb[0].mxu0 %v4936
        %v5077 = vpop.f32.mrb[0].mxu0
        %v5078 = vadd.f32 0.0, %v5077
        %v5079 = vpop.f32.mrb[0].mxu0
        %v5080 = vpop.f32.mrb[0].mxu0
        %v5081 = vadd.f32 0.0, %v5080
        %v5082 = vpop.f32.mrb[0].mxu0
        %5083 = vmatprep.mubr.bf16.mxu0 0
        %5084 = vmatmul.mubr.bf16.gmra.mrb[0].mxu0 %v4938
        %v5085 = vpop.f32.mrb[0].mxu0
        %v5086 = vadd.f32 0.0, %v5085
        %v5087 = vpop.f32.mrb[0].mxu0
        %v5088 = vpop.f32.mrb[0].mxu0
        %v5089 = vadd.f32 0.0, %v5088
        %v5090 = vpop.f32.mrb[0].mxu0
        %5091 = vmatprep.mubr.bf16.mxu0 0
        %5092 = vmatmul.mubr.bf16.gmra.mrb[0].mxu0 %v4940
        %v5093 = vpop.f32.mrb[0].mxu0
        %v5094 = vadd.f32 0.0, %v5093
        %v5095 = vpop.f32.mrb[0].mxu0
        %v5096 = vpop.f32.mrb[0].mxu0
        %v5097 = vadd.f32 0.0, %v5096
        %v5098 = vpop.f32.mrb[0].mxu0
        %5099 = vmatprep.mubr.bf16.mxu0 0
        %5100 = vmatmul.mubr.bf16.gmra.mrb[0].mxu0 %v4942
        %v5101 = vpop.f32.mrb[0].mxu0
        %v5102 = vadd.f32 0.0, %v5101
        %v5103 = vpop.f32.mrb[0].mxu0
        %v5104 = vpop.f32.mrb[0].mxu0
        %v5105 = vadd.f32 0.0, %v5104
        %v5106 = vpop.f32.mrb[0].mxu0
        %5107 = vmatprep.mubr.bf16.mxu0 0
        %5108 = vmatmul.mubr.bf16.gmra.mrb[0].mxu0 %v4944
        %v5109 = vpop.f32.mrb[0].mxu0
        %v5110 = vadd.f32 0.0, %v5109
        %v5111 = vpop.f32.mrb[0].mxu0
        %v5112 = vpop.f32.mrb[0].mxu0
        %v5113 = vadd.f32 0.0, %v5112
        %v5114 = vpop.f32.mrb[0].mxu0
        %5115 = vmatprep.mubr.bf16.mxu0 0
        %5116 = vmatmul.mubr.bf16.gmra.mrb[0].mxu0 %v4946
        %v5117 = vpop.f32.mrb[0].mxu0
        %v5118 = vadd.f32 0.0, %v5117
        %v5119 = vpop.f32.mrb[0].mxu0
        %v5120 = vpop.f32.mrb[0].mxu0
        %v5121 = vadd.f32 0.0, %v5120
        %v5122 = vpop.f32.mrb[0].mxu0
        %5123 = vmatprep.mubr.bf16.mxu0 0
        %5124 = vmatmul.mubr.bf16.gmra.mrb[0].mxu0 %v4948
        %v5125 = vpop.f32.mrb[0].mxu0
        %v5126 = vadd.f32 0.0, %v5125
        %v5127 = vpop.f32.mrb[0].mxu0
        %v5128 = vpop.f32.mrb[0].mxu0
        %v5129 = vadd.f32 0.0, %v5128
        %v5130 = vpop.f32.mrb[0].mxu0
        %5131 = vmatprep.mubr.bf16.mxu0 0
        %5132 = vmatmul.mubr.bf16.gmra.mrb[0].mxu0 %v4950
        %v5133 = vpop.f32.mrb[0].mxu0
        %v5134 = vadd.f32 0.0, %v5133
        %v5135 = vpop.f32.mrb[0].mxu0
        %v5136 = vpop.f32.mrb[0].mxu0
        %v5137 = vadd.f32 0.0, %v5136
        %v5138 = vpop.f32.mrb[0].mxu0
        %5139 = vdwg.mxu0
        %v5140 = vadd.f32 %v4881, %v5046
        %v5141 = vadd.f32 %v4882, %v5049
        %v5142 = vadd.f32 %v4883, %v5054
        %v5143 = vadd.f32 %v4884, %v5057
        %v5144 = vadd.f32 %v4885, %v5062
        %v5145 = vadd.f32 %v4886, %v5065
        %v5146 = vadd.f32 %v4887, %v5070
        %v5147 = vadd.f32 %v4888, %v5073
        %v5148 = vadd.f32 %v4889, %v5078
        %v5149 = vadd.f32 %v4890, %v5081
        %v5150 = vadd.f32 %v4891, %v5086
        %v5151 = vadd.f32 %v4892, %v5089
        %v5152 = vadd.f32 %v4893, %v5094
        %v5153 = vadd.f32 %v4894, %v5097
        %v5154 = vadd.f32 %v4895, %v5102
        %v5155 = vadd.f32 %v4896, %v5105
        %v5156 = vadd.f32 %v4897, %v5110
        %v5157 = vadd.f32 %v4898, %v5113
        %v5158 = vadd.f32 %v4899, %v5118
        %v5159 = vadd.f32 %v4900, %v5121
        %v5160 = vadd.f32 %v4901, %v5126
        %v5161 = vadd.f32 %v4902, %v5129
        %v5162 = vadd.f32 %v4903, %v5134
        %v5163 = vadd.f32 %v4904, %v5137
        %v5164 = vld [vmem:[#allocation2 + $0x10] sm:$0xf]
        %v5165 = vld [vmem:[#allocation2 + $0x14] sm:$0xf]
        %v5166 = vld [vmem:[#allocation2 + $0x18] sm:$0xf]
        %v5167 = vld [vmem:[#allocation2 + $0x1c] sm:$0xf]
        %v5168 = vld [vmem:[#allocation2 + $0x20] sm:$0xf]
        %v5169 = vld [vmem:[#allocation2 + $0x24] sm:$0xf]
        %v5170 = vld [vmem:[#allocation2 + $0x28] sm:$0xf]
        %v5171 = vld [vmem:[#allocation2 + $0x2c] sm:$0xf]
        %v5172 = vld [vmem:[#allocation2 + $0x30] sm:$0xf]
        %v5173 = vld [vmem:[#allocation2 + $0x34] sm:$0xf]
        %v5174 = vld [vmem:[#allocation2 + $0x38] sm:$0xf]
        %v5175 = vld [vmem:[#allocation2 + $0x3c] sm:$0xf]
        %v5176 = vld [vmem:[#allocation2 + $0x40] sm:$0xf]
        %v5177 = vld [vmem:[#allocation2 + $0x44] sm:$0xf]
        %v5178 = vld [vmem:[#allocation2 + $0x48] sm:$0xf]
        %v5179 = vld [vmem:[#allocation2 + $0x4c] sm:$0xf]
        %v5180 = vld [vmem:[#allocation2 + $0x50] sm:$0xf]
        %v5181 = vld [vmem:[#allocation2 + $0x54] sm:$0xf]
        %v5182 = vld [vmem:[#allocation2 + $0x58] sm:$0xf]
        %v5183 = vld [vmem:[#allocation2 + $0x5c] sm:$0xf]
        %v5184 = vld [vmem:[#allocation2 + $0x60] sm:$0xf]
        %v5185 = vld [vmem:[#allocation2 + $0x64] sm:$0xf]
        %v5186 = vld [vmem:[#allocation2 + $0x68] sm:$0xf]
        %v5187 = vld [vmem:[#allocation2 + $0x6c] sm:$0xf]
        %s5188 = scalar_lea.vmem %s3, 384
        %v5189 = vld [vmem:[%s5188] sm:$0xf]
        %v5190 = vld [vmem:[%s5188 + $0x4] sm:$0xf]
        %v5191 = vld [vmem:[%s5188 + $0x8] sm:$0xf]
        %v5192 = vld [vmem:[%s5188 + $0xc] sm:$0xf]
        %v5193 = vld [vmem:[%s5188 + $0x10] sm:$0xf]
        %v5194 = vld [vmem:[%s5188 + $0x14] sm:$0xf]
        %v5195 = vld [vmem:[%s5188 + $0x18] sm:$0xf]
        %v5196 = vld [vmem:[%s5188 + $0x1c] sm:$0xf]
        %v5197 = vld [vmem:[%s5188 + $0x20] sm:$0xf]
        %v5198 = vld [vmem:[%s5188 + $0x24] sm:$0xf]
        %v5199 = vld [vmem:[%s5188 + $0x28] sm:$0xf]
        %v5200 = vld [vmem:[%s5188 + $0x2c] sm:$0xf]
        %v5201 = vld [vmem:[%s5188 + $0x30] sm:$0xf]
        %v5202 = vld [vmem:[%s5188 + $0x34] sm:$0xf]
        %v5203 = vld [vmem:[%s5188 + $0x38] sm:$0xf]
        %v5204 = vld [vmem:[%s5188 + $0x3c] sm:$0xf]
        %v5229 = vunpack.c.l.b16 %v5164
        %v5230 = vunpack.c.l.b16 %v5165
        %v5231 = vunpack.c.l.b16 %v5166
        %v5232 = vunpack.c.l.b16 %v5167
        %v5233 = vunpack.c.l.b16 %v5168
        %v5234 = vunpack.c.l.b16 %v5169
        %v5235 = vunpack.c.l.b16 %v5170
        %v5236 = vunpack.c.l.b16 %v5171
        %v5237 = vunpack.c.l.b16 %v5172
        %v5238 = vunpack.c.l.b16 %v5173
        %v5239 = vunpack.c.l.b16 %v5174
        %v5240 = vunpack.c.l.b16 %v5175
        %v5241 = vunpack.c.l.b16 %v5176
        %v5242 = vunpack.c.l.b16 %v5177
        %v5243 = vunpack.c.l.b16 %v5178
        %v5244 = vunpack.c.l.b16 %v5179
        %v5245 = vunpack.c.l.b16 %v5180
        %v5246 = vunpack.c.l.b16 %v5181
        %v5247 = vunpack.c.l.b16 %v5182
        %v5248 = vunpack.c.l.b16 %v5183
        %v5249 = vunpack.c.l.b16 %v5184
        %v5250 = vunpack.c.l.b16 %v5185
        %v5251 = vunpack.c.l.b16 %v5186
        %v5252 = vunpack.c.l.b16 %v5187
        %v5253 = vpack.c.b16 %v5230, %v5229
        %v5254 = vpack.c.b16 %v5232, %v5231
        %v5255 = vpack.c.b16 %v5234, %v5233
        %v5256 = vpack.c.b16 %v5236, %v5235
        %v5257 = vpack.c.b16 %v5238, %v5237
        %v5258 = vpack.c.b16 %v5240, %v5239
        %v5259 = vpack.c.b16 %v5242, %v5241
        %v5260 = vpack.c.b16 %v5244, %v5243
        %v5261 = vpack.c.b16 %v5246, %v5245
        %v5262 = vpack.c.b16 %v5248, %v5247
        %v5263 = vpack.c.b16 %v5250, %v5249
        %v5264 = vpack.c.b16 %v5252, %v5251
        %v5293 = vunpack.c.l.b16 %v5189
        %v5294 = vunpack.c.l.b16 %v5190
        %v5295 = vunpack.c.l.b16 %v5191
        %v5296 = vunpack.c.l.b16 %v5192
        %v5297 = vunpack.c.l.b16 %v5193
        %v5298 = vunpack.c.l.b16 %v5194
        %v5299 = vunpack.c.l.b16 %v5195
        %v5300 = vunpack.c.l.b16 %v5196
        %v5301 = vunpack.c.l.b16 %v5197
        %v5302 = vunpack.c.l.b16 %v5198
        %v5303 = vunpack.c.l.b16 %v5199
        %v5304 = vunpack.c.l.b16 %v5200
        %v5305 = vunpack.c.l.b16 %v5201
        %v5306 = vunpack.c.l.b16 %v5202
        %v5307 = vunpack.c.l.b16 %v5203
        %v5308 = vunpack.c.l.b16 %v5204
        %v5309 = vpack.c.b16 %v5294, %v5293
        %v5310 = vpack.c.b16 %v5296, %v5295
        %v5311 = vpack.c.b16 %v5298, %v5297
        %v5312 = vpack.c.b16 %v5300, %v5299
        %v5313 = vpack.c.b16 %v5302, %v5301
        %v5314 = vpack.c.b16 %v5304, %v5303
        %v5315 = vpack.c.b16 %v5306, %v5305
        %v5316 = vpack.c.b16 %v5308, %v5307
        %5325 = vmatprep.subr.bf16.mxu0 0
        %5326 = vmatpush1.bf16.msra.mxu0 %v5309
        %5327 = vmatprep.subr.bf16.mxu0 0
        %5328 = vmatpush1.bf16.msra.mxu0 %v5310
        %5329 = vmatprep.subr.bf16.mxu0 0
        %5330 = vmatpush1.bf16.msra.mxu0 %v5311
        %5331 = vmatprep.subr.bf16.mxu0 0
        %5332 = vmatpush1.bf16.msra.mxu0 %v5312
        %5333 = vmatprep.subr.bf16.mxu0 0
        %5334 = vmatpush1.bf16.msra.mxu0 %v5313
        %5335 = vmatprep.subr.bf16.mxu0 0
        %5336 = vmatpush1.bf16.msra.mxu0 %v5314
        %5337 = vmatprep.subr.bf16.mxu0 0
        %5338 = vmatpush1.bf16.msra.mxu0 %v5315
        %5339 = vmatprep.subr.bf16.mxu0 0
        %5340 = vmatpush1.bf16.msra.mxu0 %v5316
        %5341 = vmatprep.subr.bf16.mxu0 0
        %5342 = vmatpush1.bf16.msra.mxu0 0
        %5343 = vmatprep.subr.bf16.mxu0 0
        %5344 = vmatpush1.bf16.msra.mxu0 0
        %5345 = vmatprep.subr.bf16.mxu0 0
        %5346 = vmatpush1.bf16.msra.mxu0 0
        %5347 = vmatprep.subr.bf16.mxu0 0
        %5348 = vmatpush1.bf16.msra.mxu0 0
        %5349 = vmatprep.subr.bf16.mxu0 0
        %5350 = vmatpush1.bf16.msra.mxu0 0
        %5351 = vmatprep.subr.bf16.mxu0 0
        %5352 = vmatpush1.bf16.msra.mxu0 0
        %5353 = vmatprep.subr.bf16.mxu0 0
        %5354 = vmatpush1.bf16.msra.mxu0 0
        %5355 = vmatprep.subr.bf16.mxu0 0
        %5356 = vmatpush1.bf16.msra.mxu0 0
        %5357 = vmatprep.mubr.bf16.mxu0 0
        %5358 = vmatmul.mubr.bf16.gmra.mrb[0].mxu0 %v5253
        %v5359 = vpop.f32.mrb[0].mxu0
        %v5360 = vadd.f32 0.0, %v5359
        %v5361 = vpop.f32.mrb[0].mxu0
        %v5362 = vpop.f32.mrb[0].mxu0
        %v5363 = vadd.f32 0.0, %v5362
        %v5364 = vpop.f32.mrb[0].mxu0
        %5365 = vmatprep.mubr.bf16.mxu0 0
        %5366 = vmatmul.mubr.bf16.gmra.mrb[0].mxu0 %v5254
        %v5367 = vpop.f32.mrb[0].mxu0
        %v5368 = vadd.f32 0.0, %v5367
        %v5369 = vpop.f32.mrb[0].mxu0
        %v5370 = vpop.f32.mrb[0].mxu0
        %v5371 = vadd.f32 0.0, %v5370
        %v5372 = vpop.f32.mrb[0].mxu0
        %5373 = vmatprep.mubr.bf16.mxu0 0
        %5374 = vmatmul.mubr.bf16.gmra.mrb[0].mxu0 %v5255
        %v5375 = vpop.f32.mrb[0].mxu0
        %v5376 = vadd.f32 0.0, %v5375
        %v5377 = vpop.f32.mrb[0].mxu0
        %v5378 = vpop.f32.mrb[0].mxu0
        %v5379 = vadd.f32 0.0, %v5378
        %v5380 = vpop.f32.mrb[0].mxu0
        %5381 = vmatprep.mubr.bf16.mxu0 0
        %5382 = vmatmul.mubr.bf16.gmra.mrb[0].mxu0 %v5256
        %v5383 = vpop.f32.mrb[0].mxu0
        %v5384 = vadd.f32 0.0, %v5383
        %v5385 = vpop.f32.mrb[0].mxu0
        %v5386 = vpop.f32.mrb[0].mxu0
        %v5387 = vadd.f32 0.0, %v5386
        %v5388 = vpop.f32.mrb[0].mxu0
        %5389 = vmatprep.mubr.bf16.mxu0 0
        %5390 = vmatmul.mubr.bf16.gmra.mrb[0].mxu0 %v5257
        %v5391 = vpop.f32.mrb[0].mxu0
        %v5392 = vadd.f32 0.0, %v5391
        %v5393 = vpop.f32.mrb[0].mxu0
        %v5394 = vpop.f32.mrb[0].mxu0
        %v5395 = vadd.f32 0.0, %v5394
        %v5396 = vpop.f32.mrb[0].mxu0
        %5397 = vmatprep.mubr.bf16.mxu0 0
        %5398 = vmatmul.mubr.bf16.gmra.mrb[0].mxu0 %v5258
        %v5399 = vpop.f32.mrb[0].mxu0
        %v5400 = vadd.f32 0.0, %v5399
        %v5401 = vpop.f32.mrb[0].mxu0
        %v5402 = vpop.f32.mrb[0].mxu0
        %v5403 = vadd.f32 0.0, %v5402
        %v5404 = vpop.f32.mrb[0].mxu0
        %5405 = vmatprep.mubr.bf16.mxu0 0
        %5406 = vmatmul.mubr.bf16.gmra.mrb[0].mxu0 %v5259
        %v5407 = vpop.f32.mrb[0].mxu0
        %v5408 = vadd.f32 0.0, %v5407
        %v5409 = vpop.f32.mrb[0].mxu0
        %v5410 = vpop.f32.mrb[0].mxu0
        %v5411 = vadd.f32 0.0, %v5410
        %v5412 = vpop.f32.mrb[0].mxu0
        %5413 = vmatprep.mubr.bf16.mxu0 0
        %5414 = vmatmul.mubr.bf16.gmra.mrb[0].mxu0 %v5260
        %v5415 = vpop.f32.mrb[0].mxu0
        %v5416 = vadd.f32 0.0, %v5415
        %v5417 = vpop.f32.mrb[0].mxu0
        %v5418 = vpop.f32.mrb[0].mxu0
        %v5419 = vadd.f32 0.0, %v5418
        %v5420 = vpop.f32.mrb[0].mxu0
        %5421 = vmatprep.mubr.bf16.mxu0 0
        %5422 = vmatmul.mubr.bf16.gmra.mrb[0].mxu0 %v5261
        %v5423 = vpop.f32.mrb[0].mxu0
        %v5424 = vadd.f32 0.0, %v5423
        %v5425 = vpop.f32.mrb[0].mxu0
        %v5426 = vpop.f32.mrb[0].mxu0
        %v5427 = vadd.f32 0.0, %v5426
        %v5428 = vpop.f32.mrb[0].mxu0
        %5429 = vmatprep.mubr.bf16.mxu0 0
        %5430 = vmatmul.mubr.bf16.gmra.mrb[0].mxu0 %v5262
        %v5431 = vpop.f32.mrb[0].mxu0
        %v5432 = vadd.f32 0.0, %v5431
        %v5433 = vpop.f32.mrb[0].mxu0
        %v5434 = vpop.f32.mrb[0].mxu0
        %v5435 = vadd.f32 0.0, %v5434
        %v5436 = vpop.f32.mrb[0].mxu0
        %5437 = vmatprep.mubr.bf16.mxu0 0
        %5438 = vmatmul.mubr.bf16.gmra.mrb[0].mxu0 %v5263
        %v5439 = vpop.f32.mrb[0].mxu0
        %v5440 = vadd.f32 0.0, %v5439
        %v5441 = vpop.f32.mrb[0].mxu0
        %v5442 = vpop.f32.mrb[0].mxu0
        %v5443 = vadd.f32 0.0, %v5442
        %v5444 = vpop.f32.mrb[0].mxu0
        %5445 = vmatprep.mubr.bf16.mxu0 0
        %5446 = vmatmul.mubr.bf16.gmra.mrb[0].mxu0 %v5264
        %v5447 = vpop.f32.mrb[0].mxu0
        %v5448 = vadd.f32 0.0, %v5447
        %v5449 = vpop.f32.mrb[0].mxu0
        %v5450 = vpop.f32.mrb[0].mxu0
        %v5451 = vadd.f32 0.0, %v5450
        %v5452 = vpop.f32.mrb[0].mxu0
        %5453 = vdwg.mxu0
        %v5454 = vadd.f32 %v5140, %v5360
        %v5455 = vadd.f32 %v5141, %v5363
        %v5456 = vadd.f32 %v5142, %v5368
        %v5457 = vadd.f32 %v5143, %v5371
        %v5458 = vadd.f32 %v5144, %v5376
        %v5459 = vadd.f32 %v5145, %v5379
        %v5460 = vadd.f32 %v5146, %v5384
        %v5461 = vadd.f32 %v5147, %v5387
        %v5462 = vadd.f32 %v5148, %v5392
        %v5463 = vadd.f32 %v5149, %v5395
        %v5464 = vadd.f32 %v5150, %v5400
        %v5465 = vadd.f32 %v5151, %v5403
        %v5466 = vadd.f32 %v5152, %v5408
        %v5467 = vadd.f32 %v5153, %v5411
        %v5468 = vadd.f32 %v5154, %v5416
        %v5469 = vadd.f32 %v5155, %v5419
        %v5470 = vadd.f32 %v5156, %v5424
        %v5471 = vadd.f32 %v5157, %v5427
        %v5472 = vadd.f32 %v5158, %v5432
        %v5473 = vadd.f32 %v5159, %v5435
        %v5474 = vadd.f32 %v5160, %v5440
        %v5475 = vadd.f32 %v5161, %v5443
        %v5476 = vadd.f32 %v5162, %v5448
        %v5477 = vadd.f32 %v5163, %v5451
        %v5478 = vld [vmem:[#allocation2 + $0x10] sm:$0xf]
        %v5479 = vld [vmem:[#allocation2 + $0x14] sm:$0xf]
        %v5480 = vld [vmem:[#allocation2 + $0x18] sm:$0xf]
        %v5481 = vld [vmem:[#allocation2 + $0x1c] sm:$0xf]
        %v5482 = vld [vmem:[#allocation2 + $0x20] sm:$0xf]
        %v5483 = vld [vmem:[#allocation2 + $0x24] sm:$0xf]
        %v5484 = vld [vmem:[#allocation2 + $0x28] sm:$0xf]
        %v5485 = vld [vmem:[#allocation2 + $0x2c] sm:$0xf]
        %v5486 = vld [vmem:[#allocation2 + $0x30] sm:$0xf]
        %v5487 = vld [vmem:[#allocation2 + $0x34] sm:$0xf]
        %v5488 = vld [vmem:[#allocation2 + $0x38] sm:$0xf]
        %v5489 = vld [vmem:[#allocation2 + $0x3c] sm:$0xf]
        %v5490 = vld [vmem:[#allocation2 + $0x40] sm:$0xf]
        %v5491 = vld [vmem:[#allocation2 + $0x44] sm:$0xf]
        %v5492 = vld [vmem:[#allocation2 + $0x48] sm:$0xf]
        %v5493 = vld [vmem:[#allocation2 + $0x4c] sm:$0xf]
        %v5494 = vld [vmem:[#allocation2 + $0x50] sm:$0xf]
        %v5495 = vld [vmem:[#allocation2 + $0x54] sm:$0xf]
        %v5496 = vld [vmem:[#allocation2 + $0x58] sm:$0xf]
        %v5497 = vld [vmem:[#allocation2 + $0x5c] sm:$0xf]
        %v5498 = vld [vmem:[#allocation2 + $0x60] sm:$0xf]
        %v5499 = vld [vmem:[#allocation2 + $0x64] sm:$0xf]
        %v5500 = vld [vmem:[#allocation2 + $0x68] sm:$0xf]
        %v5501 = vld [vmem:[#allocation2 + $0x6c] sm:$0xf]
        %v5502 = vld [vmem:[#allocation2 + $0x70] sm:$0x1]
        %s5503 = scalar_lea.vmem %s3, 448
        %v5504 = vld [vmem:[%s5503] sm:$0xf]
        %v5505 = vld [vmem:[%s5503 + $0x4] sm:$0xf]
        %v5506 = vld [vmem:[%s5503 + $0x8] sm:$0xf]
        %v5507 = vld [vmem:[%s5503 + $0xc] sm:$0xf]
        %v5508 = vld [vmem:[%s5503 + $0x10] sm:$0xf]
        %v5509 = vld [vmem:[%s5503 + $0x14] sm:$0xf]
        %v5510 = vld [vmem:[%s5503 + $0x18] sm:$0xf]
        %v5511 = vld [vmem:[%s5503 + $0x1c] sm:$0xf]
        %v5512 = vld [vmem:[%s5503 + $0x20] sm:$0xf]
        %v5513 = vld [vmem:[%s5503 + $0x24] sm:$0xf]
        %v5514 = vld [vmem:[%s5503 + $0x28] sm:$0xf]
        %v5515 = vld [vmem:[%s5503 + $0x2c] sm:$0xf]
        %v5516 = vld [vmem:[%s5503 + $0x30] sm:$0xf]
        %v5517 = vld [vmem:[%s5503 + $0x34] sm:$0xf]
        %v5518 = vld [vmem:[%s5503 + $0x38] sm:$0xf]
        %v5519 = vld [vmem:[%s5503 + $0x3c] sm:$0xf]
        %v5545 = vunpack.c.l.b16 %v5478
        %v5546 = vunpack.c.l.b16 %v5479
        %v5547 = vunpack.c.l.b16 %v5480
        %v5548 = vunpack.c.l.b16 %v5481
        %v5549 = vunpack.c.l.b16 %v5482
        %v5550 = vunpack.c.l.b16 %v5483
        %v5551 = vunpack.c.l.b16 %v5484
        %v5552 = vunpack.c.l.b16 %v5485
        %v5553 = vunpack.c.l.b16 %v5486
        %v5554 = vunpack.c.l.b16 %v5487
        %v5555 = vunpack.c.l.b16 %v5488
        %v5556 = vunpack.c.l.b16 %v5489
        %v5557 = vunpack.c.l.b16 %v5490
        %v5558 = vunpack.c.l.b16 %v5491
        %v5559 = vunpack.c.l.b16 %v5492
        %v5560 = vunpack.c.l.b16 %v5493
        %v5561 = vunpack.c.l.b16 %v5494
        %v5562 = vunpack.c.l.b16 %v5495
        %v5563 = vunpack.c.l.b16 %v5496
        %v5564 = vunpack.c.l.b16 %v5497
        %v5565 = vunpack.c.l.b16 %v5498
        %v5566 = vunpack.c.l.b16 %v5499
        %v5567 = vunpack.c.l.b16 %v5500
        %v5568 = vunpack.c.l.b16 %v5501
        %v5569 = vunpack.c.l.b16 %v5502
        %v5570 = vpack.c.b16 %v5546, %v5545
        %v5571 = vpack.c.b16 %v5548, %v5547
        %v5572 = vpack.c.b16 %v5550, %v5549
        %v5573 = vpack.c.b16 %v5552, %v5551
        %v5574 = vpack.c.b16 %v5554, %v5553
        %v5575 = vpack.c.b16 %v5556, %v5555
        %v5576 = vpack.c.b16 %v5558, %v5557
        %v5577 = vpack.c.b16 %v5560, %v5559
        %v5578 = vpack.c.b16 %v5562, %v5561
        %v5579 = vpack.c.b16 %v5564, %v5563
        %v5580 = vpack.c.b16 %v5566, %v5565
        %v5581 = vpack.c.b16 %v5568, %v5567
        %v5582 = vpack.c.b16 %v5569, %v5569
        %v5584 = vshrl.u32 %v5570, 16
        %v5586 = vshll.u32 %v5570, 16
        %v5588 = vrot.slane %v5586, 1
        %v5589 = vor.u32 %v5584, %v5588
        %v5591 = vshll.u32 %v5571, 16
        %v5593 = vrot.slane %v5591, 1
        %v5594 = vsel %vm382, %v5589, %v5593
        %v5595 = vshrl.u32 %v5571, 16
        %v5597 = vor.u32 %v5595, %v5593
        %v5599 = vshll.u32 %v5572, 16
        %v5601 = vrot.slane %v5599, 1
        %v5602 = vsel %vm382, %v5597, %v5601
        %v5603 = vshrl.u32 %v5572, 16
        %v5605 = vor.u32 %v5603, %v5601
        %v5607 = vshll.u32 %v5573, 16
        %v5609 = vrot.slane %v5607, 1
        %v5610 = vsel %vm382, %v5605, %v5609
        %v5611 = vshrl.u32 %v5573, 16
        %v5613 = vor.u32 %v5611, %v5609
        %v5615 = vshll.u32 %v5574, 16
        %v5617 = vrot.slane %v5615, 1
        %v5618 = vsel %vm382, %v5613, %v5617
        %v5619 = vshrl.u32 %v5574, 16
        %v5621 = vor.u32 %v5619, %v5617
        %v5623 = vshll.u32 %v5575, 16
        %v5625 = vrot.slane %v5623, 1
        %v5626 = vsel %vm382, %v5621, %v5625
        %v5627 = vshrl.u32 %v5575, 16
        %v5629 = vor.u32 %v5627, %v5625
        %v5631 = vshll.u32 %v5576, 16
        %v5633 = vrot.slane %v5631, 1
        %v5634 = vsel %vm382, %v5629, %v5633
        %v5635 = vshrl.u32 %v5576, 16
        %v5637 = vor.u32 %v5635, %v5633
        %v5639 = vshll.u32 %v5577, 16
        %v5641 = vrot.slane %v5639, 1
        %v5642 = vsel %vm382, %v5637, %v5641
        %v5643 = vshrl.u32 %v5577, 16
        %v5645 = vor.u32 %v5643, %v5641
        %v5647 = vshll.u32 %v5578, 16
        %v5649 = vrot.slane %v5647, 1
        %v5650 = vsel %vm382, %v5645, %v5649
        %v5651 = vshrl.u32 %v5578, 16
        %v5653 = vor.u32 %v5651, %v5649
        %v5655 = vshll.u32 %v5579, 16
        %v5657 = vrot.slane %v5655, 1
        %v5658 = vsel %vm382, %v5653, %v5657
        %v5659 = vshrl.u32 %v5579, 16
        %v5661 = vor.u32 %v5659, %v5657
        %v5663 = vshll.u32 %v5580, 16
        %v5665 = vrot.slane %v5663, 1
        %v5666 = vsel %vm382, %v5661, %v5665
        %v5667 = vshrl.u32 %v5580, 16
        %v5669 = vor.u32 %v5667, %v5665
        %v5671 = vshll.u32 %v5581, 16
        %v5673 = vrot.slane %v5671, 1
        %v5674 = vsel %vm382, %v5669, %v5673
        %v5675 = vshrl.u32 %v5581, 16
        %v5677 = vor.u32 %v5675, %v5673
        %v5679 = vshll.u32 %v5582, 16
        %v5681 = vrot.slane %v5679, 1
        %v5682 = vsel %vm382, %v5677, %v5681
        %v5711 = vunpack.c.l.b16 %v5504
        %v5712 = vunpack.c.l.b16 %v5505
        %v5713 = vunpack.c.l.b16 %v5506
        %v5714 = vunpack.c.l.b16 %v5507
        %v5715 = vunpack.c.l.b16 %v5508
        %v5716 = vunpack.c.l.b16 %v5509
        %v5717 = vunpack.c.l.b16 %v5510
        %v5718 = vunpack.c.l.b16 %v5511
        %v5719 = vunpack.c.l.b16 %v5512
        %v5720 = vunpack.c.l.b16 %v5513
        %v5721 = vunpack.c.l.b16 %v5514
        %v5722 = vunpack.c.l.b16 %v5515
        %v5723 = vunpack.c.l.b16 %v5516
        %v5724 = vunpack.c.l.b16 %v5517
        %v5725 = vunpack.c.l.b16 %v5518
        %v5726 = vunpack.c.l.b16 %v5519
        %v5727 = vpack.c.b16 %v5712, %v5711
        %v5728 = vpack.c.b16 %v5714, %v5713
        %v5729 = vpack.c.b16 %v5716, %v5715
        %v5730 = vpack.c.b16 %v5718, %v5717
        %v5731 = vpack.c.b16 %v5720, %v5719
        %v5732 = vpack.c.b16 %v5722, %v5721
        %v5733 = vpack.c.b16 %v5724, %v5723
        %v5734 = vpack.c.b16 %v5726, %v5725
        %5743 = vmatprep.subr.bf16.mxu0 0
        %5744 = vmatpush1.bf16.msra.mxu0 %v5727
        %5745 = vmatprep.subr.bf16.mxu0 0
        %5746 = vmatpush1.bf16.msra.mxu0 %v5728
        %5747 = vmatprep.subr.bf16.mxu0 0
        %5748 = vmatpush1.bf16.msra.mxu0 %v5729
        %5749 = vmatprep.subr.bf16.mxu0 0
        %5750 = vmatpush1.bf16.msra.mxu0 %v5730
        %5751 = vmatprep.subr.bf16.mxu0 0
        %5752 = vmatpush1.bf16.msra.mxu0 %v5731
        %5753 = vmatprep.subr.bf16.mxu0 0
        %5754 = vmatpush1.bf16.msra.mxu0 %v5732
        %5755 = vmatprep.subr.bf16.mxu0 0
        %5756 = vmatpush1.bf16.msra.mxu0 %v5733
        %5757 = vmatprep.subr.bf16.mxu0 0
        %5758 = vmatpush1.bf16.msra.mxu0 %v5734
        %5759 = vmatprep.subr.bf16.mxu0 0
        %5760 = vmatpush1.bf16.msra.mxu0 0
        %5761 = vmatprep.subr.bf16.mxu0 0
        %5762 = vmatpush1.bf16.msra.mxu0 0
        %5763 = vmatprep.subr.bf16.mxu0 0
        %5764 = vmatpush1.bf16.msra.mxu0 0
        %5765 = vmatprep.subr.bf16.mxu0 0
        %5766 = vmatpush1.bf16.msra.mxu0 0
        %5767 = vmatprep.subr.bf16.mxu0 0
        %5768 = vmatpush1.bf16.msra.mxu0 0
        %5769 = vmatprep.subr.bf16.mxu0 0
        %5770 = vmatpush1.bf16.msra.mxu0 0
        %5771 = vmatprep.subr.bf16.mxu0 0
        %5772 = vmatpush1.bf16.msra.mxu0 0
        %5773 = vmatprep.subr.bf16.mxu0 0
        %5774 = vmatpush1.bf16.msra.mxu0 0
        %5775 = vmatprep.mubr.bf16.mxu0 0
        %5776 = vmatmul.mubr.bf16.gmra.mrb[0].mxu0 %v5594
        %v5777 = vpop.f32.mrb[0].mxu0
        %v5778 = vadd.f32 0.0, %v5777
        %v5779 = vpop.f32.mrb[0].mxu0
        %v5780 = vpop.f32.mrb[0].mxu0
        %v5781 = vadd.f32 0.0, %v5780
        %v5782 = vpop.f32.mrb[0].mxu0
        %5783 = vmatprep.mubr.bf16.mxu0 0
        %5784 = vmatmul.mubr.bf16.gmra.mrb[0].mxu0 %v5602
        %v5785 = vpop.f32.mrb[0].mxu0
        %v5786 = vadd.f32 0.0, %v5785
        %v5787 = vpop.f32.mrb[0].mxu0
        %v5788 = vpop.f32.mrb[0].mxu0
        %v5789 = vadd.f32 0.0, %v5788
        %v5790 = vpop.f32.mrb[0].mxu0
        %5791 = vmatprep.mubr.bf16.mxu0 0
        %5792 = vmatmul.mubr.bf16.gmra.mrb[0].mxu0 %v5610
        %v5793 = vpop.f32.mrb[0].mxu0
        %v5794 = vadd.f32 0.0, %v5793
        %v5795 = vpop.f32.mrb[0].mxu0
        %v5796 = vpop.f32.mrb[0].mxu0
        %v5797 = vadd.f32 0.0, %v5796
        %v5798 = vpop.f32.mrb[0].mxu0
        %5799 = vmatprep.mubr.bf16.mxu0 0
        %5800 = vmatmul.mubr.bf16.gmra.mrb[0].mxu0 %v5618
        %v5801 = vpop.f32.mrb[0].mxu0
        %v5802 = vadd.f32 0.0, %v5801
        %v5803 = vpop.f32.mrb[0].mxu0
        %v5804 = vpop.f32.mrb[0].mxu0
        %v5805 = vadd.f32 0.0, %v5804
        %v5806 = vpop.f32.mrb[0].mxu0
        %5807 = vmatprep.mubr.bf16.mxu0 0
        %5808 = vmatmul.mubr.bf16.gmra.mrb[0].mxu0 %v5626
        %v5809 = vpop.f32.mrb[0].mxu0
        %v5810 = vadd.f32 0.0, %v5809
        %v5811 = vpop.f32.mrb[0].mxu0
        %v5812 = vpop.f32.mrb[0].mxu0
        %v5813 = vadd.f32 0.0, %v5812
        %v5814 = vpop.f32.mrb[0].mxu0
        %5815 = vmatprep.mubr.bf16.mxu0 0
        %5816 = vmatmul.mubr.bf16.gmra.mrb[0].mxu0 %v5634
        %v5817 = vpop.f32.mrb[0].mxu0
        %v5818 = vadd.f32 0.0, %v5817
        %v5819 = vpop.f32.mrb[0].mxu0
        %v5820 = vpop.f32.mrb[0].mxu0
        %v5821 = vadd.f32 0.0, %v5820
        %v5822 = vpop.f32.mrb[0].mxu0
        %5823 = vmatprep.mubr.bf16.mxu0 0
        %5824 = vmatmul.mubr.bf16.gmra.mrb[0].mxu0 %v5642
        %v5825 = vpop.f32.mrb[0].mxu0
        %v5826 = vadd.f32 0.0, %v5825
        %v5827 = vpop.f32.mrb[0].mxu0
        %v5828 = vpop.f32.mrb[0].mxu0
        %v5829 = vadd.f32 0.0, %v5828
        %v5830 = vpop.f32.mrb[0].mxu0
        %5831 = vmatprep.mubr.bf16.mxu0 0
        %5832 = vmatmul.mubr.bf16.gmra.mrb[0].mxu0 %v5650
        %v5833 = vpop.f32.mrb[0].mxu0
        %v5834 = vadd.f32 0.0, %v5833
        %v5835 = vpop.f32.mrb[0].mxu0
        %v5836 = vpop.f32.mrb[0].mxu0
        %v5837 = vadd.f32 0.0, %v5836
        %v5838 = vpop.f32.mrb[0].mxu0
        %5839 = vmatprep.mubr.bf16.mxu0 0
        %5840 = vmatmul.mubr.bf16.gmra.mrb[0].mxu0 %v5658
        %v5841 = vpop.f32.mrb[0].mxu0
        %v5842 = vadd.f32 0.0, %v5841
        %v5843 = vpop.f32.mrb[0].mxu0
        %v5844 = vpop.f32.mrb[0].mxu0
        %v5845 = vadd.f32 0.0, %v5844
        %v5846 = vpop.f32.mrb[0].mxu0
        %5847 = vmatprep.mubr.bf16.mxu0 0
        %5848 = vmatmul.mubr.bf16.gmra.mrb[0].mxu0 %v5666
        %v5849 = vpop.f32.mrb[0].mxu0
        %v5850 = vadd.f32 0.0, %v5849
        %v5851 = vpop.f32.mrb[0].mxu0
        %v5852 = vpop.f32.mrb[0].mxu0
        %v5853 = vadd.f32 0.0, %v5852
        %v5854 = vpop.f32.mrb[0].mxu0
        %5855 = vmatprep.mubr.bf16.mxu0 0
        %5856 = vmatmul.mubr.bf16.gmra.mrb[0].mxu0 %v5674
        %v5857 = vpop.f32.mrb[0].mxu0
        %v5858 = vadd.f32 0.0, %v5857
        %v5859 = vpop.f32.mrb[0].mxu0
        %v5860 = vpop.f32.mrb[0].mxu0
        %v5861 = vadd.f32 0.0, %v5860
        %v5862 = vpop.f32.mrb[0].mxu0
        %5863 = vmatprep.mubr.bf16.mxu0 0
        %5864 = vmatmul.mubr.bf16.gmra.mrb[0].mxu0 %v5682
        %v5865 = vpop.f32.mrb[0].mxu0
        %v5866 = vadd.f32 0.0, %v5865
        %v5867 = vpop.f32.mrb[0].mxu0
        %v5868 = vpop.f32.mrb[0].mxu0
        %v5869 = vadd.f32 0.0, %v5868
        %v5870 = vpop.f32.mrb[0].mxu0
        %5871 = vdwg.mxu0
        %v5872 = vadd.f32 %v5454, %v5778
        %v5873 = vadd.f32 %v5455, %v5781
        %v5874 = vadd.f32 %v5456, %v5786
        %v5875 = vadd.f32 %v5457, %v5789
        %v5876 = vadd.f32 %v5458, %v5794
        %v5877 = vadd.f32 %v5459, %v5797
        %v5878 = vadd.f32 %v5460, %v5802
        %v5879 = vadd.f32 %v5461, %v5805
        %v5880 = vadd.f32 %v5462, %v5810
        %v5881 = vadd.f32 %v5463, %v5813
        %v5882 = vadd.f32 %v5464, %v5818
        %v5883 = vadd.f32 %v5465, %v5821
        %v5884 = vadd.f32 %v5466, %v5826
        %v5885 = vadd.f32 %v5467, %v5829
        %v5886 = vadd.f32 %v5468, %v5834
        %v5887 = vadd.f32 %v5469, %v5837
        %v5888 = vadd.f32 %v5470, %v5842
        %v5889 = vadd.f32 %v5471, %v5845
        %v5890 = vadd.f32 %v5472, %v5850
        %v5891 = vadd.f32 %v5473, %v5853
        %v5892 = vadd.f32 %v5474, %v5858
        %v5893 = vadd.f32 %v5475, %v5861
        %v5894 = vadd.f32 %v5476, %v5866
        %v5895 = vadd.f32 %v5477, %v5869
        %v5896 = vld [vmem:[#allocation2 + $0x10] sm:$0xe]
        %s5897 = scalar_lea.vmem %s3, 512
        %v5898 = vld [vmem:[%s5897] sm:$0xf]
        %v5899 = vld [vmem:[%s5897 + $0x4] sm:$0xf]
        %v5900 = vld [vmem:[%s5897 + $0x8] sm:$0xf]
        %v5901 = vld [vmem:[%s5897 + $0xc] sm:$0xf]
        %v5902 = vld [vmem:[%s5897 + $0x10] sm:$0xf]
        %v5903 = vld [vmem:[%s5897 + $0x14] sm:$0xf]
        %v5904 = vld [vmem:[%s5897 + $0x18] sm:$0xf]
        %v5905 = vld [vmem:[%s5897 + $0x1c] sm:$0xf]
        %v5906 = vld [vmem:[%s5897 + $0x20] sm:$0xf]
        %v5907 = vld [vmem:[%s5897 + $0x24] sm:$0xf]
        %v5908 = vld [vmem:[%s5897 + $0x28] sm:$0xf]
        %v5909 = vld [vmem:[%s5897 + $0x2c] sm:$0xf]
        %v5910 = vld [vmem:[%s5897 + $0x30] sm:$0xf]
        %v5911 = vld [vmem:[%s5897 + $0x34] sm:$0xf]
        %v5912 = vld [vmem:[%s5897 + $0x38] sm:$0xf]
        %v5913 = vld [vmem:[%s5897 + $0x3c] sm:$0xf]
        %v5915 = vunpack.c.l.b16 %v5896
        %v5916 = vpack.c.b16 %v5546, %v5915
        %v5917 = vrot.slane %v5916, 1
        %v5918 = vrot.slane %v5571, 1
        %v5919 = vsel %vm873, %v5917, %v5918
        %v5920 = vrot.slane %v5572, 1
        %v5921 = vsel %vm873, %v5918, %v5920
        %v5922 = vrot.slane %v5573, 1
        %v5923 = vsel %vm873, %v5920, %v5922
        %v5924 = vrot.slane %v5574, 1
        %v5925 = vsel %vm873, %v5922, %v5924
        %v5926 = vrot.slane %v5575, 1
        %v5927 = vsel %vm873, %v5924, %v5926
        %v5928 = vrot.slane %v5576, 1
        %v5929 = vsel %vm873, %v5926, %v5928
        %v5930 = vrot.slane %v5577, 1
        %v5931 = vsel %vm873, %v5928, %v5930
        %v5932 = vrot.slane %v5578, 1
        %v5933 = vsel %vm873, %v5930, %v5932
        %v5934 = vrot.slane %v5579, 1
        %v5935 = vsel %vm873, %v5932, %v5934
        %v5936 = vrot.slane %v5580, 1
        %v5937 = vsel %vm873, %v5934, %v5936
        %v5938 = vrot.slane %v5581, 1
        %v5939 = vsel %vm873, %v5936, %v5938
        %v5940 = vrot.slane %v5582, 1
        %v5941 = vsel %vm873, %v5938, %v5940
        %v5970 = vunpack.c.l.b16 %v5898
        %v5971 = vunpack.c.l.b16 %v5899
        %v5972 = vunpack.c.l.b16 %v5900
        %v5973 = vunpack.c.l.b16 %v5901
        %v5974 = vunpack.c.l.b16 %v5902
        %v5975 = vunpack.c.l.b16 %v5903
        %v5976 = vunpack.c.l.b16 %v5904
        %v5977 = vunpack.c.l.b16 %v5905
        %v5978 = vunpack.c.l.b16 %v5906
        %v5979 = vunpack.c.l.b16 %v5907
        %v5980 = vunpack.c.l.b16 %v5908
        %v5981 = vunpack.c.l.b16 %v5909
        %v5982 = vunpack.c.l.b16 %v5910
        %v5983 = vunpack.c.l.b16 %v5911
        %v5984 = vunpack.c.l.b16 %v5912
        %v5985 = vunpack.c.l.b16 %v5913
        %v5986 = vpack.c.b16 %v5971, %v5970
        %v5987 = vpack.c.b16 %v5973, %v5972
        %v5988 = vpack.c.b16 %v5975, %v5974
        %v5989 = vpack.c.b16 %v5977, %v5976
        %v5990 = vpack.c.b16 %v5979, %v5978
        %v5991 = vpack.c.b16 %v5981, %v5980
        %v5992 = vpack.c.b16 %v5983, %v5982
        %v5993 = vpack.c.b16 %v5985, %v5984
        %6002 = vmatprep.subr.bf16.mxu0 0
        %6003 = vmatpush1.bf16.msra.mxu0 %v5986
        %6004 = vmatprep.subr.bf16.mxu0 0
        %6005 = vmatpush1.bf16.msra.mxu0 %v5987
        %6006 = vmatprep.subr.bf16.mxu0 0
        %6007 = vmatpush1.bf16.msra.mxu0 %v5988
        %6008 = vmatprep.subr.bf16.mxu0 0
        %6009 = vmatpush1.bf16.msra.mxu0 %v5989
        %6010 = vmatprep.subr.bf16.mxu0 0
        %6011 = vmatpush1.bf16.msra.mxu0 %v5990
        %6012 = vmatprep.subr.bf16.mxu0 0
        %6013 = vmatpush1.bf16.msra.mxu0 %v5991
        %6014 = vmatprep.subr.bf16.mxu0 0
        %6015 = vmatpush1.bf16.msra.mxu0 %v5992
        %6016 = vmatprep.subr.bf16.mxu0 0
        %6017 = vmatpush1.bf16.msra.mxu0 %v5993
        %6018 = vmatprep.subr.bf16.mxu0 0
        %6019 = vmatpush1.bf16.msra.mxu0 0
        %6020 = vmatprep.subr.bf16.mxu0 0
        %6021 = vmatpush1.bf16.msra.mxu0 0
        %6022 = vmatprep.subr.bf16.mxu0 0
        %6023 = vmatpush1.bf16.msra.mxu0 0
        %6024 = vmatprep.subr.bf16.mxu0 0
        %6025 = vmatpush1.bf16.msra.mxu0 0
        %6026 = vmatprep.subr.bf16.mxu0 0
        %6027 = vmatpush1.bf16.msra.mxu0 0
        %6028 = vmatprep.subr.bf16.mxu0 0
        %6029 = vmatpush1.bf16.msra.mxu0 0
        %6030 = vmatprep.subr.bf16.mxu0 0
        %6031 = vmatpush1.bf16.msra.mxu0 0
        %6032 = vmatprep.subr.bf16.mxu0 0
        %6033 = vmatpush1.bf16.msra.mxu0 0
        %6034 = vmatprep.mubr.bf16.mxu0 0
        %6035 = vmatmul.mubr.bf16.gmra.mrb[0].mxu0 %v5919
        %v6036 = vpop.f32.mrb[0].mxu0
        %v6037 = vadd.f32 0.0, %v6036
        %v6038 = vpop.f32.mrb[0].mxu0
        %v6039 = vpop.f32.mrb[0].mxu0
        %v6040 = vadd.f32 0.0, %v6039
        %v6041 = vpop.f32.mrb[0].mxu0
        %6042 = vmatprep.mubr.bf16.mxu0 0
        %6043 = vmatmul.mubr.bf16.gmra.mrb[0].mxu0 %v5921
        %v6044 = vpop.f32.mrb[0].mxu0
        %v6045 = vadd.f32 0.0, %v6044
        %v6046 = vpop.f32.mrb[0].mxu0
        %v6047 = vpop.f32.mrb[0].mxu0
        %v6048 = vadd.f32 0.0, %v6047
        %v6049 = vpop.f32.mrb[0].mxu0
        %6050 = vmatprep.mubr.bf16.mxu0 0
        %6051 = vmatmul.mubr.bf16.gmra.mrb[0].mxu0 %v5923
        %v6052 = vpop.f32.mrb[0].mxu0
        %v6053 = vadd.f32 0.0, %v6052
        %v6054 = vpop.f32.mrb[0].mxu0
        %v6055 = vpop.f32.mrb[0].mxu0
        %v6056 = vadd.f32 0.0, %v6055
        %v6057 = vpop.f32.mrb[0].mxu0
        %6058 = vmatprep.mubr.bf16.mxu0 0
        %6059 = vmatmul.mubr.bf16.gmra.mrb[0].mxu0 %v5925
        %v6060 = vpop.f32.mrb[0].mxu0
        %v6061 = vadd.f32 0.0, %v6060
        %v6062 = vpop.f32.mrb[0].mxu0
        %v6063 = vpop.f32.mrb[0].mxu0
        %v6064 = vadd.f32 0.0, %v6063
        %v6065 = vpop.f32.mrb[0].mxu0
        %6066 = vmatprep.mubr.bf16.mxu0 0
        %6067 = vmatmul.mubr.bf16.gmra.mrb[0].mxu0 %v5927
        %v6068 = vpop.f32.mrb[0].mxu0
        %v6069 = vadd.f32 0.0, %v6068
        %v6070 = vpop.f32.mrb[0].mxu0
        %v6071 = vpop.f32.mrb[0].mxu0
        %v6072 = vadd.f32 0.0, %v6071
        %v6073 = vpop.f32.mrb[0].mxu0
        %6074 = vmatprep.mubr.bf16.mxu0 0
        %6075 = vmatmul.mubr.bf16.gmra.mrb[0].mxu0 %v5929
        %v6076 = vpop.f32.mrb[0].mxu0
        %v6077 = vadd.f32 0.0, %v6076
        %v6078 = vpop.f32.mrb[0].mxu0
        %v6079 = vpop.f32.mrb[0].mxu0
        %v6080 = vadd.f32 0.0, %v6079
        %v6081 = vpop.f32.mrb[0].mxu0
        %6082 = vmatprep.mubr.bf16.mxu0 0
        %6083 = vmatmul.mubr.bf16.gmra.mrb[0].mxu0 %v5931
        %v6084 = vpop.f32.mrb[0].mxu0
        %v6085 = vadd.f32 0.0, %v6084
        %v6086 = vpop.f32.mrb[0].mxu0
        %v6087 = vpop.f32.mrb[0].mxu0
        %v6088 = vadd.f32 0.0, %v6087
        %v6089 = vpop.f32.mrb[0].mxu0
        %6090 = vmatprep.mubr.bf16.mxu0 0
        %6091 = vmatmul.mubr.bf16.gmra.mrb[0].mxu0 %v5933
        %v6092 = vpop.f32.mrb[0].mxu0
        %v6093 = vadd.f32 0.0, %v6092
        %v6094 = vpop.f32.mrb[0].mxu0
        %v6095 = vpop.f32.mrb[0].mxu0
        %v6096 = vadd.f32 0.0, %v6095
        %v6097 = vpop.f32.mrb[0].mxu0
        %6098 = vmatprep.mubr.bf16.mxu0 0
        %6099 = vmatmul.mubr.bf16.gmra.mrb[0].mxu0 %v5935
        %v6100 = vpop.f32.mrb[0].mxu0
        %v6101 = vadd.f32 0.0, %v6100
        %v6102 = vpop.f32.mrb[0].mxu0
        %v6103 = vpop.f32.mrb[0].mxu0
        %v6104 = vadd.f32 0.0, %v6103
        %v6105 = vpop.f32.mrb[0].mxu0
        %6106 = vmatprep.mubr.bf16.mxu0 0
        %6107 = vmatmul.mubr.bf16.gmra.mrb[0].mxu0 %v5937
        %v6108 = vpop.f32.mrb[0].mxu0
        %v6109 = vadd.f32 0.0, %v6108
        %v6110 = vpop.f32.mrb[0].mxu0
        %v6111 = vpop.f32.mrb[0].mxu0
        %v6112 = vadd.f32 0.0, %v6111
        %v6113 = vpop.f32.mrb[0].mxu0
        %6114 = vmatprep.mubr.bf16.mxu0 0
        %6115 = vmatmul.mubr.bf16.gmra.mrb[0].mxu0 %v5939
        %v6116 = vpop.f32.mrb[0].mxu0
        %v6117 = vadd.f32 0.0, %v6116
        %v6118 = vpop.f32.mrb[0].mxu0
        %v6119 = vpop.f32.mrb[0].mxu0
        %v6120 = vadd.f32 0.0, %v6119
        %v6121 = vpop.f32.mrb[0].mxu0
        %6122 = vmatprep.mubr.bf16.mxu0 0
        %6123 = vmatmul.mubr.bf16.gmra.mrb[0].mxu0 %v5941
        %v6124 = vpop.f32.mrb[0].mxu0
        %v6125 = vadd.f32 0.0, %v6124
        %v6126 = vpop.f32.mrb[0].mxu0
        %v6127 = vpop.f32.mrb[0].mxu0
        %v6128 = vadd.f32 0.0, %v6127
        %v6129 = vpop.f32.mrb[0].mxu0
        %6130 = vdwg.mxu0
        %v6131 = vadd.f32 %v5872, %v6037
        %v6132 = vadd.f32 %v5873, %v6040
        %v6133 = vadd.f32 %v5874, %v6045
        %v6134 = vadd.f32 %v5875, %v6048
        %v6135 = vadd.f32 %v5876, %v6053
        %v6136 = vadd.f32 %v5877, %v6056
        %v6137 = vadd.f32 %v5878, %v6061
        %v6138 = vadd.f32 %v5879, %v6064
        %v6139 = vadd.f32 %v5880, %v6069
        %v6140 = vadd.f32 %v5881, %v6072
        %v6141 = vadd.f32 %v5882, %v6077
        %v6142 = vadd.f32 %v5883, %v6080
        %v6143 = vadd.f32 %v5884, %v6085
        %v6144 = vadd.f32 %v5885, %v6088
        %v6145 = vadd.f32 %v5886, %v6093
        %v6146 = vadd.f32 %v5887, %v6096
        %v6147 = vadd.f32 %v5888, %v6101
        %v6148 = vadd.f32 %v5889, %v6104
        %v6149 = vadd.f32 %v5890, %v6109
        %v6150 = vadd.f32 %v5891, %v6112
        %v6151 = vadd.f32 %v5892, %v6117
        %v6152 = vadd.f32 %v5893, %v6120
        %v6153 = vadd.f32 %v5894, %v6125
        %v6154 = vadd.f32 %v5895, %v6128
        %v6155 = vld [vmem:[%s4] sm:$0x1]
        %v6157 = vlaneseq
        %v6158 = vshrl.u32 %v6157, 7
        %v6159 = vsub.s32 0, %v6158
        %v6160 = vrot.slane %v6155, %v6159
        %v6162 = vadd.f32 %v6131, %v6160
        %v6163 = vadd.f32 %v6132, %v6160
        %v6164 = vadd.f32 %v6133, %v6160
        %v6165 = vadd.f32 %v6134, %v6160
        %v6166 = vadd.f32 %v6135, %v6160
        %v6167 = vadd.f32 %v6136, %v6160
        %v6168 = vadd.f32 %v6137, %v6160
        %v6169 = vadd.f32 %v6138, %v6160
        %v6170 = vadd.f32 %v6139, %v6160
        %v6171 = vadd.f32 %v6140, %v6160
        %v6172 = vadd.f32 %v6141, %v6160
        %v6173 = vadd.f32 %v6142, %v6160
        %v6174 = vadd.f32 %v6143, %v6160
        %v6175 = vadd.f32 %v6144, %v6160
        %v6176 = vadd.f32 %v6145, %v6160
        %v6177 = vadd.f32 %v6146, %v6160
        %v6178 = vadd.f32 %v6147, %v6160
        %v6179 = vadd.f32 %v6148, %v6160
        %v6180 = vadd.f32 %v6149, %v6160
        %v6181 = vadd.f32 %v6150, %v6160
        %v6182 = vadd.f32 %v6151, %v6160
        %v6183 = vadd.f32 %v6152, %v6160
        %v6184 = vadd.f32 %v6153, %v6160
        %v6185 = vadd.f32 %v6154, %v6160
        %v6186 = vmax.f32 %v6162, 0.0
        %v6187 = vmax.f32 %v6163, 0.0
        %v6188 = vmax.f32 %v6164, 0.0
        %v6189 = vmax.f32 %v6165, 0.0
        %v6190 = vmax.f32 %v6166, 0.0
        %v6191 = vmax.f32 %v6167, 0.0
        %v6192 = vmax.f32 %v6168, 0.0
        %v6193 = vmax.f32 %v6169, 0.0
        %v6194 = vmax.f32 %v6170, 0.0
        %v6195 = vmax.f32 %v6171, 0.0
        %v6196 = vmax.f32 %v6172, 0.0
        %v6197 = vmax.f32 %v6173, 0.0
        %v6198 = vmax.f32 %v6174, 0.0
        %v6199 = vmax.f32 %v6175, 0.0
        %v6200 = vmax.f32 %v6176, 0.0
        %v6201 = vmax.f32 %v6177, 0.0
        %v6202 = vmax.f32 %v6178, 0.0
        %v6203 = vmax.f32 %v6179, 0.0
        %v6204 = vmax.f32 %v6180, 0.0
        %v6205 = vmax.f32 %v6181, 0.0
        %v6206 = vmax.f32 %v6182, 0.0
        %v6207 = vmax.f32 %v6183, 0.0
        %v6208 = vmax.f32 %v6184, 0.0
        %v6209 = vmax.f32 %v6185, 0.0
        %v6210 = vpack.c.bf16 %v6187, %v6186
        %v6211 = vpack.c.bf16 %v6189, %v6188
        %v6212 = vpack.c.bf16 %v6191, %v6190
        %v6213 = vpack.c.bf16 %v6193, %v6192
        %v6214 = vpack.c.bf16 %v6195, %v6194
        %v6215 = vpack.c.bf16 %v6197, %v6196
        %v6216 = vpack.c.bf16 %v6199, %v6198
        %v6217 = vpack.c.bf16 %v6201, %v6200
        %v6218 = vpack.c.bf16 %v6203, %v6202
        %v6219 = vpack.c.bf16 %v6205, %v6204
        %v6220 = vpack.c.bf16 %v6207, %v6206
        %v6221 = vpack.c.bf16 %v6209, %v6208
        %vm6222 = vcmask 130048
        %6223 = vst.msk [vmem:[#allocation3] sm:$0xff] %vm6222, %v6210
        %6224 = vst.msk [vmem:[#allocation3 + $0x8] sm:$0xff] %vm6222, %v6211
        %6225 = vst.msk [vmem:[#allocation3 + $0x10] sm:$0xff] %vm6222, %v6212
        %6226 = vst.msk [vmem:[#allocation3 + $0x18] sm:$0xff] %vm6222, %v6213
        %6227 = vst.msk [vmem:[#allocation3 + $0x20] sm:$0xff] %vm6222, %v6214
        %6228 = vst.msk [vmem:[#allocation3 + $0x28] sm:$0xff] %vm6222, %v6215
        %6229 = vst.msk [vmem:[#allocation3 + $0x30] sm:$0xff] %vm6222, %v6216
        %6230 = vst.msk [vmem:[#allocation3 + $0x38] sm:$0xff] %vm6222, %v6217
        %6231 = vst.msk [vmem:[#allocation3 + $0x40] sm:$0xff] %vm6222, %v6218
        %6232 = vst.msk [vmem:[#allocation3 + $0x48] sm:$0xff] %vm6222, %v6219
        %6233 = vst.msk [vmem:[#allocation3 + $0x50] sm:$0xff] %vm6222, %v6220
        %6234 = vst.msk [vmem:[#allocation3 + $0x58] sm:$0xff] %vm6222, %v6221
        %v6235 = vld [vmem:[%s6] sm:$0x1]
        %v6236 = vld [vmem:[#allocation3] sm:$0x1]
        %v6237 = vld [vmem:[%s5] sm:$0xf]
        %v6238 = vld [vmem:[%s5 + $0x4] sm:$0xf]
        %v6241 = vunpack.c.l.b16 %v6237
        %v6242 = vunpack.c.l.b16 %v6238
        %v6243 = vpack.c.b16 %v6242, %v6241
        %v6246 = vsel %vm6222, %v6236, 0
        %6248 = vmatprep.subr.bf16.mxu0 0
        %6249 = vmatpush1.bf16.msra.mxu0 %v6243
        %6250 = vmatprep.subr.bf16.mxu0 0
        %6251 = vmatpush1.bf16.msra.mxu0 0
        %6252 = vmatprep.subr.bf16.mxu0 0
        %6253 = vmatpush1.bf16.msra.mxu0 0
        %6254 = vmatprep.subr.bf16.mxu0 0
        %6255 = vmatpush1.bf16.msra.mxu0 0
        %6256 = vmatprep.subr.bf16.mxu0 0
        %6257 = vmatpush1.bf16.msra.mxu0 0
        %6258 = vmatprep.subr.bf16.mxu0 0
        %6259 = vmatpush1.bf16.msra.mxu0 0
        %6260 = vmatprep.subr.bf16.mxu0 0
        %6261 = vmatpush1.bf16.msra.mxu0 0
        %6262 = vmatprep.subr.bf16.mxu0 0
        %6263 = vmatpush1.bf16.msra.mxu0 0
        %6264 = vmatprep.subr.bf16.mxu0 0
        %6265 = vmatpush1.bf16.msra.mxu0 0
        %6266 = vmatprep.subr.bf16.mxu0 0
        %6267 = vmatpush1.bf16.msra.mxu0 0
        %6268 = vmatprep.subr.bf16.mxu0 0
        %6269 = vmatpush1.bf16.msra.mxu0 0
        %6270 = vmatprep.subr.bf16.mxu0 0
        %6271 = vmatpush1.bf16.msra.mxu0 0
        %6272 = vmatprep.subr.bf16.mxu0 0
        %6273 = vmatpush1.bf16.msra.mxu0 0
        %6274 = vmatprep.subr.bf16.mxu0 0
        %6275 = vmatpush1.bf16.msra.mxu0 0
        %6276 = vmatprep.subr.bf16.mxu0 0
        %6277 = vmatpush1.bf16.msra.mxu0 0
        %6278 = vmatprep.subr.bf16.mxu0 0
        %6279 = vmatpush1.bf16.msra.mxu0 0
        %6280 = vmatprep.mubr.bf16.mxu0 0
        %6281 = vmatmul.mubr.bf16.gmra.mrb[0].mxu0 %v6246
        %v6282 = vpop.f32.mrb[0].mxu0
        %v6283 = vadd.f32 0.0, %v6282
        %v6284 = vpop.f32.mrb[0].mxu0
        %v6285 = vpop.f32.mrb[0].mxu0
        %v6286 = vpop.f32.mrb[0].mxu0
        %6287 = vdwg.mxu0
        %v6288 = vadd.f32 %v6235, %v6283
        %v6289 = vld [vmem:[#allocation3] sm:$0x2]
        %s6290 = scalar_lea.vmem %s5, 8
        %v6291 = vld [vmem:[%s6290] sm:$0xf]
        %v6292 = vld [vmem:[%s6290 + $0x4] sm:$0xf]
        %v6294 = vrot.slane %v6289, 1
        %v6297 = vunpack.c.l.b16 %v6291
        %v6298 = vunpack.c.l.b16 %v6292
        %v6299 = vpack.c.b16 %v6298, %v6297
        %v6302 = vsel %vm6222, %v6294, 0
        %6304 = vmatprep.subr.bf16.mxu0 0
        %6305 = vmatpush1.bf16.msra.mxu0 %v6299
        %6306 = vmatprep.subr.bf16.mxu0 0
        %6307 = vmatpush1.bf16.msra.mxu0 0
        %6308 = vmatprep.subr.bf16.mxu0 0
        %6309 = vmatpush1.bf16.msra.mxu0 0
        %6310 = vmatprep.subr.bf16.mxu0 0
        %6311 = vmatpush1.bf16.msra.mxu0 0
        %6312 = vmatprep.subr.bf16.mxu0 0
        %6313 = vmatpush1.bf16.msra.mxu0 0
        %6314 = vmatprep.subr.bf16.mxu0 0
        %6315 = vmatpush1.bf16.msra.mxu0 0
        %6316 = vmatprep.subr.bf16.mxu0 0
        %6317 = vmatpush1.bf16.msra.mxu0 0
        %6318 = vmatprep.subr.bf16.mxu0 0
        %6319 = vmatpush1.bf16.msra.mxu0 0
        %6320 = vmatprep.subr.bf16.mxu0 0
        %6321 = vmatpush1.bf16.msra.mxu0 0
        %6322 = vmatprep.subr.bf16.mxu0 0
        %6323 = vmatpush1.bf16.msra.mxu0 0
        %6324 = vmatprep.subr.bf16.mxu0 0
        %6325 = vmatpush1.bf16.msra.mxu0 0
        %6326 = vmatprep.subr.bf16.mxu0 0
        %6327 = vmatpush1.bf16.msra.mxu0 0
        %6328 = vmatprep.subr.bf16.mxu0 0
        %6329 = vmatpush1.bf16.msra.mxu0 0
        %6330 = vmatprep.subr.bf16.mxu0 0
        %6331 = vmatpush1.bf16.msra.mxu0 0
        %6332 = vmatprep.subr.bf16.mxu0 0
        %6333 = vmatpush1.bf16.msra.mxu0 0
        %6334 = vmatprep.subr.bf16.mxu0 0
        %6335 = vmatpush1.bf16.msra.mxu0 0
        %6336 = vmatprep.mubr.bf16.mxu0 0
        %6337 = vmatmul.mubr.bf16.gmra.mrb[0].mxu0 %v6302
        %v6338 = vpop.f32.mrb[0].mxu0
        %v6339 = vadd.f32 0.0, %v6338
        %v6340 = vpop.f32.mrb[0].mxu0
        %v6341 = vpop.f32.mrb[0].mxu0
        %v6342 = vpop.f32.mrb[0].mxu0
        %6343 = vdwg.mxu0
        %v6344 = vadd.f32 %v6288, %v6339
        %v6345 = vld [vmem:[#allocation3] sm:$0x4]
        %s6346 = scalar_lea.vmem %s5, 16
        %v6347 = vld [vmem:[%s6346] sm:$0xf]
        %v6348 = vld [vmem:[%s6346 + $0x4] sm:$0xf]
        %v6350 = vrot.slane %v6345, 2
        %v6353 = vunpack.c.l.b16 %v6347
        %v6354 = vunpack.c.l.b16 %v6348
        %v6355 = vpack.c.b16 %v6354, %v6353
        %v6358 = vsel %vm6222, %v6350, 0
        %6360 = vmatprep.subr.bf16.mxu0 0
        %6361 = vmatpush1.bf16.msra.mxu0 %v6355
        %6362 = vmatprep.subr.bf16.mxu0 0
        %6363 = vmatpush1.bf16.msra.mxu0 0
        %6364 = vmatprep.subr.bf16.mxu0 0
        %6365 = vmatpush1.bf16.msra.mxu0 0
        %6366 = vmatprep.subr.bf16.mxu0 0
        %6367 = vmatpush1.bf16.msra.mxu0 0
        %6368 = vmatprep.subr.bf16.mxu0 0
        %6369 = vmatpush1.bf16.msra.mxu0 0
        %6370 = vmatprep.subr.bf16.mxu0 0
        %6371 = vmatpush1.bf16.msra.mxu0 0
        %6372 = vmatprep.subr.bf16.mxu0 0
        %6373 = vmatpush1.bf16.msra.mxu0 0
        %6374 = vmatprep.subr.bf16.mxu0 0
        %6375 = vmatpush1.bf16.msra.mxu0 0
        %6376 = vmatprep.subr.bf16.mxu0 0
        %6377 = vmatpush1.bf16.msra.mxu0 0
        %6378 = vmatprep.subr.bf16.mxu0 0
        %6379 = vmatpush1.bf16.msra.mxu0 0
        %6380 = vmatprep.subr.bf16.mxu0 0
        %6381 = vmatpush1.bf16.msra.mxu0 0
        %6382 = vmatprep.subr.bf16.mxu0 0
        %6383 = vmatpush1.bf16.msra.mxu0 0
        %6384 = vmatprep.subr.bf16.mxu0 0
        %6385 = vmatpush1.bf16.msra.mxu0 0
        %6386 = vmatprep.subr.bf16.mxu0 0
        %6387 = vmatpush1.bf16.msra.mxu0 0
        %6388 = vmatprep.subr.bf16.mxu0 0
        %6389 = vmatpush1.bf16.msra.mxu0 0
        %6390 = vmatprep.subr.bf16.mxu0 0
        %6391 = vmatpush1.bf16.msra.mxu0 0
        %6392 = vmatprep.mubr.bf16.mxu0 0
        %6393 = vmatmul.mubr.bf16.gmra.mrb[0].mxu0 %v6358
        %v6394 = vpop.f32.mrb[0].mxu0
        %v6395 = vadd.f32 0.0, %v6394
        %v6396 = vpop.f32.mrb[0].mxu0
        %v6397 = vpop.f32.mrb[0].mxu0
        %v6398 = vpop.f32.mrb[0].mxu0
        %6399 = vdwg.mxu0
        %v6400 = vadd.f32 %v6344, %v6395
        %v6401 = vld [vmem:[#allocation3] sm:$0x8]
        %s6402 = scalar_lea.vmem %s5, 24
        %v6403 = vld [vmem:[%s6402] sm:$0xf]
        %v6404 = vld [vmem:[%s6402 + $0x4] sm:$0xf]
        %v6406 = vrot.slane %v6401, 3
        %v6409 = vunpack.c.l.b16 %v6403
        %v6410 = vunpack.c.l.b16 %v6404
        %v6411 = vpack.c.b16 %v6410, %v6409
        %v6414 = vsel %vm6222, %v6406, 0
        %6416 = vmatprep.subr.bf16.mxu0 0
        %6417 = vmatpush1.bf16.msra.mxu0 %v6411
        %6418 = vmatprep.subr.bf16.mxu0 0
        %6419 = vmatpush1.bf16.msra.mxu0 0
        %6420 = vmatprep.subr.bf16.mxu0 0
        %6421 = vmatpush1.bf16.msra.mxu0 0
        %6422 = vmatprep.subr.bf16.mxu0 0
        %6423 = vmatpush1.bf16.msra.mxu0 0
        %6424 = vmatprep.subr.bf16.mxu0 0
        %6425 = vmatpush1.bf16.msra.mxu0 0
        %6426 = vmatprep.subr.bf16.mxu0 0
        %6427 = vmatpush1.bf16.msra.mxu0 0
        %6428 = vmatprep.subr.bf16.mxu0 0
        %6429 = vmatpush1.bf16.msra.mxu0 0
        %6430 = vmatprep.subr.bf16.mxu0 0
        %6431 = vmatpush1.bf16.msra.mxu0 0
        %6432 = vmatprep.subr.bf16.mxu0 0
        %6433 = vmatpush1.bf16.msra.mxu0 0
        %6434 = vmatprep.subr.bf16.mxu0 0
        %6435 = vmatpush1.bf16.msra.mxu0 0
        %6436 = vmatprep.subr.bf16.mxu0 0
        %6437 = vmatpush1.bf16.msra.mxu0 0
        %6438 = vmatprep.subr.bf16.mxu0 0
        %6439 = vmatpush1.bf16.msra.mxu0 0
        %6440 = vmatprep.subr.bf16.mxu0 0
        %6441 = vmatpush1.bf16.msra.mxu0 0
        %6442 = vmatprep.subr.bf16.mxu0 0
        %6443 = vmatpush1.bf16.msra.mxu0 0
        %6444 = vmatprep.subr.bf16.mxu0 0
        %6445 = vmatpush1.bf16.msra.mxu0 0
        %6446 = vmatprep.subr.bf16.mxu0 0
        %6447 = vmatpush1.bf16.msra.mxu0 0
        %6448 = vmatprep.mubr.bf16.mxu0 0
        %6449 = vmatmul.mubr.bf16.gmra.mrb[0].mxu0 %v6414
        %v6450 = vpop.f32.mrb[0].mxu0
        %v6451 = vadd.f32 0.0, %v6450
        %v6452 = vpop.f32.mrb[0].mxu0
        %v6453 = vpop.f32.mrb[0].mxu0
        %v6454 = vpop.f32.mrb[0].mxu0
        %6455 = vdwg.mxu0
        %v6456 = vadd.f32 %v6400, %v6451
        %v6457 = vld [vmem:[#allocation3] sm:$0x10]
        %s6458 = scalar_lea.vmem %s5, 32
        %v6459 = vld [vmem:[%s6458] sm:$0xf]
        %v6460 = vld [vmem:[%s6458 + $0x4] sm:$0xf]
        %v6462 = vrot.slane %v6457, 4
        %v6465 = vunpack.c.l.b16 %v6459
        %v6466 = vunpack.c.l.b16 %v6460
        %v6467 = vpack.c.b16 %v6466, %v6465
        %v6470 = vsel %vm6222, %v6462, 0
        %6472 = vmatprep.subr.bf16.mxu0 0
        %6473 = vmatpush1.bf16.msra.mxu0 %v6467
        %6474 = vmatprep.subr.bf16.mxu0 0
        %6475 = vmatpush1.bf16.msra.mxu0 0
        %6476 = vmatprep.subr.bf16.mxu0 0
        %6477 = vmatpush1.bf16.msra.mxu0 0
        %6478 = vmatprep.subr.bf16.mxu0 0
        %6479 = vmatpush1.bf16.msra.mxu0 0
        %6480 = vmatprep.subr.bf16.mxu0 0
        %6481 = vmatpush1.bf16.msra.mxu0 0
        %6482 = vmatprep.subr.bf16.mxu0 0
        %6483 = vmatpush1.bf16.msra.mxu0 0
        %6484 = vmatprep.subr.bf16.mxu0 0
        %6485 = vmatpush1.bf16.msra.mxu0 0
        %6486 = vmatprep.subr.bf16.mxu0 0
        %6487 = vmatpush1.bf16.msra.mxu0 0
        %6488 = vmatprep.subr.bf16.mxu0 0
        %6489 = vmatpush1.bf16.msra.mxu0 0
        %6490 = vmatprep.subr.bf16.mxu0 0
        %6491 = vmatpush1.bf16.msra.mxu0 0
        %6492 = vmatprep.subr.bf16.mxu0 0
        %6493 = vmatpush1.bf16.msra.mxu0 0
        %6494 = vmatprep.subr.bf16.mxu0 0
        %6495 = vmatpush1.bf16.msra.mxu0 0
        %6496 = vmatprep.subr.bf16.mxu0 0
        %6497 = vmatpush1.bf16.msra.mxu0 0
        %6498 = vmatprep.subr.bf16.mxu0 0
        %6499 = vmatpush1.bf16.msra.mxu0 0
        %6500 = vmatprep.subr.bf16.mxu0 0
        %6501 = vmatpush1.bf16.msra.mxu0 0
        %6502 = vmatprep.subr.bf16.mxu0 0
        %6503 = vmatpush1.bf16.msra.mxu0 0
        %6504 = vmatprep.mubr.bf16.mxu0 0
        %6505 = vmatmul.mubr.bf16.gmra.mrb[0].mxu0 %v6470
        %v6506 = vpop.f32.mrb[0].mxu0
        %v6507 = vadd.f32 0.0, %v6506
        %v6508 = vpop.f32.mrb[0].mxu0
        %v6509 = vpop.f32.mrb[0].mxu0
        %v6510 = vpop.f32.mrb[0].mxu0
        %6511 = vdwg.mxu0
        %v6512 = vadd.f32 %v6456, %v6507
        %v6513 = vld [vmem:[#allocation3] sm:$0x20]
        %s6514 = scalar_lea.vmem %s5, 40
        %v6515 = vld [vmem:[%s6514] sm:$0xf]
        %v6516 = vld [vmem:[%s6514 + $0x4] sm:$0xf]
        %v6518 = vrot.slane %v6513, 5
        %v6521 = vunpack.c.l.b16 %v6515
        %v6522 = vunpack.c.l.b16 %v6516
        %v6523 = vpack.c.b16 %v6522, %v6521
        %v6526 = vsel %vm6222, %v6518, 0
        %6528 = vmatprep.subr.bf16.mxu0 0
        %6529 = vmatpush1.bf16.msra.mxu0 %v6523
        %6530 = vmatprep.subr.bf16.mxu0 0
        %6531 = vmatpush1.bf16.msra.mxu0 0
        %6532 = vmatprep.subr.bf16.mxu0 0
        %6533 = vmatpush1.bf16.msra.mxu0 0
        %6534 = vmatprep.subr.bf16.mxu0 0
        %6535 = vmatpush1.bf16.msra.mxu0 0
        %6536 = vmatprep.subr.bf16.mxu0 0
        %6537 = vmatpush1.bf16.msra.mxu0 0
        %6538 = vmatprep.subr.bf16.mxu0 0
        %6539 = vmatpush1.bf16.msra.mxu0 0
        %6540 = vmatprep.subr.bf16.mxu0 0
        %6541 = vmatpush1.bf16.msra.mxu0 0
        %6542 = vmatprep.subr.bf16.mxu0 0
        %6543 = vmatpush1.bf16.msra.mxu0 0
        %6544 = vmatprep.subr.bf16.mxu0 0
        %6545 = vmatpush1.bf16.msra.mxu0 0
        %6546 = vmatprep.subr.bf16.mxu0 0
        %6547 = vmatpush1.bf16.msra.mxu0 0
        %6548 = vmatprep.subr.bf16.mxu0 0
        %6549 = vmatpush1.bf16.msra.mxu0 0
        %6550 = vmatprep.subr.bf16.mxu0 0
        %6551 = vmatpush1.bf16.msra.mxu0 0
        %6552 = vmatprep.subr.bf16.mxu0 0
        %6553 = vmatpush1.bf16.msra.mxu0 0
        %6554 = vmatprep.subr.bf16.mxu0 0
        %6555 = vmatpush1.bf16.msra.mxu0 0
        %6556 = vmatprep.subr.bf16.mxu0 0
        %6557 = vmatpush1.bf16.msra.mxu0 0
        %6558 = vmatprep.subr.bf16.mxu0 0
        %6559 = vmatpush1.bf16.msra.mxu0 0
        %6560 = vmatprep.mubr.bf16.mxu0 0
        %6561 = vmatmul.mubr.bf16.gmra.mrb[0].mxu0 %v6526
        %v6562 = vpop.f32.mrb[0].mxu0
        %v6563 = vadd.f32 0.0, %v6562
        %v6564 = vpop.f32.mrb[0].mxu0
        %v6565 = vpop.f32.mrb[0].mxu0
        %v6566 = vpop.f32.mrb[0].mxu0
        %6567 = vdwg.mxu0
        %v6568 = vadd.f32 %v6512, %v6563
        %v6569 = vld [vmem:[#allocation3 + $0x10] sm:$0x1]
        %s6570 = scalar_lea.vmem %s5, 48
        %v6571 = vld [vmem:[%s6570] sm:$0xf]
        %v6572 = vld [vmem:[%s6570 + $0x4] sm:$0xf]
        %v6575 = vunpack.c.l.b16 %v6571
        %v6576 = vunpack.c.l.b16 %v6572
        %v6577 = vpack.c.b16 %v6576, %v6575
        %v6580 = vsel %vm6222, %v6569, 0
        %6582 = vmatprep.subr.bf16.mxu0 0
        %6583 = vmatpush1.bf16.msra.mxu0 %v6577
        %6584 = vmatprep.subr.bf16.mxu0 0
        %6585 = vmatpush1.bf16.msra.mxu0 0
        %6586 = vmatprep.subr.bf16.mxu0 0
        %6587 = vmatpush1.bf16.msra.mxu0 0
        %6588 = vmatprep.subr.bf16.mxu0 0
        %6589 = vmatpush1.bf16.msra.mxu0 0
        %6590 = vmatprep.subr.bf16.mxu0 0
        %6591 = vmatpush1.bf16.msra.mxu0 0
        %6592 = vmatprep.subr.bf16.mxu0 0
        %6593 = vmatpush1.bf16.msra.mxu0 0
        %6594 = vmatprep.subr.bf16.mxu0 0
        %6595 = vmatpush1.bf16.msra.mxu0 0
        %6596 = vmatprep.subr.bf16.mxu0 0
        %6597 = vmatpush1.bf16.msra.mxu0 0
        %6598 = vmatprep.subr.bf16.mxu0 0
        %6599 = vmatpush1.bf16.msra.mxu0 0
        %6600 = vmatprep.subr.bf16.mxu0 0
        %6601 = vmatpush1.bf16.msra.mxu0 0
        %6602 = vmatprep.subr.bf16.mxu0 0
        %6603 = vmatpush1.bf16.msra.mxu0 0
        %6604 = vmatprep.subr.bf16.mxu0 0
        %6605 = vmatpush1.bf16.msra.mxu0 0
        %6606 = vmatprep.subr.bf16.mxu0 0
        %6607 = vmatpush1.bf16.msra.mxu0 0
        %6608 = vmatprep.subr.bf16.mxu0 0
        %6609 = vmatpush1.bf16.msra.mxu0 0
        %6610 = vmatprep.subr.bf16.mxu0 0
        %6611 = vmatpush1.bf16.msra.mxu0 0
        %6612 = vmatprep.subr.bf16.mxu0 0
        %6613 = vmatpush1.bf16.msra.mxu0 0
        %6614 = vmatprep.mubr.bf16.mxu0 0
        %6615 = vmatmul.mubr.bf16.gmra.mrb[0].mxu0 %v6580
        %v6616 = vpop.f32.mrb[0].mxu0
        %v6617 = vadd.f32 0.0, %v6616
        %v6618 = vpop.f32.mrb[0].mxu0
        %v6619 = vpop.f32.mrb[0].mxu0
        %v6620 = vpop.f32.mrb[0].mxu0
        %6621 = vdwg.mxu0
        %v6622 = vadd.f32 %v6568, %v6617
        %v6623 = vld [vmem:[#allocation3 + $0x10] sm:$0x2]
        %s6624 = scalar_lea.vmem %s5, 56
        %v6625 = vld [vmem:[%s6624] sm:$0xf]
        %v6626 = vld [vmem:[%s6624 + $0x4] sm:$0xf]
        %v6628 = vrot.slane %v6623, 1
        %v6631 = vunpack.c.l.b16 %v6625
        %v6632 = vunpack.c.l.b16 %v6626
        %v6633 = vpack.c.b16 %v6632, %v6631
        %v6636 = vsel %vm6222, %v6628, 0
        %6638 = vmatprep.subr.bf16.mxu0 0
        %6639 = vmatpush1.bf16.msra.mxu0 %v6633
        %6640 = vmatprep.subr.bf16.mxu0 0
        %6641 = vmatpush1.bf16.msra.mxu0 0
        %6642 = vmatprep.subr.bf16.mxu0 0
        %6643 = vmatpush1.bf16.msra.mxu0 0
        %6644 = vmatprep.subr.bf16.mxu0 0
        %6645 = vmatpush1.bf16.msra.mxu0 0
        %6646 = vmatprep.subr.bf16.mxu0 0
        %6647 = vmatpush1.bf16.msra.mxu0 0
        %6648 = vmatprep.subr.bf16.mxu0 0
        %6649 = vmatpush1.bf16.msra.mxu0 0
        %6650 = vmatprep.subr.bf16.mxu0 0
        %6651 = vmatpush1.bf16.msra.mxu0 0
        %6652 = vmatprep.subr.bf16.mxu0 0
        %6653 = vmatpush1.bf16.msra.mxu0 0
        %6654 = vmatprep.subr.bf16.mxu0 0
        %6655 = vmatpush1.bf16.msra.mxu0 0
        %6656 = vmatprep.subr.bf16.mxu0 0
        %6657 = vmatpush1.bf16.msra.mxu0 0
        %6658 = vmatprep.subr.bf16.mxu0 0
        %6659 = vmatpush1.bf16.msra.mxu0 0
        %6660 = vmatprep.subr.bf16.mxu0 0
        %6661 = vmatpush1.bf16.msra.mxu0 0
        %6662 = vmatprep.subr.bf16.mxu0 0
        %6663 = vmatpush1.bf16.msra.mxu0 0
        %6664 = vmatprep.subr.bf16.mxu0 0
        %6665 = vmatpush1.bf16.msra.mxu0 0
        %6666 = vmatprep.subr.bf16.mxu0 0
        %6667 = vmatpush1.bf16.msra.mxu0 0
        %6668 = vmatprep.subr.bf16.mxu0 0
        %6669 = vmatpush1.bf16.msra.mxu0 0
        %6670 = vmatprep.mubr.bf16.mxu0 0
        %6671 = vmatmul.mubr.bf16.gmra.mrb[0].mxu0 %v6636
        %v6672 = vpop.f32.mrb[0].mxu0
        %v6673 = vadd.f32 0.0, %v6672
        %v6674 = vpop.f32.mrb[0].mxu0
        %v6675 = vpop.f32.mrb[0].mxu0
        %v6676 = vpop.f32.mrb[0].mxu0
        %6677 = vdwg.mxu0
        %v6678 = vadd.f32 %v6622, %v6673
        %v6679 = vld [vmem:[#allocation3 + $0x10] sm:$0x4]
        %s6680 = scalar_lea.vmem %s5, 64
        %v6681 = vld [vmem:[%s6680] sm:$0xf]
        %v6682 = vld [vmem:[%s6680 + $0x4] sm:$0xf]
        %v6684 = vrot.slane %v6679, 2
        %v6687 = vunpack.c.l.b16 %v6681
        %v6688 = vunpack.c.l.b16 %v6682
        %v6689 = vpack.c.b16 %v6688, %v6687
        %v6692 = vsel %vm6222, %v6684, 0
        %6694 = vmatprep.subr.bf16.mxu0 0
        %6695 = vmatpush1.bf16.msra.mxu0 %v6689
        %6696 = vmatprep.subr.bf16.mxu0 0
        %6697 = vmatpush1.bf16.msra.mxu0 0
        %6698 = vmatprep.subr.bf16.mxu0 0
        %6699 = vmatpush1.bf16.msra.mxu0 0
        %6700 = vmatprep.subr.bf16.mxu0 0
        %6701 = vmatpush1.bf16.msra.mxu0 0
        %6702 = vmatprep.subr.bf16.mxu0 0
        %6703 = vmatpush1.bf16.msra.mxu0 0
        %6704 = vmatprep.subr.bf16.mxu0 0
        %6705 = vmatpush1.bf16.msra.mxu0 0
        %6706 = vmatprep.subr.bf16.mxu0 0
        %6707 = vmatpush1.bf16.msra.mxu0 0
        %6708 = vmatprep.subr.bf16.mxu0 0
        %6709 = vmatpush1.bf16.msra.mxu0 0
        %6710 = vmatprep.subr.bf16.mxu0 0
        %6711 = vmatpush1.bf16.msra.mxu0 0
        %6712 = vmatprep.subr.bf16.mxu0 0
        %6713 = vmatpush1.bf16.msra.mxu0 0
        %6714 = vmatprep.subr.bf16.mxu0 0
        %6715 = vmatpush1.bf16.msra.mxu0 0
        %6716 = vmatprep.subr.bf16.mxu0 0
        %6717 = vmatpush1.bf16.msra.mxu0 0
        %6718 = vmatprep.subr.bf16.mxu0 0
        %6719 = vmatpush1.bf16.msra.mxu0 0
        %6720 = vmatprep.subr.bf16.mxu0 0
        %6721 = vmatpush1.bf16.msra.mxu0 0
        %6722 = vmatprep.subr.bf16.mxu0 0
        %6723 = vmatpush1.bf16.msra.mxu0 0
        %6724 = vmatprep.subr.bf16.mxu0 0
        %6725 = vmatpush1.bf16.msra.mxu0 0
        %6726 = vmatprep.mubr.bf16.mxu0 0
        %6727 = vmatmul.mubr.bf16.gmra.mrb[0].mxu0 %v6692
        %v6728 = vpop.f32.mrb[0].mxu0
        %v6729 = vadd.f32 0.0, %v6728
        %v6730 = vpop.f32.mrb[0].mxu0
        %v6731 = vpop.f32.mrb[0].mxu0
        %v6732 = vpop.f32.mrb[0].mxu0
        %6733 = vdwg.mxu0
        %v6734 = vadd.f32 %v6678, %v6729
        %v6735 = vld [vmem:[#allocation3 + $0x10] sm:$0x8]
        %s6736 = scalar_lea.vmem %s5, 72
        %v6737 = vld [vmem:[%s6736] sm:$0xf]
        %v6738 = vld [vmem:[%s6736 + $0x4] sm:$0xf]
        %v6740 = vrot.slane %v6735, 3
        %v6743 = vunpack.c.l.b16 %v6737
        %v6744 = vunpack.c.l.b16 %v6738
        %v6745 = vpack.c.b16 %v6744, %v6743
        %v6748 = vsel %vm6222, %v6740, 0
        %6750 = vmatprep.subr.bf16.mxu0 0
        %6751 = vmatpush1.bf16.msra.mxu0 %v6745
        %6752 = vmatprep.subr.bf16.mxu0 0
        %6753 = vmatpush1.bf16.msra.mxu0 0
        %6754 = vmatprep.subr.bf16.mxu0 0
        %6755 = vmatpush1.bf16.msra.mxu0 0
        %6756 = vmatprep.subr.bf16.mxu0 0
        %6757 = vmatpush1.bf16.msra.mxu0 0
        %6758 = vmatprep.subr.bf16.mxu0 0
        %6759 = vmatpush1.bf16.msra.mxu0 0
        %6760 = vmatprep.subr.bf16.mxu0 0
        %6761 = vmatpush1.bf16.msra.mxu0 0
        %6762 = vmatprep.subr.bf16.mxu0 0
        %6763 = vmatpush1.bf16.msra.mxu0 0
        %6764 = vmatprep.subr.bf16.mxu0 0
        %6765 = vmatpush1.bf16.msra.mxu0 0
        %6766 = vmatprep.subr.bf16.mxu0 0
        %6767 = vmatpush1.bf16.msra.mxu0 0
        %6768 = vmatprep.subr.bf16.mxu0 0
        %6769 = vmatpush1.bf16.msra.mxu0 0
        %6770 = vmatprep.subr.bf16.mxu0 0
        %6771 = vmatpush1.bf16.msra.mxu0 0
        %6772 = vmatprep.subr.bf16.mxu0 0
        %6773 = vmatpush1.bf16.msra.mxu0 0
        %6774 = vmatprep.subr.bf16.mxu0 0
        %6775 = vmatpush1.bf16.msra.mxu0 0
        %6776 = vmatprep.subr.bf16.mxu0 0
        %6777 = vmatpush1.bf16.msra.mxu0 0
        %6778 = vmatprep.subr.bf16.mxu0 0
        %6779 = vmatpush1.bf16.msra.mxu0 0
        %6780 = vmatprep.subr.bf16.mxu0 0
        %6781 = vmatpush1.bf16.msra.mxu0 0
        %6782 = vmatprep.mubr.bf16.mxu0 0
        %6783 = vmatmul.mubr.bf16.gmra.mrb[0].mxu0 %v6748
        %v6784 = vpop.f32.mrb[0].mxu0
        %v6785 = vadd.f32 0.0, %v6784
        %v6786 = vpop.f32.mrb[0].mxu0
        %v6787 = vpop.f32.mrb[0].mxu0
        %v6788 = vpop.f32.mrb[0].mxu0
        %6789 = vdwg.mxu0
        %v6790 = vadd.f32 %v6734, %v6785
        %v6791 = vld [vmem:[#allocation3 + $0x10] sm:$0x10]
        %s6792 = scalar_lea.vmem %s5, 80
        %v6793 = vld [vmem:[%s6792] sm:$0xf]
        %v6794 = vld [vmem:[%s6792 + $0x4] sm:$0xf]
        %v6796 = vrot.slane %v6791, 4
        %v6799 = vunpack.c.l.b16 %v6793
        %v6800 = vunpack.c.l.b16 %v6794
        %v6801 = vpack.c.b16 %v6800, %v6799
        %v6804 = vsel %vm6222, %v6796, 0
        %6806 = vmatprep.subr.bf16.mxu0 0
        %6807 = vmatpush1.bf16.msra.mxu0 %v6801
        %6808 = vmatprep.subr.bf16.mxu0 0
        %6809 = vmatpush1.bf16.msra.mxu0 0
        %6810 = vmatprep.subr.bf16.mxu0 0
        %6811 = vmatpush1.bf16.msra.mxu0 0
        %6812 = vmatprep.subr.bf16.mxu0 0
        %6813 = vmatpush1.bf16.msra.mxu0 0
        %6814 = vmatprep.subr.bf16.mxu0 0
        %6815 = vmatpush1.bf16.msra.mxu0 0
        %6816 = vmatprep.subr.bf16.mxu0 0
        %6817 = vmatpush1.bf16.msra.mxu0 0
        %6818 = vmatprep.subr.bf16.mxu0 0
        %6819 = vmatpush1.bf16.msra.mxu0 0
        %6820 = vmatprep.subr.bf16.mxu0 0
        %6821 = vmatpush1.bf16.msra.mxu0 0
        %6822 = vmatprep.subr.bf16.mxu0 0
        %6823 = vmatpush1.bf16.msra.mxu0 0
        %6824 = vmatprep.subr.bf16.mxu0 0
        %6825 = vmatpush1.bf16.msra.mxu0 0
        %6826 = vmatprep.subr.bf16.mxu0 0
        %6827 = vmatpush1.bf16.msra.mxu0 0
        %6828 = vmatprep.subr.bf16.mxu0 0
        %6829 = vmatpush1.bf16.msra.mxu0 0
        %6830 = vmatprep.subr.bf16.mxu0 0
        %6831 = vmatpush1.bf16.msra.mxu0 0
        %6832 = vmatprep.subr.bf16.mxu0 0
        %6833 = vmatpush1.bf16.msra.mxu0 0
        %6834 = vmatprep.subr.bf16.mxu0 0
        %6835 = vmatpush1.bf16.msra.mxu0 0
        %6836 = vmatprep.subr.bf16.mxu0 0
        %6837 = vmatpush1.bf16.msra.mxu0 0
        %6838 = vmatprep.mubr.bf16.mxu0 0
        %6839 = vmatmul.mubr.bf16.gmra.mrb[0].mxu0 %v6804
        %v6840 = vpop.f32.mrb[0].mxu0
        %v6841 = vadd.f32 0.0, %v6840
        %v6842 = vpop.f32.mrb[0].mxu0
        %v6843 = vpop.f32.mrb[0].mxu0
        %v6844 = vpop.f32.mrb[0].mxu0
        %6845 = vdwg.mxu0
        %v6846 = vadd.f32 %v6790, %v6841
        %v6847 = vld [vmem:[#allocation3 + $0x10] sm:$0x20]
        %s6848 = scalar_lea.vmem %s5, 88
        %v6849 = vld [vmem:[%s6848] sm:$0xf]
        %v6850 = vld [vmem:[%s6848 + $0x4] sm:$0xf]
        %v6852 = vrot.slane %v6847, 5
        %v6855 = vunpack.c.l.b16 %v6849
        %v6856 = vunpack.c.l.b16 %v6850
        %v6857 = vpack.c.b16 %v6856, %v6855
        %v6860 = vsel %vm6222, %v6852, 0
        %6862 = vmatprep.subr.bf16.mxu0 0
        %6863 = vmatpush1.bf16.msra.mxu0 %v6857
        %6864 = vmatprep.subr.bf16.mxu0 0
        %6865 = vmatpush1.bf16.msra.mxu0 0
        %6866 = vmatprep.subr.bf16.mxu0 0
        %6867 = vmatpush1.bf16.msra.mxu0 0
        %6868 = vmatprep.subr.bf16.mxu0 0
        %6869 = vmatpush1.bf16.msra.mxu0 0
        %6870 = vmatprep.subr.bf16.mxu0 0
        %6871 = vmatpush1.bf16.msra.mxu0 0
        %6872 = vmatprep.subr.bf16.mxu0 0
        %6873 = vmatpush1.bf16.msra.mxu0 0
        %6874 = vmatprep.subr.bf16.mxu0 0
        %6875 = vmatpush1.bf16.msra.mxu0 0
        %6876 = vmatprep.subr.bf16.mxu0 0
        %6877 = vmatpush1.bf16.msra.mxu0 0
        %6878 = vmatprep.subr.bf16.mxu0 0
        %6879 = vmatpush1.bf16.msra.mxu0 0
        %6880 = vmatprep.subr.bf16.mxu0 0
        %6881 = vmatpush1.bf16.msra.mxu0 0
        %6882 = vmatprep.subr.bf16.mxu0 0
        %6883 = vmatpush1.bf16.msra.mxu0 0
        %6884 = vmatprep.subr.bf16.mxu0 0
        %6885 = vmatpush1.bf16.msra.mxu0 0
        %6886 = vmatprep.subr.bf16.mxu0 0
        %6887 = vmatpush1.bf16.msra.mxu0 0
        %6888 = vmatprep.subr.bf16.mxu0 0
        %6889 = vmatpush1.bf16.msra.mxu0 0
        %6890 = vmatprep.subr.bf16.mxu0 0
        %6891 = vmatpush1.bf16.msra.mxu0 0
        %6892 = vmatprep.subr.bf16.mxu0 0
        %6893 = vmatpush1.bf16.msra.mxu0 0
        %6894 = vmatprep.mubr.bf16.mxu0 0
        %6895 = vmatmul.mubr.bf16.gmra.mrb[0].mxu0 %v6860
        %v6896 = vpop.f32.mrb[0].mxu0
        %v6897 = vadd.f32 0.0, %v6896
        %v6898 = vpop.f32.mrb[0].mxu0
        %v6899 = vpop.f32.mrb[0].mxu0
        %v6900 = vpop.f32.mrb[0].mxu0
        %6901 = vdwg.mxu0
        %v6902 = vadd.f32 %v6846, %v6897
        %v6903 = vld [vmem:[#allocation3 + $0x20] sm:$0x1]
        %s6904 = scalar_lea.vmem %s5, 96
        %v6905 = vld [vmem:[%s6904] sm:$0xf]
        %v6906 = vld [vmem:[%s6904 + $0x4] sm:$0xf]
        %v6909 = vunpack.c.l.b16 %v6905
        %v6910 = vunpack.c.l.b16 %v6906
        %v6911 = vpack.c.b16 %v6910, %v6909
        %v6914 = vsel %vm6222, %v6903, 0
        %6916 = vmatprep.subr.bf16.mxu0 0
        %6917 = vmatpush1.bf16.msra.mxu0 %v6911
        %6918 = vmatprep.subr.bf16.mxu0 0
        %6919 = vmatpush1.bf16.msra.mxu0 0
        %6920 = vmatprep.subr.bf16.mxu0 0
        %6921 = vmatpush1.bf16.msra.mxu0 0
        %6922 = vmatprep.subr.bf16.mxu0 0
        %6923 = vmatpush1.bf16.msra.mxu0 0
        %6924 = vmatprep.subr.bf16.mxu0 0
        %6925 = vmatpush1.bf16.msra.mxu0 0
        %6926 = vmatprep.subr.bf16.mxu0 0
        %6927 = vmatpush1.bf16.msra.mxu0 0
        %6928 = vmatprep.subr.bf16.mxu0 0
        %6929 = vmatpush1.bf16.msra.mxu0 0
        %6930 = vmatprep.subr.bf16.mxu0 0
        %6931 = vmatpush1.bf16.msra.mxu0 0
        %6932 = vmatprep.subr.bf16.mxu0 0
        %6933 = vmatpush1.bf16.msra.mxu0 0
        %6934 = vmatprep.subr.bf16.mxu0 0
        %6935 = vmatpush1.bf16.msra.mxu0 0
        %6936 = vmatprep.subr.bf16.mxu0 0
        %6937 = vmatpush1.bf16.msra.mxu0 0
        %6938 = vmatprep.subr.bf16.mxu0 0
        %6939 = vmatpush1.bf16.msra.mxu0 0
        %6940 = vmatprep.subr.bf16.mxu0 0
        %6941 = vmatpush1.bf16.msra.mxu0 0
        %6942 = vmatprep.subr.bf16.mxu0 0
        %6943 = vmatpush1.bf16.msra.mxu0 0
        %6944 = vmatprep.subr.bf16.mxu0 0
        %6945 = vmatpush1.bf16.msra.mxu0 0
        %6946 = vmatprep.subr.bf16.mxu0 0
        %6947 = vmatpush1.bf16.msra.mxu0 0
        %6948 = vmatprep.mubr.bf16.mxu0 0
        %6949 = vmatmul.mubr.bf16.gmra.mrb[0].mxu0 %v6914
        %v6950 = vpop.f32.mrb[0].mxu0
        %v6951 = vadd.f32 0.0, %v6950
        %v6952 = vpop.f32.mrb[0].mxu0
        %v6953 = vpop.f32.mrb[0].mxu0
        %v6954 = vpop.f32.mrb[0].mxu0
        %6955 = vdwg.mxu0
        %v6956 = vadd.f32 %v6902, %v6951
        %v6957 = vld [vmem:[#allocation3 + $0x20] sm:$0x2]
        %s6958 = scalar_lea.vmem %s5, 104
        %v6959 = vld [vmem:[%s6958] sm:$0xf]
        %v6960 = vld [vmem:[%s6958 + $0x4] sm:$0xf]
        %v6962 = vrot.slane %v6957, 1
        %v6965 = vunpack.c.l.b16 %v6959
        %v6966 = vunpack.c.l.b16 %v6960
        %v6967 = vpack.c.b16 %v6966, %v6965
        %v6970 = vsel %vm6222, %v6962, 0
        %6972 = vmatprep.subr.bf16.mxu0 0
        %6973 = vmatpush1.bf16.msra.mxu0 %v6967
        %6974 = vmatprep.subr.bf16.mxu0 0
        %6975 = vmatpush1.bf16.msra.mxu0 0
        %6976 = vmatprep.subr.bf16.mxu0 0
        %6977 = vmatpush1.bf16.msra.mxu0 0
        %6978 = vmatprep.subr.bf16.mxu0 0
        %6979 = vmatpush1.bf16.msra.mxu0 0
        %6980 = vmatprep.subr.bf16.mxu0 0
        %6981 = vmatpush1.bf16.msra.mxu0 0
        %6982 = vmatprep.subr.bf16.mxu0 0
        %6983 = vmatpush1.bf16.msra.mxu0 0
        %6984 = vmatprep.subr.bf16.mxu0 0
        %6985 = vmatpush1.bf16.msra.mxu0 0
        %6986 = vmatprep.subr.bf16.mxu0 0
        %6987 = vmatpush1.bf16.msra.mxu0 0
        %6988 = vmatprep.subr.bf16.mxu0 0
        %6989 = vmatpush1.bf16.msra.mxu0 0
        %6990 = vmatprep.subr.bf16.mxu0 0
        %6991 = vmatpush1.bf16.msra.mxu0 0
        %6992 = vmatprep.subr.bf16.mxu0 0
        %6993 = vmatpush1.bf16.msra.mxu0 0
        %6994 = vmatprep.subr.bf16.mxu0 0
        %6995 = vmatpush1.bf16.msra.mxu0 0
        %6996 = vmatprep.subr.bf16.mxu0 0
        %6997 = vmatpush1.bf16.msra.mxu0 0
        %6998 = vmatprep.subr.bf16.mxu0 0
        %6999 = vmatpush1.bf16.msra.mxu0 0
        %7000 = vmatprep.subr.bf16.mxu0 0
        %7001 = vmatpush1.bf16.msra.mxu0 0
        %7002 = vmatprep.subr.bf16.mxu0 0
        %7003 = vmatpush1.bf16.msra.mxu0 0
        %7004 = vmatprep.mubr.bf16.mxu0 0
        %7005 = vmatmul.mubr.bf16.gmra.mrb[0].mxu0 %v6970
        %v7006 = vpop.f32.mrb[0].mxu0
        %v7007 = vadd.f32 0.0, %v7006
        %v7008 = vpop.f32.mrb[0].mxu0
        %v7009 = vpop.f32.mrb[0].mxu0
        %v7010 = vpop.f32.mrb[0].mxu0
        %7011 = vdwg.mxu0
        %v7012 = vadd.f32 %v6956, %v7007
        %v7013 = vld [vmem:[#allocation3 + $0x20] sm:$0x4]
        %s7014 = scalar_lea.vmem %s5, 112
        %v7015 = vld [vmem:[%s7014] sm:$0xf]
        %v7016 = vld [vmem:[%s7014 + $0x4] sm:$0xf]
        %v7018 = vrot.slane %v7013, 2
        %v7021 = vunpack.c.l.b16 %v7015
        %v7022 = vunpack.c.l.b16 %v7016
        %v7023 = vpack.c.b16 %v7022, %v7021
        %v7026 = vsel %vm6222, %v7018, 0
        %7028 = vmatprep.subr.bf16.mxu0 0
        %7029 = vmatpush1.bf16.msra.mxu0 %v7023
        %7030 = vmatprep.subr.bf16.mxu0 0
        %7031 = vmatpush1.bf16.msra.mxu0 0
        %7032 = vmatprep.subr.bf16.mxu0 0
        %7033 = vmatpush1.bf16.msra.mxu0 0
        %7034 = vmatprep.subr.bf16.mxu0 0
        %7035 = vmatpush1.bf16.msra.mxu0 0
        %7036 = vmatprep.subr.bf16.mxu0 0
        %7037 = vmatpush1.bf16.msra.mxu0 0
        %7038 = vmatprep.subr.bf16.mxu0 0
        %7039 = vmatpush1.bf16.msra.mxu0 0
        %7040 = vmatprep.subr.bf16.mxu0 0
        %7041 = vmatpush1.bf16.msra.mxu0 0
        %7042 = vmatprep.subr.bf16.mxu0 0
        %7043 = vmatpush1.bf16.msra.mxu0 0
        %7044 = vmatprep.subr.bf16.mxu0 0
        %7045 = vmatpush1.bf16.msra.mxu0 0
        %7046 = vmatprep.subr.bf16.mxu0 0
        %7047 = vmatpush1.bf16.msra.mxu0 0
        %7048 = vmatprep.subr.bf16.mxu0 0
        %7049 = vmatpush1.bf16.msra.mxu0 0
        %7050 = vmatprep.subr.bf16.mxu0 0
        %7051 = vmatpush1.bf16.msra.mxu0 0
        %7052 = vmatprep.subr.bf16.mxu0 0
        %7053 = vmatpush1.bf16.msra.mxu0 0
        %7054 = vmatprep.subr.bf16.mxu0 0
        %7055 = vmatpush1.bf16.msra.mxu0 0
        %7056 = vmatprep.subr.bf16.mxu0 0
        %7057 = vmatpush1.bf16.msra.mxu0 0
        %7058 = vmatprep.subr.bf16.mxu0 0
        %7059 = vmatpush1.bf16.msra.mxu0 0
        %7060 = vmatprep.mubr.bf16.mxu0 0
        %7061 = vmatmul.mubr.bf16.gmra.mrb[0].mxu0 %v7026
        %v7062 = vpop.f32.mrb[0].mxu0
        %v7063 = vadd.f32 0.0, %v7062
        %v7064 = vpop.f32.mrb[0].mxu0
        %v7065 = vpop.f32.mrb[0].mxu0
        %v7066 = vpop.f32.mrb[0].mxu0
        %7067 = vdwg.mxu0
        %v7068 = vadd.f32 %v7012, %v7063
        %v7069 = vld [vmem:[#allocation3 + $0x20] sm:$0x8]
        %s7070 = scalar_lea.vmem %s5, 120
        %v7071 = vld [vmem:[%s7070] sm:$0xf]
        %v7072 = vld [vmem:[%s7070 + $0x4] sm:$0xf]
        %v7074 = vrot.slane %v7069, 3
        %v7077 = vunpack.c.l.b16 %v7071
        %v7078 = vunpack.c.l.b16 %v7072
        %v7079 = vpack.c.b16 %v7078, %v7077
        %v7082 = vsel %vm6222, %v7074, 0
        %7084 = vmatprep.subr.bf16.mxu0 0
        %7085 = vmatpush1.bf16.msra.mxu0 %v7079
        %7086 = vmatprep.subr.bf16.mxu0 0
        %7087 = vmatpush1.bf16.msra.mxu0 0
        %7088 = vmatprep.subr.bf16.mxu0 0
        %7089 = vmatpush1.bf16.msra.mxu0 0
        %7090 = vmatprep.subr.bf16.mxu0 0
        %7091 = vmatpush1.bf16.msra.mxu0 0
        %7092 = vmatprep.subr.bf16.mxu0 0
        %7093 = vmatpush1.bf16.msra.mxu0 0
        %7094 = vmatprep.subr.bf16.mxu0 0
        %7095 = vmatpush1.bf16.msra.mxu0 0
        %7096 = vmatprep.subr.bf16.mxu0 0
        %7097 = vmatpush1.bf16.msra.mxu0 0
        %7098 = vmatprep.subr.bf16.mxu0 0
        %7099 = vmatpush1.bf16.msra.mxu0 0
        %7100 = vmatprep.subr.bf16.mxu0 0
        %7101 = vmatpush1.bf16.msra.mxu0 0
        %7102 = vmatprep.subr.bf16.mxu0 0
        %7103 = vmatpush1.bf16.msra.mxu0 0
        %7104 = vmatprep.subr.bf16.mxu0 0
        %7105 = vmatpush1.bf16.msra.mxu0 0
        %7106 = vmatprep.subr.bf16.mxu0 0
        %7107 = vmatpush1.bf16.msra.mxu0 0
        %7108 = vmatprep.subr.bf16.mxu0 0
        %7109 = vmatpush1.bf16.msra.mxu0 0
        %7110 = vmatprep.subr.bf16.mxu0 0
        %7111 = vmatpush1.bf16.msra.mxu0 0
        %7112 = vmatprep.subr.bf16.mxu0 0
        %7113 = vmatpush1.bf16.msra.mxu0 0
        %7114 = vmatprep.subr.bf16.mxu0 0
        %7115 = vmatpush1.bf16.msra.mxu0 0
        %7116 = vmatprep.mubr.bf16.mxu0 0
        %7117 = vmatmul.mubr.bf16.gmra.mrb[0].mxu0 %v7082
        %v7118 = vpop.f32.mrb[0].mxu0
        %v7119 = vadd.f32 0.0, %v7118
        %v7120 = vpop.f32.mrb[0].mxu0
        %v7121 = vpop.f32.mrb[0].mxu0
        %v7122 = vpop.f32.mrb[0].mxu0
        %7123 = vdwg.mxu0
        %v7124 = vadd.f32 %v7068, %v7119
        %v7125 = vld [vmem:[#allocation3 + $0x20] sm:$0x10]
        %s7126 = scalar_lea.vmem %s5, 128
        %v7127 = vld [vmem:[%s7126] sm:$0xf]
        %v7128 = vld [vmem:[%s7126 + $0x4] sm:$0xf]
        %v7130 = vrot.slane %v7125, 4
        %v7133 = vunpack.c.l.b16 %v7127
        %v7134 = vunpack.c.l.b16 %v7128
        %v7135 = vpack.c.b16 %v7134, %v7133
        %v7138 = vsel %vm6222, %v7130, 0
        %7140 = vmatprep.subr.bf16.mxu0 0
        %7141 = vmatpush1.bf16.msra.mxu0 %v7135
        %7142 = vmatprep.subr.bf16.mxu0 0
        %7143 = vmatpush1.bf16.msra.mxu0 0
        %7144 = vmatprep.subr.bf16.mxu0 0
        %7145 = vmatpush1.bf16.msra.mxu0 0
        %7146 = vmatprep.subr.bf16.mxu0 0
        %7147 = vmatpush1.bf16.msra.mxu0 0
        %7148 = vmatprep.subr.bf16.mxu0 0
        %7149 = vmatpush1.bf16.msra.mxu0 0
        %7150 = vmatprep.subr.bf16.mxu0 0
        %7151 = vmatpush1.bf16.msra.mxu0 0
        %7152 = vmatprep.subr.bf16.mxu0 0
        %7153 = vmatpush1.bf16.msra.mxu0 0
        %7154 = vmatprep.subr.bf16.mxu0 0
        %7155 = vmatpush1.bf16.msra.mxu0 0
        %7156 = vmatprep.subr.bf16.mxu0 0
        %7157 = vmatpush1.bf16.msra.mxu0 0
        %7158 = vmatprep.subr.bf16.mxu0 0
        %7159 = vmatpush1.bf16.msra.mxu0 0
        %7160 = vmatprep.subr.bf16.mxu0 0
        %7161 = vmatpush1.bf16.msra.mxu0 0
        %7162 = vmatprep.subr.bf16.mxu0 0
        %7163 = vmatpush1.bf16.msra.mxu0 0
        %7164 = vmatprep.subr.bf16.mxu0 0
        %7165 = vmatpush1.bf16.msra.mxu0 0
        %7166 = vmatprep.subr.bf16.mxu0 0
        %7167 = vmatpush1.bf16.msra.mxu0 0
        %7168 = vmatprep.subr.bf16.mxu0 0
        %7169 = vmatpush1.bf16.msra.mxu0 0
        %7170 = vmatprep.subr.bf16.mxu0 0
        %7171 = vmatpush1.bf16.msra.mxu0 0
        %7172 = vmatprep.mubr.bf16.mxu0 0
        %7173 = vmatmul.mubr.bf16.gmra.mrb[0].mxu0 %v7138
        %v7174 = vpop.f32.mrb[0].mxu0
        %v7175 = vadd.f32 0.0, %v7174
        %v7176 = vpop.f32.mrb[0].mxu0
        %v7177 = vpop.f32.mrb[0].mxu0
        %v7178 = vpop.f32.mrb[0].mxu0
        %7179 = vdwg.mxu0
        %v7180 = vadd.f32 %v7124, %v7175
        %v7181 = vld [vmem:[#allocation3 + $0x20] sm:$0x20]
        %s7182 = scalar_lea.vmem %s5, 136
        %v7183 = vld [vmem:[%s7182] sm:$0xf]
        %v7184 = vld [vmem:[%s7182 + $0x4] sm:$0xf]
        %v7186 = vrot.slane %v7181, 5
        %v7189 = vunpack.c.l.b16 %v7183
        %v7190 = vunpack.c.l.b16 %v7184
        %v7191 = vpack.c.b16 %v7190, %v7189
        %v7194 = vsel %vm6222, %v7186, 0
        %7196 = vmatprep.subr.bf16.mxu0 0
        %7197 = vmatpush1.bf16.msra.mxu0 %v7191
        %7198 = vmatprep.subr.bf16.mxu0 0
        %7199 = vmatpush1.bf16.msra.mxu0 0
        %7200 = vmatprep.subr.bf16.mxu0 0
        %7201 = vmatpush1.bf16.msra.mxu0 0
        %7202 = vmatprep.subr.bf16.mxu0 0
        %7203 = vmatpush1.bf16.msra.mxu0 0
        %7204 = vmatprep.subr.bf16.mxu0 0
        %7205 = vmatpush1.bf16.msra.mxu0 0
        %7206 = vmatprep.subr.bf16.mxu0 0
        %7207 = vmatpush1.bf16.msra.mxu0 0
        %7208 = vmatprep.subr.bf16.mxu0 0
        %7209 = vmatpush1.bf16.msra.mxu0 0
        %7210 = vmatprep.subr.bf16.mxu0 0
        %7211 = vmatpush1.bf16.msra.mxu0 0
        %7212 = vmatprep.subr.bf16.mxu0 0
        %7213 = vmatpush1.bf16.msra.mxu0 0
        %7214 = vmatprep.subr.bf16.mxu0 0
        %7215 = vmatpush1.bf16.msra.mxu0 0
        %7216 = vmatprep.subr.bf16.mxu0 0
        %7217 = vmatpush1.bf16.msra.mxu0 0
        %7218 = vmatprep.subr.bf16.mxu0 0
        %7219 = vmatpush1.bf16.msra.mxu0 0
        %7220 = vmatprep.subr.bf16.mxu0 0
        %7221 = vmatpush1.bf16.msra.mxu0 0
        %7222 = vmatprep.subr.bf16.mxu0 0
        %7223 = vmatpush1.bf16.msra.mxu0 0
        %7224 = vmatprep.subr.bf16.mxu0 0
        %7225 = vmatpush1.bf16.msra.mxu0 0
        %7226 = vmatprep.subr.bf16.mxu0 0
        %7227 = vmatpush1.bf16.msra.mxu0 0
        %7228 = vmatprep.mubr.bf16.mxu0 0
        %7229 = vmatmul.mubr.bf16.gmra.mrb[0].mxu0 %v7194
        %v7230 = vpop.f32.mrb[0].mxu0
        %v7231 = vadd.f32 0.0, %v7230
        %v7232 = vpop.f32.mrb[0].mxu0
        %v7233 = vpop.f32.mrb[0].mxu0
        %v7234 = vpop.f32.mrb[0].mxu0
        %7235 = vdwg.mxu0
        %v7236 = vadd.f32 %v7180, %v7231
        %v7237 = vld [vmem:[#allocation3 + $0x30] sm:$0x1]
        %s7238 = scalar_lea.vmem %s5, 144
        %v7239 = vld [vmem:[%s7238] sm:$0xf]
        %v7240 = vld [vmem:[%s7238 + $0x4] sm:$0xf]
        %v7243 = vunpack.c.l.b16 %v7239
        %v7244 = vunpack.c.l.b16 %v7240
        %v7245 = vpack.c.b16 %v7244, %v7243
        %v7248 = vsel %vm6222, %v7237, 0
        %7250 = vmatprep.subr.bf16.mxu0 0
        %7251 = vmatpush1.bf16.msra.mxu0 %v7245
        %7252 = vmatprep.subr.bf16.mxu0 0
        %7253 = vmatpush1.bf16.msra.mxu0 0
        %7254 = vmatprep.subr.bf16.mxu0 0
        %7255 = vmatpush1.bf16.msra.mxu0 0
        %7256 = vmatprep.subr.bf16.mxu0 0
        %7257 = vmatpush1.bf16.msra.mxu0 0
        %7258 = vmatprep.subr.bf16.mxu0 0
        %7259 = vmatpush1.bf16.msra.mxu0 0
        %7260 = vmatprep.subr.bf16.mxu0 0
        %7261 = vmatpush1.bf16.msra.mxu0 0
        %7262 = vmatprep.subr.bf16.mxu0 0
        %7263 = vmatpush1.bf16.msra.mxu0 0
        %7264 = vmatprep.subr.bf16.mxu0 0
        %7265 = vmatpush1.bf16.msra.mxu0 0
        %7266 = vmatprep.subr.bf16.mxu0 0
        %7267 = vmatpush1.bf16.msra.mxu0 0
        %7268 = vmatprep.subr.bf16.mxu0 0
        %7269 = vmatpush1.bf16.msra.mxu0 0
        %7270 = vmatprep.subr.bf16.mxu0 0
        %7271 = vmatpush1.bf16.msra.mxu0 0
        %7272 = vmatprep.subr.bf16.mxu0 0
        %7273 = vmatpush1.bf16.msra.mxu0 0
        %7274 = vmatprep.subr.bf16.mxu0 0
        %7275 = vmatpush1.bf16.msra.mxu0 0
        %7276 = vmatprep.subr.bf16.mxu0 0
        %7277 = vmatpush1.bf16.msra.mxu0 0
        %7278 = vmatprep.subr.bf16.mxu0 0
        %7279 = vmatpush1.bf16.msra.mxu0 0
        %7280 = vmatprep.subr.bf16.mxu0 0
        %7281 = vmatpush1.bf16.msra.mxu0 0
        %7282 = vmatprep.mubr.bf16.mxu0 0
        %7283 = vmatmul.mubr.bf16.gmra.mrb[0].mxu0 %v7248
        %v7284 = vpop.f32.mrb[0].mxu0
        %v7285 = vadd.f32 0.0, %v7284
        %v7286 = vpop.f32.mrb[0].mxu0
        %v7287 = vpop.f32.mrb[0].mxu0
        %v7288 = vpop.f32.mrb[0].mxu0
        %7289 = vdwg.mxu0
        %v7290 = vadd.f32 %v7236, %v7285
        %v7291 = vld [vmem:[#allocation3 + $0x30] sm:$0x2]
        %s7292 = scalar_lea.vmem %s5, 152
        %v7293 = vld [vmem:[%s7292] sm:$0xf]
        %v7294 = vld [vmem:[%s7292 + $0x4] sm:$0xf]
        %v7296 = vrot.slane %v7291, 1
        %v7299 = vunpack.c.l.b16 %v7293
        %v7300 = vunpack.c.l.b16 %v7294
        %v7301 = vpack.c.b16 %v7300, %v7299
        %v7304 = vsel %vm6222, %v7296, 0
        %7306 = vmatprep.subr.bf16.mxu0 0
        %7307 = vmatpush1.bf16.msra.mxu0 %v7301
        %7308 = vmatprep.subr.bf16.mxu0 0
        %7309 = vmatpush1.bf16.msra.mxu0 0
        %7310 = vmatprep.subr.bf16.mxu0 0
        %7311 = vmatpush1.bf16.msra.mxu0 0
        %7312 = vmatprep.subr.bf16.mxu0 0
        %7313 = vmatpush1.bf16.msra.mxu0 0
        %7314 = vmatprep.subr.bf16.mxu0 0
        %7315 = vmatpush1.bf16.msra.mxu0 0
        %7316 = vmatprep.subr.bf16.mxu0 0
        %7317 = vmatpush1.bf16.msra.mxu0 0
        %7318 = vmatprep.subr.bf16.mxu0 0
        %7319 = vmatpush1.bf16.msra.mxu0 0
        %7320 = vmatprep.subr.bf16.mxu0 0
        %7321 = vmatpush1.bf16.msra.mxu0 0
        %7322 = vmatprep.subr.bf16.mxu0 0
        %7323 = vmatpush1.bf16.msra.mxu0 0
        %7324 = vmatprep.subr.bf16.mxu0 0
        %7325 = vmatpush1.bf16.msra.mxu0 0
        %7326 = vmatprep.subr.bf16.mxu0 0
        %7327 = vmatpush1.bf16.msra.mxu0 0
        %7328 = vmatprep.subr.bf16.mxu0 0
        %7329 = vmatpush1.bf16.msra.mxu0 0
        %7330 = vmatprep.subr.bf16.mxu0 0
        %7331 = vmatpush1.bf16.msra.mxu0 0
        %7332 = vmatprep.subr.bf16.mxu0 0
        %7333 = vmatpush1.bf16.msra.mxu0 0
        %7334 = vmatprep.subr.bf16.mxu0 0
        %7335 = vmatpush1.bf16.msra.mxu0 0
        %7336 = vmatprep.subr.bf16.mxu0 0
        %7337 = vmatpush1.bf16.msra.mxu0 0
        %7338 = vmatprep.mubr.bf16.mxu0 0
        %7339 = vmatmul.mubr.bf16.gmra.mrb[0].mxu0 %v7304
        %v7340 = vpop.f32.mrb[0].mxu0
        %v7341 = vadd.f32 0.0, %v7340
        %v7342 = vpop.f32.mrb[0].mxu0
        %v7343 = vpop.f32.mrb[0].mxu0
        %v7344 = vpop.f32.mrb[0].mxu0
        %7345 = vdwg.mxu0
        %v7346 = vadd.f32 %v7290, %v7341
        %v7347 = vld [vmem:[#allocation3 + $0x30] sm:$0x4]
        %s7348 = scalar_lea.vmem %s5, 160
        %v7349 = vld [vmem:[%s7348] sm:$0xf]
        %v7350 = vld [vmem:[%s7348 + $0x4] sm:$0xf]
        %v7352 = vrot.slane %v7347, 2
        %v7355 = vunpack.c.l.b16 %v7349
        %v7356 = vunpack.c.l.b16 %v7350
        %v7357 = vpack.c.b16 %v7356, %v7355
        %v7360 = vsel %vm6222, %v7352, 0
        %7362 = vmatprep.subr.bf16.mxu0 0
        %7363 = vmatpush1.bf16.msra.mxu0 %v7357
        %7364 = vmatprep.subr.bf16.mxu0 0
        %7365 = vmatpush1.bf16.msra.mxu0 0
        %7366 = vmatprep.subr.bf16.mxu0 0
        %7367 = vmatpush1.bf16.msra.mxu0 0
        %7368 = vmatprep.subr.bf16.mxu0 0
        %7369 = vmatpush1.bf16.msra.mxu0 0
        %7370 = vmatprep.subr.bf16.mxu0 0
        %7371 = vmatpush1.bf16.msra.mxu0 0
        %7372 = vmatprep.subr.bf16.mxu0 0
        %7373 = vmatpush1.bf16.msra.mxu0 0
        %7374 = vmatprep.subr.bf16.mxu0 0
        %7375 = vmatpush1.bf16.msra.mxu0 0
        %7376 = vmatprep.subr.bf16.mxu0 0
        %7377 = vmatpush1.bf16.msra.mxu0 0
        %7378 = vmatprep.subr.bf16.mxu0 0
        %7379 = vmatpush1.bf16.msra.mxu0 0
        %7380 = vmatprep.subr.bf16.mxu0 0
        %7381 = vmatpush1.bf16.msra.mxu0 0
        %7382 = vmatprep.subr.bf16.mxu0 0
        %7383 = vmatpush1.bf16.msra.mxu0 0
        %7384 = vmatprep.subr.bf16.mxu0 0
        %7385 = vmatpush1.bf16.msra.mxu0 0
        %7386 = vmatprep.subr.bf16.mxu0 0
        %7387 = vmatpush1.bf16.msra.mxu0 0
        %7388 = vmatprep.subr.bf16.mxu0 0
        %7389 = vmatpush1.bf16.msra.mxu0 0
        %7390 = vmatprep.subr.bf16.mxu0 0
        %7391 = vmatpush1.bf16.msra.mxu0 0
        %7392 = vmatprep.subr.bf16.mxu0 0
        %7393 = vmatpush1.bf16.msra.mxu0 0
        %7394 = vmatprep.mubr.bf16.mxu0 0
        %7395 = vmatmul.mubr.bf16.gmra.mrb[0].mxu0 %v7360
        %v7396 = vpop.f32.mrb[0].mxu0
        %v7397 = vadd.f32 0.0, %v7396
        %v7398 = vpop.f32.mrb[0].mxu0
        %v7399 = vpop.f32.mrb[0].mxu0
        %v7400 = vpop.f32.mrb[0].mxu0
        %7401 = vdwg.mxu0
        %v7402 = vadd.f32 %v7346, %v7397
        %v7403 = vld [vmem:[#allocation3 + $0x30] sm:$0x8]
        %s7404 = scalar_lea.vmem %s5, 168
        %v7405 = vld [vmem:[%s7404] sm:$0xf]
        %v7406 = vld [vmem:[%s7404 + $0x4] sm:$0xf]
        %v7408 = vrot.slane %v7403, 3
        %v7411 = vunpack.c.l.b16 %v7405
        %v7412 = vunpack.c.l.b16 %v7406
        %v7413 = vpack.c.b16 %v7412, %v7411
        %v7416 = vsel %vm6222, %v7408, 0
        %7418 = vmatprep.subr.bf16.mxu0 0
        %7419 = vmatpush1.bf16.msra.mxu0 %v7413
        %7420 = vmatprep.subr.bf16.mxu0 0
        %7421 = vmatpush1.bf16.msra.mxu0 0
        %7422 = vmatprep.subr.bf16.mxu0 0
        %7423 = vmatpush1.bf16.msra.mxu0 0
        %7424 = vmatprep.subr.bf16.mxu0 0
        %7425 = vmatpush1.bf16.msra.mxu0 0
        %7426 = vmatprep.subr.bf16.mxu0 0
        %7427 = vmatpush1.bf16.msra.mxu0 0
        %7428 = vmatprep.subr.bf16.mxu0 0
        %7429 = vmatpush1.bf16.msra.mxu0 0
        %7430 = vmatprep.subr.bf16.mxu0 0
        %7431 = vmatpush1.bf16.msra.mxu0 0
        %7432 = vmatprep.subr.bf16.mxu0 0
        %7433 = vmatpush1.bf16.msra.mxu0 0
        %7434 = vmatprep.subr.bf16.mxu0 0
        %7435 = vmatpush1.bf16.msra.mxu0 0
        %7436 = vmatprep.subr.bf16.mxu0 0
        %7437 = vmatpush1.bf16.msra.mxu0 0
        %7438 = vmatprep.subr.bf16.mxu0 0
        %7439 = vmatpush1.bf16.msra.mxu0 0
        %7440 = vmatprep.subr.bf16.mxu0 0
        %7441 = vmatpush1.bf16.msra.mxu0 0
        %7442 = vmatprep.subr.bf16.mxu0 0
        %7443 = vmatpush1.bf16.msra.mxu0 0
        %7444 = vmatprep.subr.bf16.mxu0 0
        %7445 = vmatpush1.bf16.msra.mxu0 0
        %7446 = vmatprep.subr.bf16.mxu0 0
        %7447 = vmatpush1.bf16.msra.mxu0 0
        %7448 = vmatprep.subr.bf16.mxu0 0
        %7449 = vmatpush1.bf16.msra.mxu0 0
        %7450 = vmatprep.mubr.bf16.mxu0 0
        %7451 = vmatmul.mubr.bf16.gmra.mrb[0].mxu0 %v7416
        %v7452 = vpop.f32.mrb[0].mxu0
        %v7453 = vadd.f32 0.0, %v7452
        %v7454 = vpop.f32.mrb[0].mxu0
        %v7455 = vpop.f32.mrb[0].mxu0
        %v7456 = vpop.f32.mrb[0].mxu0
        %7457 = vdwg.mxu0
        %v7458 = vadd.f32 %v7402, %v7453
        %v7459 = vld [vmem:[#allocation3 + $0x30] sm:$0x10]
        %s7460 = scalar_lea.vmem %s5, 176
        %v7461 = vld [vmem:[%s7460] sm:$0xf]
        %v7462 = vld [vmem:[%s7460 + $0x4] sm:$0xf]
        %v7464 = vrot.slane %v7459, 4
        %v7467 = vunpack.c.l.b16 %v7461
        %v7468 = vunpack.c.l.b16 %v7462
        %v7469 = vpack.c.b16 %v7468, %v7467
        %v7472 = vsel %vm6222, %v7464, 0
        %7474 = vmatprep.subr.bf16.mxu0 0
        %7475 = vmatpush1.bf16.msra.mxu0 %v7469
        %7476 = vmatprep.subr.bf16.mxu0 0
        %7477 = vmatpush1.bf16.msra.mxu0 0
        %7478 = vmatprep.subr.bf16.mxu0 0
        %7479 = vmatpush1.bf16.msra.mxu0 0
        %7480 = vmatprep.subr.bf16.mxu0 0
        %7481 = vmatpush1.bf16.msra.mxu0 0
        %7482 = vmatprep.subr.bf16.mxu0 0
        %7483 = vmatpush1.bf16.msra.mxu0 0
        %7484 = vmatprep.subr.bf16.mxu0 0
        %7485 = vmatpush1.bf16.msra.mxu0 0
        %7486 = vmatprep.subr.bf16.mxu0 0
        %7487 = vmatpush1.bf16.msra.mxu0 0
        %7488 = vmatprep.subr.bf16.mxu0 0
        %7489 = vmatpush1.bf16.msra.mxu0 0
        %7490 = vmatprep.subr.bf16.mxu0 0
        %7491 = vmatpush1.bf16.msra.mxu0 0
        %7492 = vmatprep.subr.bf16.mxu0 0
        %7493 = vmatpush1.bf16.msra.mxu0 0
        %7494 = vmatprep.subr.bf16.mxu0 0
        %7495 = vmatpush1.bf16.msra.mxu0 0
        %7496 = vmatprep.subr.bf16.mxu0 0
        %7497 = vmatpush1.bf16.msra.mxu0 0
        %7498 = vmatprep.subr.bf16.mxu0 0
        %7499 = vmatpush1.bf16.msra.mxu0 0
        %7500 = vmatprep.subr.bf16.mxu0 0
        %7501 = vmatpush1.bf16.msra.mxu0 0
        %7502 = vmatprep.subr.bf16.mxu0 0
        %7503 = vmatpush1.bf16.msra.mxu0 0
        %7504 = vmatprep.subr.bf16.mxu0 0
        %7505 = vmatpush1.bf16.msra.mxu0 0
        %7506 = vmatprep.mubr.bf16.mxu0 0
        %7507 = vmatmul.mubr.bf16.gmra.mrb[0].mxu0 %v7472
        %v7508 = vpop.f32.mrb[0].mxu0
        %v7509 = vadd.f32 0.0, %v7508
        %v7510 = vpop.f32.mrb[0].mxu0
        %v7511 = vpop.f32.mrb[0].mxu0
        %v7512 = vpop.f32.mrb[0].mxu0
        %7513 = vdwg.mxu0
        %v7514 = vadd.f32 %v7458, %v7509
        %v7515 = vld [vmem:[#allocation3 + $0x30] sm:$0x20]
        %s7516 = scalar_lea.vmem %s5, 184
        %v7517 = vld [vmem:[%s7516] sm:$0xf]
        %v7518 = vld [vmem:[%s7516 + $0x4] sm:$0xf]
        %v7520 = vrot.slane %v7515, 5
        %v7523 = vunpack.c.l.b16 %v7517
        %v7524 = vunpack.c.l.b16 %v7518
        %v7525 = vpack.c.b16 %v7524, %v7523
        %v7528 = vsel %vm6222, %v7520, 0
        %7530 = vmatprep.subr.bf16.mxu0 0
        %7531 = vmatpush1.bf16.msra.mxu0 %v7525
        %7532 = vmatprep.subr.bf16.mxu0 0
        %7533 = vmatpush1.bf16.msra.mxu0 0
        %7534 = vmatprep.subr.bf16.mxu0 0
        %7535 = vmatpush1.bf16.msra.mxu0 0
        %7536 = vmatprep.subr.bf16.mxu0 0
        %7537 = vmatpush1.bf16.msra.mxu0 0
        %7538 = vmatprep.subr.bf16.mxu0 0
        %7539 = vmatpush1.bf16.msra.mxu0 0
        %7540 = vmatprep.subr.bf16.mxu0 0
        %7541 = vmatpush1.bf16.msra.mxu0 0
        %7542 = vmatprep.subr.bf16.mxu0 0
        %7543 = vmatpush1.bf16.msra.mxu0 0
        %7544 = vmatprep.subr.bf16.mxu0 0
        %7545 = vmatpush1.bf16.msra.mxu0 0
        %7546 = vmatprep.subr.bf16.mxu0 0
        %7547 = vmatpush1.bf16.msra.mxu0 0
        %7548 = vmatprep.subr.bf16.mxu0 0
        %7549 = vmatpush1.bf16.msra.mxu0 0
        %7550 = vmatprep.subr.bf16.mxu0 0
        %7551 = vmatpush1.bf16.msra.mxu0 0
        %7552 = vmatprep.subr.bf16.mxu0 0
        %7553 = vmatpush1.bf16.msra.mxu0 0
        %7554 = vmatprep.subr.bf16.mxu0 0
        %7555 = vmatpush1.bf16.msra.mxu0 0
        %7556 = vmatprep.subr.bf16.mxu0 0
        %7557 = vmatpush1.bf16.msra.mxu0 0
        %7558 = vmatprep.subr.bf16.mxu0 0
        %7559 = vmatpush1.bf16.msra.mxu0 0
        %7560 = vmatprep.subr.bf16.mxu0 0
        %7561 = vmatpush1.bf16.msra.mxu0 0
        %7562 = vmatprep.mubr.bf16.mxu0 0
        %7563 = vmatmul.mubr.bf16.gmra.mrb[0].mxu0 %v7528
        %v7564 = vpop.f32.mrb[0].mxu0
        %v7565 = vadd.f32 0.0, %v7564
        %v7566 = vpop.f32.mrb[0].mxu0
        %v7567 = vpop.f32.mrb[0].mxu0
        %v7568 = vpop.f32.mrb[0].mxu0
        %7569 = vdwg.mxu0
        %v7570 = vadd.f32 %v7514, %v7565
        %v7571 = vld [vmem:[#allocation3 + $0x40] sm:$0x1]
        %s7572 = scalar_lea.vmem %s5, 192
        %v7573 = vld [vmem:[%s7572] sm:$0xf]
        %v7574 = vld [vmem:[%s7572 + $0x4] sm:$0xf]
        %v7577 = vunpack.c.l.b16 %v7573
        %v7578 = vunpack.c.l.b16 %v7574
        %v7579 = vpack.c.b16 %v7578, %v7577
        %v7582 = vsel %vm6222, %v7571, 0
        %7584 = vmatprep.subr.bf16.mxu0 0
        %7585 = vmatpush1.bf16.msra.mxu0 %v7579
        %7586 = vmatprep.subr.bf16.mxu0 0
        %7587 = vmatpush1.bf16.msra.mxu0 0
        %7588 = vmatprep.subr.bf16.mxu0 0
        %7589 = vmatpush1.bf16.msra.mxu0 0
        %7590 = vmatprep.subr.bf16.mxu0 0
        %7591 = vmatpush1.bf16.msra.mxu0 0
        %7592 = vmatprep.subr.bf16.mxu0 0
        %7593 = vmatpush1.bf16.msra.mxu0 0
        %7594 = vmatprep.subr.bf16.mxu0 0
        %7595 = vmatpush1.bf16.msra.mxu0 0
        %7596 = vmatprep.subr.bf16.mxu0 0
        %7597 = vmatpush1.bf16.msra.mxu0 0
        %7598 = vmatprep.subr.bf16.mxu0 0
        %7599 = vmatpush1.bf16.msra.mxu0 0
        %7600 = vmatprep.subr.bf16.mxu0 0
        %7601 = vmatpush1.bf16.msra.mxu0 0
        %7602 = vmatprep.subr.bf16.mxu0 0
        %7603 = vmatpush1.bf16.msra.mxu0 0
        %7604 = vmatprep.subr.bf16.mxu0 0
        %7605 = vmatpush1.bf16.msra.mxu0 0
        %7606 = vmatprep.subr.bf16.mxu0 0
        %7607 = vmatpush1.bf16.msra.mxu0 0
        %7608 = vmatprep.subr.bf16.mxu0 0
        %7609 = vmatpush1.bf16.msra.mxu0 0
        %7610 = vmatprep.subr.bf16.mxu0 0
        %7611 = vmatpush1.bf16.msra.mxu0 0
        %7612 = vmatprep.subr.bf16.mxu0 0
        %7613 = vmatpush1.bf16.msra.mxu0 0
        %7614 = vmatprep.subr.bf16.mxu0 0
        %7615 = vmatpush1.bf16.msra.mxu0 0
        %7616 = vmatprep.mubr.bf16.mxu0 0
        %7617 = vmatmul.mubr.bf16.gmra.mrb[0].mxu0 %v7582
        %v7618 = vpop.f32.mrb[0].mxu0
        %v7619 = vadd.f32 0.0, %v7618
        %v7620 = vpop.f32.mrb[0].mxu0
        %v7621 = vpop.f32.mrb[0].mxu0
        %v7622 = vpop.f32.mrb[0].mxu0
        %7623 = vdwg.mxu0
        %v7624 = vadd.f32 %v7570, %v7619
        %v7625 = vld [vmem:[#allocation3 + $0x40] sm:$0x2]
        %s7626 = scalar_lea.vmem %s5, 200
        %v7627 = vld [vmem:[%s7626] sm:$0xf]
        %v7628 = vld [vmem:[%s7626 + $0x4] sm:$0xf]
        %v7630 = vrot.slane %v7625, 1
        %v7633 = vunpack.c.l.b16 %v7627
        %v7634 = vunpack.c.l.b16 %v7628
        %v7635 = vpack.c.b16 %v7634, %v7633
        %v7638 = vsel %vm6222, %v7630, 0
        %7640 = vmatprep.subr.bf16.mxu0 0
        %7641 = vmatpush1.bf16.msra.mxu0 %v7635
        %7642 = vmatprep.subr.bf16.mxu0 0
        %7643 = vmatpush1.bf16.msra.mxu0 0
        %7644 = vmatprep.subr.bf16.mxu0 0
        %7645 = vmatpush1.bf16.msra.mxu0 0
        %7646 = vmatprep.subr.bf16.mxu0 0
        %7647 = vmatpush1.bf16.msra.mxu0 0
        %7648 = vmatprep.subr.bf16.mxu0 0
        %7649 = vmatpush1.bf16.msra.mxu0 0
        %7650 = vmatprep.subr.bf16.mxu0 0
        %7651 = vmatpush1.bf16.msra.mxu0 0
        %7652 = vmatprep.subr.bf16.mxu0 0
        %7653 = vmatpush1.bf16.msra.mxu0 0
        %7654 = vmatprep.subr.bf16.mxu0 0
        %7655 = vmatpush1.bf16.msra.mxu0 0
        %7656 = vmatprep.subr.bf16.mxu0 0
        %7657 = vmatpush1.bf16.msra.mxu0 0
        %7658 = vmatprep.subr.bf16.mxu0 0
        %7659 = vmatpush1.bf16.msra.mxu0 0
        %7660 = vmatprep.subr.bf16.mxu0 0
        %7661 = vmatpush1.bf16.msra.mxu0 0
        %7662 = vmatprep.subr.bf16.mxu0 0
        %7663 = vmatpush1.bf16.msra.mxu0 0
        %7664 = vmatprep.subr.bf16.mxu0 0
        %7665 = vmatpush1.bf16.msra.mxu0 0
        %7666 = vmatprep.subr.bf16.mxu0 0
        %7667 = vmatpush1.bf16.msra.mxu0 0
        %7668 = vmatprep.subr.bf16.mxu0 0
        %7669 = vmatpush1.bf16.msra.mxu0 0
        %7670 = vmatprep.subr.bf16.mxu0 0
        %7671 = vmatpush1.bf16.msra.mxu0 0
        %7672 = vmatprep.mubr.bf16.mxu0 0
        %7673 = vmatmul.mubr.bf16.gmra.mrb[0].mxu0 %v7638
        %v7674 = vpop.f32.mrb[0].mxu0
        %v7675 = vadd.f32 0.0, %v7674
        %v7676 = vpop.f32.mrb[0].mxu0
        %v7677 = vpop.f32.mrb[0].mxu0
        %v7678 = vpop.f32.mrb[0].mxu0
        %7679 = vdwg.mxu0
        %v7680 = vadd.f32 %v7624, %v7675
        %v7681 = vld [vmem:[#allocation3 + $0x40] sm:$0x4]
        %s7682 = scalar_lea.vmem %s5, 208
        %v7683 = vld [vmem:[%s7682] sm:$0xf]
        %v7684 = vld [vmem:[%s7682 + $0x4] sm:$0xf]
        %v7686 = vrot.slane %v7681, 2
        %v7689 = vunpack.c.l.b16 %v7683
        %v7690 = vunpack.c.l.b16 %v7684
        %v7691 = vpack.c.b16 %v7690, %v7689
        %v7694 = vsel %vm6222, %v7686, 0
        %7696 = vmatprep.subr.bf16.mxu0 0
        %7697 = vmatpush1.bf16.msra.mxu0 %v7691
        %7698 = vmatprep.subr.bf16.mxu0 0
        %7699 = vmatpush1.bf16.msra.mxu0 0
        %7700 = vmatprep.subr.bf16.mxu0 0
        %7701 = vmatpush1.bf16.msra.mxu0 0
        %7702 = vmatprep.subr.bf16.mxu0 0
        %7703 = vmatpush1.bf16.msra.mxu0 0
        %7704 = vmatprep.subr.bf16.mxu0 0
        %7705 = vmatpush1.bf16.msra.mxu0 0
        %7706 = vmatprep.subr.bf16.mxu0 0
        %7707 = vmatpush1.bf16.msra.mxu0 0
        %7708 = vmatprep.subr.bf16.mxu0 0
        %7709 = vmatpush1.bf16.msra.mxu0 0
        %7710 = vmatprep.subr.bf16.mxu0 0
        %7711 = vmatpush1.bf16.msra.mxu0 0
        %7712 = vmatprep.subr.bf16.mxu0 0
        %7713 = vmatpush1.bf16.msra.mxu0 0
        %7714 = vmatprep.subr.bf16.mxu0 0
        %7715 = vmatpush1.bf16.msra.mxu0 0
        %7716 = vmatprep.subr.bf16.mxu0 0
        %7717 = vmatpush1.bf16.msra.mxu0 0
        %7718 = vmatprep.subr.bf16.mxu0 0
        %7719 = vmatpush1.bf16.msra.mxu0 0
        %7720 = vmatprep.subr.bf16.mxu0 0
        %7721 = vmatpush1.bf16.msra.mxu0 0
        %7722 = vmatprep.subr.bf16.mxu0 0
        %7723 = vmatpush1.bf16.msra.mxu0 0
        %7724 = vmatprep.subr.bf16.mxu0 0
        %7725 = vmatpush1.bf16.msra.mxu0 0
        %7726 = vmatprep.subr.bf16.mxu0 0
        %7727 = vmatpush1.bf16.msra.mxu0 0
        %7728 = vmatprep.mubr.bf16.mxu0 0
        %7729 = vmatmul.mubr.bf16.gmra.mrb[0].mxu0 %v7694
        %v7730 = vpop.f32.mrb[0].mxu0
        %v7731 = vadd.f32 0.0, %v7730
        %v7732 = vpop.f32.mrb[0].mxu0
        %v7733 = vpop.f32.mrb[0].mxu0
        %v7734 = vpop.f32.mrb[0].mxu0
        %7735 = vdwg.mxu0
        %v7736 = vadd.f32 %v7680, %v7731
        %v7737 = vld [vmem:[#allocation3 + $0x40] sm:$0x8]
        %s7738 = scalar_lea.vmem %s5, 216
        %v7739 = vld [vmem:[%s7738] sm:$0xf]
        %v7740 = vld [vmem:[%s7738 + $0x4] sm:$0xf]
        %v7742 = vrot.slane %v7737, 3
        %v7745 = vunpack.c.l.b16 %v7739
        %v7746 = vunpack.c.l.b16 %v7740
        %v7747 = vpack.c.b16 %v7746, %v7745
        %v7750 = vsel %vm6222, %v7742, 0
        %7752 = vmatprep.subr.bf16.mxu0 0
        %7753 = vmatpush1.bf16.msra.mxu0 %v7747
        %7754 = vmatprep.subr.bf16.mxu0 0
        %7755 = vmatpush1.bf16.msra.mxu0 0
        %7756 = vmatprep.subr.bf16.mxu0 0
        %7757 = vmatpush1.bf16.msra.mxu0 0
        %7758 = vmatprep.subr.bf16.mxu0 0
        %7759 = vmatpush1.bf16.msra.mxu0 0
        %7760 = vmatprep.subr.bf16.mxu0 0
        %7761 = vmatpush1.bf16.msra.mxu0 0
        %7762 = vmatprep.subr.bf16.mxu0 0
        %7763 = vmatpush1.bf16.msra.mxu0 0
        %7764 = vmatprep.subr.bf16.mxu0 0
        %7765 = vmatpush1.bf16.msra.mxu0 0
        %7766 = vmatprep.subr.bf16.mxu0 0
        %7767 = vmatpush1.bf16.msra.mxu0 0
        %7768 = vmatprep.subr.bf16.mxu0 0
        %7769 = vmatpush1.bf16.msra.mxu0 0
        %7770 = vmatprep.subr.bf16.mxu0 0
        %7771 = vmatpush1.bf16.msra.mxu0 0
        %7772 = vmatprep.subr.bf16.mxu0 0
        %7773 = vmatpush1.bf16.msra.mxu0 0
        %7774 = vmatprep.subr.bf16.mxu0 0
        %7775 = vmatpush1.bf16.msra.mxu0 0
        %7776 = vmatprep.subr.bf16.mxu0 0
        %7777 = vmatpush1.bf16.msra.mxu0 0
        %7778 = vmatprep.subr.bf16.mxu0 0
        %7779 = vmatpush1.bf16.msra.mxu0 0
        %7780 = vmatprep.subr.bf16.mxu0 0
        %7781 = vmatpush1.bf16.msra.mxu0 0
        %7782 = vmatprep.subr.bf16.mxu0 0
        %7783 = vmatpush1.bf16.msra.mxu0 0
        %7784 = vmatprep.mubr.bf16.mxu0 0
        %7785 = vmatmul.mubr.bf16.gmra.mrb[0].mxu0 %v7750
        %v7786 = vpop.f32.mrb[0].mxu0
        %v7787 = vadd.f32 0.0, %v7786
        %v7788 = vpop.f32.mrb[0].mxu0
        %v7789 = vpop.f32.mrb[0].mxu0
        %v7790 = vpop.f32.mrb[0].mxu0
        %7791 = vdwg.mxu0
        %v7792 = vadd.f32 %v7736, %v7787
        %v7793 = vld [vmem:[#allocation3 + $0x40] sm:$0x10]
        %s7794 = scalar_lea.vmem %s5, 224
        %v7795 = vld [vmem:[%s7794] sm:$0xf]
        %v7796 = vld [vmem:[%s7794 + $0x4] sm:$0xf]
        %v7798 = vrot.slane %v7793, 4
        %v7801 = vunpack.c.l.b16 %v7795
        %v7802 = vunpack.c.l.b16 %v7796
        %v7803 = vpack.c.b16 %v7802, %v7801
        %v7806 = vsel %vm6222, %v7798, 0
        %7808 = vmatprep.subr.bf16.mxu0 0
        %7809 = vmatpush1.bf16.msra.mxu0 %v7803
        %7810 = vmatprep.subr.bf16.mxu0 0
        %7811 = vmatpush1.bf16.msra.mxu0 0
        %7812 = vmatprep.subr.bf16.mxu0 0
        %7813 = vmatpush1.bf16.msra.mxu0 0
        %7814 = vmatprep.subr.bf16.mxu0 0
        %7815 = vmatpush1.bf16.msra.mxu0 0
        %7816 = vmatprep.subr.bf16.mxu0 0
        %7817 = vmatpush1.bf16.msra.mxu0 0
        %7818 = vmatprep.subr.bf16.mxu0 0
        %7819 = vmatpush1.bf16.msra.mxu0 0
        %7820 = vmatprep.subr.bf16.mxu0 0
        %7821 = vmatpush1.bf16.msra.mxu0 0
        %7822 = vmatprep.subr.bf16.mxu0 0
        %7823 = vmatpush1.bf16.msra.mxu0 0
        %7824 = vmatprep.subr.bf16.mxu0 0
        %7825 = vmatpush1.bf16.msra.mxu0 0
        %7826 = vmatprep.subr.bf16.mxu0 0
        %7827 = vmatpush1.bf16.msra.mxu0 0
        %7828 = vmatprep.subr.bf16.mxu0 0
        %7829 = vmatpush1.bf16.msra.mxu0 0
        %7830 = vmatprep.subr.bf16.mxu0 0
        %7831 = vmatpush1.bf16.msra.mxu0 0
        %7832 = vmatprep.subr.bf16.mxu0 0
        %7833 = vmatpush1.bf16.msra.mxu0 0
        %7834 = vmatprep.subr.bf16.mxu0 0
        %7835 = vmatpush1.bf16.msra.mxu0 0
        %7836 = vmatprep.subr.bf16.mxu0 0
        %7837 = vmatpush1.bf16.msra.mxu0 0
        %7838 = vmatprep.subr.bf16.mxu0 0
        %7839 = vmatpush1.bf16.msra.mxu0 0
        %7840 = vmatprep.mubr.bf16.mxu0 0
        %7841 = vmatmul.mubr.bf16.gmra.mrb[0].mxu0 %v7806
        %v7842 = vpop.f32.mrb[0].mxu0
        %v7843 = vadd.f32 0.0, %v7842
        %v7844 = vpop.f32.mrb[0].mxu0
        %v7845 = vpop.f32.mrb[0].mxu0
        %v7846 = vpop.f32.mrb[0].mxu0
        %7847 = vdwg.mxu0
        %v7848 = vadd.f32 %v7792, %v7843
        %v7849 = vld [vmem:[#allocation3 + $0x40] sm:$0x20]
        %s7850 = scalar_lea.vmem %s5, 232
        %v7851 = vld [vmem:[%s7850] sm:$0xf]
        %v7852 = vld [vmem:[%s7850 + $0x4] sm:$0xf]
        %v7854 = vrot.slane %v7849, 5
        %v7857 = vunpack.c.l.b16 %v7851
        %v7858 = vunpack.c.l.b16 %v7852
        %v7859 = vpack.c.b16 %v7858, %v7857
        %v7862 = vsel %vm6222, %v7854, 0
        %7864 = vmatprep.subr.bf16.mxu0 0
        %7865 = vmatpush1.bf16.msra.mxu0 %v7859
        %7866 = vmatprep.subr.bf16.mxu0 0
        %7867 = vmatpush1.bf16.msra.mxu0 0
        %7868 = vmatprep.subr.bf16.mxu0 0
        %7869 = vmatpush1.bf16.msra.mxu0 0
        %7870 = vmatprep.subr.bf16.mxu0 0
        %7871 = vmatpush1.bf16.msra.mxu0 0
        %7872 = vmatprep.subr.bf16.mxu0 0
        %7873 = vmatpush1.bf16.msra.mxu0 0
        %7874 = vmatprep.subr.bf16.mxu0 0
        %7875 = vmatpush1.bf16.msra.mxu0 0
        %7876 = vmatprep.subr.bf16.mxu0 0
        %7877 = vmatpush1.bf16.msra.mxu0 0
        %7878 = vmatprep.subr.bf16.mxu0 0
        %7879 = vmatpush1.bf16.msra.mxu0 0
        %7880 = vmatprep.subr.bf16.mxu0 0
        %7881 = vmatpush1.bf16.msra.mxu0 0
        %7882 = vmatprep.subr.bf16.mxu0 0
        %7883 = vmatpush1.bf16.msra.mxu0 0
        %7884 = vmatprep.subr.bf16.mxu0 0
        %7885 = vmatpush1.bf16.msra.mxu0 0
        %7886 = vmatprep.subr.bf16.mxu0 0
        %7887 = vmatpush1.bf16.msra.mxu0 0
        %7888 = vmatprep.subr.bf16.mxu0 0
        %7889 = vmatpush1.bf16.msra.mxu0 0
        %7890 = vmatprep.subr.bf16.mxu0 0
        %7891 = vmatpush1.bf16.msra.mxu0 0
        %7892 = vmatprep.subr.bf16.mxu0 0
        %7893 = vmatpush1.bf16.msra.mxu0 0
        %7894 = vmatprep.subr.bf16.mxu0 0
        %7895 = vmatpush1.bf16.msra.mxu0 0
        %7896 = vmatprep.mubr.bf16.mxu0 0
        %7897 = vmatmul.mubr.bf16.gmra.mrb[0].mxu0 %v7862
        %v7898 = vpop.f32.mrb[0].mxu0
        %v7899 = vadd.f32 0.0, %v7898
        %v7900 = vpop.f32.mrb[0].mxu0
        %v7901 = vpop.f32.mrb[0].mxu0
        %v7902 = vpop.f32.mrb[0].mxu0
        %7903 = vdwg.mxu0
        %v7904 = vadd.f32 %v7848, %v7899
        %v7905 = vld [vmem:[#allocation3 + $0x50] sm:$0x1]
        %s7906 = scalar_lea.vmem %s5, 240
        %v7907 = vld [vmem:[%s7906] sm:$0xf]
        %v7908 = vld [vmem:[%s7906 + $0x4] sm:$0xf]
        %v7911 = vunpack.c.l.b16 %v7907
        %v7912 = vunpack.c.l.b16 %v7908
        %v7913 = vpack.c.b16 %v7912, %v7911
        %v7916 = vsel %vm6222, %v7905, 0
        %7918 = vmatprep.subr.bf16.mxu0 0
        %7919 = vmatpush1.bf16.msra.mxu0 %v7913
        %7920 = vmatprep.subr.bf16.mxu0 0
        %7921 = vmatpush1.bf16.msra.mxu0 0
        %7922 = vmatprep.subr.bf16.mxu0 0
        %7923 = vmatpush1.bf16.msra.mxu0 0
        %7924 = vmatprep.subr.bf16.mxu0 0
        %7925 = vmatpush1.bf16.msra.mxu0 0
        %7926 = vmatprep.subr.bf16.mxu0 0
        %7927 = vmatpush1.bf16.msra.mxu0 0
        %7928 = vmatprep.subr.bf16.mxu0 0
        %7929 = vmatpush1.bf16.msra.mxu0 0
        %7930 = vmatprep.subr.bf16.mxu0 0
        %7931 = vmatpush1.bf16.msra.mxu0 0
        %7932 = vmatprep.subr.bf16.mxu0 0
        %7933 = vmatpush1.bf16.msra.mxu0 0
        %7934 = vmatprep.subr.bf16.mxu0 0
        %7935 = vmatpush1.bf16.msra.mxu0 0
        %7936 = vmatprep.subr.bf16.mxu0 0
        %7937 = vmatpush1.bf16.msra.mxu0 0
        %7938 = vmatprep.subr.bf16.mxu0 0
        %7939 = vmatpush1.bf16.msra.mxu0 0
        %7940 = vmatprep.subr.bf16.mxu0 0
        %7941 = vmatpush1.bf16.msra.mxu0 0
        %7942 = vmatprep.subr.bf16.mxu0 0
        %7943 = vmatpush1.bf16.msra.mxu0 0
        %7944 = vmatprep.subr.bf16.mxu0 0
        %7945 = vmatpush1.bf16.msra.mxu0 0
        %7946 = vmatprep.subr.bf16.mxu0 0
        %7947 = vmatpush1.bf16.msra.mxu0 0
        %7948 = vmatprep.subr.bf16.mxu0 0
        %7949 = vmatpush1.bf16.msra.mxu0 0
        %7950 = vmatprep.mubr.bf16.mxu0 0
        %7951 = vmatmul.mubr.bf16.gmra.mrb[0].mxu0 %v7916
        %v7952 = vpop.f32.mrb[0].mxu0
        %v7953 = vadd.f32 0.0, %v7952
        %v7954 = vpop.f32.mrb[0].mxu0
        %v7955 = vpop.f32.mrb[0].mxu0
        %v7956 = vpop.f32.mrb[0].mxu0
        %7957 = vdwg.mxu0
        %v7958 = vadd.f32 %v7904, %v7953
        %v7959 = vld [vmem:[#allocation3 + $0x50] sm:$0x2]
        %s7960 = scalar_lea.vmem %s5, 248
        %v7961 = vld [vmem:[%s7960] sm:$0xf]
        %v7962 = vld [vmem:[%s7960 + $0x4] sm:$0xf]
        %v7964 = vrot.slane %v7959, 1
        %v7967 = vunpack.c.l.b16 %v7961
        %v7968 = vunpack.c.l.b16 %v7962
        %v7969 = vpack.c.b16 %v7968, %v7967
        %v7972 = vsel %vm6222, %v7964, 0
        %7974 = vmatprep.subr.bf16.mxu0 0
        %7975 = vmatpush1.bf16.msra.mxu0 %v7969
        %7976 = vmatprep.subr.bf16.mxu0 0
        %7977 = vmatpush1.bf16.msra.mxu0 0
        %7978 = vmatprep.subr.bf16.mxu0 0
        %7979 = vmatpush1.bf16.msra.mxu0 0
        %7980 = vmatprep.subr.bf16.mxu0 0
        %7981 = vmatpush1.bf16.msra.mxu0 0
        %7982 = vmatprep.subr.bf16.mxu0 0
        %7983 = vmatpush1.bf16.msra.mxu0 0
        %7984 = vmatprep.subr.bf16.mxu0 0
        %7985 = vmatpush1.bf16.msra.mxu0 0
        %7986 = vmatprep.subr.bf16.mxu0 0
        %7987 = vmatpush1.bf16.msra.mxu0 0
        %7988 = vmatprep.subr.bf16.mxu0 0
        %7989 = vmatpush1.bf16.msra.mxu0 0
        %7990 = vmatprep.subr.bf16.mxu0 0
        %7991 = vmatpush1.bf16.msra.mxu0 0
        %7992 = vmatprep.subr.bf16.mxu0 0
        %7993 = vmatpush1.bf16.msra.mxu0 0
        %7994 = vmatprep.subr.bf16.mxu0 0
        %7995 = vmatpush1.bf16.msra.mxu0 0
        %7996 = vmatprep.subr.bf16.mxu0 0
        %7997 = vmatpush1.bf16.msra.mxu0 0
        %7998 = vmatprep.subr.bf16.mxu0 0
        %7999 = vmatpush1.bf16.msra.mxu0 0
        %8000 = vmatprep.subr.bf16.mxu0 0
        %8001 = vmatpush1.bf16.msra.mxu0 0
        %8002 = vmatprep.subr.bf16.mxu0 0
        %8003 = vmatpush1.bf16.msra.mxu0 0
        %8004 = vmatprep.subr.bf16.mxu0 0
        %8005 = vmatpush1.bf16.msra.mxu0 0
        %8006 = vmatprep.mubr.bf16.mxu0 0
        %8007 = vmatmul.mubr.bf16.gmra.mrb[0].mxu0 %v7972
        %v8008 = vpop.f32.mrb[0].mxu0
        %v8009 = vadd.f32 0.0, %v8008
        %v8010 = vpop.f32.mrb[0].mxu0
        %v8011 = vpop.f32.mrb[0].mxu0
        %v8012 = vpop.f32.mrb[0].mxu0
        %8013 = vdwg.mxu0
        %v8014 = vadd.f32 %v7958, %v8009
        %v8015 = vld [vmem:[#allocation3 + $0x50] sm:$0x4]
        %s8016 = scalar_lea.vmem %s5, 256
        %v8017 = vld [vmem:[%s8016] sm:$0xf]
        %v8018 = vld [vmem:[%s8016 + $0x4] sm:$0xf]
        %v8020 = vrot.slane %v8015, 2
        %v8023 = vunpack.c.l.b16 %v8017
        %v8024 = vunpack.c.l.b16 %v8018
        %v8025 = vpack.c.b16 %v8024, %v8023
        %v8028 = vsel %vm6222, %v8020, 0
        %8030 = vmatprep.subr.bf16.mxu0 0
        %8031 = vmatpush1.bf16.msra.mxu0 %v8025
        %8032 = vmatprep.subr.bf16.mxu0 0
        %8033 = vmatpush1.bf16.msra.mxu0 0
        %8034 = vmatprep.subr.bf16.mxu0 0
        %8035 = vmatpush1.bf16.msra.mxu0 0
        %8036 = vmatprep.subr.bf16.mxu0 0
        %8037 = vmatpush1.bf16.msra.mxu0 0
        %8038 = vmatprep.subr.bf16.mxu0 0
        %8039 = vmatpush1.bf16.msra.mxu0 0
        %8040 = vmatprep.subr.bf16.mxu0 0
        %8041 = vmatpush1.bf16.msra.mxu0 0
        %8042 = vmatprep.subr.bf16.mxu0 0
        %8043 = vmatpush1.bf16.msra.mxu0 0
        %8044 = vmatprep.subr.bf16.mxu0 0
        %8045 = vmatpush1.bf16.msra.mxu0 0
        %8046 = vmatprep.subr.bf16.mxu0 0
        %8047 = vmatpush1.bf16.msra.mxu0 0
        %8048 = vmatprep.subr.bf16.mxu0 0
        %8049 = vmatpush1.bf16.msra.mxu0 0
        %8050 = vmatprep.subr.bf16.mxu0 0
        %8051 = vmatpush1.bf16.msra.mxu0 0
        %8052 = vmatprep.subr.bf16.mxu0 0
        %8053 = vmatpush1.bf16.msra.mxu0 0
        %8054 = vmatprep.subr.bf16.mxu0 0
        %8055 = vmatpush1.bf16.msra.mxu0 0
        %8056 = vmatprep.subr.bf16.mxu0 0
        %8057 = vmatpush1.bf16.msra.mxu0 0
        %8058 = vmatprep.subr.bf16.mxu0 0
        %8059 = vmatpush1.bf16.msra.mxu0 0
        %8060 = vmatprep.subr.bf16.mxu0 0
        %8061 = vmatpush1.bf16.msra.mxu0 0
        %8062 = vmatprep.mubr.bf16.mxu0 0
        %8063 = vmatmul.mubr.bf16.gmra.mrb[0].mxu0 %v8028
        %v8064 = vpop.f32.mrb[0].mxu0
        %v8065 = vadd.f32 0.0, %v8064
        %v8066 = vpop.f32.mrb[0].mxu0
        %v8067 = vpop.f32.mrb[0].mxu0
        %v8068 = vpop.f32.mrb[0].mxu0
        %8069 = vdwg.mxu0
        %v8070 = vadd.f32 %v8014, %v8065
        %v8071 = vld [vmem:[#allocation3 + $0x50] sm:$0x8]
        %s8072 = scalar_lea.vmem %s5, 264
        %v8073 = vld [vmem:[%s8072] sm:$0xf]
        %v8074 = vld [vmem:[%s8072 + $0x4] sm:$0xf]
        %v8076 = vrot.slane %v8071, 3
        %v8079 = vunpack.c.l.b16 %v8073
        %v8080 = vunpack.c.l.b16 %v8074
        %v8081 = vpack.c.b16 %v8080, %v8079
        %v8084 = vsel %vm6222, %v8076, 0
        %8086 = vmatprep.subr.bf16.mxu0 0
        %8087 = vmatpush1.bf16.msra.mxu0 %v8081
        %8088 = vmatprep.subr.bf16.mxu0 0
        %8089 = vmatpush1.bf16.msra.mxu0 0
        %8090 = vmatprep.subr.bf16.mxu0 0
        %8091 = vmatpush1.bf16.msra.mxu0 0
        %8092 = vmatprep.subr.bf16.mxu0 0
        %8093 = vmatpush1.bf16.msra.mxu0 0
        %8094 = vmatprep.subr.bf16.mxu0 0
        %8095 = vmatpush1.bf16.msra.mxu0 0
        %8096 = vmatprep.subr.bf16.mxu0 0
        %8097 = vmatpush1.bf16.msra.mxu0 0
        %8098 = vmatprep.subr.bf16.mxu0 0
        %8099 = vmatpush1.bf16.msra.mxu0 0
        %8100 = vmatprep.subr.bf16.mxu0 0
        %8101 = vmatpush1.bf16.msra.mxu0 0
        %8102 = vmatprep.subr.bf16.mxu0 0
        %8103 = vmatpush1.bf16.msra.mxu0 0
        %8104 = vmatprep.subr.bf16.mxu0 0
        %8105 = vmatpush1.bf16.msra.mxu0 0
        %8106 = vmatprep.subr.bf16.mxu0 0
        %8107 = vmatpush1.bf16.msra.mxu0 0
        %8108 = vmatprep.subr.bf16.mxu0 0
        %8109 = vmatpush1.bf16.msra.mxu0 0
        %8110 = vmatprep.subr.bf16.mxu0 0
        %8111 = vmatpush1.bf16.msra.mxu0 0
        %8112 = vmatprep.subr.bf16.mxu0 0
        %8113 = vmatpush1.bf16.msra.mxu0 0
        %8114 = vmatprep.subr.bf16.mxu0 0
        %8115 = vmatpush1.bf16.msra.mxu0 0
        %8116 = vmatprep.subr.bf16.mxu0 0
        %8117 = vmatpush1.bf16.msra.mxu0 0
        %8118 = vmatprep.mubr.bf16.mxu0 0
        %8119 = vmatmul.mubr.bf16.gmra.mrb[0].mxu0 %v8084
        %v8120 = vpop.f32.mrb[0].mxu0
        %v8121 = vadd.f32 0.0, %v8120
        %v8122 = vpop.f32.mrb[0].mxu0
        %v8123 = vpop.f32.mrb[0].mxu0
        %v8124 = vpop.f32.mrb[0].mxu0
        %8125 = vdwg.mxu0
        %v8126 = vadd.f32 %v8070, %v8121
        %v8127 = vld [vmem:[#allocation3 + $0x50] sm:$0x10]
        %s8128 = scalar_lea.vmem %s5, 272
        %v8129 = vld [vmem:[%s8128] sm:$0xf]
        %v8130 = vld [vmem:[%s8128 + $0x4] sm:$0xf]
        %v8132 = vrot.slane %v8127, 4
        %v8135 = vunpack.c.l.b16 %v8129
        %v8136 = vunpack.c.l.b16 %v8130
        %v8137 = vpack.c.b16 %v8136, %v8135
        %v8140 = vsel %vm6222, %v8132, 0
        %8142 = vmatprep.subr.bf16.mxu0 0
        %8143 = vmatpush1.bf16.msra.mxu0 %v8137
        %8144 = vmatprep.subr.bf16.mxu0 0
        %8145 = vmatpush1.bf16.msra.mxu0 0
        %8146 = vmatprep.subr.bf16.mxu0 0
        %8147 = vmatpush1.bf16.msra.mxu0 0
        %8148 = vmatprep.subr.bf16.mxu0 0
        %8149 = vmatpush1.bf16.msra.mxu0 0
        %8150 = vmatprep.subr.bf16.mxu0 0
        %8151 = vmatpush1.bf16.msra.mxu0 0
        %8152 = vmatprep.subr.bf16.mxu0 0
        %8153 = vmatpush1.bf16.msra.mxu0 0
        %8154 = vmatprep.subr.bf16.mxu0 0
        %8155 = vmatpush1.bf16.msra.mxu0 0
        %8156 = vmatprep.subr.bf16.mxu0 0
        %8157 = vmatpush1.bf16.msra.mxu0 0
        %8158 = vmatprep.subr.bf16.mxu0 0
        %8159 = vmatpush1.bf16.msra.mxu0 0
        %8160 = vmatprep.subr.bf16.mxu0 0
        %8161 = vmatpush1.bf16.msra.mxu0 0
        %8162 = vmatprep.subr.bf16.mxu0 0
        %8163 = vmatpush1.bf16.msra.mxu0 0
        %8164 = vmatprep.subr.bf16.mxu0 0
        %8165 = vmatpush1.bf16.msra.mxu0 0
        %8166 = vmatprep.subr.bf16.mxu0 0
        %8167 = vmatpush1.bf16.msra.mxu0 0
        %8168 = vmatprep.subr.bf16.mxu0 0
        %8169 = vmatpush1.bf16.msra.mxu0 0
        %8170 = vmatprep.subr.bf16.mxu0 0
        %8171 = vmatpush1.bf16.msra.mxu0 0
        %8172 = vmatprep.subr.bf16.mxu0 0
        %8173 = vmatpush1.bf16.msra.mxu0 0
        %8174 = vmatprep.mubr.bf16.mxu0 0
        %8175 = vmatmul.mubr.bf16.gmra.mrb[0].mxu0 %v8140
        %v8176 = vpop.f32.mrb[0].mxu0
        %v8177 = vadd.f32 0.0, %v8176
        %v8178 = vpop.f32.mrb[0].mxu0
        %v8179 = vpop.f32.mrb[0].mxu0
        %v8180 = vpop.f32.mrb[0].mxu0
        %8181 = vdwg.mxu0
        %v8182 = vadd.f32 %v8126, %v8177
        %v8183 = vld [vmem:[#allocation3 + $0x50] sm:$0x20]
        %s8184 = scalar_lea.vmem %s5, 280
        %v8185 = vld [vmem:[%s8184] sm:$0xf]
        %v8186 = vld [vmem:[%s8184 + $0x4] sm:$0xf]
        %v8188 = vrot.slane %v8183, 5
        %v8191 = vunpack.c.l.b16 %v8185
        %v8192 = vunpack.c.l.b16 %v8186
        %v8193 = vpack.c.b16 %v8192, %v8191
        %v8196 = vsel %vm6222, %v8188, 0
        %8198 = vmatprep.subr.bf16.mxu0 0
        %8199 = vmatpush1.bf16.msra.mxu0 %v8193
        %8200 = vmatprep.subr.bf16.mxu0 0
        %8201 = vmatpush1.bf16.msra.mxu0 0
        %8202 = vmatprep.subr.bf16.mxu0 0
        %8203 = vmatpush1.bf16.msra.mxu0 0
        %8204 = vmatprep.subr.bf16.mxu0 0
        %8205 = vmatpush1.bf16.msra.mxu0 0
        %8206 = vmatprep.subr.bf16.mxu0 0
        %8207 = vmatpush1.bf16.msra.mxu0 0
        %8208 = vmatprep.subr.bf16.mxu0 0
        %8209 = vmatpush1.bf16.msra.mxu0 0
        %8210 = vmatprep.subr.bf16.mxu0 0
        %8211 = vmatpush1.bf16.msra.mxu0 0
        %8212 = vmatprep.subr.bf16.mxu0 0
        %8213 = vmatpush1.bf16.msra.mxu0 0
        %8214 = vmatprep.subr.bf16.mxu0 0
        %8215 = vmatpush1.bf16.msra.mxu0 0
        %8216 = vmatprep.subr.bf16.mxu0 0
        %8217 = vmatpush1.bf16.msra.mxu0 0
        %8218 = vmatprep.subr.bf16.mxu0 0
        %8219 = vmatpush1.bf16.msra.mxu0 0
        %8220 = vmatprep.subr.bf16.mxu0 0
        %8221 = vmatpush1.bf16.msra.mxu0 0
        %8222 = vmatprep.subr.bf16.mxu0 0
        %8223 = vmatpush1.bf16.msra.mxu0 0
        %8224 = vmatprep.subr.bf16.mxu0 0
        %8225 = vmatpush1.bf16.msra.mxu0 0
        %8226 = vmatprep.subr.bf16.mxu0 0
        %8227 = vmatpush1.bf16.msra.mxu0 0
        %8228 = vmatprep.subr.bf16.mxu0 0
        %8229 = vmatpush1.bf16.msra.mxu0 0
        %8230 = vmatprep.mubr.bf16.mxu0 0
        %8231 = vmatmul.mubr.bf16.gmra.mrb[0].mxu0 %v8196
        %v8232 = vpop.f32.mrb[0].mxu0
        %v8233 = vadd.f32 0.0, %v8232
        %v8234 = vpop.f32.mrb[0].mxu0
        %v8235 = vpop.f32.mrb[0].mxu0
        %v8236 = vpop.f32.mrb[0].mxu0
        %8237 = vdwg.mxu0
        %v8238 = vadd.f32 %v8182, %v8233
        %vm8239 = vcmask 1040384
        %v8240 = vsel %vm8239, %v8238, -inf
        %8241 = vmax.xlane.f32.xlu0 %v8240
        %v8242 = vpop.xlane.xlu0 %8241
        %v8243 = vsub.f32 %v8238, %v8242
        %v8244 = vmul.f32 %v8243, 1.442695
        %v8245 = vpow.pop %v8244
        %v8246 = vsel %vm8239, %v8245, 0.0
        %8247 = vadd.xlane.f32.xlu0 %v8246
        %v8248 = vpop.xlane.xlu0 %8247
        %v8249 = vrcp.pop %v8248
        %v8250 = vmul.f32 %v8245, %v8249
        %8251 = vst [vmem:[%s270] sm:$0x1] %v8250
        %s8252 = sand.u32 %s181, 1
        %s8253 = scalar_lea.sflag [#allocation5], %s8252
        %s8254 = sand.u32 %s181, 1
        %s8255 = scalar_lea.vmem [#allocation4], %s8254
        // Predicated region
        $region49: #{_lambda_.1} parent=47 // pred_check
          %p8256 = pneg %p191
        $region50: #{_lambda_.1} parent=47 // pred_check_branch
          %8258 = sbr.rel (%p8256) target = $region52
        $region51: #{_lambda_.1} parent=47 // pred_region
          %s8260 = ssub.s32 16, 16
          %8261 = vsyncadd %s8253, %s8260
          %s8262 = smul.addr %s21, 16
          %s8263 = scalar_lea.hbm %s7, %s8262
          %s8265 = sshll.u32 %s8255, 4
          %s8266 = int_to_ptr.vmem [resolvable:$true] %s8265
          %8268 = dma.vmem_to_hbm [thread:$0]  %s8266, 16, %s8263, %s8253
        $region52: #{_lambda_.1} parent=47 // pred_fallthru
          _
      $region48: #{_lambda_.1} parent=5 // pred_fallthru
        _
      %p8269 = scmp.le.s32.totalorder 2, %s16
      // Predicated region
      $region53: #{_lambda_.1} parent=5 // pred_check
        %p8270 = pneg %p8269
      $region54: #{_lambda_.1} parent=5 // pred_check_branch
        %8272 = sbr.rel (%p8270) target = $region56
      $region55: #{_lambda_.1} parent=5 // pred_region
        %s8273 = ssub.s32 %s16, 2
        // Predicated region
        $region57: #{_lambda_.1} parent=55 // pred_check
          %p8274 = pneg %p197
        $region58: #{_lambda_.1} parent=55 // pred_check_branch
          %8276 = sbr.rel (%p8274) target = $region60
        $region59: #{_lambda_.1} parent=55 // pred_region
          %s8277 = sand.u32 %s182, 1
          %s8278 = scalar_lea.sflag [#allocation5], %s8277
          %s8279 = sand.u32 %s182, 1
          %s8280 = scalar_lea.vmem [#allocation4], %s8279
          %8281 = dma.done %s8278, 16
        $region60: #{_lambda_.1} parent=55 // pred_fallthru
          _
      $region56: #{_lambda_.1} parent=5 // pred_fallthru
        _
    $region6: #{_lambda_.1} parent=1 // loop_footer
      %s20 = sadd.s32 1, %s16
    $region7: #{_lambda_.1} parent=1 // loop_footer_branch
      %15 = sbr.rel target = $region3
    $region8: #{_lambda_.1} parent=1 // loop_exit
      _
    %8282 = vsyncpa [#allocation5], 1
    %s8283 = scalar_lea.sflag [#allocation5], 1
    %8284 = vsyncpa %s8283, 1

</llo_original>
